<compile_context>
chip_gen: v6e
topology: v6e:2x2x1
jax: 0.10.0
libtpu: 0.0.40
codegen_flags: <defaults>
</compile_context>

<pallas_src>
import random

import jax
import jax.numpy as jnp
from jax import lax
from jax.experimental import pallas as pl
from jax.experimental.pallas import tpu as pltpu

# ----- model sizes (small, consistent with the module's forward) -----
S = 8            # source sequence length (src.shape[0])
B = 2            # batch size (src.shape[1])
T = 6            # target max_len (trg.shape[0])
SRC_VOCAB = 16
TRG_VOCAB = 12   # decoder.output_dim
E = 16           # embedding dim
HE = 32          # encoder hidden dim
HD = 32          # decoder hidden dim
HA = 32          # attention hidden dim
SOS_IDX = 1


# ---------------------------------------------------------------------------
# Fused kernel: encoder GRU + (T-1) x [attention + decoder GRU + projection]
# ---------------------------------------------------------------------------
def seq2seq_kernel(emb_src_ref, step_mask_ref, mask_sb_ref, trg_ref, tf_ref,
                   enc_wih_ref, enc_whh_ref, enc_bih_ref, enc_bhh_ref,
                   enc_wfc_ref, enc_bfc_ref,
                   dec_emb_ref,
                   attn_wh_ref, attn_we_ref, attn_b_ref, attn_v_ref,
                   dec_wih_e_ref, dec_wih_w_ref, dec_whh_ref,
                   dec_bih_ref, dec_bhh_ref,
                   fc_wh_ref, fc_ww_ref, fc_we_ref, fc_b_ref,
                   outputs_ref, attn_out_ref):
    f32 = jnp.float32
    s_len, b, _ = step_mask_ref.shape
    t_len = trg_ref.shape[0]
    he = enc_whh_ref.shape[0]
    hd = dec_whh_ref.shape[0]
    ha = attn_we_ref.shape[1]
    vocab = dec_emb_ref.shape[0]

    # ---------------- Encoder (packed-sequence GRU, gates r,z,n) ----------------
    # Hoisted input-to-hidden matmul: one MXU call covers all S timesteps.
    gi_all = (jnp.dot(emb_src_ref[...], enc_wih_ref[...],
                      preferred_element_type=f32)
              + enc_bih_ref[...]).reshape(s_len, b, 3 * he)       # (S, B, 3HE)
    whh = enc_whh_ref[...]
    bhh = enc_bhh_ref[...]
    step_mask = step_mask_ref[...]                                # (S, B, 1)

    h = jnp.zeros((b, he), f32)
    enc_rows = []
    for t in range(s_len):                    # fully unrolled serial recurrence
        gi = gi_all[t]                                            # (B, 3HE)
        gh = jnp.dot(h, whh, preferred_element_type=f32) + bhh
        r = jax.nn.sigmoid(gi[:, :he] + gh[:, :he])
        z = jax.nn.sigmoid(gi[:, he:2 * he] + gh[:, he:2 * he])
        n = jnp.tanh(gi[:, 2 * he:] + r * gh[:, 2 * he:])
        h_cand = (1.0 - z) * n + z * h
        m_t = step_mask[t]                                        # (B, 1)
        h = m_t * h_cand + (1.0 - m_t) * h      # freeze hidden past src_len
        enc_rows.append(m_t * h)                # packed outputs: zero at pads
    enc_3d = jnp.stack(enc_rows, axis=0)                          # (S, B, HE)
    enc_flat = enc_3d.reshape(s_len * b, he)                      # (S*B, HE)

    hidden = jnp.tanh(jnp.dot(h, enc_wfc_ref[...], preferred_element_type=f32)
                      + enc_bfc_ref[...])                         # (B, HD)

    # Attention "key" projection of encoder outputs: one matmul, reused T-1 times.
    enc_we3 = (jnp.dot(enc_flat, attn_we_ref[...], preferred_element_type=f32)
               + attn_b_ref[...]).reshape(s_len, b, ha)           # (S, B, HA)

    mask_sb = mask_sb_ref[...]                                    # (S, B)
    trg = trg_ref[...]                                            # (T, B, 1) i32
    tf = tf_ref[...]                                              # (T, B, 1) f32
    dec_emb = dec_emb_ref[...]                                    # (V, E)
    v_row = attn_v_ref[...]                                       # (1, HA)
    vocab_iota = lax.broadcasted_iota(jnp.int32, (b, vocab), 1)   # (B, V)
    vocab_iota_f = vocab_iota.astype(f32)

    # ---------------- Decoder: T-1 fused steps ----------------
    tok = trg[0]                                                  # (B, 1) i32
    logits_list = []
    att_list = []
    for t in range(1, t_len):
        # in-kernel embedding gather via one-hot matmul (12x16 table = 1 tile)
        onehot = (vocab_iota == tok).astype(f32)                  # (B, V)
        emb = jnp.dot(onehot, dec_emb, preferred_element_type=f32)  # (B, E)

        # --- attention (split weights: no [h_rep; enc] concat / broadcast_to) ---
        h_wh = jnp.dot(hidden, attn_wh_ref[...],
                       preferred_element_type=f32)                # (B, HA)
        energy = jnp.tanh(enc_we3 + h_wh[None, :, :])             # (S, B, HA)
        scores = jnp.sum(energy * v_row, axis=2)                  # (S, B)
        scores = jnp.where(mask_sb > 0.0, scores, -1e10)  # masked_fill(mask==0)
        scores = scores - jnp.max(scores, axis=0, keepdims=True)
        e = jnp.exp(scores)
        a_sb = e * pl.reciprocal(jnp.sum(e, axis=0, keepdims=True),
                                 approx=True)                     # (S, B) softmax
        weighted = jnp.sum(a_sb[:, :, None] * enc_3d, axis=0)     # (B, HE)

        # --- decoder GRU cell (input weight split: no [emb; weighted] concat) ---
        gi = (jnp.dot(emb, dec_wih_e_ref[...], preferred_element_type=f32)
              + jnp.dot(weighted, dec_wih_w_ref[...], preferred_element_type=f32)
              + dec_bih_ref[...])                                 # (B, 3HD)
        gh = (jnp.dot(hidden, dec_whh_ref[...], preferred_element_type=f32)
              + dec_bhh_ref[...])
        r = jax.nn.sigmoid(gi[:, :hd] + gh[:, :hd])
        z = jax.nn.sigmoid(gi[:, hd:2 * hd] + gh[:, hd:2 * hd])
        n = jnp.tanh(gi[:, 2 * hd:] + r * gh[:, 2 * hd:])
        hidden = (1.0 - z) * n + z * hidden                       # (B, HD)

        # --- output projection (fc split: no [h; weighted; emb] concat) ---
        logits = (jnp.dot(hidden, fc_wh_ref[...], preferred_element_type=f32)
                  + jnp.dot(weighted, fc_ww_ref[...], preferred_element_type=f32)
                  + jnp.dot(emb, fc_we_ref[...], preferred_element_type=f32)
                  + fc_b_ref[...])                                # (B, V)

        logits_list.append(logits)
        att_list.append(a_sb)

        # --- next input token: precomputed teacher-forcing flag vs argmax ---
        mx = jnp.max(logits, axis=1, keepdims=True)
        top1 = jnp.min(jnp.where(logits == mx, vocab_iota_f, float(vocab)),
                       axis=1, keepdims=True).astype(jnp.int32)   # (B, 1)
        tok = jnp.where(tf[t] > 0.5, trg[t], top1)

    # Single slab stores (row 0 stays zero, as in the reference).
    outputs_ref[...] = jnp.concatenate(
        [jnp.zeros((1, b, vocab), f32), jnp.stack(logits_list, axis=0)], axis=0)
    attn_out_ref[...] = jnp.concatenate(
        [jnp.zeros((1, s_len, b), f32), jnp.stack(att_list, axis=0)], axis=0)


def _seq2seq_pallas(params, emb_src_flat, step_mask, mask_sb, trg3, tf3):
    t_len, b = trg3.shape[0], trg3.shape[1]
    s_len = step_mask.shape[0]
    vmem = pl.BlockSpec(memory_space=pltpu.MemorySpace.VMEM)
    args = (emb_src_flat, step_mask, mask_sb, trg3, tf3,
            params["enc_wih"], params["enc_whh"], params["enc_bih"],
            params["enc_bhh"], params["enc_wfc"], params["enc_bfc"],
            params["dec_emb"],
            params["attn_wh"], params["attn_we"], params["attn_b"],
            params["attn_v"],
            params["dec_wih_e"], params["dec_wih_w"], params["dec_whh"],
            params["dec_bih"], params["dec_bhh"],
            params["fc_wh"], params["fc_ww"], params["fc_we"], params["fc_b"])
    # No grid: single invocation, everything (few tens of KiB) resident in VMEM.
    return pl.pallas_call(
        seq2seq_kernel,
        in_specs=[vmem] * len(args),
        out_specs=(vmem, vmem),
        out_shape=(
            jax.ShapeDtypeStruct((t_len, b, TRG_VOCAB), jnp.float32),
            jax.ShapeDtypeStruct((t_len, s_len, b), jnp.float32),
        ),
    )(*args)


# ---------------------------------------------------------------------------
# Seq2Seq.forward
# ---------------------------------------------------------------------------
def seq2seq_forward(params, src, src_len, trg, teacher_forcing_ratio=0.5):
    # src: [S, B] int32, src_len: [B] int32 (max(src_len) == S), trg: [T, B] int32
    if trg is None:
        assert teacher_forcing_ratio == 0, "Must be zero during inference"
        trg = jnp.full((20, src.shape[1]), SOS_IDX, dtype=jnp.int32)

    s_len, b = src.shape
    t_len = trg.shape[0]

    # create_mask(src_len), stored source-major [S, B] for the in-kernel softmax
    mask_sb = (jnp.arange(s_len)[:, None] < src_len[None, :]).astype(jnp.float32)
    step_mask = mask_sb[:, :, None]                               # (S, B, 1)

    # encoder embedding lookup is glue (as in the reference); GRU runs in-kernel
    emb_src_flat = params["enc_emb"][src].reshape(s_len * b, -1)  # (S*B, E)

    # Precompute teacher-forcing decisions on the host (one flag per step, same
    # for the whole batch, exactly like the reference's random.random() call),
    # so the entire decoder loop can run inside one Pallas kernel.
    flags = [0.0] + [1.0 if random.random() < teacher_forcing_ratio else 0.0
                     for _ in range(1, t_len)]
    tf3 = jnp.broadcast_to(jnp.asarray(flags, jnp.float32)[:, None, None],
                           (t_len, b, 1))
    trg3 = trg.astype(jnp.int32)[:, :, None]                      # (T, B, 1)

    outputs, att_tsb = _seq2seq_pallas(params, emb_src_flat, step_mask,
                                       mask_sb, trg3, tf3)
    attentions = jnp.transpose(att_tsb, (0, 2, 1))                # (T, B, S)
    return outputs, attentions


# ---------------------------------------------------------------------------
# Deterministic parameter init (synthetic weights, no checkpoint).
# Concatenated weights of the reference model are stored pre-split so the
# kernel never builds lane-axis concats.
# ---------------------------------------------------------------------------
def init_params(key):
    ks = jax.random.split(key, 20)

    def w(k, shape, scale=0.1):
        return (scale * jax.random.normal(k, shape)).astype(jnp.float32)

    return dict(
        enc_emb=w(ks[0], (SRC_VOCAB, E)),
        enc_wih=w(ks[1], (E, 3 * HE)),
        enc_whh=w(ks[2], (HE, 3 * HE)),
        enc_bih=w(ks[3], (1, 3 * HE)),
        enc_bhh=w(ks[4], (1, 3 * HE)),
        enc_wfc=w(ks[5], (HE, HD)),
        enc_bfc=w(ks[6], (1, HD)),
        dec_emb=w(ks[7], (TRG_VOCAB, E)),
        attn_wh=w(ks[8], (HD, HA)),          # split of attn W: [W_h | W_e]
        attn_we=w(ks[9], (HE, HA)),
        attn_b=w(ks[10], (1, HA)),
        attn_v=w(ks[11], (1, HA)),
        dec_wih_e=w(ks[12], (E, 3 * HD)),    # split of dec W_ih: [emb | weighted]
        dec_wih_w=w(ks[13], (HE, 3 * HD)),
        dec_whh=w(ks[14], (HD, 3 * HD)),
        dec_bih=w(ks[15], (1, 3 * HD)),
        dec_bhh=w(ks[16], (1, 3 * HD)),
        fc_wh=w(ks[17], (HD, TRG_VOCAB)),    # split of fc W: [h | weighted | emb]
        fc_ww=w(ks[18], (HE, TRG_VOCAB)),
        fc_we=w(ks[19], (E, TRG_VOCAB)),
        fc_b=jnp.zeros((1, TRG_VOCAB), jnp.float32),
    )


if __name__ == "__main__":
    random.seed(0)  # deterministic teacher forcing decisions
    key = jax.random.PRNGKey(0)
    kp, ks_, kt = jax.random.split(key, 3)

    params = init_params(kp)
    src = jax.random.randint(ks_, (S, B), 0, SRC_VOCAB, dtype=jnp.int32)
    src_len = jnp.array([S, S - 3], dtype=jnp.int32)   # max(src_len) == S
    trg = jax.random.randint(kt, (T, B), 0, TRG_VOCAB, dtype=jnp.int32)
    trg = trg.at[0].set(SOS_IDX)

    outputs, attentions = seq2seq_forward(params, src, src_len, trg,
                                          teacher_forcing_ratio=0.5)
    jax.block_until_ready((outputs, attentions))

    assert outputs.shape == (T, B, TRG_VOCAB)
    assert attentions.shape == (T, B, S)
    assert bool(jnp.all(jnp.isfinite(outputs)))
    print("KERNEL_OK")
</pallas_src>

<mosaic_0001>
module attributes {stable_mosaic.version = 11 : i64} {
  func.func @seq2seq_kernel(%arg0: memref<16x16xf32, #tpu.memory_space<vmem>>, %arg1: memref<8x2x1xf32, #tpu.memory_space<vmem>>, %arg2: memref<8x2xf32, #tpu.memory_space<vmem>>, %arg3: memref<6x2x1xi32, #tpu.memory_space<vmem>>, %arg4: memref<6x2x1xf32, #tpu.memory_space<vmem>>, %arg5: memref<16x96xf32, #tpu.memory_space<vmem>>, %arg6: memref<32x96xf32, #tpu.memory_space<vmem>>, %arg7: memref<1x96xf32, #tpu.memory_space<vmem>>, %arg8: memref<1x96xf32, #tpu.memory_space<vmem>>, %arg9: memref<32x32xf32, #tpu.memory_space<vmem>>, %arg10: memref<1x32xf32, #tpu.memory_space<vmem>>, %arg11: memref<12x16xf32, #tpu.memory_space<vmem>>, %arg12: memref<32x32xf32, #tpu.memory_space<vmem>>, %arg13: memref<32x32xf32, #tpu.memory_space<vmem>>, %arg14: memref<1x32xf32, #tpu.memory_space<vmem>>, %arg15: memref<1x32xf32, #tpu.memory_space<vmem>>, %arg16: memref<16x96xf32, #tpu.memory_space<vmem>>, %arg17: memref<32x96xf32, #tpu.memory_space<vmem>>, %arg18: memref<32x96xf32, #tpu.memory_space<vmem>>, %arg19: memref<1x96xf32, #tpu.memory_space<vmem>>, %arg20: memref<1x96xf32, #tpu.memory_space<vmem>>, %arg21: memref<32x12xf32, #tpu.memory_space<vmem>>, %arg22: memref<32x12xf32, #tpu.memory_space<vmem>>, %arg23: memref<16x12xf32, #tpu.memory_space<vmem>>, %arg24: memref<1x12xf32, #tpu.memory_space<vmem>>, %arg25: memref<6x2x12xf32, #tpu.memory_space<vmem>>, %arg26: memref<6x8x2xf32, #tpu.memory_space<vmem>>) attributes {dimension_semantics = [], scalar_prefetch = 0 : i64, scratch_operands = 0 : i64, tpu.core_type = #tpu.core_type<tc>} {
    %c0 = arith.constant 0 : index
    %c0_0 = arith.constant 0 : index
    %0 = vector.load %arg0[%c0, %c0_0] : memref<16x16xf32, #tpu.memory_space<vmem>>, vector<16x16xf32>
    %c0_1 = arith.constant 0 : index
    %c0_2 = arith.constant 0 : index
    %1 = vector.load %arg5[%c0_1, %c0_2] : memref<16x96xf32, #tpu.memory_space<vmem>>, vector<16x96xf32>
    %cst = arith.constant dense<0.000000e+00> : vector<16x96xf32>
    %2 = tpu.matmul %0, %1, %cst {dimension_numbers = #tpu.dot_dimension_numbers<[1], [0], [0], [1], [0, 0, 1, 1], [], []>} : vector<16x16xf32>, vector<16x96xf32>, vector<16x96xf32> -> vector<16x96xf32>
    %c0_3 = arith.constant 0 : index
    %c0_4 = arith.constant 0 : index
    %3 = vector.load %arg7[%c0_3, %c0_4] : memref<1x96xf32, #tpu.memory_space<vmem>>, vector<1x96xf32>
    %4 = vector.broadcast %3 : vector<1x96xf32> to vector<16x96xf32>
    %5 = arith.addf %2, %4 : vector<16x96xf32>
    %6 = vector.shape_cast %5 : vector<16x96xf32> to vector<8x2x96xf32>
    %c0_5 = arith.constant 0 : index
    %c0_6 = arith.constant 0 : index
    %7 = vector.load %arg6[%c0_5, %c0_6] : memref<32x96xf32, #tpu.memory_space<vmem>>, vector<32x96xf32>
    %c0_7 = arith.constant 0 : index
    %c0_8 = arith.constant 0 : index
    %8 = vector.load %arg8[%c0_7, %c0_8] : memref<1x96xf32, #tpu.memory_space<vmem>>, vector<1x96xf32>
    %c0_9 = arith.constant 0 : index
    %c0_10 = arith.constant 0 : index
    %c0_11 = arith.constant 0 : index
    %9 = vector.load %arg1[%c0_9, %c0_10, %c0_11] : memref<8x2x1xf32, #tpu.memory_space<vmem>>, vector<8x2x1xf32>
    %cst_12 = arith.constant 0.000000e+00 : f32
    %10 = vector.broadcast %cst_12 : f32 to vector<2x32xf32>
    %11 = vector.extract_strided_slice %6 {offsets = [0, 0, 0], sizes = [1, 2, 96], strides = [1, 1, 1]} : vector<8x2x96xf32> to vector<1x2x96xf32>
    %12 = vector.shape_cast %11 : vector<1x2x96xf32> to vector<2x96xf32>
    %cst_13 = arith.constant dense<0.000000e+00> : vector<2x96xf32>
    %13 = tpu.matmul %10, %7, %cst_13 {dimension_numbers = #tpu.dot_dimension_numbers<[1], [0], [0], [1], [0, 0, 1, 1], [], []>} : vector<2x32xf32>, vector<32x96xf32>, vector<2x96xf32> -> vector<2x96xf32>
    %14 = vector.broadcast %8 : vector<1x96xf32> to vector<2x96xf32>
    %15 = arith.addf %13, %14 : vector<2x96xf32>
    %16 = vector.extract_strided_slice %12 {offsets = [0, 0], sizes = [2, 32], strides = [1, 1]} : vector<2x96xf32> to vector<2x32xf32>
    %17 = vector.extract_strided_slice %15 {offsets = [0, 0], sizes = [2, 32], strides = [1, 1]} : vector<2x96xf32> to vector<2x32xf32>
    %18 = arith.addf %16, %17 : vector<2x32xf32>
    %19 = arith.negf %18 : vector<2x32xf32>
    %20 = math.exp %19 : vector<2x32xf32>
    %cst_14 = arith.constant 1.000000e+00 : f32
    %21 = vector.broadcast %cst_14 : f32 to vector<2x32xf32>
    %22 = arith.addf %21, %20 : vector<2x32xf32>
    %23 = arith.divf %21, %22 : vector<2x32xf32>
    %24 = vector.extract_strided_slice %12 {offsets = [0, 32], sizes = [2, 32], strides = [1, 1]} : vector<2x96xf32> to vector<2x32xf32>
    %25 = vector.extract_strided_slice %15 {offsets = [0, 32], sizes = [2, 32], strides = [1, 1]} : vector<2x96xf32> to vector<2x32xf32>
    %26 = arith.addf %24, %25 : vector<2x32xf32>
    %27 = arith.negf %26 : vector<2x32xf32>
    %28 = math.exp %27 : vector<2x32xf32>
    %cst_15 = arith.constant 1.000000e+00 : f32
    %29 = vector.broadcast %cst_15 : f32 to vector<2x32xf32>
    %30 = arith.addf %29, %28 : vector<2x32xf32>
    %31 = arith.divf %29, %30 : vector<2x32xf32>
    %32 = vector.extract_strided_slice %12 {offsets = [0, 64], sizes = [2, 32], strides = [1, 1]} : vector<2x96xf32> to vector<2x32xf32>
    %33 = vector.extract_strided_slice %15 {offsets = [0, 64], sizes = [2, 32], strides = [1, 1]} : vector<2x96xf32> to vector<2x32xf32>
    %34 = arith.mulf %23, %33 : vector<2x32xf32>
    %35 = arith.addf %32, %34 : vector<2x32xf32>
    %36 = math.tanh %35 : vector<2x32xf32>
    %cst_16 = arith.constant 1.000000e+00 : f32
    %37 = vector.broadcast %cst_16 : f32 to vector<2x32xf32>
    %38 = arith.subf %37, %31 : vector<2x32xf32>
    %39 = arith.mulf %38, %36 : vector<2x32xf32>
    %40 = arith.mulf %31, %10 : vector<2x32xf32>
    %41 = arith.addf %39, %40 : vector<2x32xf32>
    %42 = vector.extract_strided_slice %9 {offsets = [0, 0, 0], sizes = [1, 2, 1], strides = [1, 1, 1]} : vector<8x2x1xf32> to vector<1x2x1xf32>
    %43 = vector.shape_cast %42 : vector<1x2x1xf32> to vector<2x1xf32>
    %44 = vector.broadcast %43 : vector<2x1xf32> to vector<2x32xf32>
    %45 = arith.mulf %44, %41 : vector<2x32xf32>
    %cst_17 = arith.constant 1.000000e+00 : f32
    %46 = vector.broadcast %cst_17 : f32 to vector<2x1xf32>
    %47 = arith.subf %46, %43 : vector<2x1xf32>
    %48 = vector.broadcast %47 : vector<2x1xf32> to vector<2x32xf32>
    %49 = arith.mulf %48, %10 : vector<2x32xf32>
    %50 = arith.addf %45, %49 : vector<2x32xf32>
    %51 = vector.broadcast %43 : vector<2x1xf32> to vector<2x32xf32>
    %52 = arith.mulf %51, %50 : vector<2x32xf32>
    %53 = vector.extract_strided_slice %6 {offsets = [1, 0, 0], sizes = [1, 2, 96], strides = [1, 1, 1]} : vector<8x2x96xf32> to vector<1x2x96xf32>
    %54 = vector.shape_cast %53 : vector<1x2x96xf32> to vector<2x96xf32>
    %cst_18 = arith.constant dense<0.000000e+00> : vector<2x96xf32>
    %55 = tpu.matmul %50, %7, %cst_18 {dimension_numbers = #tpu.dot_dimension_numbers<[1], [0], [0], [1], [0, 0, 1, 1], [], []>} : vector<2x32xf32>, vector<32x96xf32>, vector<2x96xf32> -> vector<2x96xf32>
    %56 = vector.broadcast %8 : vector<1x96xf32> to vector<2x96xf32>
    %57 = arith.addf %55, %56 : vector<2x96xf32>
    %58 = vector.extract_strided_slice %54 {offsets = [0, 0], sizes = [2, 32], strides = [1, 1]} : vector<2x96xf32> to vector<2x32xf32>
    %59 = vector.extract_strided_slice %57 {offsets = [0, 0], sizes = [2, 32], strides = [1, 1]} : vector<2x96xf32> to vector<2x32xf32>
    %60 = arith.addf %58, %59 : vector<2x32xf32>
    %61 = arith.negf %60 : vector<2x32xf32>
    %62 = math.exp %61 : vector<2x32xf32>
    %cst_19 = arith.constant 1.000000e+00 : f32
    %63 = vector.broadcast %cst_19 : f32 to vector<2x32xf32>
    %64 = arith.addf %63, %62 : vector<2x32xf32>
    %65 = arith.divf %63, %64 : vector<2x32xf32>
    %66 = vector.extract_strided_slice %54 {offsets = [0, 32], sizes = [2, 32], strides = [1, 1]} : vector<2x96xf32> to vector<2x32xf32>
    %67 = vector.extract_strided_slice %57 {offsets = [0, 32], sizes = [2, 32], strides = [1, 1]} : vector<2x96xf32> to vector<2x32xf32>
    %68 = arith.addf %66, %67 : vector<2x32xf32>
    %69 = arith.negf %68 : vector<2x32xf32>
    %70 = math.exp %69 : vector<2x32xf32>
    %cst_20 = arith.constant 1.000000e+00 : f32
    %71 = vector.broadcast %cst_20 : f32 to vector<2x32xf32>
    %72 = arith.addf %71, %70 : vector<2x32xf32>
    %73 = arith.divf %71, %72 : vector<2x32xf32>
    %74 = vector.extract_strided_slice %54 {offsets = [0, 64], sizes = [2, 32], strides = [1, 1]} : vector<2x96xf32> to vector<2x32xf32>
    %75 = vector.extract_strided_slice %57 {offsets = [0, 64], sizes = [2, 32], strides = [1, 1]} : vector<2x96xf32> to vector<2x32xf32>
    %76 = arith.mulf %65, %75 : vector<2x32xf32>
    %77 = arith.addf %74, %76 : vector<2x32xf32>
    %78 = math.tanh %77 : vector<2x32xf32>
    %cst_21 = arith.constant 1.000000e+00 : f32
    %79 = vector.broadcast %cst_21 : f32 to vector<2x32xf32>
    %80 = arith.subf %79, %73 : vector<2x32xf32>
    %81 = arith.mulf %80, %78 : vector<2x32xf32>
    %82 = arith.mulf %73, %50 : vector<2x32xf32>
    %83 = arith.addf %81, %82 : vector<2x32xf32>
    %84 = vector.extract_strided_slice %9 {offsets = [1, 0, 0], sizes = [1, 2, 1], strides = [1, 1, 1]} : vector<8x2x1xf32> to vector<1x2x1xf32>
    %85 = vector.shape_cast %84 : vector<1x2x1xf32> to vector<2x1xf32>
    %86 = vector.broadcast %85 : vector<2x1xf32> to vector<2x32xf32>
    %87 = arith.mulf %86, %83 : vector<2x32xf32>
    %cst_22 = arith.constant 1.000000e+00 : f32
    %88 = vector.broadcast %cst_22 : f32 to vector<2x1xf32>
    %89 = arith.subf %88, %85 : vector<2x1xf32>
    %90 = vector.broadcast %89 : vector<2x1xf32> to vector<2x32xf32>
    %91 = arith.mulf %90, %50 : vector<2x32xf32>
    %92 = arith.addf %87, %91 : vector<2x32xf32>
    %93 = vector.broadcast %85 : vector<2x1xf32> to vector<2x32xf32>
    %94 = arith.mulf %93, %92 : vector<2x32xf32>
    %95 = vector.extract_strided_slice %6 {offsets = [2, 0, 0], sizes = [1, 2, 96], strides = [1, 1, 1]} : vector<8x2x96xf32> to vector<1x2x96xf32>
    %96 = vector.shape_cast %95 : vector<1x2x96xf32> to vector<2x96xf32>
    %cst_23 = arith.constant dense<0.000000e+00> : vector<2x96xf32>
    %97 = tpu.matmul %92, %7, %cst_23 {dimension_numbers = #tpu.dot_dimension_numbers<[1], [0], [0], [1], [0, 0, 1, 1], [], []>} : vector<2x32xf32>, vector<32x96xf32>, vector<2x96xf32> -> vector<2x96xf32>
    %98 = vector.broadcast %8 : vector<1x96xf32> to vector<2x96xf32>
    %99 = arith.addf %97, %98 : vector<2x96xf32>
    %100 = vector.extract_strided_slice %96 {offsets = [0, 0], sizes = [2, 32], strides = [1, 1]} : vector<2x96xf32> to vector<2x32xf32>
    %101 = vector.extract_strided_slice %99 {offsets = [0, 0], sizes = [2, 32], strides = [1, 1]} : vector<2x96xf32> to vector<2x32xf32>
    %102 = arith.addf %100, %101 : vector<2x32xf32>
    %103 = arith.negf %102 : vector<2x32xf32>
    %104 = math.exp %103 : vector<2x32xf32>
    %cst_24 = arith.constant 1.000000e+00 : f32
    %105 = vector.broadcast %cst_24 : f32 to vector<2x32xf32>
    %106 = arith.addf %105, %104 : vector<2x32xf32>
    %107 = arith.divf %105, %106 : vector<2x32xf32>
    %108 = vector.extract_strided_slice %96 {offsets = [0, 32], sizes = [2, 32], strides = [1, 1]} : vector<2x96xf32> to vector<2x32xf32>
    %109 = vector.extract_strided_slice %99 {offsets = [0, 32], sizes = [2, 32], strides = [1, 1]} : vector<2x96xf32> to vector<2x32xf32>
    %110 = arith.addf %108, %109 : vector<2x32xf32>
    %111 = arith.negf %110 : vector<2x32xf32>
    %112 = math.exp %111 : vector<2x32xf32>
    %cst_25 = arith.constant 1.000000e+00 : f32
    %113 = vector.broadcast %cst_25 : f32 to vector<2x32xf32>
    %114 = arith.addf %113, %112 : vector<2x32xf32>
    %115 = arith.divf %113, %114 : vector<2x32xf32>
    %116 = vector.extract_strided_slice %96 {offsets = [0, 64], sizes = [2, 32], strides = [1, 1]} : vector<2x96xf32> to vector<2x32xf32>
    %117 = vector.extract_strided_slice %99 {offsets = [0, 64], sizes = [2, 32], strides = [1, 1]} : vector<2x96xf32> to vector<2x32xf32>
    %118 = arith.mulf %107, %117 : vector<2x32xf32>
    %119 = arith.addf %116, %118 : vector<2x32xf32>
    %120 = math.tanh %119 : vector<2x32xf32>
    %cst_26 = arith.constant 1.000000e+00 : f32
    %121 = vector.broadcast %cst_26 : f32 to vector<2x32xf32>
    %122 = arith.subf %121, %115 : vector<2x32xf32>
    %123 = arith.mulf %122, %120 : vector<2x32xf32>
    %124 = arith.mulf %115, %92 : vector<2x32xf32>
    %125 = arith.addf %123, %124 : vector<2x32xf32>
    %126 = vector.extract_strided_slice %9 {offsets = [2, 0, 0], sizes = [1, 2, 1], strides = [1, 1, 1]} : vector<8x2x1xf32> to vector<1x2x1xf32>
    %127 = vector.shape_cast %126 : vector<1x2x1xf32> to vector<2x1xf32>
    %128 = vector.broadcast %127 : vector<2x1xf32> to vector<2x32xf32>
    %129 = arith.mulf %128, %125 : vector<2x32xf32>
    %cst_27 = arith.constant 1.000000e+00 : f32
    %130 = vector.broadcast %cst_27 : f32 to vector<2x1xf32>
    %131 = arith.subf %130, %127 : vector<2x1xf32>
    %132 = vector.broadcast %131 : vector<2x1xf32> to vector<2x32xf32>
    %133 = arith.mulf %132, %92 : vector<2x32xf32>
    %134 = arith.addf %129, %133 : vector<2x32xf32>
    %135 = vector.broadcast %127 : vector<2x1xf32> to vector<2x32xf32>
    %136 = arith.mulf %135, %134 : vector<2x32xf32>
    %137 = vector.extract_strided_slice %6 {offsets = [3, 0, 0], sizes = [1, 2, 96], strides = [1, 1, 1]} : vector<8x2x96xf32> to vector<1x2x96xf32>
    %138 = vector.shape_cast %137 : vector<1x2x96xf32> to vector<2x96xf32>
    %cst_28 = arith.constant dense<0.000000e+00> : vector<2x96xf32>
    %139 = tpu.matmul %134, %7, %cst_28 {dimension_numbers = #tpu.dot_dimension_numbers<[1], [0], [0], [1], [0, 0, 1, 1], [], []>} : vector<2x32xf32>, vector<32x96xf32>, vector<2x96xf32> -> vector<2x96xf32>
    %140 = vector.broadcast %8 : vector<1x96xf32> to vector<2x96xf32>
    %141 = arith.addf %139, %140 : vector<2x96xf32>
    %142 = vector.extract_strided_slice %138 {offsets = [0, 0], sizes = [2, 32], strides = [1, 1]} : vector<2x96xf32> to vector<2x32xf32>
    %143 = vector.extract_strided_slice %141 {offsets = [0, 0], sizes = [2, 32], strides = [1, 1]} : vector<2x96xf32> to vector<2x32xf32>
    %144 = arith.addf %142, %143 : vector<2x32xf32>
    %145 = arith.negf %144 : vector<2x32xf32>
    %146 = math.exp %145 : vector<2x32xf32>
    %cst_29 = arith.constant 1.000000e+00 : f32
    %147 = vector.broadcast %cst_29 : f32 to vector<2x32xf32>
    %148 = arith.addf %147, %146 : vector<2x32xf32>
    %149 = arith.divf %147, %148 : vector<2x32xf32>
    %150 = vector.extract_strided_slice %138 {offsets = [0, 32], sizes = [2, 32], strides = [1, 1]} : vector<2x96xf32> to vector<2x32xf32>
    %151 = vector.extract_strided_slice %141 {offsets = [0, 32], sizes = [2, 32], strides = [1, 1]} : vector<2x96xf32> to vector<2x32xf32>
    %152 = arith.addf %150, %151 : vector<2x32xf32>
    %153 = arith.negf %152 : vector<2x32xf32>
    %154 = math.exp %153 : vector<2x32xf32>
    %cst_30 = arith.constant 1.000000e+00 : f32
    %155 = vector.broadcast %cst_30 : f32 to vector<2x32xf32>
    %156 = arith.addf %155, %154 : vector<2x32xf32>
    %157 = arith.divf %155, %156 : vector<2x32xf32>
    %158 = vector.extract_strided_slice %138 {offsets = [0, 64], sizes = [2, 32], strides = [1, 1]} : vector<2x96xf32> to vector<2x32xf32>
    %159 = vector.extract_strided_slice %141 {offsets = [0, 64], sizes = [2, 32], strides = [1, 1]} : vector<2x96xf32> to vector<2x32xf32>
    %160 = arith.mulf %149, %159 : vector<2x32xf32>
    %161 = arith.addf %158, %160 : vector<2x32xf32>
    %162 = math.tanh %161 : vector<2x32xf32>
    %cst_31 = arith.constant 1.000000e+00 : f32
    %163 = vector.broadcast %cst_31 : f32 to vector<2x32xf32>
    %164 = arith.subf %163, %157 : vector<2x32xf32>
    %165 = arith.mulf %164, %162 : vector<2x32xf32>
    %166 = arith.mulf %157, %134 : vector<2x32xf32>
    %167 = arith.addf %165, %166 : vector<2x32xf32>
    %168 = vector.extract_strided_slice %9 {offsets = [3, 0, 0], sizes = [1, 2, 1], strides = [1, 1, 1]} : vector<8x2x1xf32> to vector<1x2x1xf32>
    %169 = vector.shape_cast %168 : vector<1x2x1xf32> to vector<2x1xf32>
    %170 = vector.broadcast %169 : vector<2x1xf32> to vector<2x32xf32>
    %171 = arith.mulf %170, %167 : vector<2x32xf32>
    %cst_32 = arith.constant 1.000000e+00 : f32
    %172 = vector.broadcast %cst_32 : f32 to vector<2x1xf32>
    %173 = arith.subf %172, %169 : vector<2x1xf32>
    %174 = vector.broadcast %173 : vector<2x1xf32> to vector<2x32xf32>
    %175 = arith.mulf %174, %134 : vector<2x32xf32>
    %176 = arith.addf %171, %175 : vector<2x32xf32>
    %177 = vector.broadcast %169 : vector<2x1xf32> to vector<2x32xf32>
    %178 = arith.mulf %177, %176 : vector<2x32xf32>
    %179 = vector.extract_strided_slice %6 {offsets = [4, 0, 0], sizes = [1, 2, 96], strides = [1, 1, 1]} : vector<8x2x96xf32> to vector<1x2x96xf32>
    %180 = vector.shape_cast %179 : vector<1x2x96xf32> to vector<2x96xf32>
    %cst_33 = arith.constant dense<0.000000e+00> : vector<2x96xf32>
    %181 = tpu.matmul %176, %7, %cst_33 {dimension_numbers = #tpu.dot_dimension_numbers<[1], [0], [0], [1], [0, 0, 1, 1], [], []>} : vector<2x32xf32>, vector<32x96xf32>, vector<2x96xf32> -> vector<2x96xf32>
    %182 = vector.broadcast %8 : vector<1x96xf32> to vector<2x96xf32>
    %183 = arith.addf %181, %182 : vector<2x96xf32>
    %184 = vector.extract_strided_slice %180 {offsets = [0, 0], sizes = [2, 32], strides = [1, 1]} : vector<2x96xf32> to vector<2x32xf32>
    %185 = vector.extract_strided_slice %183 {offsets = [0, 0], sizes = [2, 32], strides = [1, 1]} : vector<2x96xf32> to vector<2x32xf32>
    %186 = arith.addf %184, %185 : vector<2x32xf32>
    %187 = arith.negf %186 : vector<2x32xf32>
    %188 = math.exp %187 : vector<2x32xf32>
    %cst_34 = arith.constant 1.000000e+00 : f32
    %189 = vector.broadcast %cst_34 : f32 to vector<2x32xf32>
    %190 = arith.addf %189, %188 : vector<2x32xf32>
    %191 = arith.divf %189, %190 : vector<2x32xf32>
    %192 = vector.extract_strided_slice %180 {offsets = [0, 32], sizes = [2, 32], strides = [1, 1]} : vector<2x96xf32> to vector<2x32xf32>
    %193 = vector.extract_strided_slice %183 {offsets = [0, 32], sizes = [2, 32], strides = [1, 1]} : vector<2x96xf32> to vector<2x32xf32>
    %194 = arith.addf %192, %193 : vector<2x32xf32>
    %195 = arith.negf %194 : vector<2x32xf32>
    %196 = math.exp %195 : vector<2x32xf32>
    %cst_35 = arith.constant 1.000000e+00 : f32
    %197 = vector.broadcast %cst_35 : f32 to vector<2x32xf32>
    %198 = arith.addf %197, %196 : vector<2x32xf32>
    %199 = arith.divf %197, %198 : vector<2x32xf32>
    %200 = vector.extract_strided_slice %180 {offsets = [0, 64], sizes = [2, 32], strides = [1, 1]} : vector<2x96xf32> to vector<2x32xf32>
    %201 = vector.extract_strided_slice %183 {offsets = [0, 64], sizes = [2, 32], strides = [1, 1]} : vector<2x96xf32> to vector<2x32xf32>
    %202 = arith.mulf %191, %201 : vector<2x32xf32>
    %203 = arith.addf %200, %202 : vector<2x32xf32>
    %204 = math.tanh %203 : vector<2x32xf32>
    %cst_36 = arith.constant 1.000000e+00 : f32
    %205 = vector.broadcast %cst_36 : f32 to vector<2x32xf32>
    %206 = arith.subf %205, %199 : vector<2x32xf32>
    %207 = arith.mulf %206, %204 : vector<2x32xf32>
    %208 = arith.mulf %199, %176 : vector<2x32xf32>
    %209 = arith.addf %207, %208 : vector<2x32xf32>
    %210 = vector.extract_strided_slice %9 {offsets = [4, 0, 0], sizes = [1, 2, 1], strides = [1, 1, 1]} : vector<8x2x1xf32> to vector<1x2x1xf32>
    %211 = vector.shape_cast %210 : vector<1x2x1xf32> to vector<2x1xf32>
    %212 = vector.broadcast %211 : vector<2x1xf32> to vector<2x32xf32>
    %213 = arith.mulf %212, %209 : vector<2x32xf32>
    %cst_37 = arith.constant 1.000000e+00 : f32
    %214 = vector.broadcast %cst_37 : f32 to vector<2x1xf32>
    %215 = arith.subf %214, %211 : vector<2x1xf32>
    %216 = vector.broadcast %215 : vector<2x1xf32> to vector<2x32xf32>
    %217 = arith.mulf %216, %176 : vector<2x32xf32>
    %218 = arith.addf %213, %217 : vector<2x32xf32>
    %219 = vector.broadcast %211 : vector<2x1xf32> to vector<2x32xf32>
    %220 = arith.mulf %219, %218 : vector<2x32xf32>
    %221 = vector.extract_strided_slice %6 {offsets = [5, 0, 0], sizes = [1, 2, 96], strides = [1, 1, 1]} : vector<8x2x96xf32> to vector<1x2x96xf32>
    %222 = vector.shape_cast %221 : vector<1x2x96xf32> to vector<2x96xf32>
    %cst_38 = arith.constant dense<0.000000e+00> : vector<2x96xf32>
    %223 = tpu.matmul %218, %7, %cst_38 {dimension_numbers = #tpu.dot_dimension_numbers<[1], [0], [0], [1], [0, 0, 1, 1], [], []>} : vector<2x32xf32>, vector<32x96xf32>, vector<2x96xf32> -> vector<2x96xf32>
    %224 = vector.broadcast %8 : vector<1x96xf32> to vector<2x96xf32>
    %225 = arith.addf %223, %224 : vector<2x96xf32>
    %226 = vector.extract_strided_slice %222 {offsets = [0, 0], sizes = [2, 32], strides = [1, 1]} : vector<2x96xf32> to vector<2x32xf32>
    %227 = vector.extract_strided_slice %225 {offsets = [0, 0], sizes = [2, 32], strides = [1, 1]} : vector<2x96xf32> to vector<2x32xf32>
    %228 = arith.addf %226, %227 : vector<2x32xf32>
    %229 = arith.negf %228 : vector<2x32xf32>
    %230 = math.exp %229 : vector<2x32xf32>
    %cst_39 = arith.constant 1.000000e+00 : f32
    %231 = vector.broadcast %cst_39 : f32 to vector<2x32xf32>
    %232 = arith.addf %231, %230 : vector<2x32xf32>
    %233 = arith.divf %231, %232 : vector<2x32xf32>
    %234 = vector.extract_strided_slice %222 {offsets = [0, 32], sizes = [2, 32], strides = [1, 1]} : vector<2x96xf32> to vector<2x32xf32>
    %235 = vector.extract_strided_slice %225 {offsets = [0, 32], sizes = [2, 32], strides = [1, 1]} : vector<2x96xf32> to vector<2x32xf32>
    %236 = arith.addf %234, %235 : vector<2x32xf32>
    %237 = arith.negf %236 : vector<2x32xf32>
    %238 = math.exp %237 : vector<2x32xf32>
    %cst_40 = arith.constant 1.000000e+00 : f32
    %239 = vector.broadcast %cst_40 : f32 to vector<2x32xf32>
    %240 = arith.addf %239, %238 : vector<2x32xf32>
    %241 = arith.divf %239, %240 : vector<2x32xf32>
    %242 = vector.extract_strided_slice %222 {offsets = [0, 64], sizes = [2, 32], strides = [1, 1]} : vector<2x96xf32> to vector<2x32xf32>
    %243 = vector.extract_strided_slice %225 {offsets = [0, 64], sizes = [2, 32], strides = [1, 1]} : vector<2x96xf32> to vector<2x32xf32>
    %244 = arith.mulf %233, %243 : vector<2x32xf32>
    %245 = arith.addf %242, %244 : vector<2x32xf32>
    %246 = math.tanh %245 : vector<2x32xf32>
    %cst_41 = arith.constant 1.000000e+00 : f32
    %247 = vector.broadcast %cst_41 : f32 to vector<2x32xf32>
    %248 = arith.subf %247, %241 : vector<2x32xf32>
    %249 = arith.mulf %248, %246 : vector<2x32xf32>
    %250 = arith.mulf %241, %218 : vector<2x32xf32>
    %251 = arith.addf %249, %250 : vector<2x32xf32>
    %252 = vector.extract_strided_slice %9 {offsets = [5, 0, 0], sizes = [1, 2, 1], strides = [1, 1, 1]} : vector<8x2x1xf32> to vector<1x2x1xf32>
    %253 = vector.shape_cast %252 : vector<1x2x1xf32> to vector<2x1xf32>
    %254 = vector.broadcast %253 : vector<2x1xf32> to vector<2x32xf32>
    %255 = arith.mulf %254, %251 : vector<2x32xf32>
    %cst_42 = arith.constant 1.000000e+00 : f32
    %256 = vector.broadcast %cst_42 : f32 to vector<2x1xf32>
    %257 = arith.subf %256, %253 : vector<2x1xf32>
    %258 = vector.broadcast %257 : vector<2x1xf32> to vector<2x32xf32>
    %259 = arith.mulf %258, %218 : vector<2x32xf32>
    %260 = arith.addf %255, %259 : vector<2x32xf32>
    %261 = vector.broadcast %253 : vector<2x1xf32> to vector<2x32xf32>
    %262 = arith.mulf %261, %260 : vector<2x32xf32>
    %263 = vector.extract_strided_slice %6 {offsets = [6, 0, 0], sizes = [1, 2, 96], strides = [1, 1, 1]} : vector<8x2x96xf32> to vector<1x2x96xf32>
    %264 = vector.shape_cast %263 : vector<1x2x96xf32> to vector<2x96xf32>
    %cst_43 = arith.constant dense<0.000000e+00> : vector<2x96xf32>
    %265 = tpu.matmul %260, %7, %cst_43 {dimension_numbers = #tpu.dot_dimension_numbers<[1], [0], [0], [1], [0, 0, 1, 1], [], []>} : vector<2x32xf32>, vector<32x96xf32>, vector<2x96xf32> -> vector<2x96xf32>
    %266 = vector.broadcast %8 : vector<1x96xf32> to vector<2x96xf32>
    %267 = arith.addf %265, %266 : vector<2x96xf32>
    %268 = vector.extract_strided_slice %264 {offsets = [0, 0], sizes = [2, 32], strides = [1, 1]} : vector<2x96xf32> to vector<2x32xf32>
    %269 = vector.extract_strided_slice %267 {offsets = [0, 0], sizes = [2, 32], strides = [1, 1]} : vector<2x96xf32> to vector<2x32xf32>
    %270 = arith.addf %268, %269 : vector<2x32xf32>
    %271 = arith.negf %270 : vector<2x32xf32>
    %272 = math.exp %271 : vector<2x32xf32>
    %cst_44 = arith.constant 1.000000e+00 : f32
    %273 = vector.broadcast %cst_44 : f32 to vector<2x32xf32>
    %274 = arith.addf %273, %272 : vector<2x32xf32>
    %275 = arith.divf %273, %274 : vector<2x32xf32>
    %276 = vector.extract_strided_slice %264 {offsets = [0, 32], sizes = [2, 32], strides = [1, 1]} : vector<2x96xf32> to vector<2x32xf32>
    %277 = vector.extract_strided_slice %267 {offsets = [0, 32], sizes = [2, 32], strides = [1, 1]} : vector<2x96xf32> to vector<2x32xf32>
    %278 = arith.addf %276, %277 : vector<2x32xf32>
    %279 = arith.negf %278 : vector<2x32xf32>
    %280 = math.exp %279 : vector<2x32xf32>
    %cst_45 = arith.constant 1.000000e+00 : f32
    %281 = vector.broadcast %cst_45 : f32 to vector<2x32xf32>
    %282 = arith.addf %281, %280 : vector<2x32xf32>
    %283 = arith.divf %281, %282 : vector<2x32xf32>
    %284 = vector.extract_strided_slice %264 {offsets = [0, 64], sizes = [2, 32], strides = [1, 1]} : vector<2x96xf32> to vector<2x32xf32>
    %285 = vector.extract_strided_slice %267 {offsets = [0, 64], sizes = [2, 32], strides = [1, 1]} : vector<2x96xf32> to vector<2x32xf32>
    %286 = arith.mulf %275, %285 : vector<2x32xf32>
    %287 = arith.addf %284, %286 : vector<2x32xf32>
    %288 = math.tanh %287 : vector<2x32xf32>
    %cst_46 = arith.constant 1.000000e+00 : f32
    %289 = vector.broadcast %cst_46 : f32 to vector<2x32xf32>
    %290 = arith.subf %289, %283 : vector<2x32xf32>
    %291 = arith.mulf %290, %288 : vector<2x32xf32>
    %292 = arith.mulf %283, %260 : vector<2x32xf32>
    %293 = arith.addf %291, %292 : vector<2x32xf32>
    %294 = vector.extract_strided_slice %9 {offsets = [6, 0, 0], sizes = [1, 2, 1], strides = [1, 1, 1]} : vector<8x2x1xf32> to vector<1x2x1xf32>
    %295 = vector.shape_cast %294 : vector<1x2x1xf32> to vector<2x1xf32>
    %296 = vector.broadcast %295 : vector<2x1xf32> to vector<2x32xf32>
    %297 = arith.mulf %296, %293 : vector<2x32xf32>
    %cst_47 = arith.constant 1.000000e+00 : f32
    %298 = vector.broadcast %cst_47 : f32 to vector<2x1xf32>
    %299 = arith.subf %298, %295 : vector<2x1xf32>
    %300 = vector.broadcast %299 : vector<2x1xf32> to vector<2x32xf32>
    %301 = arith.mulf %300, %260 : vector<2x32xf32>
    %302 = arith.addf %297, %301 : vector<2x32xf32>
    %303 = vector.broadcast %295 : vector<2x1xf32> to vector<2x32xf32>
    %304 = arith.mulf %303, %302 : vector<2x32xf32>
    %305 = vector.extract_strided_slice %6 {offsets = [7, 0, 0], sizes = [1, 2, 96], strides = [1, 1, 1]} : vector<8x2x96xf32> to vector<1x2x96xf32>
    %306 = vector.shape_cast %305 : vector<1x2x96xf32> to vector<2x96xf32>
    %cst_48 = arith.constant dense<0.000000e+00> : vector<2x96xf32>
    %307 = tpu.matmul %302, %7, %cst_48 {dimension_numbers = #tpu.dot_dimension_numbers<[1], [0], [0], [1], [0, 0, 1, 1], [], []>} : vector<2x32xf32>, vector<32x96xf32>, vector<2x96xf32> -> vector<2x96xf32>
    %308 = vector.broadcast %8 : vector<1x96xf32> to vector<2x96xf32>
    %309 = arith.addf %307, %308 : vector<2x96xf32>
    %310 = vector.extract_strided_slice %306 {offsets = [0, 0], sizes = [2, 32], strides = [1, 1]} : vector<2x96xf32> to vector<2x32xf32>
    %311 = vector.extract_strided_slice %309 {offsets = [0, 0], sizes = [2, 32], strides = [1, 1]} : vector<2x96xf32> to vector<2x32xf32>
    %312 = arith.addf %310, %311 : vector<2x32xf32>
    %313 = arith.negf %312 : vector<2x32xf32>
    %314 = math.exp %313 : vector<2x32xf32>
    %cst_49 = arith.constant 1.000000e+00 : f32
    %315 = vector.broadcast %cst_49 : f32 to vector<2x32xf32>
    %316 = arith.addf %315, %314 : vector<2x32xf32>
    %317 = arith.divf %315, %316 : vector<2x32xf32>
    %318 = vector.extract_strided_slice %306 {offsets = [0, 32], sizes = [2, 32], strides = [1, 1]} : vector<2x96xf32> to vector<2x32xf32>
    %319 = vector.extract_strided_slice %309 {offsets = [0, 32], sizes = [2, 32], strides = [1, 1]} : vector<2x96xf32> to vector<2x32xf32>
    %320 = arith.addf %318, %319 : vector<2x32xf32>
    %321 = arith.negf %320 : vector<2x32xf32>
    %322 = math.exp %321 : vector<2x32xf32>
    %cst_50 = arith.constant 1.000000e+00 : f32
    %323 = vector.broadcast %cst_50 : f32 to vector<2x32xf32>
    %324 = arith.addf %323, %322 : vector<2x32xf32>
    %325 = arith.divf %323, %324 : vector<2x32xf32>
    %326 = vector.extract_strided_slice %306 {offsets = [0, 64], sizes = [2, 32], strides = [1, 1]} : vector<2x96xf32> to vector<2x32xf32>
    %327 = vector.extract_strided_slice %309 {offsets = [0, 64], sizes = [2, 32], strides = [1, 1]} : vector<2x96xf32> to vector<2x32xf32>
    %328 = arith.mulf %317, %327 : vector<2x32xf32>
    %329 = arith.addf %326, %328 : vector<2x32xf32>
    %330 = math.tanh %329 : vector<2x32xf32>
    %cst_51 = arith.constant 1.000000e+00 : f32
    %331 = vector.broadcast %cst_51 : f32 to vector<2x32xf32>
    %332 = arith.subf %331, %325 : vector<2x32xf32>
    %333 = arith.mulf %332, %330 : vector<2x32xf32>
    %334 = arith.mulf %325, %302 : vector<2x32xf32>
    %335 = arith.addf %333, %334 : vector<2x32xf32>
    %336 = vector.extract_strided_slice %9 {offsets = [7, 0, 0], sizes = [1, 2, 1], strides = [1, 1, 1]} : vector<8x2x1xf32> to vector<1x2x1xf32>
    %337 = vector.shape_cast %336 : vector<1x2x1xf32> to vector<2x1xf32>
    %338 = vector.broadcast %337 : vector<2x1xf32> to vector<2x32xf32>
    %339 = arith.mulf %338, %335 : vector<2x32xf32>
    %cst_52 = arith.constant 1.000000e+00 : f32
    %340 = vector.broadcast %cst_52 : f32 to vector<2x1xf32>
    %341 = arith.subf %340, %337 : vector<2x1xf32>
    %342 = vector.broadcast %341 : vector<2x1xf32> to vector<2x32xf32>
    %343 = arith.mulf %342, %302 : vector<2x32xf32>
    %344 = arith.addf %339, %343 : vector<2x32xf32>
    %345 = vector.broadcast %337 : vector<2x1xf32> to vector<2x32xf32>
    %346 = arith.mulf %345, %344 : vector<2x32xf32>
    %347 = vector.shape_cast %52 : vector<2x32xf32> to vector<1x2x32xf32>
    %348 = vector.shape_cast %94 : vector<2x32xf32> to vector<1x2x32xf32>
    %349 = vector.shape_cast %136 : vector<2x32xf32> to vector<1x2x32xf32>
    %350 = vector.shape_cast %178 : vector<2x32xf32> to vector<1x2x32xf32>
    %351 = vector.shape_cast %220 : vector<2x32xf32> to vector<1x2x32xf32>
    %352 = vector.shape_cast %262 : vector<2x32xf32> to vector<1x2x32xf32>
    %353 = vector.shape_cast %304 : vector<2x32xf32> to vector<1x2x32xf32>
    %354 = vector.shape_cast %346 : vector<2x32xf32> to vector<1x2x32xf32>
    %355 = tpu.concatenate %347, %348, %349, %350, %351, %352, %353, %354 in 0 : vector<1x2x32xf32>, vector<1x2x32xf32>, vector<1x2x32xf32>, vector<1x2x32xf32>, vector<1x2x32xf32>, vector<1x2x32xf32>, vector<1x2x32xf32>, vector<1x2x32xf32> -> vector<8x2x32xf32>
    %356 = vector.shape_cast %355 : vector<8x2x32xf32> to vector<16x32xf32>
    %c0_53 = arith.constant 0 : index
    %c0_54 = arith.constant 0 : index
    %357 = vector.load %arg9[%c0_53, %c0_54] : memref<32x32xf32, #tpu.memory_space<vmem>>, vector<32x32xf32>
    %cst_55 = arith.constant dense<0.000000e+00> : vector<2x32xf32>
    %358 = tpu.matmul %344, %357, %cst_55 {dimension_numbers = #tpu.dot_dimension_numbers<[1], [0], [0], [1], [0, 0, 1, 1], [], []>} : vector<2x32xf32>, vector<32x32xf32>, vector<2x32xf32> -> vector<2x32xf32>
    %c0_56 = arith.constant 0 : index
    %c0_57 = arith.constant 0 : index
    %359 = vector.load %arg10[%c0_56, %c0_57] : memref<1x32xf32, #tpu.memory_space<vmem>>, vector<1x32xf32>
    %360 = vector.broadcast %359 : vector<1x32xf32> to vector<2x32xf32>
    %361 = arith.addf %358, %360 : vector<2x32xf32>
    %362 = math.tanh %361 : vector<2x32xf32>
    %c0_58 = arith.constant 0 : index
    %c0_59 = arith.constant 0 : index
    %363 = vector.load %arg13[%c0_58, %c0_59] : memref<32x32xf32, #tpu.memory_space<vmem>>, vector<32x32xf32>
    %cst_60 = arith.constant dense<0.000000e+00> : vector<16x32xf32>
    %364 = tpu.matmul %356, %363, %cst_60 {dimension_numbers = #tpu.dot_dimension_numbers<[1], [0], [0], [1], [0, 0, 1, 1], [], []>} : vector<16x32xf32>, vector<32x32xf32>, vector<16x32xf32> -> vector<16x32xf32>
    %c0_61 = arith.constant 0 : index
    %c0_62 = arith.constant 0 : index
    %365 = vector.load %arg14[%c0_61, %c0_62] : memref<1x32xf32, #tpu.memory_space<vmem>>, vector<1x32xf32>
    %366 = vector.broadcast %365 : vector<1x32xf32> to vector<16x32xf32>
    %367 = arith.addf %364, %366 : vector<16x32xf32>
    %368 = vector.shape_cast %367 : vector<16x32xf32> to vector<8x2x32xf32>
    %c0_63 = arith.constant 0 : index
    %c0_64 = arith.constant 0 : index
    %369 = vector.load %arg2[%c0_63, %c0_64] : memref<8x2xf32, #tpu.memory_space<vmem>>, vector<8x2xf32>
    %c0_65 = arith.constant 0 : index
    %c0_66 = arith.constant 0 : index
    %c0_67 = arith.constant 0 : index
    %370 = vector.load %arg3[%c0_65, %c0_66, %c0_67] : memref<6x2x1xi32, #tpu.memory_space<vmem>>, vector<6x2x1xi32>
    %c0_68 = arith.constant 0 : index
    %c0_69 = arith.constant 0 : index
    %c0_70 = arith.constant 0 : index
    %371 = vector.load %arg4[%c0_68, %c0_69, %c0_70] : memref<6x2x1xf32, #tpu.memory_space<vmem>>, vector<6x2x1xf32>
    %c0_71 = arith.constant 0 : index
    %c0_72 = arith.constant 0 : index
    %372 = vector.load %arg11[%c0_71, %c0_72] : memref<12x16xf32, #tpu.memory_space<vmem>>, vector<12x16xf32>
    %c0_73 = arith.constant 0 : index
    %c0_74 = arith.constant 0 : index
    %373 = vector.load %arg15[%c0_73, %c0_74] : memref<1x32xf32, #tpu.memory_space<vmem>>, vector<1x32xf32>
    %374 = tpu.iota {dimensions = array<i32: 1>} : vector<2x12xi32>
    %375 = arith.sitofp %374 : vector<2x12xi32> to vector<2x12xf32>
    %376 = vector.extract_strided_slice %370 {offsets = [0, 0, 0], sizes = [1, 2, 1], strides = [1, 1, 1]} : vector<6x2x1xi32> to vector<1x2x1xi32>
    %377 = vector.shape_cast %376 : vector<1x2x1xi32> to vector<2x1xi32>
    %378 = vector.broadcast %377 : vector<2x1xi32> to vector<2x12xi32>
    %379 = arith.cmpi eq, %374, %378 : vector<2x12xi32>
    %380 = arith.extui %379 : vector<2x12xi1> to vector<2x12xi32>
    %381 = arith.sitofp %380 : vector<2x12xi32> to vector<2x12xf32>
    %cst_75 = arith.constant dense<0.000000e+00> : vector<2x16xf32>
    %382 = tpu.matmul %381, %372, %cst_75 {dimension_numbers = #tpu.dot_dimension_numbers<[1], [0], [0], [1], [0, 0, 1, 1], [], []>} : vector<2x12xf32>, vector<12x16xf32>, vector<2x16xf32> -> vector<2x16xf32>
    %c0_76 = arith.constant 0 : index
    %c0_77 = arith.constant 0 : index
    %383 = vector.load %arg12[%c0_76, %c0_77] : memref<32x32xf32, #tpu.memory_space<vmem>>, vector<32x32xf32>
    %cst_78 = arith.constant dense<0.000000e+00> : vector<2x32xf32>
    %384 = tpu.matmul %362, %383, %cst_78 {dimension_numbers = #tpu.dot_dimension_numbers<[1], [0], [0], [1], [0, 0, 1, 1], [], []>} : vector<2x32xf32>, vector<32x32xf32>, vector<2x32xf32> -> vector<2x32xf32>
    %385 = vector.shape_cast %384 : vector<2x32xf32> to vector<1x2x32xf32>
    %386 = vector.broadcast %385 : vector<1x2x32xf32> to vector<8x2x32xf32>
    %387 = arith.addf %368, %386 : vector<8x2x32xf32>
    %388 = math.tanh %387 : vector<8x2x32xf32>
    %389 = vector.shape_cast %373 : vector<1x32xf32> to vector<1x1x32xf32>
    %390 = vector.broadcast %389 : vector<1x1x32xf32> to vector<8x2x32xf32>
    %391 = arith.mulf %388, %390 : vector<8x2x32xf32>
    %cst_79 = arith.constant dense<0.000000e+00> : vector<8x2xf32>
    %392 = vector.multi_reduction <add>, %391, %cst_79 [2] : vector<8x2x32xf32> to vector<8x2xf32>
    %cst_80 = arith.constant 0.000000e+00 : f32
    %393 = vector.broadcast %cst_80 : f32 to vector<8x2xf32>
    %394 = arith.cmpf ogt, %369, %393 : vector<8x2xf32>
    %cst_81 = arith.constant -1.000000e+10 : f32
    %395 = vector.broadcast %cst_81 : f32 to vector<8x2xf32>
    %396 = arith.select %394, %392, %395 : vector<8x2xi1>, vector<8x2xf32>
    %cst_82 = arith.constant dense<0xFF800000> : vector<2xf32>
    %397 = vector.multi_reduction <maximumf>, %396, %cst_82 [0] : vector<8x2xf32> to vector<2xf32>
    %398 = vector.shape_cast %397 : vector<2xf32> to vector<1x2xf32>
    %399 = vector.broadcast %398 : vector<1x2xf32> to vector<8x2xf32>
    %400 = arith.subf %396, %399 : vector<8x2xf32>
    %401 = math.exp %400 : vector<8x2xf32>
    %cst_83 = arith.constant dense<0.000000e+00> : vector<2xf32>
    %402 = vector.multi_reduction <add>, %401, %cst_83 [0] : vector<8x2xf32> to vector<2xf32>
    %403 = vector.shape_cast %402 : vector<2xf32> to vector<1x2xf32>
    %404 = tpu.reciprocal %403 {approx = true} : vector<1x2xf32> -> vector<1x2xf32>
    %405 = vector.broadcast %404 : vector<1x2xf32> to vector<8x2xf32>
    %406 = arith.mulf %401, %405 : vector<8x2xf32>
    %407 = vector.shape_cast %406 : vector<8x2xf32> to vector<8x2x1xf32>
    %408 = vector.broadcast %407 : vector<8x2x1xf32> to vector<8x2x32xf32>
    %409 = arith.mulf %408, %355 : vector<8x2x32xf32>
    %cst_84 = arith.constant dense<0.000000e+00> : vector<2x32xf32>
    %410 = vector.multi_reduction <add>, %409, %cst_84 [0] : vector<8x2x32xf32> to vector<2x32xf32>
    %c0_85 = arith.constant 0 : index
    %c0_86 = arith.constant 0 : index
    %411 = vector.load %arg16[%c0_85, %c0_86] : memref<16x96xf32, #tpu.memory_space<vmem>>, vector<16x96xf32>
    %cst_87 = arith.constant dense<0.000000e+00> : vector<2x96xf32>
    %412 = tpu.matmul %382, %411, %cst_87 {dimension_numbers = #tpu.dot_dimension_numbers<[1], [0], [0], [1], [0, 0, 1, 1], [], []>} : vector<2x16xf32>, vector<16x96xf32>, vector<2x96xf32> -> vector<2x96xf32>
    %c0_88 = arith.constant 0 : index
    %c0_89 = arith.constant 0 : index
    %413 = vector.load %arg17[%c0_88, %c0_89] : memref<32x96xf32, #tpu.memory_space<vmem>>, vector<32x96xf32>
    %cst_90 = arith.constant dense<0.000000e+00> : vector<2x96xf32>
    %414 = tpu.matmul %410, %413, %cst_90 {dimension_numbers = #tpu.dot_dimension_numbers<[1], [0], [0], [1], [0, 0, 1, 1], [], []>} : vector<2x32xf32>, vector<32x96xf32>, vector<2x96xf32> -> vector<2x96xf32>
    %415 = arith.addf %412, %414 : vector<2x96xf32>
    %c0_91 = arith.constant 0 : index
    %c0_92 = arith.constant 0 : index
    %416 = vector.load %arg19[%c0_91, %c0_92] : memref<1x96xf32, #tpu.memory_space<vmem>>, vector<1x96xf32>
    %417 = vector.broadcast %416 : vector<1x96xf32> to vector<2x96xf32>
    %418 = arith.addf %415, %417 : vector<2x96xf32>
    %c0_93 = arith.constant 0 : index
    %c0_94 = arith.constant 0 : index
    %419 = vector.load %arg18[%c0_93, %c0_94] : memref<32x96xf32, #tpu.memory_space<vmem>>, vector<32x96xf32>
    %cst_95 = arith.constant dense<0.000000e+00> : vector<2x96xf32>
    %420 = tpu.matmul %362, %419, %cst_95 {dimension_numbers = #tpu.dot_dimension_numbers<[1], [0], [0], [1], [0, 0, 1, 1], [], []>} : vector<2x32xf32>, vector<32x96xf32>, vector<2x96xf32> -> vector<2x96xf32>
    %c0_96 = arith.constant 0 : index
    %c0_97 = arith.constant 0 : index
    %421 = vector.load %arg20[%c0_96, %c0_97] : memref<1x96xf32, #tpu.memory_space<vmem>>, vector<1x96xf32>
    %422 = vector.broadcast %421 : vector<1x96xf32> to vector<2x96xf32>
    %423 = arith.addf %420, %422 : vector<2x96xf32>
    %424 = vector.extract_strided_slice %418 {offsets = [0, 0], sizes = [2, 32], strides = [1, 1]} : vector<2x96xf32> to vector<2x32xf32>
    %425 = vector.extract_strided_slice %423 {offsets = [0, 0], sizes = [2, 32], strides = [1, 1]} : vector<2x96xf32> to vector<2x32xf32>
    %426 = arith.addf %424, %425 : vector<2x32xf32>
    %427 = arith.negf %426 : vector<2x32xf32>
    %428 = math.exp %427 : vector<2x32xf32>
    %cst_98 = arith.constant 1.000000e+00 : f32
    %429 = vector.broadcast %cst_98 : f32 to vector<2x32xf32>
    %430 = arith.addf %429, %428 : vector<2x32xf32>
    %431 = arith.divf %429, %430 : vector<2x32xf32>
    %432 = vector.extract_strided_slice %418 {offsets = [0, 32], sizes = [2, 32], strides = [1, 1]} : vector<2x96xf32> to vector<2x32xf32>
    %433 = vector.extract_strided_slice %423 {offsets = [0, 32], sizes = [2, 32], strides = [1, 1]} : vector<2x96xf32> to vector<2x32xf32>
    %434 = arith.addf %432, %433 : vector<2x32xf32>
    %435 = arith.negf %434 : vector<2x32xf32>
    %436 = math.exp %435 : vector<2x32xf32>
    %cst_99 = arith.constant 1.000000e+00 : f32
    %437 = vector.broadcast %cst_99 : f32 to vector<2x32xf32>
    %438 = arith.addf %437, %436 : vector<2x32xf32>
    %439 = arith.divf %437, %438 : vector<2x32xf32>
    %440 = vector.extract_strided_slice %418 {offsets = [0, 64], sizes = [2, 32], strides = [1, 1]} : vector<2x96xf32> to vector<2x32xf32>
    %441 = vector.extract_strided_slice %423 {offsets = [0, 64], sizes = [2, 32], strides = [1, 1]} : vector<2x96xf32> to vector<2x32xf32>
    %442 = arith.mulf %431, %441 : vector<2x32xf32>
    %443 = arith.addf %440, %442 : vector<2x32xf32>
    %444 = math.tanh %443 : vector<2x32xf32>
    %cst_100 = arith.constant 1.000000e+00 : f32
    %445 = vector.broadcast %cst_100 : f32 to vector<2x32xf32>
    %446 = arith.subf %445, %439 : vector<2x32xf32>
    %447 = arith.mulf %446, %444 : vector<2x32xf32>
    %448 = arith.mulf %439, %362 : vector<2x32xf32>
    %449 = arith.addf %447, %448 : vector<2x32xf32>
    %c0_101 = arith.constant 0 : index
    %c0_102 = arith.constant 0 : index
    %450 = vector.load %arg21[%c0_101, %c0_102] : memref<32x12xf32, #tpu.memory_space<vmem>>, vector<32x12xf32>
    %cst_103 = arith.constant dense<0.000000e+00> : vector<2x12xf32>
    %451 = tpu.matmul %449, %450, %cst_103 {dimension_numbers = #tpu.dot_dimension_numbers<[1], [0], [0], [1], [0, 0, 1, 1], [], []>} : vector<2x32xf32>, vector<32x12xf32>, vector<2x12xf32> -> vector<2x12xf32>
    %c0_104 = arith.constant 0 : index
    %c0_105 = arith.constant 0 : index
    %452 = vector.load %arg22[%c0_104, %c0_105] : memref<32x12xf32, #tpu.memory_space<vmem>>, vector<32x12xf32>
    %cst_106 = arith.constant dense<0.000000e+00> : vector<2x12xf32>
    %453 = tpu.matmul %410, %452, %cst_106 {dimension_numbers = #tpu.dot_dimension_numbers<[1], [0], [0], [1], [0, 0, 1, 1], [], []>} : vector<2x32xf32>, vector<32x12xf32>, vector<2x12xf32> -> vector<2x12xf32>
    %454 = arith.addf %451, %453 : vector<2x12xf32>
    %c0_107 = arith.constant 0 : index
    %c0_108 = arith.constant 0 : index
    %455 = vector.load %arg23[%c0_107, %c0_108] : memref<16x12xf32, #tpu.memory_space<vmem>>, vector<16x12xf32>
    %cst_109 = arith.constant dense<0.000000e+00> : vector<2x12xf32>
    %456 = tpu.matmul %382, %455, %cst_109 {dimension_numbers = #tpu.dot_dimension_numbers<[1], [0], [0], [1], [0, 0, 1, 1], [], []>} : vector<2x16xf32>, vector<16x12xf32>, vector<2x12xf32> -> vector<2x12xf32>
    %457 = arith.addf %454, %456 : vector<2x12xf32>
    %c0_110 = arith.constant 0 : index
    %c0_111 = arith.constant 0 : index
    %458 = vector.load %arg24[%c0_110, %c0_111] : memref<1x12xf32, #tpu.memory_space<vmem>>, vector<1x12xf32>
    %459 = vector.broadcast %458 : vector<1x12xf32> to vector<2x12xf32>
    %460 = arith.addf %457, %459 : vector<2x12xf32>
    %cst_112 = arith.constant dense<0xFF800000> : vector<2xf32>
    %461 = vector.multi_reduction <maximumf>, %460, %cst_112 [1] : vector<2x12xf32> to vector<2xf32>
    %462 = vector.shape_cast %461 : vector<2xf32> to vector<2x1xf32>
    %463 = vector.broadcast %462 : vector<2x1xf32> to vector<2x12xf32>
    %464 = arith.cmpf oeq, %460, %463 : vector<2x12xf32>
    %cst_113 = arith.constant 1.200000e+01 : f32
    %465 = vector.broadcast %cst_113 : f32 to vector<2x12xf32>
    %466 = arith.select %464, %375, %465 : vector<2x12xi1>, vector<2x12xf32>
    %cst_114 = arith.constant dense<0x7F800000> : vector<2xf32>
    %467 = vector.multi_reduction <minimumf>, %466, %cst_114 [1] : vector<2x12xf32> to vector<2xf32>
    %468 = vector.shape_cast %467 : vector<2xf32> to vector<2x1xf32>
    %469 = arith.fptosi %468 : vector<2x1xf32> to vector<2x1xi32>
    %470 = vector.extract_strided_slice %371 {offsets = [1, 0, 0], sizes = [1, 2, 1], strides = [1, 1, 1]} : vector<6x2x1xf32> to vector<1x2x1xf32>
    %471 = vector.shape_cast %470 : vector<1x2x1xf32> to vector<2x1xf32>
    %cst_115 = arith.constant 5.000000e-01 : f32
    %472 = vector.broadcast %cst_115 : f32 to vector<2x1xf32>
    %473 = arith.cmpf ogt, %471, %472 : vector<2x1xf32>
    %474 = vector.extract_strided_slice %370 {offsets = [1, 0, 0], sizes = [1, 2, 1], strides = [1, 1, 1]} : vector<6x2x1xi32> to vector<1x2x1xi32>
    %475 = vector.shape_cast %474 : vector<1x2x1xi32> to vector<2x1xi32>
    %476 = arith.select %473, %475, %469 : vector<2x1xi1>, vector<2x1xi32>
    %477 = vector.broadcast %476 : vector<2x1xi32> to vector<2x12xi32>
    %478 = arith.cmpi eq, %374, %477 : vector<2x12xi32>
    %479 = arith.extui %478 : vector<2x12xi1> to vector<2x12xi32>
    %480 = arith.sitofp %479 : vector<2x12xi32> to vector<2x12xf32>
    %cst_116 = arith.constant dense<0.000000e+00> : vector<2x16xf32>
    %481 = tpu.matmul %480, %372, %cst_116 {dimension_numbers = #tpu.dot_dimension_numbers<[1], [0], [0], [1], [0, 0, 1, 1], [], []>} : vector<2x12xf32>, vector<12x16xf32>, vector<2x16xf32> -> vector<2x16xf32>
    %c0_117 = arith.constant 0 : index
    %c0_118 = arith.constant 0 : index
    %482 = vector.load %arg12[%c0_117, %c0_118] : memref<32x32xf32, #tpu.memory_space<vmem>>, vector<32x32xf32>
    %cst_119 = arith.constant dense<0.000000e+00> : vector<2x32xf32>
    %483 = tpu.matmul %449, %482, %cst_119 {dimension_numbers = #tpu.dot_dimension_numbers<[1], [0], [0], [1], [0, 0, 1, 1], [], []>} : vector<2x32xf32>, vector<32x32xf32>, vector<2x32xf32> -> vector<2x32xf32>
    %484 = vector.shape_cast %483 : vector<2x32xf32> to vector<1x2x32xf32>
    %485 = vector.broadcast %484 : vector<1x2x32xf32> to vector<8x2x32xf32>
    %486 = arith.addf %368, %485 : vector<8x2x32xf32>
    %487 = math.tanh %486 : vector<8x2x32xf32>
    %488 = vector.shape_cast %373 : vector<1x32xf32> to vector<1x1x32xf32>
    %489 = vector.broadcast %488 : vector<1x1x32xf32> to vector<8x2x32xf32>
    %490 = arith.mulf %487, %489 : vector<8x2x32xf32>
    %cst_120 = arith.constant dense<0.000000e+00> : vector<8x2xf32>
    %491 = vector.multi_reduction <add>, %490, %cst_120 [2] : vector<8x2x32xf32> to vector<8x2xf32>
    %cst_121 = arith.constant 0.000000e+00 : f32
    %492 = vector.broadcast %cst_121 : f32 to vector<8x2xf32>
    %493 = arith.cmpf ogt, %369, %492 : vector<8x2xf32>
    %cst_122 = arith.constant -1.000000e+10 : f32
    %494 = vector.broadcast %cst_122 : f32 to vector<8x2xf32>
    %495 = arith.select %493, %491, %494 : vector<8x2xi1>, vector<8x2xf32>
    %cst_123 = arith.constant dense<0xFF800000> : vector<2xf32>
    %496 = vector.multi_reduction <maximumf>, %495, %cst_123 [0] : vector<8x2xf32> to vector<2xf32>
    %497 = vector.shape_cast %496 : vector<2xf32> to vector<1x2xf32>
    %498 = vector.broadcast %497 : vector<1x2xf32> to vector<8x2xf32>
    %499 = arith.subf %495, %498 : vector<8x2xf32>
    %500 = math.exp %499 : vector<8x2xf32>
    %cst_124 = arith.constant dense<0.000000e+00> : vector<2xf32>
    %501 = vector.multi_reduction <add>, %500, %cst_124 [0] : vector<8x2xf32> to vector<2xf32>
    %502 = vector.shape_cast %501 : vector<2xf32> to vector<1x2xf32>
    %503 = tpu.reciprocal %502 {approx = true} : vector<1x2xf32> -> vector<1x2xf32>
    %504 = vector.broadcast %503 : vector<1x2xf32> to vector<8x2xf32>
    %505 = arith.mulf %500, %504 : vector<8x2xf32>
    %506 = vector.shape_cast %505 : vector<8x2xf32> to vector<8x2x1xf32>
    %507 = vector.broadcast %506 : vector<8x2x1xf32> to vector<8x2x32xf32>
    %508 = arith.mulf %507, %355 : vector<8x2x32xf32>
    %cst_125 = arith.constant dense<0.000000e+00> : vector<2x32xf32>
    %509 = vector.multi_reduction <add>, %508, %cst_125 [0] : vector<8x2x32xf32> to vector<2x32xf32>
    %c0_126 = arith.constant 0 : index
    %c0_127 = arith.constant 0 : index
    %510 = vector.load %arg16[%c0_126, %c0_127] : memref<16x96xf32, #tpu.memory_space<vmem>>, vector<16x96xf32>
    %cst_128 = arith.constant dense<0.000000e+00> : vector<2x96xf32>
    %511 = tpu.matmul %481, %510, %cst_128 {dimension_numbers = #tpu.dot_dimension_numbers<[1], [0], [0], [1], [0, 0, 1, 1], [], []>} : vector<2x16xf32>, vector<16x96xf32>, vector<2x96xf32> -> vector<2x96xf32>
    %c0_129 = arith.constant 0 : index
    %c0_130 = arith.constant 0 : index
    %512 = vector.load %arg17[%c0_129, %c0_130] : memref<32x96xf32, #tpu.memory_space<vmem>>, vector<32x96xf32>
    %cst_131 = arith.constant dense<0.000000e+00> : vector<2x96xf32>
    %513 = tpu.matmul %509, %512, %cst_131 {dimension_numbers = #tpu.dot_dimension_numbers<[1], [0], [0], [1], [0, 0, 1, 1], [], []>} : vector<2x32xf32>, vector<32x96xf32>, vector<2x96xf32> -> vector<2x96xf32>
    %514 = arith.addf %511, %513 : vector<2x96xf32>
    %c0_132 = arith.constant 0 : index
    %c0_133 = arith.constant 0 : index
    %515 = vector.load %arg19[%c0_132, %c0_133] : memref<1x96xf32, #tpu.memory_space<vmem>>, vector<1x96xf32>
    %516 = vector.broadcast %515 : vector<1x96xf32> to vector<2x96xf32>
    %517 = arith.addf %514, %516 : vector<2x96xf32>
    %c0_134 = arith.constant 0 : index
    %c0_135 = arith.constant 0 : index
    %518 = vector.load %arg18[%c0_134, %c0_135] : memref<32x96xf32, #tpu.memory_space<vmem>>, vector<32x96xf32>
    %cst_136 = arith.constant dense<0.000000e+00> : vector<2x96xf32>
    %519 = tpu.matmul %449, %518, %cst_136 {dimension_numbers = #tpu.dot_dimension_numbers<[1], [0], [0], [1], [0, 0, 1, 1], [], []>} : vector<2x32xf32>, vector<32x96xf32>, vector<2x96xf32> -> vector<2x96xf32>
    %c0_137 = arith.constant 0 : index
    %c0_138 = arith.constant 0 : index
    %520 = vector.load %arg20[%c0_137, %c0_138] : memref<1x96xf32, #tpu.memory_space<vmem>>, vector<1x96xf32>
    %521 = vector.broadcast %520 : vector<1x96xf32> to vector<2x96xf32>
    %522 = arith.addf %519, %521 : vector<2x96xf32>
    %523 = vector.extract_strided_slice %517 {offsets = [0, 0], sizes = [2, 32], strides = [1, 1]} : vector<2x96xf32> to vector<2x32xf32>
    %524 = vector.extract_strided_slice %522 {offsets = [0, 0], sizes = [2, 32], strides = [1, 1]} : vector<2x96xf32> to vector<2x32xf32>
    %525 = arith.addf %523, %524 : vector<2x32xf32>
    %526 = arith.negf %525 : vector<2x32xf32>
    %527 = math.exp %526 : vector<2x32xf32>
    %cst_139 = arith.constant 1.000000e+00 : f32
    %528 = vector.broadcast %cst_139 : f32 to vector<2x32xf32>
    %529 = arith.addf %528, %527 : vector<2x32xf32>
    %530 = arith.divf %528, %529 : vector<2x32xf32>
    %531 = vector.extract_strided_slice %517 {offsets = [0, 32], sizes = [2, 32], strides = [1, 1]} : vector<2x96xf32> to vector<2x32xf32>
    %532 = vector.extract_strided_slice %522 {offsets = [0, 32], sizes = [2, 32], strides = [1, 1]} : vector<2x96xf32> to vector<2x32xf32>
    %533 = arith.addf %531, %532 : vector<2x32xf32>
    %534 = arith.negf %533 : vector<2x32xf32>
    %535 = math.exp %534 : vector<2x32xf32>
    %cst_140 = arith.constant 1.000000e+00 : f32
    %536 = vector.broadcast %cst_140 : f32 to vector<2x32xf32>
    %537 = arith.addf %536, %535 : vector<2x32xf32>
    %538 = arith.divf %536, %537 : vector<2x32xf32>
    %539 = vector.extract_strided_slice %517 {offsets = [0, 64], sizes = [2, 32], strides = [1, 1]} : vector<2x96xf32> to vector<2x32xf32>
    %540 = vector.extract_strided_slice %522 {offsets = [0, 64], sizes = [2, 32], strides = [1, 1]} : vector<2x96xf32> to vector<2x32xf32>
    %541 = arith.mulf %530, %540 : vector<2x32xf32>
    %542 = arith.addf %539, %541 : vector<2x32xf32>
    %543 = math.tanh %542 : vector<2x32xf32>
    %cst_141 = arith.constant 1.000000e+00 : f32
    %544 = vector.broadcast %cst_141 : f32 to vector<2x32xf32>
    %545 = arith.subf %544, %538 : vector<2x32xf32>
    %546 = arith.mulf %545, %543 : vector<2x32xf32>
    %547 = arith.mulf %538, %449 : vector<2x32xf32>
    %548 = arith.addf %546, %547 : vector<2x32xf32>
    %c0_142 = arith.constant 0 : index
    %c0_143 = arith.constant 0 : index
    %549 = vector.load %arg21[%c0_142, %c0_143] : memref<32x12xf32, #tpu.memory_space<vmem>>, vector<32x12xf32>
    %cst_144 = arith.constant dense<0.000000e+00> : vector<2x12xf32>
    %550 = tpu.matmul %548, %549, %cst_144 {dimension_numbers = #tpu.dot_dimension_numbers<[1], [0], [0], [1], [0, 0, 1, 1], [], []>} : vector<2x32xf32>, vector<32x12xf32>, vector<2x12xf32> -> vector<2x12xf32>
    %c0_145 = arith.constant 0 : index
    %c0_146 = arith.constant 0 : index
    %551 = vector.load %arg22[%c0_145, %c0_146] : memref<32x12xf32, #tpu.memory_space<vmem>>, vector<32x12xf32>
    %cst_147 = arith.constant dense<0.000000e+00> : vector<2x12xf32>
    %552 = tpu.matmul %509, %551, %cst_147 {dimension_numbers = #tpu.dot_dimension_numbers<[1], [0], [0], [1], [0, 0, 1, 1], [], []>} : vector<2x32xf32>, vector<32x12xf32>, vector<2x12xf32> -> vector<2x12xf32>
    %553 = arith.addf %550, %552 : vector<2x12xf32>
    %c0_148 = arith.constant 0 : index
    %c0_149 = arith.constant 0 : index
    %554 = vector.load %arg23[%c0_148, %c0_149] : memref<16x12xf32, #tpu.memory_space<vmem>>, vector<16x12xf32>
    %cst_150 = arith.constant dense<0.000000e+00> : vector<2x12xf32>
    %555 = tpu.matmul %481, %554, %cst_150 {dimension_numbers = #tpu.dot_dimension_numbers<[1], [0], [0], [1], [0, 0, 1, 1], [], []>} : vector<2x16xf32>, vector<16x12xf32>, vector<2x12xf32> -> vector<2x12xf32>
    %556 = arith.addf %553, %555 : vector<2x12xf32>
    %c0_151 = arith.constant 0 : index
    %c0_152 = arith.constant 0 : index
    %557 = vector.load %arg24[%c0_151, %c0_152] : memref<1x12xf32, #tpu.memory_space<vmem>>, vector<1x12xf32>
    %558 = vector.broadcast %557 : vector<1x12xf32> to vector<2x12xf32>
    %559 = arith.addf %556, %558 : vector<2x12xf32>
    %cst_153 = arith.constant dense<0xFF800000> : vector<2xf32>
    %560 = vector.multi_reduction <maximumf>, %559, %cst_153 [1] : vector<2x12xf32> to vector<2xf32>
    %561 = vector.shape_cast %560 : vector<2xf32> to vector<2x1xf32>
    %562 = vector.broadcast %561 : vector<2x1xf32> to vector<2x12xf32>
    %563 = arith.cmpf oeq, %559, %562 : vector<2x12xf32>
    %cst_154 = arith.constant 1.200000e+01 : f32
    %564 = vector.broadcast %cst_154 : f32 to vector<2x12xf32>
    %565 = arith.select %563, %375, %564 : vector<2x12xi1>, vector<2x12xf32>
    %cst_155 = arith.constant dense<0x7F800000> : vector<2xf32>
    %566 = vector.multi_reduction <minimumf>, %565, %cst_155 [1] : vector<2x12xf32> to vector<2xf32>
    %567 = vector.shape_cast %566 : vector<2xf32> to vector<2x1xf32>
    %568 = arith.fptosi %567 : vector<2x1xf32> to vector<2x1xi32>
    %569 = vector.extract_strided_slice %371 {offsets = [2, 0, 0], sizes = [1, 2, 1], strides = [1, 1, 1]} : vector<6x2x1xf32> to vector<1x2x1xf32>
    %570 = vector.shape_cast %569 : vector<1x2x1xf32> to vector<2x1xf32>
    %cst_156 = arith.constant 5.000000e-01 : f32
    %571 = vector.broadcast %cst_156 : f32 to vector<2x1xf32>
    %572 = arith.cmpf ogt, %570, %571 : vector<2x1xf32>
    %573 = vector.extract_strided_slice %370 {offsets = [2, 0, 0], sizes = [1, 2, 1], strides = [1, 1, 1]} : vector<6x2x1xi32> to vector<1x2x1xi32>
    %574 = vector.shape_cast %573 : vector<1x2x1xi32> to vector<2x1xi32>
    %575 = arith.select %572, %574, %568 : vector<2x1xi1>, vector<2x1xi32>
    %576 = vector.broadcast %575 : vector<2x1xi32> to vector<2x12xi32>
    %577 = arith.cmpi eq, %374, %576 : vector<2x12xi32>
    %578 = arith.extui %577 : vector<2x12xi1> to vector<2x12xi32>
    %579 = arith.sitofp %578 : vector<2x12xi32> to vector<2x12xf32>
    %cst_157 = arith.constant dense<0.000000e+00> : vector<2x16xf32>
    %580 = tpu.matmul %579, %372, %cst_157 {dimension_numbers = #tpu.dot_dimension_numbers<[1], [0], [0], [1], [0, 0, 1, 1], [], []>} : vector<2x12xf32>, vector<12x16xf32>, vector<2x16xf32> -> vector<2x16xf32>
    %c0_158 = arith.constant 0 : index
    %c0_159 = arith.constant 0 : index
    %581 = vector.load %arg12[%c0_158, %c0_159] : memref<32x32xf32, #tpu.memory_space<vmem>>, vector<32x32xf32>
    %cst_160 = arith.constant dense<0.000000e+00> : vector<2x32xf32>
    %582 = tpu.matmul %548, %581, %cst_160 {dimension_numbers = #tpu.dot_dimension_numbers<[1], [0], [0], [1], [0, 0, 1, 1], [], []>} : vector<2x32xf32>, vector<32x32xf32>, vector<2x32xf32> -> vector<2x32xf32>
    %583 = vector.shape_cast %582 : vector<2x32xf32> to vector<1x2x32xf32>
    %584 = vector.broadcast %583 : vector<1x2x32xf32> to vector<8x2x32xf32>
    %585 = arith.addf %368, %584 : vector<8x2x32xf32>
    %586 = math.tanh %585 : vector<8x2x32xf32>
    %587 = vector.shape_cast %373 : vector<1x32xf32> to vector<1x1x32xf32>
    %588 = vector.broadcast %587 : vector<1x1x32xf32> to vector<8x2x32xf32>
    %589 = arith.mulf %586, %588 : vector<8x2x32xf32>
    %cst_161 = arith.constant dense<0.000000e+00> : vector<8x2xf32>
    %590 = vector.multi_reduction <add>, %589, %cst_161 [2] : vector<8x2x32xf32> to vector<8x2xf32>
    %cst_162 = arith.constant 0.000000e+00 : f32
    %591 = vector.broadcast %cst_162 : f32 to vector<8x2xf32>
    %592 = arith.cmpf ogt, %369, %591 : vector<8x2xf32>
    %cst_163 = arith.constant -1.000000e+10 : f32
    %593 = vector.broadcast %cst_163 : f32 to vector<8x2xf32>
    %594 = arith.select %592, %590, %593 : vector<8x2xi1>, vector<8x2xf32>
    %cst_164 = arith.constant dense<0xFF800000> : vector<2xf32>
    %595 = vector.multi_reduction <maximumf>, %594, %cst_164 [0] : vector<8x2xf32> to vector<2xf32>
    %596 = vector.shape_cast %595 : vector<2xf32> to vector<1x2xf32>
    %597 = vector.broadcast %596 : vector<1x2xf32> to vector<8x2xf32>
    %598 = arith.subf %594, %597 : vector<8x2xf32>
    %599 = math.exp %598 : vector<8x2xf32>
    %cst_165 = arith.constant dense<0.000000e+00> : vector<2xf32>
    %600 = vector.multi_reduction <add>, %599, %cst_165 [0] : vector<8x2xf32> to vector<2xf32>
    %601 = vector.shape_cast %600 : vector<2xf32> to vector<1x2xf32>
    %602 = tpu.reciprocal %601 {approx = true} : vector<1x2xf32> -> vector<1x2xf32>
    %603 = vector.broadcast %602 : vector<1x2xf32> to vector<8x2xf32>
    %604 = arith.mulf %599, %603 : vector<8x2xf32>
    %605 = vector.shape_cast %604 : vector<8x2xf32> to vector<8x2x1xf32>
    %606 = vector.broadcast %605 : vector<8x2x1xf32> to vector<8x2x32xf32>
    %607 = arith.mulf %606, %355 : vector<8x2x32xf32>
    %cst_166 = arith.constant dense<0.000000e+00> : vector<2x32xf32>
    %608 = vector.multi_reduction <add>, %607, %cst_166 [0] : vector<8x2x32xf32> to vector<2x32xf32>
    %c0_167 = arith.constant 0 : index
    %c0_168 = arith.constant 0 : index
    %609 = vector.load %arg16[%c0_167, %c0_168] : memref<16x96xf32, #tpu.memory_space<vmem>>, vector<16x96xf32>
    %cst_169 = arith.constant dense<0.000000e+00> : vector<2x96xf32>
    %610 = tpu.matmul %580, %609, %cst_169 {dimension_numbers = #tpu.dot_dimension_numbers<[1], [0], [0], [1], [0, 0, 1, 1], [], []>} : vector<2x16xf32>, vector<16x96xf32>, vector<2x96xf32> -> vector<2x96xf32>
    %c0_170 = arith.constant 0 : index
    %c0_171 = arith.constant 0 : index
    %611 = vector.load %arg17[%c0_170, %c0_171] : memref<32x96xf32, #tpu.memory_space<vmem>>, vector<32x96xf32>
    %cst_172 = arith.constant dense<0.000000e+00> : vector<2x96xf32>
    %612 = tpu.matmul %608, %611, %cst_172 {dimension_numbers = #tpu.dot_dimension_numbers<[1], [0], [0], [1], [0, 0, 1, 1], [], []>} : vector<2x32xf32>, vector<32x96xf32>, vector<2x96xf32> -> vector<2x96xf32>
    %613 = arith.addf %610, %612 : vector<2x96xf32>
    %c0_173 = arith.constant 0 : index
    %c0_174 = arith.constant 0 : index
    %614 = vector.load %arg19[%c0_173, %c0_174] : memref<1x96xf32, #tpu.memory_space<vmem>>, vector<1x96xf32>
    %615 = vector.broadcast %614 : vector<1x96xf32> to vector<2x96xf32>
    %616 = arith.addf %613, %615 : vector<2x96xf32>
    %c0_175 = arith.constant 0 : index
    %c0_176 = arith.constant 0 : index
    %617 = vector.load %arg18[%c0_175, %c0_176] : memref<32x96xf32, #tpu.memory_space<vmem>>, vector<32x96xf32>
    %cst_177 = arith.constant dense<0.000000e+00> : vector<2x96xf32>
    %618 = tpu.matmul %548, %617, %cst_177 {dimension_numbers = #tpu.dot_dimension_numbers<[1], [0], [0], [1], [0, 0, 1, 1], [], []>} : vector<2x32xf32>, vector<32x96xf32>, vector<2x96xf32> -> vector<2x96xf32>
    %c0_178 = arith.constant 0 : index
    %c0_179 = arith.constant 0 : index
    %619 = vector.load %arg20[%c0_178, %c0_179] : memref<1x96xf32, #tpu.memory_space<vmem>>, vector<1x96xf32>
    %620 = vector.broadcast %619 : vector<1x96xf32> to vector<2x96xf32>
    %621 = arith.addf %618, %620 : vector<2x96xf32>
    %622 = vector.extract_strided_slice %616 {offsets = [0, 0], sizes = [2, 32], strides = [1, 1]} : vector<2x96xf32> to vector<2x32xf32>
    %623 = vector.extract_strided_slice %621 {offsets = [0, 0], sizes = [2, 32], strides = [1, 1]} : vector<2x96xf32> to vector<2x32xf32>
    %624 = arith.addf %622, %623 : vector<2x32xf32>
    %625 = arith.negf %624 : vector<2x32xf32>
    %626 = math.exp %625 : vector<2x32xf32>
    %cst_180 = arith.constant 1.000000e+00 : f32
    %627 = vector.broadcast %cst_180 : f32 to vector<2x32xf32>
    %628 = arith.addf %627, %626 : vector<2x32xf32>
    %629 = arith.divf %627, %628 : vector<2x32xf32>
    %630 = vector.extract_strided_slice %616 {offsets = [0, 32], sizes = [2, 32], strides = [1, 1]} : vector<2x96xf32> to vector<2x32xf32>
    %631 = vector.extract_strided_slice %621 {offsets = [0, 32], sizes = [2, 32], strides = [1, 1]} : vector<2x96xf32> to vector<2x32xf32>
    %632 = arith.addf %630, %631 : vector<2x32xf32>
    %633 = arith.negf %632 : vector<2x32xf32>
    %634 = math.exp %633 : vector<2x32xf32>
    %cst_181 = arith.constant 1.000000e+00 : f32
    %635 = vector.broadcast %cst_181 : f32 to vector<2x32xf32>
    %636 = arith.addf %635, %634 : vector<2x32xf32>
    %637 = arith.divf %635, %636 : vector<2x32xf32>
    %638 = vector.extract_strided_slice %616 {offsets = [0, 64], sizes = [2, 32], strides = [1, 1]} : vector<2x96xf32> to vector<2x32xf32>
    %639 = vector.extract_strided_slice %621 {offsets = [0, 64], sizes = [2, 32], strides = [1, 1]} : vector<2x96xf32> to vector<2x32xf32>
    %640 = arith.mulf %629, %639 : vector<2x32xf32>
    %641 = arith.addf %638, %640 : vector<2x32xf32>
    %642 = math.tanh %641 : vector<2x32xf32>
    %cst_182 = arith.constant 1.000000e+00 : f32
    %643 = vector.broadcast %cst_182 : f32 to vector<2x32xf32>
    %644 = arith.subf %643, %637 : vector<2x32xf32>
    %645 = arith.mulf %644, %642 : vector<2x32xf32>
    %646 = arith.mulf %637, %548 : vector<2x32xf32>
    %647 = arith.addf %645, %646 : vector<2x32xf32>
    %c0_183 = arith.constant 0 : index
    %c0_184 = arith.constant 0 : index
    %648 = vector.load %arg21[%c0_183, %c0_184] : memref<32x12xf32, #tpu.memory_space<vmem>>, vector<32x12xf32>
    %cst_185 = arith.constant dense<0.000000e+00> : vector<2x12xf32>
    %649 = tpu.matmul %647, %648, %cst_185 {dimension_numbers = #tpu.dot_dimension_numbers<[1], [0], [0], [1], [0, 0, 1, 1], [], []>} : vector<2x32xf32>, vector<32x12xf32>, vector<2x12xf32> -> vector<2x12xf32>
    %c0_186 = arith.constant 0 : index
    %c0_187 = arith.constant 0 : index
    %650 = vector.load %arg22[%c0_186, %c0_187] : memref<32x12xf32, #tpu.memory_space<vmem>>, vector<32x12xf32>
    %cst_188 = arith.constant dense<0.000000e+00> : vector<2x12xf32>
    %651 = tpu.matmul %608, %650, %cst_188 {dimension_numbers = #tpu.dot_dimension_numbers<[1], [0], [0], [1], [0, 0, 1, 1], [], []>} : vector<2x32xf32>, vector<32x12xf32>, vector<2x12xf32> -> vector<2x12xf32>
    %652 = arith.addf %649, %651 : vector<2x12xf32>
    %c0_189 = arith.constant 0 : index
    %c0_190 = arith.constant 0 : index
    %653 = vector.load %arg23[%c0_189, %c0_190] : memref<16x12xf32, #tpu.memory_space<vmem>>, vector<16x12xf32>
    %cst_191 = arith.constant dense<0.000000e+00> : vector<2x12xf32>
    %654 = tpu.matmul %580, %653, %cst_191 {dimension_numbers = #tpu.dot_dimension_numbers<[1], [0], [0], [1], [0, 0, 1, 1], [], []>} : vector<2x16xf32>, vector<16x12xf32>, vector<2x12xf32> -> vector<2x12xf32>
    %655 = arith.addf %652, %654 : vector<2x12xf32>
    %c0_192 = arith.constant 0 : index
    %c0_193 = arith.constant 0 : index
    %656 = vector.load %arg24[%c0_192, %c0_193] : memref<1x12xf32, #tpu.memory_space<vmem>>, vector<1x12xf32>
    %657 = vector.broadcast %656 : vector<1x12xf32> to vector<2x12xf32>
    %658 = arith.addf %655, %657 : vector<2x12xf32>
    %cst_194 = arith.constant dense<0xFF800000> : vector<2xf32>
    %659 = vector.multi_reduction <maximumf>, %658, %cst_194 [1] : vector<2x12xf32> to vector<2xf32>
    %660 = vector.shape_cast %659 : vector<2xf32> to vector<2x1xf32>
    %661 = vector.broadcast %660 : vector<2x1xf32> to vector<2x12xf32>
    %662 = arith.cmpf oeq, %658, %661 : vector<2x12xf32>
    %cst_195 = arith.constant 1.200000e+01 : f32
    %663 = vector.broadcast %cst_195 : f32 to vector<2x12xf32>
    %664 = arith.select %662, %375, %663 : vector<2x12xi1>, vector<2x12xf32>
    %cst_196 = arith.constant dense<0x7F800000> : vector<2xf32>
    %665 = vector.multi_reduction <minimumf>, %664, %cst_196 [1] : vector<2x12xf32> to vector<2xf32>
    %666 = vector.shape_cast %665 : vector<2xf32> to vector<2x1xf32>
    %667 = arith.fptosi %666 : vector<2x1xf32> to vector<2x1xi32>
    %668 = vector.extract_strided_slice %371 {offsets = [3, 0, 0], sizes = [1, 2, 1], strides = [1, 1, 1]} : vector<6x2x1xf32> to vector<1x2x1xf32>
    %669 = vector.shape_cast %668 : vector<1x2x1xf32> to vector<2x1xf32>
    %cst_197 = arith.constant 5.000000e-01 : f32
    %670 = vector.broadcast %cst_197 : f32 to vector<2x1xf32>
    %671 = arith.cmpf ogt, %669, %670 : vector<2x1xf32>
    %672 = vector.extract_strided_slice %370 {offsets = [3, 0, 0], sizes = [1, 2, 1], strides = [1, 1, 1]} : vector<6x2x1xi32> to vector<1x2x1xi32>
    %673 = vector.shape_cast %672 : vector<1x2x1xi32> to vector<2x1xi32>
    %674 = arith.select %671, %673, %667 : vector<2x1xi1>, vector<2x1xi32>
    %675 = vector.broadcast %674 : vector<2x1xi32> to vector<2x12xi32>
    %676 = arith.cmpi eq, %374, %675 : vector<2x12xi32>
    %677 = arith.extui %676 : vector<2x12xi1> to vector<2x12xi32>
    %678 = arith.sitofp %677 : vector<2x12xi32> to vector<2x12xf32>
    %cst_198 = arith.constant dense<0.000000e+00> : vector<2x16xf32>
    %679 = tpu.matmul %678, %372, %cst_198 {dimension_numbers = #tpu.dot_dimension_numbers<[1], [0], [0], [1], [0, 0, 1, 1], [], []>} : vector<2x12xf32>, vector<12x16xf32>, vector<2x16xf32> -> vector<2x16xf32>
    %c0_199 = arith.constant 0 : index
    %c0_200 = arith.constant 0 : index
    %680 = vector.load %arg12[%c0_199, %c0_200] : memref<32x32xf32, #tpu.memory_space<vmem>>, vector<32x32xf32>
    %cst_201 = arith.constant dense<0.000000e+00> : vector<2x32xf32>
    %681 = tpu.matmul %647, %680, %cst_201 {dimension_numbers = #tpu.dot_dimension_numbers<[1], [0], [0], [1], [0, 0, 1, 1], [], []>} : vector<2x32xf32>, vector<32x32xf32>, vector<2x32xf32> -> vector<2x32xf32>
    %682 = vector.shape_cast %681 : vector<2x32xf32> to vector<1x2x32xf32>
    %683 = vector.broadcast %682 : vector<1x2x32xf32> to vector<8x2x32xf32>
    %684 = arith.addf %368, %683 : vector<8x2x32xf32>
    %685 = math.tanh %684 : vector<8x2x32xf32>
    %686 = vector.shape_cast %373 : vector<1x32xf32> to vector<1x1x32xf32>
    %687 = vector.broadcast %686 : vector<1x1x32xf32> to vector<8x2x32xf32>
    %688 = arith.mulf %685, %687 : vector<8x2x32xf32>
    %cst_202 = arith.constant dense<0.000000e+00> : vector<8x2xf32>
    %689 = vector.multi_reduction <add>, %688, %cst_202 [2] : vector<8x2x32xf32> to vector<8x2xf32>
    %cst_203 = arith.constant 0.000000e+00 : f32
    %690 = vector.broadcast %cst_203 : f32 to vector<8x2xf32>
    %691 = arith.cmpf ogt, %369, %690 : vector<8x2xf32>
    %cst_204 = arith.constant -1.000000e+10 : f32
    %692 = vector.broadcast %cst_204 : f32 to vector<8x2xf32>
    %693 = arith.select %691, %689, %692 : vector<8x2xi1>, vector<8x2xf32>
    %cst_205 = arith.constant dense<0xFF800000> : vector<2xf32>
    %694 = vector.multi_reduction <maximumf>, %693, %cst_205 [0] : vector<8x2xf32> to vector<2xf32>
    %695 = vector.shape_cast %694 : vector<2xf32> to vector<1x2xf32>
    %696 = vector.broadcast %695 : vector<1x2xf32> to vector<8x2xf32>
    %697 = arith.subf %693, %696 : vector<8x2xf32>
    %698 = math.exp %697 : vector<8x2xf32>
    %cst_206 = arith.constant dense<0.000000e+00> : vector<2xf32>
    %699 = vector.multi_reduction <add>, %698, %cst_206 [0] : vector<8x2xf32> to vector<2xf32>
    %700 = vector.shape_cast %699 : vector<2xf32> to vector<1x2xf32>
    %701 = tpu.reciprocal %700 {approx = true} : vector<1x2xf32> -> vector<1x2xf32>
    %702 = vector.broadcast %701 : vector<1x2xf32> to vector<8x2xf32>
    %703 = arith.mulf %698, %702 : vector<8x2xf32>
    %704 = vector.shape_cast %703 : vector<8x2xf32> to vector<8x2x1xf32>
    %705 = vector.broadcast %704 : vector<8x2x1xf32> to vector<8x2x32xf32>
    %706 = arith.mulf %705, %355 : vector<8x2x32xf32>
    %cst_207 = arith.constant dense<0.000000e+00> : vector<2x32xf32>
    %707 = vector.multi_reduction <add>, %706, %cst_207 [0] : vector<8x2x32xf32> to vector<2x32xf32>
    %c0_208 = arith.constant 0 : index
    %c0_209 = arith.constant 0 : index
    %708 = vector.load %arg16[%c0_208, %c0_209] : memref<16x96xf32, #tpu.memory_space<vmem>>, vector<16x96xf32>
    %cst_210 = arith.constant dense<0.000000e+00> : vector<2x96xf32>
    %709 = tpu.matmul %679, %708, %cst_210 {dimension_numbers = #tpu.dot_dimension_numbers<[1], [0], [0], [1], [0, 0, 1, 1], [], []>} : vector<2x16xf32>, vector<16x96xf32>, vector<2x96xf32> -> vector<2x96xf32>
    %c0_211 = arith.constant 0 : index
    %c0_212 = arith.constant 0 : index
    %710 = vector.load %arg17[%c0_211, %c0_212] : memref<32x96xf32, #tpu.memory_space<vmem>>, vector<32x96xf32>
    %cst_213 = arith.constant dense<0.000000e+00> : vector<2x96xf32>
    %711 = tpu.matmul %707, %710, %cst_213 {dimension_numbers = #tpu.dot_dimension_numbers<[1], [0], [0], [1], [0, 0, 1, 1], [], []>} : vector<2x32xf32>, vector<32x96xf32>, vector<2x96xf32> -> vector<2x96xf32>
    %712 = arith.addf %709, %711 : vector<2x96xf32>
    %c0_214 = arith.constant 0 : index
    %c0_215 = arith.constant 0 : index
    %713 = vector.load %arg19[%c0_214, %c0_215] : memref<1x96xf32, #tpu.memory_space<vmem>>, vector<1x96xf32>
    %714 = vector.broadcast %713 : vector<1x96xf32> to vector<2x96xf32>
    %715 = arith.addf %712, %714 : vector<2x96xf32>
    %c0_216 = arith.constant 0 : index
    %c0_217 = arith.constant 0 : index
    %716 = vector.load %arg18[%c0_216, %c0_217] : memref<32x96xf32, #tpu.memory_space<vmem>>, vector<32x96xf32>
    %cst_218 = arith.constant dense<0.000000e+00> : vector<2x96xf32>
    %717 = tpu.matmul %647, %716, %cst_218 {dimension_numbers = #tpu.dot_dimension_numbers<[1], [0], [0], [1], [0, 0, 1, 1], [], []>} : vector<2x32xf32>, vector<32x96xf32>, vector<2x96xf32> -> vector<2x96xf32>
    %c0_219 = arith.constant 0 : index
    %c0_220 = arith.constant 0 : index
    %718 = vector.load %arg20[%c0_219, %c0_220] : memref<1x96xf32, #tpu.memory_space<vmem>>, vector<1x96xf32>
    %719 = vector.broadcast %718 : vector<1x96xf32> to vector<2x96xf32>
    %720 = arith.addf %717, %719 : vector<2x96xf32>
    %721 = vector.extract_strided_slice %715 {offsets = [0, 0], sizes = [2, 32], strides = [1, 1]} : vector<2x96xf32> to vector<2x32xf32>
    %722 = vector.extract_strided_slice %720 {offsets = [0, 0], sizes = [2, 32], strides = [1, 1]} : vector<2x96xf32> to vector<2x32xf32>
    %723 = arith.addf %721, %722 : vector<2x32xf32>
    %724 = arith.negf %723 : vector<2x32xf32>
    %725 = math.exp %724 : vector<2x32xf32>
    %cst_221 = arith.constant 1.000000e+00 : f32
    %726 = vector.broadcast %cst_221 : f32 to vector<2x32xf32>
    %727 = arith.addf %726, %725 : vector<2x32xf32>
    %728 = arith.divf %726, %727 : vector<2x32xf32>
    %729 = vector.extract_strided_slice %715 {offsets = [0, 32], sizes = [2, 32], strides = [1, 1]} : vector<2x96xf32> to vector<2x32xf32>
    %730 = vector.extract_strided_slice %720 {offsets = [0, 32], sizes = [2, 32], strides = [1, 1]} : vector<2x96xf32> to vector<2x32xf32>
    %731 = arith.addf %729, %730 : vector<2x32xf32>
    %732 = arith.negf %731 : vector<2x32xf32>
    %733 = math.exp %732 : vector<2x32xf32>
    %cst_222 = arith.constant 1.000000e+00 : f32
    %734 = vector.broadcast %cst_222 : f32 to vector<2x32xf32>
    %735 = arith.addf %734, %733 : vector<2x32xf32>
    %736 = arith.divf %734, %735 : vector<2x32xf32>
    %737 = vector.extract_strided_slice %715 {offsets = [0, 64], sizes = [2, 32], strides = [1, 1]} : vector<2x96xf32> to vector<2x32xf32>
    %738 = vector.extract_strided_slice %720 {offsets = [0, 64], sizes = [2, 32], strides = [1, 1]} : vector<2x96xf32> to vector<2x32xf32>
    %739 = arith.mulf %728, %738 : vector<2x32xf32>
    %740 = arith.addf %737, %739 : vector<2x32xf32>
    %741 = math.tanh %740 : vector<2x32xf32>
    %cst_223 = arith.constant 1.000000e+00 : f32
    %742 = vector.broadcast %cst_223 : f32 to vector<2x32xf32>
    %743 = arith.subf %742, %736 : vector<2x32xf32>
    %744 = arith.mulf %743, %741 : vector<2x32xf32>
    %745 = arith.mulf %736, %647 : vector<2x32xf32>
    %746 = arith.addf %744, %745 : vector<2x32xf32>
    %c0_224 = arith.constant 0 : index
    %c0_225 = arith.constant 0 : index
    %747 = vector.load %arg21[%c0_224, %c0_225] : memref<32x12xf32, #tpu.memory_space<vmem>>, vector<32x12xf32>
    %cst_226 = arith.constant dense<0.000000e+00> : vector<2x12xf32>
    %748 = tpu.matmul %746, %747, %cst_226 {dimension_numbers = #tpu.dot_dimension_numbers<[1], [0], [0], [1], [0, 0, 1, 1], [], []>} : vector<2x32xf32>, vector<32x12xf32>, vector<2x12xf32> -> vector<2x12xf32>
    %c0_227 = arith.constant 0 : index
    %c0_228 = arith.constant 0 : index
    %749 = vector.load %arg22[%c0_227, %c0_228] : memref<32x12xf32, #tpu.memory_space<vmem>>, vector<32x12xf32>
    %cst_229 = arith.constant dense<0.000000e+00> : vector<2x12xf32>
    %750 = tpu.matmul %707, %749, %cst_229 {dimension_numbers = #tpu.dot_dimension_numbers<[1], [0], [0], [1], [0, 0, 1, 1], [], []>} : vector<2x32xf32>, vector<32x12xf32>, vector<2x12xf32> -> vector<2x12xf32>
    %751 = arith.addf %748, %750 : vector<2x12xf32>
    %c0_230 = arith.constant 0 : index
    %c0_231 = arith.constant 0 : index
    %752 = vector.load %arg23[%c0_230, %c0_231] : memref<16x12xf32, #tpu.memory_space<vmem>>, vector<16x12xf32>
    %cst_232 = arith.constant dense<0.000000e+00> : vector<2x12xf32>
    %753 = tpu.matmul %679, %752, %cst_232 {dimension_numbers = #tpu.dot_dimension_numbers<[1], [0], [0], [1], [0, 0, 1, 1], [], []>} : vector<2x16xf32>, vector<16x12xf32>, vector<2x12xf32> -> vector<2x12xf32>
    %754 = arith.addf %751, %753 : vector<2x12xf32>
    %c0_233 = arith.constant 0 : index
    %c0_234 = arith.constant 0 : index
    %755 = vector.load %arg24[%c0_233, %c0_234] : memref<1x12xf32, #tpu.memory_space<vmem>>, vector<1x12xf32>
    %756 = vector.broadcast %755 : vector<1x12xf32> to vector<2x12xf32>
    %757 = arith.addf %754, %756 : vector<2x12xf32>
    %cst_235 = arith.constant dense<0xFF800000> : vector<2xf32>
    %758 = vector.multi_reduction <maximumf>, %757, %cst_235 [1] : vector<2x12xf32> to vector<2xf32>
    %759 = vector.shape_cast %758 : vector<2xf32> to vector<2x1xf32>
    %760 = vector.broadcast %759 : vector<2x1xf32> to vector<2x12xf32>
    %761 = arith.cmpf oeq, %757, %760 : vector<2x12xf32>
    %cst_236 = arith.constant 1.200000e+01 : f32
    %762 = vector.broadcast %cst_236 : f32 to vector<2x12xf32>
    %763 = arith.select %761, %375, %762 : vector<2x12xi1>, vector<2x12xf32>
    %cst_237 = arith.constant dense<0x7F800000> : vector<2xf32>
    %764 = vector.multi_reduction <minimumf>, %763, %cst_237 [1] : vector<2x12xf32> to vector<2xf32>
    %765 = vector.shape_cast %764 : vector<2xf32> to vector<2x1xf32>
    %766 = arith.fptosi %765 : vector<2x1xf32> to vector<2x1xi32>
    %767 = vector.extract_strided_slice %371 {offsets = [4, 0, 0], sizes = [1, 2, 1], strides = [1, 1, 1]} : vector<6x2x1xf32> to vector<1x2x1xf32>
    %768 = vector.shape_cast %767 : vector<1x2x1xf32> to vector<2x1xf32>
    %cst_238 = arith.constant 5.000000e-01 : f32
    %769 = vector.broadcast %cst_238 : f32 to vector<2x1xf32>
    %770 = arith.cmpf ogt, %768, %769 : vector<2x1xf32>
    %771 = vector.extract_strided_slice %370 {offsets = [4, 0, 0], sizes = [1, 2, 1], strides = [1, 1, 1]} : vector<6x2x1xi32> to vector<1x2x1xi32>
    %772 = vector.shape_cast %771 : vector<1x2x1xi32> to vector<2x1xi32>
    %773 = arith.select %770, %772, %766 : vector<2x1xi1>, vector<2x1xi32>
    %774 = vector.broadcast %773 : vector<2x1xi32> to vector<2x12xi32>
    %775 = arith.cmpi eq, %374, %774 : vector<2x12xi32>
    %776 = arith.extui %775 : vector<2x12xi1> to vector<2x12xi32>
    %777 = arith.sitofp %776 : vector<2x12xi32> to vector<2x12xf32>
    %cst_239 = arith.constant dense<0.000000e+00> : vector<2x16xf32>
    %778 = tpu.matmul %777, %372, %cst_239 {dimension_numbers = #tpu.dot_dimension_numbers<[1], [0], [0], [1], [0, 0, 1, 1], [], []>} : vector<2x12xf32>, vector<12x16xf32>, vector<2x16xf32> -> vector<2x16xf32>
    %c0_240 = arith.constant 0 : index
    %c0_241 = arith.constant 0 : index
    %779 = vector.load %arg12[%c0_240, %c0_241] : memref<32x32xf32, #tpu.memory_space<vmem>>, vector<32x32xf32>
    %cst_242 = arith.constant dense<0.000000e+00> : vector<2x32xf32>
    %780 = tpu.matmul %746, %779, %cst_242 {dimension_numbers = #tpu.dot_dimension_numbers<[1], [0], [0], [1], [0, 0, 1, 1], [], []>} : vector<2x32xf32>, vector<32x32xf32>, vector<2x32xf32> -> vector<2x32xf32>
    %781 = vector.shape_cast %780 : vector<2x32xf32> to vector<1x2x32xf32>
    %782 = vector.broadcast %781 : vector<1x2x32xf32> to vector<8x2x32xf32>
    %783 = arith.addf %368, %782 : vector<8x2x32xf32>
    %784 = math.tanh %783 : vector<8x2x32xf32>
    %785 = vector.shape_cast %373 : vector<1x32xf32> to vector<1x1x32xf32>
    %786 = vector.broadcast %785 : vector<1x1x32xf32> to vector<8x2x32xf32>
    %787 = arith.mulf %784, %786 : vector<8x2x32xf32>
    %cst_243 = arith.constant dense<0.000000e+00> : vector<8x2xf32>
    %788 = vector.multi_reduction <add>, %787, %cst_243 [2] : vector<8x2x32xf32> to vector<8x2xf32>
    %cst_244 = arith.constant 0.000000e+00 : f32
    %789 = vector.broadcast %cst_244 : f32 to vector<8x2xf32>
    %790 = arith.cmpf ogt, %369, %789 : vector<8x2xf32>
    %cst_245 = arith.constant -1.000000e+10 : f32
    %791 = vector.broadcast %cst_245 : f32 to vector<8x2xf32>
    %792 = arith.select %790, %788, %791 : vector<8x2xi1>, vector<8x2xf32>
    %cst_246 = arith.constant dense<0xFF800000> : vector<2xf32>
    %793 = vector.multi_reduction <maximumf>, %792, %cst_246 [0] : vector<8x2xf32> to vector<2xf32>
    %794 = vector.shape_cast %793 : vector<2xf32> to vector<1x2xf32>
    %795 = vector.broadcast %794 : vector<1x2xf32> to vector<8x2xf32>
    %796 = arith.subf %792, %795 : vector<8x2xf32>
    %797 = math.exp %796 : vector<8x2xf32>
    %cst_247 = arith.constant dense<0.000000e+00> : vector<2xf32>
    %798 = vector.multi_reduction <add>, %797, %cst_247 [0] : vector<8x2xf32> to vector<2xf32>
    %799 = vector.shape_cast %798 : vector<2xf32> to vector<1x2xf32>
    %800 = tpu.reciprocal %799 {approx = true} : vector<1x2xf32> -> vector<1x2xf32>
    %801 = vector.broadcast %800 : vector<1x2xf32> to vector<8x2xf32>
    %802 = arith.mulf %797, %801 : vector<8x2xf32>
    %803 = vector.shape_cast %802 : vector<8x2xf32> to vector<8x2x1xf32>
    %804 = vector.broadcast %803 : vector<8x2x1xf32> to vector<8x2x32xf32>
    %805 = arith.mulf %804, %355 : vector<8x2x32xf32>
    %cst_248 = arith.constant dense<0.000000e+00> : vector<2x32xf32>
    %806 = vector.multi_reduction <add>, %805, %cst_248 [0] : vector<8x2x32xf32> to vector<2x32xf32>
    %c0_249 = arith.constant 0 : index
    %c0_250 = arith.constant 0 : index
    %807 = vector.load %arg16[%c0_249, %c0_250] : memref<16x96xf32, #tpu.memory_space<vmem>>, vector<16x96xf32>
    %cst_251 = arith.constant dense<0.000000e+00> : vector<2x96xf32>
    %808 = tpu.matmul %778, %807, %cst_251 {dimension_numbers = #tpu.dot_dimension_numbers<[1], [0], [0], [1], [0, 0, 1, 1], [], []>} : vector<2x16xf32>, vector<16x96xf32>, vector<2x96xf32> -> vector<2x96xf32>
    %c0_252 = arith.constant 0 : index
    %c0_253 = arith.constant 0 : index
    %809 = vector.load %arg17[%c0_252, %c0_253] : memref<32x96xf32, #tpu.memory_space<vmem>>, vector<32x96xf32>
    %cst_254 = arith.constant dense<0.000000e+00> : vector<2x96xf32>
    %810 = tpu.matmul %806, %809, %cst_254 {dimension_numbers = #tpu.dot_dimension_numbers<[1], [0], [0], [1], [0, 0, 1, 1], [], []>} : vector<2x32xf32>, vector<32x96xf32>, vector<2x96xf32> -> vector<2x96xf32>
    %811 = arith.addf %808, %810 : vector<2x96xf32>
    %c0_255 = arith.constant 0 : index
    %c0_256 = arith.constant 0 : index
    %812 = vector.load %arg19[%c0_255, %c0_256] : memref<1x96xf32, #tpu.memory_space<vmem>>, vector<1x96xf32>
    %813 = vector.broadcast %812 : vector<1x96xf32> to vector<2x96xf32>
    %814 = arith.addf %811, %813 : vector<2x96xf32>
    %c0_257 = arith.constant 0 : index
    %c0_258 = arith.constant 0 : index
    %815 = vector.load %arg18[%c0_257, %c0_258] : memref<32x96xf32, #tpu.memory_space<vmem>>, vector<32x96xf32>
    %cst_259 = arith.constant dense<0.000000e+00> : vector<2x96xf32>
    %816 = tpu.matmul %746, %815, %cst_259 {dimension_numbers = #tpu.dot_dimension_numbers<[1], [0], [0], [1], [0, 0, 1, 1], [], []>} : vector<2x32xf32>, vector<32x96xf32>, vector<2x96xf32> -> vector<2x96xf32>
    %c0_260 = arith.constant 0 : index
    %c0_261 = arith.constant 0 : index
    %817 = vector.load %arg20[%c0_260, %c0_261] : memref<1x96xf32, #tpu.memory_space<vmem>>, vector<1x96xf32>
    %818 = vector.broadcast %817 : vector<1x96xf32> to vector<2x96xf32>
    %819 = arith.addf %816, %818 : vector<2x96xf32>
    %820 = vector.extract_strided_slice %814 {offsets = [0, 0], sizes = [2, 32], strides = [1, 1]} : vector<2x96xf32> to vector<2x32xf32>
    %821 = vector.extract_strided_slice %819 {offsets = [0, 0], sizes = [2, 32], strides = [1, 1]} : vector<2x96xf32> to vector<2x32xf32>
    %822 = arith.addf %820, %821 : vector<2x32xf32>
    %823 = arith.negf %822 : vector<2x32xf32>
    %824 = math.exp %823 : vector<2x32xf32>
    %cst_262 = arith.constant 1.000000e+00 : f32
    %825 = vector.broadcast %cst_262 : f32 to vector<2x32xf32>
    %826 = arith.addf %825, %824 : vector<2x32xf32>
    %827 = arith.divf %825, %826 : vector<2x32xf32>
    %828 = vector.extract_strided_slice %814 {offsets = [0, 32], sizes = [2, 32], strides = [1, 1]} : vector<2x96xf32> to vector<2x32xf32>
    %829 = vector.extract_strided_slice %819 {offsets = [0, 32], sizes = [2, 32], strides = [1, 1]} : vector<2x96xf32> to vector<2x32xf32>
    %830 = arith.addf %828, %829 : vector<2x32xf32>
    %831 = arith.negf %830 : vector<2x32xf32>
    %832 = math.exp %831 : vector<2x32xf32>
    %cst_263 = arith.constant 1.000000e+00 : f32
    %833 = vector.broadcast %cst_263 : f32 to vector<2x32xf32>
    %834 = arith.addf %833, %832 : vector<2x32xf32>
    %835 = arith.divf %833, %834 : vector<2x32xf32>
    %836 = vector.extract_strided_slice %814 {offsets = [0, 64], sizes = [2, 32], strides = [1, 1]} : vector<2x96xf32> to vector<2x32xf32>
    %837 = vector.extract_strided_slice %819 {offsets = [0, 64], sizes = [2, 32], strides = [1, 1]} : vector<2x96xf32> to vector<2x32xf32>
    %838 = arith.mulf %827, %837 : vector<2x32xf32>
    %839 = arith.addf %836, %838 : vector<2x32xf32>
    %840 = math.tanh %839 : vector<2x32xf32>
    %cst_264 = arith.constant 1.000000e+00 : f32
    %841 = vector.broadcast %cst_264 : f32 to vector<2x32xf32>
    %842 = arith.subf %841, %835 : vector<2x32xf32>
    %843 = arith.mulf %842, %840 : vector<2x32xf32>
    %844 = arith.mulf %835, %746 : vector<2x32xf32>
    %845 = arith.addf %843, %844 : vector<2x32xf32>
    %c0_265 = arith.constant 0 : index
    %c0_266 = arith.constant 0 : index
    %846 = vector.load %arg21[%c0_265, %c0_266] : memref<32x12xf32, #tpu.memory_space<vmem>>, vector<32x12xf32>
    %cst_267 = arith.constant dense<0.000000e+00> : vector<2x12xf32>
    %847 = tpu.matmul %845, %846, %cst_267 {dimension_numbers = #tpu.dot_dimension_numbers<[1], [0], [0], [1], [0, 0, 1, 1], [], []>} : vector<2x32xf32>, vector<32x12xf32>, vector<2x12xf32> -> vector<2x12xf32>
    %c0_268 = arith.constant 0 : index
    %c0_269 = arith.constant 0 : index
    %848 = vector.load %arg22[%c0_268, %c0_269] : memref<32x12xf32, #tpu.memory_space<vmem>>, vector<32x12xf32>
    %cst_270 = arith.constant dense<0.000000e+00> : vector<2x12xf32>
    %849 = tpu.matmul %806, %848, %cst_270 {dimension_numbers = #tpu.dot_dimension_numbers<[1], [0], [0], [1], [0, 0, 1, 1], [], []>} : vector<2x32xf32>, vector<32x12xf32>, vector<2x12xf32> -> vector<2x12xf32>
    %850 = arith.addf %847, %849 : vector<2x12xf32>
    %c0_271 = arith.constant 0 : index
    %c0_272 = arith.constant 0 : index
    %851 = vector.load %arg23[%c0_271, %c0_272] : memref<16x12xf32, #tpu.memory_space<vmem>>, vector<16x12xf32>
    %cst_273 = arith.constant dense<0.000000e+00> : vector<2x12xf32>
    %852 = tpu.matmul %778, %851, %cst_273 {dimension_numbers = #tpu.dot_dimension_numbers<[1], [0], [0], [1], [0, 0, 1, 1], [], []>} : vector<2x16xf32>, vector<16x12xf32>, vector<2x12xf32> -> vector<2x12xf32>
    %853 = arith.addf %850, %852 : vector<2x12xf32>
    %c0_274 = arith.constant 0 : index
    %c0_275 = arith.constant 0 : index
    %854 = vector.load %arg24[%c0_274, %c0_275] : memref<1x12xf32, #tpu.memory_space<vmem>>, vector<1x12xf32>
    %855 = vector.broadcast %854 : vector<1x12xf32> to vector<2x12xf32>
    %856 = arith.addf %853, %855 : vector<2x12xf32>
    %cst_276 = arith.constant 0.000000e+00 : f32
    %857 = vector.broadcast %cst_276 : f32 to vector<1x2x12xf32>
    %858 = vector.shape_cast %460 : vector<2x12xf32> to vector<1x2x12xf32>
    %859 = vector.shape_cast %559 : vector<2x12xf32> to vector<1x2x12xf32>
    %860 = vector.shape_cast %658 : vector<2x12xf32> to vector<1x2x12xf32>
    %861 = vector.shape_cast %757 : vector<2x12xf32> to vector<1x2x12xf32>
    %862 = vector.shape_cast %856 : vector<2x12xf32> to vector<1x2x12xf32>
    %863 = tpu.concatenate %858, %859, %860, %861, %862 in 0 : vector<1x2x12xf32>, vector<1x2x12xf32>, vector<1x2x12xf32>, vector<1x2x12xf32>, vector<1x2x12xf32> -> vector<5x2x12xf32>
    %864 = tpu.concatenate %857, %863 in 0 : vector<1x2x12xf32>, vector<5x2x12xf32> -> vector<6x2x12xf32>
    %c0_277 = arith.constant 0 : index
    %c0_278 = arith.constant 0 : index
    %c0_279 = arith.constant 0 : index
    %865 = vector.load %arg25[%c0_277, %c0_278, %c0_279] : memref<6x2x12xf32, #tpu.memory_space<vmem>>, vector<6x2x12xf32>
    tpu.vector_store %arg25[%c0_277, %c0_278, %c0_279], %864 {strides = array<i32>} : memref<6x2x12xf32, #tpu.memory_space<vmem>>, vector<6x2x12xf32>,
    %cst_280 = arith.constant 0.000000e+00 : f32
    %866 = vector.broadcast %cst_280 : f32 to vector<1x8x2xf32>
    %867 = vector.shape_cast %406 : vector<8x2xf32> to vector<1x8x2xf32>
    %868 = vector.shape_cast %505 : vector<8x2xf32> to vector<1x8x2xf32>
    %869 = vector.shape_cast %604 : vector<8x2xf32> to vector<1x8x2xf32>
    %870 = vector.shape_cast %703 : vector<8x2xf32> to vector<1x8x2xf32>
    %871 = vector.shape_cast %802 : vector<8x2xf32> to vector<1x8x2xf32>
    %872 = tpu.concatenate %867, %868, %869, %870, %871 in 0 : vector<1x8x2xf32>, vector<1x8x2xf32>, vector<1x8x2xf32>, vector<1x8x2xf32>, vector<1x8x2xf32> -> vector<5x8x2xf32>
    %873 = tpu.concatenate %866, %872 in 0 : vector<1x8x2xf32>, vector<5x8x2xf32> -> vector<6x8x2xf32>
    %c0_281 = arith.constant 0 : index
    %c0_282 = arith.constant 0 : index
    %c0_283 = arith.constant 0 : index
    %874 = vector.load %arg26[%c0_281, %c0_282, %c0_283] : memref<6x8x2xf32, #tpu.memory_space<vmem>>, vector<6x8x2xf32>
    tpu.vector_store %arg26[%c0_281, %c0_282, %c0_283], %873 {strides = array<i32>} : memref<6x8x2xf32, #tpu.memory_space<vmem>>, vector<6x8x2xf32>,
    return
  }
}

</mosaic_0001>

<llo_original>
// kernel: tpu_custom_call.1
$region0: #{tpu_custom_call.1}
  #allocation0 [shape = 'u32[]', space=smem, size = 0x4, offset = 0x4, fixed_abs, tag = 'smem constant byte address 0x4 - core index']
  #allocation1 [shape = 'u32[144,128]{1,0:T(1,128)}', space=vmem, size = 0x12000, scoped, tag = 'internal scratch']
  %s0 = inlined_call_operand.hbm [shape: f32[16,16], index: 0, kind: input, shape index: {}]
  %s1 = inlined_call_operand.vmem [shape: f32[8,2,1], index: 1, kind: input, shape index: {}]
  %s2 = inlined_call_operand.vmem [shape: f32[8,2], index: 2, kind: input, shape index: {}]
  %s3 = inlined_call_operand.vmem [shape: s32[6,2,1], index: 3, kind: input, shape index: {}]
  %s4 = inlined_call_operand.vmem [shape: f32[6,2,1], index: 4, kind: input, shape index: {}]
  %s5 = inlined_call_operand.hbm [shape: f32[16,96], index: 5, kind: input, shape index: {}]
  %s6 = inlined_call_operand.vmem [shape: f32[32,96], index: 6, kind: input, shape index: {}]
  %s7 = inlined_call_operand.hbm [shape: f32[1,96], index: 7, kind: input, shape index: {}]
  %s8 = inlined_call_operand.hbm [shape: f32[1,96], index: 8, kind: input, shape index: {}]
  %s9 = inlined_call_operand.vmem [shape: f32[32,32], index: 9, kind: input, shape index: {}]
  %s10 = inlined_call_operand.hbm [shape: f32[1,32], index: 10, kind: input, shape index: {}]
  %s11 = inlined_call_operand.hbm [shape: f32[12,16], index: 11, kind: input, shape index: {}]
  %s12 = inlined_call_operand.vmem [shape: f32[32,32], index: 12, kind: input, shape index: {}]
  %s13 = inlined_call_operand.vmem [shape: f32[32,32], index: 13, kind: input, shape index: {}]
  %s14 = inlined_call_operand.hbm [shape: f32[1,32], index: 14, kind: input, shape index: {}]
  %s15 = inlined_call_operand.hbm [shape: f32[1,32], index: 15, kind: input, shape index: {}]
  %s16 = inlined_call_operand.hbm [shape: f32[16,96], index: 16, kind: input, shape index: {}]
  %s17 = inlined_call_operand.vmem [shape: f32[32,96], index: 17, kind: input, shape index: {}]
  %s18 = inlined_call_operand.hbm [shape: f32[32,96], index: 18, kind: input, shape index: {}]
  %s19 = inlined_call_operand.hbm [shape: f32[1,96], index: 19, kind: input, shape index: {}]
  %s20 = inlined_call_operand.hbm [shape: f32[1,96], index: 20, kind: input, shape index: {}]
  %s21 = inlined_call_operand.vmem [shape: f32[32,12], index: 21, kind: input, shape index: {}]
  %s22 = inlined_call_operand.vmem [shape: f32[32,12], index: 22, kind: input, shape index: {}]
  %s23 = inlined_call_operand.hbm [shape: f32[16,12], index: 23, kind: input, shape index: {}]
  %s24 = inlined_call_operand.vmem [shape: f32[1,12], index: 24, kind: input, shape index: {}]
  %s25 = inlined_call_operand.hbm [shape: f32[6,2,12], index: 25, kind: output, shape index: {0}]
  %s26 = inlined_call_operand.vmem [shape: f32[6,8,2], index: 26, kind: output, shape index: {1}]
  %27 = xla_tuple %s25, %s26
  %s28 = sld [smem:[#allocation0]]
  $region170: #{tpu_custom_call.1} parent=0
    _
  %s30 = ssub.s32 1, %s28
  %s31 = scalar_select 0, %s30, %s28
  $region1: #{tpu_custom_call.1} parent=0
    #allocation2 [shape = 'u8[8192]{0}', space=vmem, size = 0x2000, scoped, tag = 'input window, operand 0, single buffered']
    #allocation3 [shape = 's32[1]{0}', space=sflag, size = 0x4, scoped, tag = 'scoped memory for tpu_custom_call.1']
    #allocation4 [shape = 's32[1]{0}', space=sflag, size = 0x4, scoped, tag = 'scoped memory for tpu_custom_call.1']
    #allocation5 [shape = 'u8[8192]{0}', space=vmem, size = 0x2000, scoped, tag = 'input window, operand 5, single buffered']
    #allocation6 [shape = 's32[1]{0}', space=sflag, size = 0x4, scoped, tag = 'scoped memory for tpu_custom_call.1']
    #allocation7 [shape = 'u8[512]{0}', space=vmem, size = 0x400, scoped, tag = 'input window, operand 7, single buffered']
    #allocation8 [shape = 'u8[512]{0}', space=vmem, size = 0x400, scoped, tag = 'input window, operand 8, single buffered']
    #allocation9 [shape = 's32[1]{0}', space=sflag, size = 0x4, scoped, tag = 'scoped memory for tpu_custom_call.1']
    #allocation10 [shape = 'u8[512]{0}', space=vmem, size = 0x400, scoped, tag = 'input window, operand 10, single buffered']
    #allocation11 [shape = 'u8[8192]{0}', space=vmem, size = 0x2000, scoped, tag = 'input window, operand 11, single buffered']
    #allocation12 [shape = 's32[1]{0}', space=sflag, size = 0x4, scoped, tag = 'scoped memory for tpu_custom_call.1']
    #allocation13 [shape = 'u8[512]{0}', space=vmem, size = 0x400, scoped, tag = 'input window, operand 14, single buffered']
    #allocation14 [shape = 'u8[512]{0}', space=vmem, size = 0x400, scoped, tag = 'input window, operand 15, single buffered']
    #allocation15 [shape = 's32[1]{0}', space=sflag, size = 0x4, scoped, tag = 'scoped memory for tpu_custom_call.1']
    #allocation16 [shape = 'u8[8192]{0}', space=vmem, size = 0x2000, scoped, tag = 'input window, operand 16, single buffered']
    #allocation17 [shape = 'u8[16384]{0}', space=vmem, size = 0x4000, scoped, tag = 'input window, operand 18, single buffered']
    #allocation18 [shape = 's32[1]{0}', space=sflag, size = 0x4, scoped, tag = 'scoped memory for tpu_custom_call.1']
    #allocation19 [shape = 'u8[512]{0}', space=vmem, size = 0x400, scoped, tag = 'input window, operand 19, single buffered']
    #allocation20 [shape = 'u8[512]{0}', space=vmem, size = 0x400, scoped, tag = 'input window, operand 20, single buffered']
    #allocation21 [shape = 's32[1]{0}', space=sflag, size = 0x4, scoped, tag = 'scoped memory for tpu_custom_call.1']
    #allocation22 [shape = 'u8[8192]{0}', space=vmem, size = 0x2000, scoped, tag = 'input window, operand 23, single buffered']
    #allocation23 [shape = 'u8[6144]{0}', space=vmem, size = 0x1800, scoped, tag = 'output window, operand 0, single buffered']
    %32 = vsyncpa [#allocation3], 0
    %33 = vsyncpa [#allocation6], 0
    %34 = vsyncpa [#allocation9], 0
    %35 = vsyncpa [#allocation12], 0
    %36 = vsyncpa [#allocation15], 0
    %37 = vsyncpa [#allocation18], 0
    %38 = vsyncpa [#allocation21], 0
    %39 = vsyncpa [#allocation4], 0
    // Predicated region
    $region2: #{tpu_custom_call.1} parent=1 // pred_check
      _
    $region3: #{tpu_custom_call.1} parent=1 // pred_check_branch
      %41 = sbr.rel (0) target = $region5
    $region4: #{tpu_custom_call.1} parent=1 // pred_region
      %s43 = ssub.s32 256, 256
      %44 = vsyncadd [#allocation3], %s43
      %s45 = sshll.u32 [#allocation2], 4
      %s46 = int_to_ptr.vmem [resolvable:$true] %s45
      %51 = dma.hbm_to_vmem [thread:$0]  %s0, 256, %s46, [#allocation3], 128, 128, 8
    $region5: #{tpu_custom_call.1} parent=1 // pred_fallthru
      _
    // Predicated region
    $region6: #{tpu_custom_call.1} parent=1 // pred_check
      _
    $region7: #{tpu_custom_call.1} parent=1 // pred_check_branch
      %53 = sbr.rel (0) target = $region9
    $region8: #{tpu_custom_call.1} parent=1 // pred_region
      _
    $region9: #{tpu_custom_call.1} parent=1 // pred_fallthru
      _
    // Predicated region
    $region10: #{tpu_custom_call.1} parent=1 // pred_check
      _
    $region11: #{tpu_custom_call.1} parent=1 // pred_check_branch
      %55 = sbr.rel (0) target = $region13
    $region12: #{tpu_custom_call.1} parent=1 // pred_region
      _
    $region13: #{tpu_custom_call.1} parent=1 // pred_fallthru
      _
    // Predicated region
    $region14: #{tpu_custom_call.1} parent=1 // pred_check
      _
    $region15: #{tpu_custom_call.1} parent=1 // pred_check_branch
      %57 = sbr.rel (0) target = $region17
    $region16: #{tpu_custom_call.1} parent=1 // pred_region
      _
    $region17: #{tpu_custom_call.1} parent=1 // pred_fallthru
      _
    // Predicated region
    $region18: #{tpu_custom_call.1} parent=1 // pred_check
      _
    $region19: #{tpu_custom_call.1} parent=1 // pred_check_branch
      %59 = sbr.rel (0) target = $region21
    $region20: #{tpu_custom_call.1} parent=1 // pred_region
      _
    $region21: #{tpu_custom_call.1} parent=1 // pred_fallthru
      _
    // Predicated region
    $region22: #{tpu_custom_call.1} parent=1 // pred_check
      _
    $region23: #{tpu_custom_call.1} parent=1 // pred_check_branch
      %61 = sbr.rel (0) target = $region25
    $region24: #{tpu_custom_call.1} parent=1 // pred_region
      %s63 = ssub.s32 256, 256
      %64 = vsyncadd [#allocation6], %s63
      %s65 = sshll.u32 [#allocation5], 4
      %s66 = int_to_ptr.vmem [resolvable:$true] %s65
      %71 = dma.hbm_to_vmem [thread:$0]  %s5, 256, %s66, [#allocation6], 128, 128, 8
    $region25: #{tpu_custom_call.1} parent=1 // pred_fallthru
      _
    // Predicated region
    $region26: #{tpu_custom_call.1} parent=1 // pred_check
      _
    $region27: #{tpu_custom_call.1} parent=1 // pred_check_branch
      %73 = sbr.rel (0) target = $region29
    $region28: #{tpu_custom_call.1} parent=1 // pred_region
      _
    $region29: #{tpu_custom_call.1} parent=1 // pred_fallthru
      _
    // Predicated region
    $region30: #{tpu_custom_call.1} parent=1 // pred_check
      _
    $region31: #{tpu_custom_call.1} parent=1 // pred_check_branch
      %75 = sbr.rel (0) target = $region33
    $region32: #{tpu_custom_call.1} parent=1 // pred_region
      %s77 = ssub.s32 16, 16
      %78 = vsyncadd [#allocation6], %s77
      %s80 = sshll.u32 [#allocation7], 4
      %s81 = int_to_ptr.vmem [resolvable:$true] %s80
      %83 = dma.hbm_to_vmem [thread:$0]  %s7, 16, %s81, [#allocation6]
    $region33: #{tpu_custom_call.1} parent=1 // pred_fallthru
      _
    // Predicated region
    $region34: #{tpu_custom_call.1} parent=1 // pred_check
      _
    $region35: #{tpu_custom_call.1} parent=1 // pred_check_branch
      %85 = sbr.rel (0) target = $region37
    $region36: #{tpu_custom_call.1} parent=1 // pred_region
      %s87 = ssub.s32 16, 16
      %88 = vsyncadd [#allocation9], %s87
      %s90 = sshll.u32 [#allocation8], 4
      %s91 = int_to_ptr.vmem [resolvable:$true] %s90
      %93 = dma.hbm_to_vmem [thread:$0]  %s8, 16, %s91, [#allocation9]
    $region37: #{tpu_custom_call.1} parent=1 // pred_fallthru
      _
    // Predicated region
    $region38: #{tpu_custom_call.1} parent=1 // pred_check
      _
    $region39: #{tpu_custom_call.1} parent=1 // pred_check_branch
      %95 = sbr.rel (0) target = $region41
    $region40: #{tpu_custom_call.1} parent=1 // pred_region
      _
    $region41: #{tpu_custom_call.1} parent=1 // pred_fallthru
      _
    // Predicated region
    $region42: #{tpu_custom_call.1} parent=1 // pred_check
      _
    $region43: #{tpu_custom_call.1} parent=1 // pred_check_branch
      %97 = sbr.rel (0) target = $region45
    $region44: #{tpu_custom_call.1} parent=1 // pred_region
      %s99 = ssub.s32 16, 16
      %100 = vsyncadd [#allocation9], %s99
      %s102 = sshll.u32 [#allocation10], 4
      %s103 = int_to_ptr.vmem [resolvable:$true] %s102
      %105 = dma.hbm_to_vmem [thread:$0]  %s10, 16, %s103, [#allocation9]
    $region45: #{tpu_custom_call.1} parent=1 // pred_fallthru
      _
    // Predicated region
    $region46: #{tpu_custom_call.1} parent=1 // pred_check
      _
    $region47: #{tpu_custom_call.1} parent=1 // pred_check_branch
      %107 = sbr.rel (0) target = $region49
    $region48: #{tpu_custom_call.1} parent=1 // pred_region
      %s109 = ssub.s32 256, 256
      %110 = vsyncadd [#allocation12], %s109
      %s111 = sshll.u32 [#allocation11], 4
      %s112 = int_to_ptr.vmem [resolvable:$true] %s111
      %117 = dma.hbm_to_vmem [thread:$0]  %s11, 256, %s112, [#allocation12], 128, 128, 8
    $region49: #{tpu_custom_call.1} parent=1 // pred_fallthru
      _
    // Predicated region
    $region50: #{tpu_custom_call.1} parent=1 // pred_check
      _
    $region51: #{tpu_custom_call.1} parent=1 // pred_check_branch
      %119 = sbr.rel (0) target = $region53
    $region52: #{tpu_custom_call.1} parent=1 // pred_region
      _
    $region53: #{tpu_custom_call.1} parent=1 // pred_fallthru
      _
    // Predicated region
    $region54: #{tpu_custom_call.1} parent=1 // pred_check
      _
    $region55: #{tpu_custom_call.1} parent=1 // pred_check_branch
      %121 = sbr.rel (0) target = $region57
    $region56: #{tpu_custom_call.1} parent=1 // pred_region
      _
    $region57: #{tpu_custom_call.1} parent=1 // pred_fallthru
      _
    // Predicated region
    $region58: #{tpu_custom_call.1} parent=1 // pred_check
      _
    $region59: #{tpu_custom_call.1} parent=1 // pred_check_branch
      %123 = sbr.rel (0) target = $region61
    $region60: #{tpu_custom_call.1} parent=1 // pred_region
      %s125 = ssub.s32 16, 16
      %126 = vsyncadd [#allocation12], %s125
      %s128 = sshll.u32 [#allocation13], 4
      %s129 = int_to_ptr.vmem [resolvable:$true] %s128
      %131 = dma.hbm_to_vmem [thread:$0]  %s14, 16, %s129, [#allocation12]
    $region61: #{tpu_custom_call.1} parent=1 // pred_fallthru
      _
    // Predicated region
    $region62: #{tpu_custom_call.1} parent=1 // pred_check
      _
    $region63: #{tpu_custom_call.1} parent=1 // pred_check_branch
      %133 = sbr.rel (0) target = $region65
    $region64: #{tpu_custom_call.1} parent=1 // pred_region
      %s135 = ssub.s32 16, 16
      %136 = vsyncadd [#allocation15], %s135
      %s138 = sshll.u32 [#allocation14], 4
      %s139 = int_to_ptr.vmem [resolvable:$true] %s138
      %141 = dma.hbm_to_vmem [thread:$0]  %s15, 16, %s139, [#allocation15]
    $region65: #{tpu_custom_call.1} parent=1 // pred_fallthru
      _
    // Predicated region
    $region66: #{tpu_custom_call.1} parent=1 // pred_check
      _
    $region67: #{tpu_custom_call.1} parent=1 // pred_check_branch
      %143 = sbr.rel (0) target = $region69
    $region68: #{tpu_custom_call.1} parent=1 // pred_region
      %s145 = ssub.s32 256, 256
      %146 = vsyncadd [#allocation15], %s145
      %s147 = sshll.u32 [#allocation16], 4
      %s148 = int_to_ptr.vmem [resolvable:$true] %s147
      %153 = dma.hbm_to_vmem [thread:$0]  %s16, 256, %s148, [#allocation15], 128, 128, 8
    $region69: #{tpu_custom_call.1} parent=1 // pred_fallthru
      _
    // Predicated region
    $region70: #{tpu_custom_call.1} parent=1 // pred_check
      _
    $region71: #{tpu_custom_call.1} parent=1 // pred_check_branch
      %155 = sbr.rel (0) target = $region73
    $region72: #{tpu_custom_call.1} parent=1 // pred_region
      _
    $region73: #{tpu_custom_call.1} parent=1 // pred_fallthru
      _
    // Predicated region
    $region74: #{tpu_custom_call.1} parent=1 // pred_check
      _
    $region75: #{tpu_custom_call.1} parent=1 // pred_check_branch
      %157 = sbr.rel (0) target = $region77
    $region76: #{tpu_custom_call.1} parent=1 // pred_region
      %s159 = ssub.s32 512, 512
      %160 = vsyncadd [#allocation18], %s159
      %s161 = sshll.u32 [#allocation17], 4
      %s162 = int_to_ptr.vmem [resolvable:$true] %s161
      %167 = dma.hbm_to_vmem [thread:$0]  %s18, 512, %s162, [#allocation18], 128, 128, 8
    $region77: #{tpu_custom_call.1} parent=1 // pred_fallthru
      _
    // Predicated region
    $region78: #{tpu_custom_call.1} parent=1 // pred_check
      _
    $region79: #{tpu_custom_call.1} parent=1 // pred_check_branch
      %169 = sbr.rel (0) target = $region81
    $region80: #{tpu_custom_call.1} parent=1 // pred_region
      %s171 = ssub.s32 16, 16
      %172 = vsyncadd [#allocation18], %s171
      %s174 = sshll.u32 [#allocation19], 4
      %s175 = int_to_ptr.vmem [resolvable:$true] %s174
      %177 = dma.hbm_to_vmem [thread:$0]  %s19, 16, %s175, [#allocation18]
    $region81: #{tpu_custom_call.1} parent=1 // pred_fallthru
      _
    // Predicated region
    $region82: #{tpu_custom_call.1} parent=1 // pred_check
      _
    $region83: #{tpu_custom_call.1} parent=1 // pred_check_branch
      %179 = sbr.rel (0) target = $region85
    $region84: #{tpu_custom_call.1} parent=1 // pred_region
      %s181 = ssub.s32 16, 16
      %182 = vsyncadd [#allocation21], %s181
      %s184 = sshll.u32 [#allocation20], 4
      %s185 = int_to_ptr.vmem [resolvable:$true] %s184
      %187 = dma.hbm_to_vmem [thread:$0]  %s20, 16, %s185, [#allocation21]
    $region85: #{tpu_custom_call.1} parent=1 // pred_fallthru
      _
    // Predicated region
    $region86: #{tpu_custom_call.1} parent=1 // pred_check
      _
    $region87: #{tpu_custom_call.1} parent=1 // pred_check_branch
      %189 = sbr.rel (0) target = $region89
    $region88: #{tpu_custom_call.1} parent=1 // pred_region
      _
    $region89: #{tpu_custom_call.1} parent=1 // pred_fallthru
      _
    // Predicated region
    $region90: #{tpu_custom_call.1} parent=1 // pred_check
      _
    $region91: #{tpu_custom_call.1} parent=1 // pred_check_branch
      %191 = sbr.rel (0) target = $region93
    $region92: #{tpu_custom_call.1} parent=1 // pred_region
      _
    $region93: #{tpu_custom_call.1} parent=1 // pred_fallthru
      _
    // Predicated region
    $region94: #{tpu_custom_call.1} parent=1 // pred_check
      _
    $region95: #{tpu_custom_call.1} parent=1 // pred_check_branch
      %193 = sbr.rel (0) target = $region97
    $region96: #{tpu_custom_call.1} parent=1 // pred_region
      %s195 = ssub.s32 256, 256
      %196 = vsyncadd [#allocation21], %s195
      %s197 = sshll.u32 [#allocation22], 4
      %s198 = int_to_ptr.vmem [resolvable:$true] %s197
      %203 = dma.hbm_to_vmem [thread:$0]  %s23, 256, %s198, [#allocation21], 128, 128, 8
    $region97: #{tpu_custom_call.1} parent=1 // pred_fallthru
      _
    // Predicated region
    $region98: #{tpu_custom_call.1} parent=1 // pred_check
      _
    $region99: #{tpu_custom_call.1} parent=1 // pred_check_branch
      %205 = sbr.rel (0) target = $region101
    $region100: #{tpu_custom_call.1} parent=1 // pred_region
      _
    $region101: #{tpu_custom_call.1} parent=1 // pred_fallthru
      _
    // Predicated region
    $region102: #{tpu_custom_call.1} parent=1 // pred_check
      _
    $region103: #{tpu_custom_call.1} parent=1 // pred_check_branch
      %207 = sbr.rel (0) target = $region105
    $region104: #{tpu_custom_call.1} parent=1 // pred_region
      %208 = dma.done [#allocation3], 256
    $region105: #{tpu_custom_call.1} parent=1 // pred_fallthru
      _
    // Predicated region
    $region106: #{tpu_custom_call.1} parent=1 // pred_check
      _
    $region107: #{tpu_custom_call.1} parent=1 // pred_check_branch
      %210 = sbr.rel (0) target = $region109
    $region108: #{tpu_custom_call.1} parent=1 // pred_region
      %211 = dma.done [#allocation6], 256
    $region109: #{tpu_custom_call.1} parent=1 // pred_fallthru
      _
    // Predicated region
    $region110: #{tpu_custom_call.1} parent=1 // pred_check
      _
    $region111: #{tpu_custom_call.1} parent=1 // pred_check_branch
      %213 = sbr.rel (0) target = $region113
    $region112: #{tpu_custom_call.1} parent=1 // pred_region
      %214 = dma.done [#allocation6], 16
    $region113: #{tpu_custom_call.1} parent=1 // pred_fallthru
      _
    // Predicated region
    $region114: #{tpu_custom_call.1} parent=1 // pred_check
      _
    $region115: #{tpu_custom_call.1} parent=1 // pred_check_branch
      %216 = sbr.rel (0) target = $region117
    $region116: #{tpu_custom_call.1} parent=1 // pred_region
      %217 = dma.done [#allocation9], 16
    $region117: #{tpu_custom_call.1} parent=1 // pred_fallthru
      _
    // Predicated region
    $region118: #{tpu_custom_call.1} parent=1 // pred_check
      _
    $region119: #{tpu_custom_call.1} parent=1 // pred_check_branch
      %219 = sbr.rel (0) target = $region121
    $region120: #{tpu_custom_call.1} parent=1 // pred_region
      %220 = dma.done [#allocation9], 16
    $region121: #{tpu_custom_call.1} parent=1 // pred_fallthru
      _
    // Predicated region
    $region122: #{tpu_custom_call.1} parent=1 // pred_check
      _
    $region123: #{tpu_custom_call.1} parent=1 // pred_check_branch
      %222 = sbr.rel (0) target = $region125
    $region124: #{tpu_custom_call.1} parent=1 // pred_region
      %223 = dma.done [#allocation12], 256
    $region125: #{tpu_custom_call.1} parent=1 // pred_fallthru
      _
    // Predicated region
    $region126: #{tpu_custom_call.1} parent=1 // pred_check
      _
    $region127: #{tpu_custom_call.1} parent=1 // pred_check_branch
      %225 = sbr.rel (0) target = $region129
    $region128: #{tpu_custom_call.1} parent=1 // pred_region
      %226 = dma.done [#allocation12], 16
    $region129: #{tpu_custom_call.1} parent=1 // pred_fallthru
      _
    // Predicated region
    $region130: #{tpu_custom_call.1} parent=1 // pred_check
      _
    $region131: #{tpu_custom_call.1} parent=1 // pred_check_branch
      %228 = sbr.rel (0) target = $region133
    $region132: #{tpu_custom_call.1} parent=1 // pred_region
      %229 = dma.done [#allocation15], 16
    $region133: #{tpu_custom_call.1} parent=1 // pred_fallthru
      _
    // Predicated region
    $region134: #{tpu_custom_call.1} parent=1 // pred_check
      _
    $region135: #{tpu_custom_call.1} parent=1 // pred_check_branch
      %231 = sbr.rel (0) target = $region137
    $region136: #{tpu_custom_call.1} parent=1 // pred_region
      %232 = dma.done [#allocation15], 256
    $region137: #{tpu_custom_call.1} parent=1 // pred_fallthru
      _
    // Predicated region
    $region138: #{tpu_custom_call.1} parent=1 // pred_check
      _
    $region139: #{tpu_custom_call.1} parent=1 // pred_check_branch
      %234 = sbr.rel (0) target = $region141
    $region140: #{tpu_custom_call.1} parent=1 // pred_region
      %235 = dma.done [#allocation18], 512
    $region141: #{tpu_custom_call.1} parent=1 // pred_fallthru
      _
    // Predicated region
    $region142: #{tpu_custom_call.1} parent=1 // pred_check
      _
    $region143: #{tpu_custom_call.1} parent=1 // pred_check_branch
      %237 = sbr.rel (0) target = $region145
    $region144: #{tpu_custom_call.1} parent=1 // pred_region
      %238 = dma.done [#allocation18], 16
    $region145: #{tpu_custom_call.1} parent=1 // pred_fallthru
      _
    // Predicated region
    $region146: #{tpu_custom_call.1} parent=1 // pred_check
      _
    $region147: #{tpu_custom_call.1} parent=1 // pred_check_branch
      %240 = sbr.rel (0) target = $region149
    $region148: #{tpu_custom_call.1} parent=1 // pred_region
      %241 = dma.done [#allocation21], 16
    $region149: #{tpu_custom_call.1} parent=1 // pred_fallthru
      _
    // Predicated region
    $region150: #{tpu_custom_call.1} parent=1 // pred_check
      _
    $region151: #{tpu_custom_call.1} parent=1 // pred_check_branch
      %243 = sbr.rel (0) target = $region153
    $region152: #{tpu_custom_call.1} parent=1 // pred_region
      %244 = dma.done [#allocation21], 256
    $region153: #{tpu_custom_call.1} parent=1 // pred_fallthru
      _
    %v245 = vld [vmem:[#allocation2] sm:$0xff]
    %v246 = vld [vmem:[#allocation2 + $0x8] sm:$0xff]
    %v247 = vld [vmem:[#allocation5] sm:$0xff]
    %v248 = vld [vmem:[#allocation5 + $0x8] sm:$0xff]
    %v249 = vld [vmem:[#allocation7] sm:$0x1]
    %v251 = vlaneseq
    %v252 = vshrl.u32 %v251, 7
    %v253 = vsub.s32 0, %v252
    %v254 = vrot.slane %v249, %v253
    %vm256 = vcmask 130048
    %v258 = vsel %vm256, %v245, 0
    %v261 = vsel %vm256, %v246, 0
    %263 = vmatprep.subr.mxu0 0.0
    %264 = vmatpush1.msra.mxu0 0.0
    %265 = vmatprep.subr.mxu0 0.0
    %266 = vmatpush1.msra.mxu0 0.0
    %267 = vmatprep.subr.mxu0 0.0
    %268 = vmatpush1.msra.mxu0 0.0
    %269 = vmatprep.subr.mxu0 0.0
    %270 = vmatpush1.msra.mxu0 0.0
    %271 = vmatprep.subr.mxu0 0.0
    %272 = vmatpush1.msra.mxu0 0.0
    %273 = vmatprep.subr.mxu0 0.0
    %274 = vmatpush1.msra.mxu0 0.0
    %275 = vmatprep.subr.mxu0 0.0
    %276 = vmatpush1.msra.mxu0 0.0
    %277 = vmatprep.subr.mxu0 0.0
    %278 = vmatpush1.msra.mxu0 0.0
    %279 = vmatprep.subr.mxu0 0.0
    %280 = vmatpush1.msra.mxu0 0.0
    %281 = vmatprep.subr.mxu0 0.0
    %282 = vmatpush1.msra.mxu0 0.0
    %283 = vmatprep.subr.mxu0 0.0
    %284 = vmatpush1.msra.mxu0 0.0
    %285 = vmatprep.subr.mxu0 0.0
    %286 = vmatpush1.msra.mxu0 0.0
    %287 = vmatprep.subr.mxu0 0.0
    %288 = vmatpush1.msra.mxu0 0.0
    %289 = vmatprep.subr.mxu0 0.0
    %290 = vmatpush1.msra.mxu0 0.0
    %291 = vmatprep.subr.mxu0 0.0
    %292 = vmatpush1.msra.mxu0 %v248
    %293 = vmatprep.subr.mxu0 0.0
    %294 = vmatpush1.msra.mxu0 %v247
    %295 = vmatprep.subr.mxu0 0.0
    %296 = vmatpush2.msra.mxu0 0.0
    %297 = vmatprep.subr.mxu0 0.0
    %298 = vmatpush2.msra.mxu0 0.0
    %299 = vmatprep.subr.mxu0 0.0
    %300 = vmatpush2.msra.mxu0 0.0
    %301 = vmatprep.subr.mxu0 0.0
    %302 = vmatpush2.msra.mxu0 0.0
    %303 = vmatprep.subr.mxu0 0.0
    %304 = vmatpush2.msra.mxu0 0.0
    %305 = vmatprep.subr.mxu0 0.0
    %306 = vmatpush2.msra.mxu0 0.0
    %307 = vmatprep.subr.mxu0 0.0
    %308 = vmatpush2.msra.mxu0 0.0
    %309 = vmatprep.subr.mxu0 0.0
    %310 = vmatpush2.msra.mxu0 0.0
    %311 = vmatprep.subr.mxu0 0.0
    %312 = vmatpush2.msra.mxu0 0.0
    %313 = vmatprep.subr.mxu0 0.0
    %314 = vmatpush2.msra.mxu0 0.0
    %315 = vmatprep.subr.mxu0 0.0
    %316 = vmatpush2.msra.mxu0 0.0
    %317 = vmatprep.subr.mxu0 0.0
    %318 = vmatpush2.msra.mxu0 0.0
    %319 = vmatprep.subr.mxu0 0.0
    %320 = vmatpush2.msra.mxu0 0.0
    %321 = vmatprep.subr.mxu0 0.0
    %322 = vmatpush2.msra.mxu0 0.0
    %323 = vmatprep.subr.mxu0 0.0
    %324 = vmatpush2.msra.mxu0 0.0
    %325 = vmatprep.subr.mxu0 0.0
    %326 = vmatpush2.msra.mxu0 0.0
    %327 = vmatprep.mubr.f32.mxu0 0.0
    %328 = vmatmul.mubr.f32.gmra.mxu0 %v258
    %v329 = vpop.f32.mrf.mxu0
    %v330 = vadd.f32 %v254, %v329
    %v331 = vpop.f32.mrf.mxu0
    %332 = vmatprep.mubr.f32.mxu0 0.0
    %333 = vmatmul.mubr.f32.gmra.mxu0 %v261
    %v334 = vpop.f32.mrf.mxu0
    %v335 = vadd.f32 %v254, %v334
    %v336 = vpop.f32.mrf.mxu0
    %337 = vdwg.mxu0
    %v340 = vcombine.high %v330, %v330
    %v342 = vunpack.c.l.s4 1983009808
    %v343 = vunpack.c.0.s8 %v342
    %v344 = vlaneseq
    %v345 = vshrl.u32 %v344, 7
    %v346 = vsub.s32 %v343, %v345
    %v347 = vrot.slane %v330, %v346
    %v349 = vunpack.c.l.s4 1983009808
    %v350 = vunpack.c.0.s8 %v349
    %v351 = vlaneseq
    %v352 = vshrl.u32 %v351, 7
    %v353 = vsub.s32 %v350, %v352
    %v354 = vrot.slane %v340, %v353
    %v355 = vcombine.high %v347, %v347
    %v356 = vcombine.high %v354, %v354
    %v357 = vcombine.high %v335, %v335
    %v359 = vunpack.c.l.s4 1983009808
    %v360 = vunpack.c.0.s8 %v359
    %v361 = vlaneseq
    %v362 = vshrl.u32 %v361, 7
    %v363 = vsub.s32 %v360, %v362
    %v364 = vrot.slane %v335, %v363
    %v366 = vunpack.c.l.s4 1983009808
    %v367 = vunpack.c.0.s8 %v366
    %v368 = vlaneseq
    %v369 = vshrl.u32 %v368, 7
    %v370 = vsub.s32 %v367, %v369
    %v371 = vrot.slane %v357, %v370
    %v372 = vcombine.high %v364, %v364
    %v373 = vcombine.high %v371, %v371
    %v382 = vld [vmem:[%s6] sm:$0xff]
    %v383 = vld [vmem:[%s6 + $0x8] sm:$0xff]
    %v384 = vld [vmem:[%s6 + $0x10] sm:$0xff]
    %v385 = vld [vmem:[%s6 + $0x18] sm:$0xff]
    %v386 = vld [vmem:[#allocation8] sm:$0x1]
    %v387 = vld [vmem:[%s1] sm:$0x3]
    %v388 = vld [vmem:[%s1 + $0x2] sm:$0x3]
    %v389 = vld [vmem:[%s1 + $0x4] sm:$0x3]
    %v390 = vld [vmem:[%s1 + $0x6] sm:$0x3]
    %v391 = vld [vmem:[%s1 + $0x8] sm:$0x3]
    %v392 = vld [vmem:[%s1 + $0xa] sm:$0x3]
    %v393 = vld [vmem:[%s1 + $0xc] sm:$0x3]
    %v394 = vld [vmem:[%s1 + $0xe] sm:$0x3]
    %v396 = vlaneseq
    %v397 = vshrl.u32 %v396, 7
    %v398 = vsub.s32 0, %v397
    %v399 = vrot.slane %v386, %v398
    %vm401 = vcmask 261120
    %v403 = vsel %vm401, 0.0, 0
    %405 = vmatprep.subr.mxu0 0.0
    %406 = vmatpush1.msra.mxu0 0.0
    %407 = vmatprep.subr.mxu0 0.0
    %408 = vmatpush1.msra.mxu0 0.0
    %409 = vmatprep.subr.mxu0 0.0
    %410 = vmatpush1.msra.mxu0 0.0
    %411 = vmatprep.subr.mxu0 0.0
    %412 = vmatpush1.msra.mxu0 0.0
    %413 = vmatprep.subr.mxu0 0.0
    %414 = vmatpush1.msra.mxu0 0.0
    %415 = vmatprep.subr.mxu0 0.0
    %416 = vmatpush1.msra.mxu0 0.0
    %417 = vmatprep.subr.mxu0 0.0
    %418 = vmatpush1.msra.mxu0 0.0
    %419 = vmatprep.subr.mxu0 0.0
    %420 = vmatpush1.msra.mxu0 0.0
    %421 = vmatprep.subr.mxu0 0.0
    %422 = vmatpush1.msra.mxu0 0.0
    %423 = vmatprep.subr.mxu0 0.0
    %424 = vmatpush1.msra.mxu0 0.0
    %425 = vmatprep.subr.mxu0 0.0
    %426 = vmatpush1.msra.mxu0 0.0
    %427 = vmatprep.subr.mxu0 0.0
    %428 = vmatpush1.msra.mxu0 0.0
    %429 = vmatprep.subr.mxu0 0.0
    %430 = vmatpush1.msra.mxu0 %v385
    %431 = vmatprep.subr.mxu0 0.0
    %432 = vmatpush1.msra.mxu0 %v384
    %433 = vmatprep.subr.mxu0 0.0
    %434 = vmatpush1.msra.mxu0 %v383
    %435 = vmatprep.subr.mxu0 0.0
    %436 = vmatpush1.msra.mxu0 %v382
    %437 = vmatprep.subr.mxu0 0.0
    %438 = vmatpush2.msra.mxu0 0.0
    %439 = vmatprep.subr.mxu0 0.0
    %440 = vmatpush2.msra.mxu0 0.0
    %441 = vmatprep.subr.mxu0 0.0
    %442 = vmatpush2.msra.mxu0 0.0
    %443 = vmatprep.subr.mxu0 0.0
    %444 = vmatpush2.msra.mxu0 0.0
    %445 = vmatprep.subr.mxu0 0.0
    %446 = vmatpush2.msra.mxu0 0.0
    %447 = vmatprep.subr.mxu0 0.0
    %448 = vmatpush2.msra.mxu0 0.0
    %449 = vmatprep.subr.mxu0 0.0
    %450 = vmatpush2.msra.mxu0 0.0
    %451 = vmatprep.subr.mxu0 0.0
    %452 = vmatpush2.msra.mxu0 0.0
    %453 = vmatprep.subr.mxu0 0.0
    %454 = vmatpush2.msra.mxu0 0.0
    %455 = vmatprep.subr.mxu0 0.0
    %456 = vmatpush2.msra.mxu0 0.0
    %457 = vmatprep.subr.mxu0 0.0
    %458 = vmatpush2.msra.mxu0 0.0
    %459 = vmatprep.subr.mxu0 0.0
    %460 = vmatpush2.msra.mxu0 0.0
    %461 = vmatprep.subr.mxu0 0.0
    %462 = vmatpush2.msra.mxu0 0.0
    %463 = vmatprep.subr.mxu0 0.0
    %464 = vmatpush2.msra.mxu0 0.0
    %465 = vmatprep.subr.mxu0 0.0
    %466 = vmatpush2.msra.mxu0 0.0
    %467 = vmatprep.subr.mxu0 0.0
    %468 = vmatpush2.msra.mxu0 0.0
    %469 = vmatprep.mubr.f32.mxu0 0.0
    %470 = vmatmul.mubr.f32.gmra.mxu0 %v403
    %v471 = vpop.f32.mrf.mxu0
    %v472 = vadd.f32 %v399, %v471
    %v473 = vpop.f32.mrf.mxu0
    %474 = vdwg.mxu0
    %v475 = vadd.f32 %v347, %v472
    %v476 = vxor.u32 %v475, 2147483648
    %v477 = vmul.f32 %v476, 1.442695
    %v478 = vpow.pop %v477
    %v479 = vadd.f32 %v478, 1.0
    %v480 = vrcp.pop %v479
    %v481 = vmul.f32 1.0, %v480
    %v484 = vunpack.c.l.s4 1983009808
    %v485 = vunpack.c.0.s8 %v484
    %v486 = vlaneseq
    %v487 = vshrl.u32 %v486, 7
    %v488 = vsub.s32 %v485, %v487
    %v489 = vrot.slane %v472, %v488
    %490 = vrot.lane.b32.xlu0 %v489, 64
    %v491 = vpop.permute.xlu0 %490
    %v493 = vmul.f32 %v481, %v491
    %495 = vrot.lane.b32.xlu0 %v493, 64
    %v496 = vpop.permute.xlu0 %495
    %v498 = vadd.f32 %v347, %v496
    %v499 = vtanh.pop %v498
    %v500 = vsub.f32 1.0, %v481
    %502 = vrot.lane.b32.xlu0 %v499, 96
    %v503 = vpop.permute.xlu0 %502
    %v505 = vmul.f32 %v500, %v503
    %v506 = vmul.f32 %v481, 0.0
    %v507 = vadd.f32 %v505, %v506
    %509 = vset.pattern.permute.xlu0 0
    %510 = vperm.xlu0 %509, %v387
    %v511 = vpop.permute.xlu0 %510
    %v515 = vunpack.c.l.s4 1983009808
    %v516 = vunpack.c.0.s8 %v515
    %v517 = vlaneseq
    %v518 = vshrl.u32 %v517, 7
    %v519 = vsub.s32 %v516, %v518
    %v520 = vrot.slane %v507, %v519
    %521 = vrot.lane.b32.xlu0 %v520, 96
    %v522 = vpop.permute.xlu0 %521
    %v524 = vmul.f32 %v511, %v522
    %v525 = vsub.f32 1.0, %v387
    %527 = vset.pattern.permute.xlu0 0
    %528 = vperm.xlu0 %527, %v525
    %v529 = vpop.permute.xlu0 %528
    %v531 = vmul.f32 %v529, 0.0
    %v532 = vadd.f32 %v524, %v531
    %v533 = vmul.f32 %v511, %v532
    %v535 = vsel %vm401, %v532, 0
    %537 = vmatprep.subr.mxu0 0.0
    %538 = vmatpush1.msra.mxu0 0.0
    %539 = vmatprep.subr.mxu0 0.0
    %540 = vmatpush1.msra.mxu0 0.0
    %541 = vmatprep.subr.mxu0 0.0
    %542 = vmatpush1.msra.mxu0 0.0
    %543 = vmatprep.subr.mxu0 0.0
    %544 = vmatpush1.msra.mxu0 0.0
    %545 = vmatprep.subr.mxu0 0.0
    %546 = vmatpush1.msra.mxu0 0.0
    %547 = vmatprep.subr.mxu0 0.0
    %548 = vmatpush1.msra.mxu0 0.0
    %549 = vmatprep.subr.mxu0 0.0
    %550 = vmatpush1.msra.mxu0 0.0
    %551 = vmatprep.subr.mxu0 0.0
    %552 = vmatpush1.msra.mxu0 0.0
    %553 = vmatprep.subr.mxu0 0.0
    %554 = vmatpush1.msra.mxu0 0.0
    %555 = vmatprep.subr.mxu0 0.0
    %556 = vmatpush1.msra.mxu0 0.0
    %557 = vmatprep.subr.mxu0 0.0
    %558 = vmatpush1.msra.mxu0 0.0
    %559 = vmatprep.subr.mxu0 0.0
    %560 = vmatpush1.msra.mxu0 0.0
    %561 = vmatprep.subr.mxu0 0.0
    %562 = vmatpush1.msra.mxu0 %v385
    %563 = vmatprep.subr.mxu0 0.0
    %564 = vmatpush1.msra.mxu0 %v384
    %565 = vmatprep.subr.mxu0 0.0
    %566 = vmatpush1.msra.mxu0 %v383
    %567 = vmatprep.subr.mxu0 0.0
    %568 = vmatpush1.msra.mxu0 %v382
    %569 = vmatprep.subr.mxu0 0.0
    %570 = vmatpush2.msra.mxu0 0.0
    %571 = vmatprep.subr.mxu0 0.0
    %572 = vmatpush2.msra.mxu0 0.0
    %573 = vmatprep.subr.mxu0 0.0
    %574 = vmatpush2.msra.mxu0 0.0
    %575 = vmatprep.subr.mxu0 0.0
    %576 = vmatpush2.msra.mxu0 0.0
    %577 = vmatprep.subr.mxu0 0.0
    %578 = vmatpush2.msra.mxu0 0.0
    %579 = vmatprep.subr.mxu0 0.0
    %580 = vmatpush2.msra.mxu0 0.0
    %581 = vmatprep.subr.mxu0 0.0
    %582 = vmatpush2.msra.mxu0 0.0
    %583 = vmatprep.subr.mxu0 0.0
    %584 = vmatpush2.msra.mxu0 0.0
    %585 = vmatprep.subr.mxu0 0.0
    %586 = vmatpush2.msra.mxu0 0.0
    %587 = vmatprep.subr.mxu0 0.0
    %588 = vmatpush2.msra.mxu0 0.0
    %589 = vmatprep.subr.mxu0 0.0
    %590 = vmatpush2.msra.mxu0 0.0
    %591 = vmatprep.subr.mxu0 0.0
    %592 = vmatpush2.msra.mxu0 0.0
    %593 = vmatprep.subr.mxu0 0.0
    %594 = vmatpush2.msra.mxu0 0.0
    %595 = vmatprep.subr.mxu0 0.0
    %596 = vmatpush2.msra.mxu0 0.0
    %597 = vmatprep.subr.mxu0 0.0
    %598 = vmatpush2.msra.mxu0 0.0
    %599 = vmatprep.subr.mxu0 0.0
    %600 = vmatpush2.msra.mxu0 0.0
    %601 = vmatprep.mubr.f32.mxu0 0.0
    %602 = vmatmul.mubr.f32.gmra.mxu0 %v535
    %v603 = vpop.f32.mrf.mxu0
    %v604 = vadd.f32 %v399, %v603
    %v605 = vpop.f32.mrf.mxu0
    %606 = vdwg.mxu0
    %v607 = vadd.f32 %v355, %v604
    %v608 = vxor.u32 %v607, 2147483648
    %v609 = vmul.f32 %v608, 1.442695
    %v610 = vpow.pop %v609
    %v611 = vadd.f32 %v610, 1.0
    %v612 = vrcp.pop %v611
    %v613 = vmul.f32 1.0, %v612
    %v616 = vunpack.c.l.s4 1983009808
    %v617 = vunpack.c.0.s8 %v616
    %v618 = vlaneseq
    %v619 = vshrl.u32 %v618, 7
    %v620 = vsub.s32 %v617, %v619
    %v621 = vrot.slane %v604, %v620
    %622 = vrot.lane.b32.xlu0 %v621, 64
    %v623 = vpop.permute.xlu0 %622
    %v625 = vmul.f32 %v613, %v623
    %627 = vrot.lane.b32.xlu0 %v625, 64
    %v628 = vpop.permute.xlu0 %627
    %v630 = vadd.f32 %v355, %v628
    %v631 = vtanh.pop %v630
    %v632 = vsub.f32 1.0, %v613
    %634 = vrot.lane.b32.xlu0 %v631, 96
    %v635 = vpop.permute.xlu0 %634
    %v637 = vmul.f32 %v632, %v635
    %v639 = vunpack.c.l.s4 1983009808
    %v640 = vunpack.c.0.s8 %v639
    %v641 = vlaneseq
    %v642 = vshrl.u32 %v641, 7
    %v643 = vsub.s32 %v640, %v642
    %v644 = vrot.slane %v532, %v643
    %645 = vrot.lane.b32.xlu0 %v644, 32
    %v646 = vpop.permute.xlu0 %645
    %v648 = vmul.f32 %v613, %v646
    %v649 = vadd.f32 %v637, %v648
    %651 = vset.pattern.permute.xlu0 0
    %652 = vperm.xlu0 %651, %v388
    %v653 = vpop.permute.xlu0 %652
    %v657 = vunpack.c.l.s4 1983009808
    %v658 = vunpack.c.0.s8 %v657
    %v659 = vlaneseq
    %v660 = vshrl.u32 %v659, 7
    %v661 = vsub.s32 %v658, %v660
    %v662 = vrot.slane %v649, %v661
    %663 = vrot.lane.b32.xlu0 %v662, 96
    %v664 = vpop.permute.xlu0 %663
    %v666 = vmul.f32 %v653, %v664
    %v667 = vsub.f32 1.0, %v388
    %669 = vset.pattern.permute.xlu0 0
    %670 = vperm.xlu0 %669, %v667
    %v671 = vpop.permute.xlu0 %670
    %v673 = vmul.f32 %v671, %v532
    %v674 = vadd.f32 %v666, %v673
    %v675 = vmul.f32 %v653, %v674
    %v677 = vsel %vm401, %v674, 0
    %679 = vmatprep.subr.mxu0 0.0
    %680 = vmatpush1.msra.mxu0 0.0
    %681 = vmatprep.subr.mxu0 0.0
    %682 = vmatpush1.msra.mxu0 0.0
    %683 = vmatprep.subr.mxu0 0.0
    %684 = vmatpush1.msra.mxu0 0.0
    %685 = vmatprep.subr.mxu0 0.0
    %686 = vmatpush1.msra.mxu0 0.0
    %687 = vmatprep.subr.mxu0 0.0
    %688 = vmatpush1.msra.mxu0 0.0
    %689 = vmatprep.subr.mxu0 0.0
    %690 = vmatpush1.msra.mxu0 0.0
    %691 = vmatprep.subr.mxu0 0.0
    %692 = vmatpush1.msra.mxu0 0.0
    %693 = vmatprep.subr.mxu0 0.0
    %694 = vmatpush1.msra.mxu0 0.0
    %695 = vmatprep.subr.mxu0 0.0
    %696 = vmatpush1.msra.mxu0 0.0
    %697 = vmatprep.subr.mxu0 0.0
    %698 = vmatpush1.msra.mxu0 0.0
    %699 = vmatprep.subr.mxu0 0.0
    %700 = vmatpush1.msra.mxu0 0.0
    %701 = vmatprep.subr.mxu0 0.0
    %702 = vmatpush1.msra.mxu0 0.0
    %703 = vmatprep.subr.mxu0 0.0
    %704 = vmatpush1.msra.mxu0 %v385
    %705 = vmatprep.subr.mxu0 0.0
    %706 = vmatpush1.msra.mxu0 %v384
    %707 = vmatprep.subr.mxu0 0.0
    %708 = vmatpush1.msra.mxu0 %v383
    %709 = vmatprep.subr.mxu0 0.0
    %710 = vmatpush1.msra.mxu0 %v382
    %711 = vmatprep.subr.mxu0 0.0
    %712 = vmatpush2.msra.mxu0 0.0
    %713 = vmatprep.subr.mxu0 0.0
    %714 = vmatpush2.msra.mxu0 0.0
    %715 = vmatprep.subr.mxu0 0.0
    %716 = vmatpush2.msra.mxu0 0.0
    %717 = vmatprep.subr.mxu0 0.0
    %718 = vmatpush2.msra.mxu0 0.0
    %719 = vmatprep.subr.mxu0 0.0
    %720 = vmatpush2.msra.mxu0 0.0
    %721 = vmatprep.subr.mxu0 0.0
    %722 = vmatpush2.msra.mxu0 0.0
    %723 = vmatprep.subr.mxu0 0.0
    %724 = vmatpush2.msra.mxu0 0.0
    %725 = vmatprep.subr.mxu0 0.0
    %726 = vmatpush2.msra.mxu0 0.0
    %727 = vmatprep.subr.mxu0 0.0
    %728 = vmatpush2.msra.mxu0 0.0
    %729 = vmatprep.subr.mxu0 0.0
    %730 = vmatpush2.msra.mxu0 0.0
    %731 = vmatprep.subr.mxu0 0.0
    %732 = vmatpush2.msra.mxu0 0.0
    %733 = vmatprep.subr.mxu0 0.0
    %734 = vmatpush2.msra.mxu0 0.0
    %735 = vmatprep.subr.mxu0 0.0
    %736 = vmatpush2.msra.mxu0 0.0
    %737 = vmatprep.subr.mxu0 0.0
    %738 = vmatpush2.msra.mxu0 0.0
    %739 = vmatprep.subr.mxu0 0.0
    %740 = vmatpush2.msra.mxu0 0.0
    %741 = vmatprep.subr.mxu0 0.0
    %742 = vmatpush2.msra.mxu0 0.0
    %743 = vmatprep.mubr.f32.mxu0 0.0
    %744 = vmatmul.mubr.f32.gmra.mxu0 %v677
    %v745 = vpop.f32.mrf.mxu0
    %v746 = vadd.f32 %v399, %v745
    %v747 = vpop.f32.mrf.mxu0
    %748 = vdwg.mxu0
    %v749 = vadd.f32 %v354, %v746
    %v750 = vxor.u32 %v749, 2147483648
    %v751 = vmul.f32 %v750, 1.442695
    %v752 = vpow.pop %v751
    %v753 = vadd.f32 %v752, 1.0
    %v754 = vrcp.pop %v753
    %v755 = vmul.f32 1.0, %v754
    %v758 = vunpack.c.l.s4 1983009808
    %v759 = vunpack.c.0.s8 %v758
    %v760 = vlaneseq
    %v761 = vshrl.u32 %v760, 7
    %v762 = vsub.s32 %v759, %v761
    %v763 = vrot.slane %v746, %v762
    %764 = vrot.lane.b32.xlu0 %v763, 64
    %v765 = vpop.permute.xlu0 %764
    %v767 = vmul.f32 %v755, %v765
    %769 = vrot.lane.b32.xlu0 %v767, 64
    %v770 = vpop.permute.xlu0 %769
    %v772 = vadd.f32 %v354, %v770
    %v773 = vtanh.pop %v772
    %v774 = vsub.f32 1.0, %v755
    %776 = vrot.lane.b32.xlu0 %v773, 96
    %v777 = vpop.permute.xlu0 %776
    %v779 = vmul.f32 %v774, %v777
    %v781 = vunpack.c.l.s4 1983009808
    %v782 = vunpack.c.0.s8 %v781
    %v783 = vlaneseq
    %v784 = vshrl.u32 %v783, 7
    %v785 = vsub.s32 %v782, %v784
    %v786 = vrot.slane %v674, %v785
    %787 = vrot.lane.b32.xlu0 %v786, 32
    %v788 = vpop.permute.xlu0 %787
    %v790 = vmul.f32 %v755, %v788
    %v791 = vadd.f32 %v779, %v790
    %793 = vset.pattern.permute.xlu0 0
    %794 = vperm.xlu0 %793, %v389
    %v795 = vpop.permute.xlu0 %794
    %v799 = vunpack.c.l.s4 1983009808
    %v800 = vunpack.c.0.s8 %v799
    %v801 = vlaneseq
    %v802 = vshrl.u32 %v801, 7
    %v803 = vsub.s32 %v800, %v802
    %v804 = vrot.slane %v791, %v803
    %805 = vrot.lane.b32.xlu0 %v804, 96
    %v806 = vpop.permute.xlu0 %805
    %v808 = vmul.f32 %v795, %v806
    %v809 = vsub.f32 1.0, %v389
    %811 = vset.pattern.permute.xlu0 0
    %812 = vperm.xlu0 %811, %v809
    %v813 = vpop.permute.xlu0 %812
    %v815 = vmul.f32 %v813, %v674
    %v816 = vadd.f32 %v808, %v815
    %v817 = vmul.f32 %v795, %v816
    %v819 = vsel %vm401, %v816, 0
    %821 = vmatprep.subr.mxu0 0.0
    %822 = vmatpush1.msra.mxu0 0.0
    %823 = vmatprep.subr.mxu0 0.0
    %824 = vmatpush1.msra.mxu0 0.0
    %825 = vmatprep.subr.mxu0 0.0
    %826 = vmatpush1.msra.mxu0 0.0
    %827 = vmatprep.subr.mxu0 0.0
    %828 = vmatpush1.msra.mxu0 0.0
    %829 = vmatprep.subr.mxu0 0.0
    %830 = vmatpush1.msra.mxu0 0.0
    %831 = vmatprep.subr.mxu0 0.0
    %832 = vmatpush1.msra.mxu0 0.0
    %833 = vmatprep.subr.mxu0 0.0
    %834 = vmatpush1.msra.mxu0 0.0
    %835 = vmatprep.subr.mxu0 0.0
    %836 = vmatpush1.msra.mxu0 0.0
    %837 = vmatprep.subr.mxu0 0.0
    %838 = vmatpush1.msra.mxu0 0.0
    %839 = vmatprep.subr.mxu0 0.0
    %840 = vmatpush1.msra.mxu0 0.0
    %841 = vmatprep.subr.mxu0 0.0
    %842 = vmatpush1.msra.mxu0 0.0
    %843 = vmatprep.subr.mxu0 0.0
    %844 = vmatpush1.msra.mxu0 0.0
    %845 = vmatprep.subr.mxu0 0.0
    %846 = vmatpush1.msra.mxu0 %v385
    %847 = vmatprep.subr.mxu0 0.0
    %848 = vmatpush1.msra.mxu0 %v384
    %849 = vmatprep.subr.mxu0 0.0
    %850 = vmatpush1.msra.mxu0 %v383
    %851 = vmatprep.subr.mxu0 0.0
    %852 = vmatpush1.msra.mxu0 %v382
    %853 = vmatprep.subr.mxu0 0.0
    %854 = vmatpush2.msra.mxu0 0.0
    %855 = vmatprep.subr.mxu0 0.0
    %856 = vmatpush2.msra.mxu0 0.0
    %857 = vmatprep.subr.mxu0 0.0
    %858 = vmatpush2.msra.mxu0 0.0
    %859 = vmatprep.subr.mxu0 0.0
    %860 = vmatpush2.msra.mxu0 0.0
    %861 = vmatprep.subr.mxu0 0.0
    %862 = vmatpush2.msra.mxu0 0.0
    %863 = vmatprep.subr.mxu0 0.0
    %864 = vmatpush2.msra.mxu0 0.0
    %865 = vmatprep.subr.mxu0 0.0
    %866 = vmatpush2.msra.mxu0 0.0
    %867 = vmatprep.subr.mxu0 0.0
    %868 = vmatpush2.msra.mxu0 0.0
    %869 = vmatprep.subr.mxu0 0.0
    %870 = vmatpush2.msra.mxu0 0.0
    %871 = vmatprep.subr.mxu0 0.0
    %872 = vmatpush2.msra.mxu0 0.0
    %873 = vmatprep.subr.mxu0 0.0
    %874 = vmatpush2.msra.mxu0 0.0
    %875 = vmatprep.subr.mxu0 0.0
    %876 = vmatpush2.msra.mxu0 0.0
    %877 = vmatprep.subr.mxu0 0.0
    %878 = vmatpush2.msra.mxu0 0.0
    %879 = vmatprep.subr.mxu0 0.0
    %880 = vmatpush2.msra.mxu0 0.0
    %881 = vmatprep.subr.mxu0 0.0
    %882 = vmatpush2.msra.mxu0 0.0
    %883 = vmatprep.subr.mxu0 0.0
    %884 = vmatpush2.msra.mxu0 0.0
    %885 = vmatprep.mubr.f32.mxu0 0.0
    %886 = vmatmul.mubr.f32.gmra.mxu0 %v819
    %v887 = vpop.f32.mrf.mxu0
    %v888 = vadd.f32 %v399, %v887
    %v889 = vpop.f32.mrf.mxu0
    %890 = vdwg.mxu0
    %v891 = vadd.f32 %v356, %v888
    %v892 = vxor.u32 %v891, 2147483648
    %v893 = vmul.f32 %v892, 1.442695
    %v894 = vpow.pop %v893
    %v895 = vadd.f32 %v894, 1.0
    %v896 = vrcp.pop %v895
    %v897 = vmul.f32 1.0, %v896
    %v900 = vunpack.c.l.s4 1983009808
    %v901 = vunpack.c.0.s8 %v900
    %v902 = vlaneseq
    %v903 = vshrl.u32 %v902, 7
    %v904 = vsub.s32 %v901, %v903
    %v905 = vrot.slane %v888, %v904
    %906 = vrot.lane.b32.xlu0 %v905, 64
    %v907 = vpop.permute.xlu0 %906
    %v909 = vmul.f32 %v897, %v907
    %911 = vrot.lane.b32.xlu0 %v909, 64
    %v912 = vpop.permute.xlu0 %911
    %v914 = vadd.f32 %v356, %v912
    %v915 = vtanh.pop %v914
    %v916 = vsub.f32 1.0, %v897
    %918 = vrot.lane.b32.xlu0 %v915, 96
    %v919 = vpop.permute.xlu0 %918
    %v921 = vmul.f32 %v916, %v919
    %v923 = vunpack.c.l.s4 1983009808
    %v924 = vunpack.c.0.s8 %v923
    %v925 = vlaneseq
    %v926 = vshrl.u32 %v925, 7
    %v927 = vsub.s32 %v924, %v926
    %v928 = vrot.slane %v816, %v927
    %929 = vrot.lane.b32.xlu0 %v928, 32
    %v930 = vpop.permute.xlu0 %929
    %v932 = vmul.f32 %v897, %v930
    %v933 = vadd.f32 %v921, %v932
    %935 = vset.pattern.permute.xlu0 0
    %936 = vperm.xlu0 %935, %v390
    %v937 = vpop.permute.xlu0 %936
    %v941 = vunpack.c.l.s4 1983009808
    %v942 = vunpack.c.0.s8 %v941
    %v943 = vlaneseq
    %v944 = vshrl.u32 %v943, 7
    %v945 = vsub.s32 %v942, %v944
    %v946 = vrot.slane %v933, %v945
    %947 = vrot.lane.b32.xlu0 %v946, 96
    %v948 = vpop.permute.xlu0 %947
    %v950 = vmul.f32 %v937, %v948
    %v951 = vsub.f32 1.0, %v390
    %953 = vset.pattern.permute.xlu0 0
    %954 = vperm.xlu0 %953, %v951
    %v955 = vpop.permute.xlu0 %954
    %v957 = vmul.f32 %v955, %v816
    %v958 = vadd.f32 %v950, %v957
    %v959 = vmul.f32 %v937, %v958
    %v961 = vsel %vm401, %v958, 0
    %963 = vmatprep.subr.mxu0 0.0
    %964 = vmatpush1.msra.mxu0 0.0
    %965 = vmatprep.subr.mxu0 0.0
    %966 = vmatpush1.msra.mxu0 0.0
    %967 = vmatprep.subr.mxu0 0.0
    %968 = vmatpush1.msra.mxu0 0.0
    %969 = vmatprep.subr.mxu0 0.0
    %970 = vmatpush1.msra.mxu0 0.0
    %971 = vmatprep.subr.mxu0 0.0
    %972 = vmatpush1.msra.mxu0 0.0
    %973 = vmatprep.subr.mxu0 0.0
    %974 = vmatpush1.msra.mxu0 0.0
    %975 = vmatprep.subr.mxu0 0.0
    %976 = vmatpush1.msra.mxu0 0.0
    %977 = vmatprep.subr.mxu0 0.0
    %978 = vmatpush1.msra.mxu0 0.0
    %979 = vmatprep.subr.mxu0 0.0
    %980 = vmatpush1.msra.mxu0 0.0
    %981 = vmatprep.subr.mxu0 0.0
    %982 = vmatpush1.msra.mxu0 0.0
    %983 = vmatprep.subr.mxu0 0.0
    %984 = vmatpush1.msra.mxu0 0.0
    %985 = vmatprep.subr.mxu0 0.0
    %986 = vmatpush1.msra.mxu0 0.0
    %987 = vmatprep.subr.mxu0 0.0
    %988 = vmatpush1.msra.mxu0 %v385
    %989 = vmatprep.subr.mxu0 0.0
    %990 = vmatpush1.msra.mxu0 %v384
    %991 = vmatprep.subr.mxu0 0.0
    %992 = vmatpush1.msra.mxu0 %v383
    %993 = vmatprep.subr.mxu0 0.0
    %994 = vmatpush1.msra.mxu0 %v382
    %995 = vmatprep.subr.mxu0 0.0
    %996 = vmatpush2.msra.mxu0 0.0
    %997 = vmatprep.subr.mxu0 0.0
    %998 = vmatpush2.msra.mxu0 0.0
    %999 = vmatprep.subr.mxu0 0.0
    %1000 = vmatpush2.msra.mxu0 0.0
    %1001 = vmatprep.subr.mxu0 0.0
    %1002 = vmatpush2.msra.mxu0 0.0
    %1003 = vmatprep.subr.mxu0 0.0
    %1004 = vmatpush2.msra.mxu0 0.0
    %1005 = vmatprep.subr.mxu0 0.0
    %1006 = vmatpush2.msra.mxu0 0.0
    %1007 = vmatprep.subr.mxu0 0.0
    %1008 = vmatpush2.msra.mxu0 0.0
    %1009 = vmatprep.subr.mxu0 0.0
    %1010 = vmatpush2.msra.mxu0 0.0
    %1011 = vmatprep.subr.mxu0 0.0
    %1012 = vmatpush2.msra.mxu0 0.0
    %1013 = vmatprep.subr.mxu0 0.0
    %1014 = vmatpush2.msra.mxu0 0.0
    %1015 = vmatprep.subr.mxu0 0.0
    %1016 = vmatpush2.msra.mxu0 0.0
    %1017 = vmatprep.subr.mxu0 0.0
    %1018 = vmatpush2.msra.mxu0 0.0
    %1019 = vmatprep.subr.mxu0 0.0
    %1020 = vmatpush2.msra.mxu0 0.0
    %1021 = vmatprep.subr.mxu0 0.0
    %1022 = vmatpush2.msra.mxu0 0.0
    %1023 = vmatprep.subr.mxu0 0.0
    %1024 = vmatpush2.msra.mxu0 0.0
    %1025 = vmatprep.subr.mxu0 0.0
    %1026 = vmatpush2.msra.mxu0 0.0
    %1027 = vmatprep.mubr.f32.mxu0 0.0
    %1028 = vmatmul.mubr.f32.gmra.mxu0 %v961
    %v1029 = vpop.f32.mrf.mxu0
    %v1030 = vadd.f32 %v399, %v1029
    %v1031 = vpop.f32.mrf.mxu0
    %1032 = vdwg.mxu0
    %v1033 = vadd.f32 %v364, %v1030
    %v1034 = vxor.u32 %v1033, 2147483648
    %v1035 = vmul.f32 %v1034, 1.442695
    %v1036 = vpow.pop %v1035
    %v1037 = vadd.f32 %v1036, 1.0
    %v1038 = vrcp.pop %v1037
    %v1039 = vmul.f32 1.0, %v1038
    %v1042 = vunpack.c.l.s4 1983009808
    %v1043 = vunpack.c.0.s8 %v1042
    %v1044 = vlaneseq
    %v1045 = vshrl.u32 %v1044, 7
    %v1046 = vsub.s32 %v1043, %v1045
    %v1047 = vrot.slane %v1030, %v1046
    %1048 = vrot.lane.b32.xlu0 %v1047, 64
    %v1049 = vpop.permute.xlu0 %1048
    %v1051 = vmul.f32 %v1039, %v1049
    %1053 = vrot.lane.b32.xlu0 %v1051, 64
    %v1054 = vpop.permute.xlu0 %1053
    %v1056 = vadd.f32 %v364, %v1054
    %v1057 = vtanh.pop %v1056
    %v1058 = vsub.f32 1.0, %v1039
    %1060 = vrot.lane.b32.xlu0 %v1057, 96
    %v1061 = vpop.permute.xlu0 %1060
    %v1063 = vmul.f32 %v1058, %v1061
    %v1065 = vunpack.c.l.s4 1983009808
    %v1066 = vunpack.c.0.s8 %v1065
    %v1067 = vlaneseq
    %v1068 = vshrl.u32 %v1067, 7
    %v1069 = vsub.s32 %v1066, %v1068
    %v1070 = vrot.slane %v958, %v1069
    %1071 = vrot.lane.b32.xlu0 %v1070, 32
    %v1072 = vpop.permute.xlu0 %1071
    %v1074 = vmul.f32 %v1039, %v1072
    %v1075 = vadd.f32 %v1063, %v1074
    %1077 = vset.pattern.permute.xlu0 0
    %1078 = vperm.xlu0 %1077, %v391
    %v1079 = vpop.permute.xlu0 %1078
    %v1083 = vunpack.c.l.s4 1983009808
    %v1084 = vunpack.c.0.s8 %v1083
    %v1085 = vlaneseq
    %v1086 = vshrl.u32 %v1085, 7
    %v1087 = vsub.s32 %v1084, %v1086
    %v1088 = vrot.slane %v1075, %v1087
    %1089 = vrot.lane.b32.xlu0 %v1088, 96
    %v1090 = vpop.permute.xlu0 %1089
    %v1092 = vmul.f32 %v1079, %v1090
    %v1093 = vsub.f32 1.0, %v391
    %1095 = vset.pattern.permute.xlu0 0
    %1096 = vperm.xlu0 %1095, %v1093
    %v1097 = vpop.permute.xlu0 %1096
    %v1099 = vmul.f32 %v1097, %v958
    %v1100 = vadd.f32 %v1092, %v1099
    %v1101 = vmul.f32 %v1079, %v1100
    %v1103 = vsel %vm401, %v1100, 0
    %1105 = vmatprep.subr.mxu0 0.0
    %1106 = vmatpush1.msra.mxu0 0.0
    %1107 = vmatprep.subr.mxu0 0.0
    %1108 = vmatpush1.msra.mxu0 0.0
    %1109 = vmatprep.subr.mxu0 0.0
    %1110 = vmatpush1.msra.mxu0 0.0
    %1111 = vmatprep.subr.mxu0 0.0
    %1112 = vmatpush1.msra.mxu0 0.0
    %1113 = vmatprep.subr.mxu0 0.0
    %1114 = vmatpush1.msra.mxu0 0.0
    %1115 = vmatprep.subr.mxu0 0.0
    %1116 = vmatpush1.msra.mxu0 0.0
    %1117 = vmatprep.subr.mxu0 0.0
    %1118 = vmatpush1.msra.mxu0 0.0
    %1119 = vmatprep.subr.mxu0 0.0
    %1120 = vmatpush1.msra.mxu0 0.0
    %1121 = vmatprep.subr.mxu0 0.0
    %1122 = vmatpush1.msra.mxu0 0.0
    %1123 = vmatprep.subr.mxu0 0.0
    %1124 = vmatpush1.msra.mxu0 0.0
    %1125 = vmatprep.subr.mxu0 0.0
    %1126 = vmatpush1.msra.mxu0 0.0
    %1127 = vmatprep.subr.mxu0 0.0
    %1128 = vmatpush1.msra.mxu0 0.0
    %1129 = vmatprep.subr.mxu0 0.0
    %1130 = vmatpush1.msra.mxu0 %v385
    %1131 = vmatprep.subr.mxu0 0.0
    %1132 = vmatpush1.msra.mxu0 %v384
    %1133 = vmatprep.subr.mxu0 0.0
    %1134 = vmatpush1.msra.mxu0 %v383
    %1135 = vmatprep.subr.mxu0 0.0
    %1136 = vmatpush1.msra.mxu0 %v382
    %1137 = vmatprep.subr.mxu0 0.0
    %1138 = vmatpush2.msra.mxu0 0.0
    %1139 = vmatprep.subr.mxu0 0.0
    %1140 = vmatpush2.msra.mxu0 0.0
    %1141 = vmatprep.subr.mxu0 0.0
    %1142 = vmatpush2.msra.mxu0 0.0
    %1143 = vmatprep.subr.mxu0 0.0
    %1144 = vmatpush2.msra.mxu0 0.0
    %1145 = vmatprep.subr.mxu0 0.0
    %1146 = vmatpush2.msra.mxu0 0.0
    %1147 = vmatprep.subr.mxu0 0.0
    %1148 = vmatpush2.msra.mxu0 0.0
    %1149 = vmatprep.subr.mxu0 0.0
    %1150 = vmatpush2.msra.mxu0 0.0
    %1151 = vmatprep.subr.mxu0 0.0
    %1152 = vmatpush2.msra.mxu0 0.0
    %1153 = vmatprep.subr.mxu0 0.0
    %1154 = vmatpush2.msra.mxu0 0.0
    %1155 = vmatprep.subr.mxu0 0.0
    %1156 = vmatpush2.msra.mxu0 0.0
    %1157 = vmatprep.subr.mxu0 0.0
    %1158 = vmatpush2.msra.mxu0 0.0
    %1159 = vmatprep.subr.mxu0 0.0
    %1160 = vmatpush2.msra.mxu0 0.0
    %1161 = vmatprep.subr.mxu0 0.0
    %1162 = vmatpush2.msra.mxu0 0.0
    %1163 = vmatprep.subr.mxu0 0.0
    %1164 = vmatpush2.msra.mxu0 0.0
    %1165 = vmatprep.subr.mxu0 0.0
    %1166 = vmatpush2.msra.mxu0 0.0
    %1167 = vmatprep.subr.mxu0 0.0
    %1168 = vmatpush2.msra.mxu0 0.0
    %1169 = vmatprep.mubr.f32.mxu0 0.0
    %1170 = vmatmul.mubr.f32.gmra.mxu0 %v1103
    %v1171 = vpop.f32.mrf.mxu0
    %v1172 = vadd.f32 %v399, %v1171
    %v1173 = vpop.f32.mrf.mxu0
    %1174 = vdwg.mxu0
    %v1175 = vadd.f32 %v372, %v1172
    %v1176 = vxor.u32 %v1175, 2147483648
    %v1177 = vmul.f32 %v1176, 1.442695
    %v1178 = vpow.pop %v1177
    %v1179 = vadd.f32 %v1178, 1.0
    %v1180 = vrcp.pop %v1179
    %v1181 = vmul.f32 1.0, %v1180
    %v1184 = vunpack.c.l.s4 1983009808
    %v1185 = vunpack.c.0.s8 %v1184
    %v1186 = vlaneseq
    %v1187 = vshrl.u32 %v1186, 7
    %v1188 = vsub.s32 %v1185, %v1187
    %v1189 = vrot.slane %v1172, %v1188
    %1190 = vrot.lane.b32.xlu0 %v1189, 64
    %v1191 = vpop.permute.xlu0 %1190
    %v1193 = vmul.f32 %v1181, %v1191
    %1195 = vrot.lane.b32.xlu0 %v1193, 64
    %v1196 = vpop.permute.xlu0 %1195
    %v1198 = vadd.f32 %v372, %v1196
    %v1199 = vtanh.pop %v1198
    %v1200 = vsub.f32 1.0, %v1181
    %1202 = vrot.lane.b32.xlu0 %v1199, 96
    %v1203 = vpop.permute.xlu0 %1202
    %v1205 = vmul.f32 %v1200, %v1203
    %v1207 = vunpack.c.l.s4 1983009808
    %v1208 = vunpack.c.0.s8 %v1207
    %v1209 = vlaneseq
    %v1210 = vshrl.u32 %v1209, 7
    %v1211 = vsub.s32 %v1208, %v1210
    %v1212 = vrot.slane %v1100, %v1211
    %1213 = vrot.lane.b32.xlu0 %v1212, 32
    %v1214 = vpop.permute.xlu0 %1213
    %v1216 = vmul.f32 %v1181, %v1214
    %v1217 = vadd.f32 %v1205, %v1216
    %1219 = vset.pattern.permute.xlu0 0
    %1220 = vperm.xlu0 %1219, %v392
    %v1221 = vpop.permute.xlu0 %1220
    %v1225 = vunpack.c.l.s4 1983009808
    %v1226 = vunpack.c.0.s8 %v1225
    %v1227 = vlaneseq
    %v1228 = vshrl.u32 %v1227, 7
    %v1229 = vsub.s32 %v1226, %v1228
    %v1230 = vrot.slane %v1217, %v1229
    %1231 = vrot.lane.b32.xlu0 %v1230, 96
    %v1232 = vpop.permute.xlu0 %1231
    %v1234 = vmul.f32 %v1221, %v1232
    %v1235 = vsub.f32 1.0, %v392
    %1237 = vset.pattern.permute.xlu0 0
    %1238 = vperm.xlu0 %1237, %v1235
    %v1239 = vpop.permute.xlu0 %1238
    %v1241 = vmul.f32 %v1239, %v1100
    %v1242 = vadd.f32 %v1234, %v1241
    %v1243 = vmul.f32 %v1221, %v1242
    %v1245 = vsel %vm401, %v1242, 0
    %1247 = vmatprep.subr.mxu0 0.0
    %1248 = vmatpush1.msra.mxu0 0.0
    %1249 = vmatprep.subr.mxu0 0.0
    %1250 = vmatpush1.msra.mxu0 0.0
    %1251 = vmatprep.subr.mxu0 0.0
    %1252 = vmatpush1.msra.mxu0 0.0
    %1253 = vmatprep.subr.mxu0 0.0
    %1254 = vmatpush1.msra.mxu0 0.0
    %1255 = vmatprep.subr.mxu0 0.0
    %1256 = vmatpush1.msra.mxu0 0.0
    %1257 = vmatprep.subr.mxu0 0.0
    %1258 = vmatpush1.msra.mxu0 0.0
    %1259 = vmatprep.subr.mxu0 0.0
    %1260 = vmatpush1.msra.mxu0 0.0
    %1261 = vmatprep.subr.mxu0 0.0
    %1262 = vmatpush1.msra.mxu0 0.0
    %1263 = vmatprep.subr.mxu0 0.0
    %1264 = vmatpush1.msra.mxu0 0.0
    %1265 = vmatprep.subr.mxu0 0.0
    %1266 = vmatpush1.msra.mxu0 0.0
    %1267 = vmatprep.subr.mxu0 0.0
    %1268 = vmatpush1.msra.mxu0 0.0
    %1269 = vmatprep.subr.mxu0 0.0
    %1270 = vmatpush1.msra.mxu0 0.0
    %1271 = vmatprep.subr.mxu0 0.0
    %1272 = vmatpush1.msra.mxu0 %v385
    %1273 = vmatprep.subr.mxu0 0.0
    %1274 = vmatpush1.msra.mxu0 %v384
    %1275 = vmatprep.subr.mxu0 0.0
    %1276 = vmatpush1.msra.mxu0 %v383
    %1277 = vmatprep.subr.mxu0 0.0
    %1278 = vmatpush1.msra.mxu0 %v382
    %1279 = vmatprep.subr.mxu0 0.0
    %1280 = vmatpush2.msra.mxu0 0.0
    %1281 = vmatprep.subr.mxu0 0.0
    %1282 = vmatpush2.msra.mxu0 0.0
    %1283 = vmatprep.subr.mxu0 0.0
    %1284 = vmatpush2.msra.mxu0 0.0
    %1285 = vmatprep.subr.mxu0 0.0
    %1286 = vmatpush2.msra.mxu0 0.0
    %1287 = vmatprep.subr.mxu0 0.0
    %1288 = vmatpush2.msra.mxu0 0.0
    %1289 = vmatprep.subr.mxu0 0.0
    %1290 = vmatpush2.msra.mxu0 0.0
    %1291 = vmatprep.subr.mxu0 0.0
    %1292 = vmatpush2.msra.mxu0 0.0
    %1293 = vmatprep.subr.mxu0 0.0
    %1294 = vmatpush2.msra.mxu0 0.0
    %1295 = vmatprep.subr.mxu0 0.0
    %1296 = vmatpush2.msra.mxu0 0.0
    %1297 = vmatprep.subr.mxu0 0.0
    %1298 = vmatpush2.msra.mxu0 0.0
    %1299 = vmatprep.subr.mxu0 0.0
    %1300 = vmatpush2.msra.mxu0 0.0
    %1301 = vmatprep.subr.mxu0 0.0
    %1302 = vmatpush2.msra.mxu0 0.0
    %1303 = vmatprep.subr.mxu0 0.0
    %1304 = vmatpush2.msra.mxu0 0.0
    %1305 = vmatprep.subr.mxu0 0.0
    %1306 = vmatpush2.msra.mxu0 0.0
    %1307 = vmatprep.subr.mxu0 0.0
    %1308 = vmatpush2.msra.mxu0 0.0
    %1309 = vmatprep.subr.mxu0 0.0
    %1310 = vmatpush2.msra.mxu0 0.0
    %1311 = vmatprep.mubr.f32.mxu0 0.0
    %1312 = vmatmul.mubr.f32.gmra.mxu0 %v1245
    %v1313 = vpop.f32.mrf.mxu0
    %v1314 = vadd.f32 %v399, %v1313
    %v1315 = vpop.f32.mrf.mxu0
    %1316 = vdwg.mxu0
    %v1317 = vadd.f32 %v371, %v1314
    %v1318 = vxor.u32 %v1317, 2147483648
    %v1319 = vmul.f32 %v1318, 1.442695
    %v1320 = vpow.pop %v1319
    %v1321 = vadd.f32 %v1320, 1.0
    %v1322 = vrcp.pop %v1321
    %v1323 = vmul.f32 1.0, %v1322
    %v1326 = vunpack.c.l.s4 1983009808
    %v1327 = vunpack.c.0.s8 %v1326
    %v1328 = vlaneseq
    %v1329 = vshrl.u32 %v1328, 7
    %v1330 = vsub.s32 %v1327, %v1329
    %v1331 = vrot.slane %v1314, %v1330
    %1332 = vrot.lane.b32.xlu0 %v1331, 64
    %v1333 = vpop.permute.xlu0 %1332
    %v1335 = vmul.f32 %v1323, %v1333
    %1337 = vrot.lane.b32.xlu0 %v1335, 64
    %v1338 = vpop.permute.xlu0 %1337
    %v1340 = vadd.f32 %v371, %v1338
    %v1341 = vtanh.pop %v1340
    %v1342 = vsub.f32 1.0, %v1323
    %1344 = vrot.lane.b32.xlu0 %v1341, 96
    %v1345 = vpop.permute.xlu0 %1344
    %v1347 = vmul.f32 %v1342, %v1345
    %v1349 = vunpack.c.l.s4 1983009808
    %v1350 = vunpack.c.0.s8 %v1349
    %v1351 = vlaneseq
    %v1352 = vshrl.u32 %v1351, 7
    %v1353 = vsub.s32 %v1350, %v1352
    %v1354 = vrot.slane %v1242, %v1353
    %1355 = vrot.lane.b32.xlu0 %v1354, 32
    %v1356 = vpop.permute.xlu0 %1355
    %v1358 = vmul.f32 %v1323, %v1356
    %v1359 = vadd.f32 %v1347, %v1358
    %1361 = vset.pattern.permute.xlu0 0
    %1362 = vperm.xlu0 %1361, %v393
    %v1363 = vpop.permute.xlu0 %1362
    %v1367 = vunpack.c.l.s4 1983009808
    %v1368 = vunpack.c.0.s8 %v1367
    %v1369 = vlaneseq
    %v1370 = vshrl.u32 %v1369, 7
    %v1371 = vsub.s32 %v1368, %v1370
    %v1372 = vrot.slane %v1359, %v1371
    %1373 = vrot.lane.b32.xlu0 %v1372, 96
    %v1374 = vpop.permute.xlu0 %1373
    %v1376 = vmul.f32 %v1363, %v1374
    %v1377 = vsub.f32 1.0, %v393
    %1379 = vset.pattern.permute.xlu0 0
    %1380 = vperm.xlu0 %1379, %v1377
    %v1381 = vpop.permute.xlu0 %1380
    %v1383 = vmul.f32 %v1381, %v1242
    %v1384 = vadd.f32 %v1376, %v1383
    %v1385 = vmul.f32 %v1363, %v1384
    %v1387 = vsel %vm401, %v1384, 0
    %1389 = vmatprep.subr.mxu0 0.0
    %1390 = vmatpush1.msra.mxu0 0.0
    %1391 = vmatprep.subr.mxu0 0.0
    %1392 = vmatpush1.msra.mxu0 0.0
    %1393 = vmatprep.subr.mxu0 0.0
    %1394 = vmatpush1.msra.mxu0 0.0
    %1395 = vmatprep.subr.mxu0 0.0
    %1396 = vmatpush1.msra.mxu0 0.0
    %1397 = vmatprep.subr.mxu0 0.0
    %1398 = vmatpush1.msra.mxu0 0.0
    %1399 = vmatprep.subr.mxu0 0.0
    %1400 = vmatpush1.msra.mxu0 0.0
    %1401 = vmatprep.subr.mxu0 0.0
    %1402 = vmatpush1.msra.mxu0 0.0
    %1403 = vmatprep.subr.mxu0 0.0
    %1404 = vmatpush1.msra.mxu0 0.0
    %1405 = vmatprep.subr.mxu0 0.0
    %1406 = vmatpush1.msra.mxu0 0.0
    %1407 = vmatprep.subr.mxu0 0.0
    %1408 = vmatpush1.msra.mxu0 0.0
    %1409 = vmatprep.subr.mxu0 0.0
    %1410 = vmatpush1.msra.mxu0 0.0
    %1411 = vmatprep.subr.mxu0 0.0
    %1412 = vmatpush1.msra.mxu0 0.0
    %1413 = vmatprep.subr.mxu0 0.0
    %1414 = vmatpush1.msra.mxu0 %v385
    %1415 = vmatprep.subr.mxu0 0.0
    %1416 = vmatpush1.msra.mxu0 %v384
    %1417 = vmatprep.subr.mxu0 0.0
    %1418 = vmatpush1.msra.mxu0 %v383
    %1419 = vmatprep.subr.mxu0 0.0
    %1420 = vmatpush1.msra.mxu0 %v382
    %1421 = vmatprep.subr.mxu0 0.0
    %1422 = vmatpush2.msra.mxu0 0.0
    %1423 = vmatprep.subr.mxu0 0.0
    %1424 = vmatpush2.msra.mxu0 0.0
    %1425 = vmatprep.subr.mxu0 0.0
    %1426 = vmatpush2.msra.mxu0 0.0
    %1427 = vmatprep.subr.mxu0 0.0
    %1428 = vmatpush2.msra.mxu0 0.0
    %1429 = vmatprep.subr.mxu0 0.0
    %1430 = vmatpush2.msra.mxu0 0.0
    %1431 = vmatprep.subr.mxu0 0.0
    %1432 = vmatpush2.msra.mxu0 0.0
    %1433 = vmatprep.subr.mxu0 0.0
    %1434 = vmatpush2.msra.mxu0 0.0
    %1435 = vmatprep.subr.mxu0 0.0
    %1436 = vmatpush2.msra.mxu0 0.0
    %1437 = vmatprep.subr.mxu0 0.0
    %1438 = vmatpush2.msra.mxu0 0.0
    %1439 = vmatprep.subr.mxu0 0.0
    %1440 = vmatpush2.msra.mxu0 0.0
    %1441 = vmatprep.subr.mxu0 0.0
    %1442 = vmatpush2.msra.mxu0 0.0
    %1443 = vmatprep.subr.mxu0 0.0
    %1444 = vmatpush2.msra.mxu0 0.0
    %1445 = vmatprep.subr.mxu0 0.0
    %1446 = vmatpush2.msra.mxu0 0.0
    %1447 = vmatprep.subr.mxu0 0.0
    %1448 = vmatpush2.msra.mxu0 0.0
    %1449 = vmatprep.subr.mxu0 0.0
    %1450 = vmatpush2.msra.mxu0 0.0
    %1451 = vmatprep.subr.mxu0 0.0
    %1452 = vmatpush2.msra.mxu0 0.0
    %1453 = vmatprep.mubr.f32.mxu0 0.0
    %1454 = vmatmul.mubr.f32.gmra.mxu0 %v1387
    %v1455 = vpop.f32.mrf.mxu0
    %v1456 = vadd.f32 %v399, %v1455
    %v1457 = vpop.f32.mrf.mxu0
    %1458 = vdwg.mxu0
    %v1459 = vadd.f32 %v373, %v1456
    %v1460 = vxor.u32 %v1459, 2147483648
    %v1461 = vmul.f32 %v1460, 1.442695
    %v1462 = vpow.pop %v1461
    %v1463 = vadd.f32 %v1462, 1.0
    %v1464 = vrcp.pop %v1463
    %v1465 = vmul.f32 1.0, %v1464
    %v1468 = vunpack.c.l.s4 1983009808
    %v1469 = vunpack.c.0.s8 %v1468
    %v1470 = vlaneseq
    %v1471 = vshrl.u32 %v1470, 7
    %v1472 = vsub.s32 %v1469, %v1471
    %v1473 = vrot.slane %v1456, %v1472
    %1474 = vrot.lane.b32.xlu0 %v1473, 64
    %v1475 = vpop.permute.xlu0 %1474
    %v1477 = vmul.f32 %v1465, %v1475
    %1479 = vrot.lane.b32.xlu0 %v1477, 64
    %v1480 = vpop.permute.xlu0 %1479
    %v1482 = vadd.f32 %v373, %v1480
    %v1483 = vtanh.pop %v1482
    %v1484 = vsub.f32 1.0, %v1465
    %1486 = vrot.lane.b32.xlu0 %v1483, 96
    %v1487 = vpop.permute.xlu0 %1486
    %v1489 = vmul.f32 %v1484, %v1487
    %v1491 = vunpack.c.l.s4 1983009808
    %v1492 = vunpack.c.0.s8 %v1491
    %v1493 = vlaneseq
    %v1494 = vshrl.u32 %v1493, 7
    %v1495 = vsub.s32 %v1492, %v1494
    %v1496 = vrot.slane %v1384, %v1495
    %1497 = vrot.lane.b32.xlu0 %v1496, 32
    %v1498 = vpop.permute.xlu0 %1497
    %v1500 = vmul.f32 %v1465, %v1498
    %v1501 = vadd.f32 %v1489, %v1500
    %1503 = vset.pattern.permute.xlu0 0
    %1504 = vperm.xlu0 %1503, %v394
    %v1505 = vpop.permute.xlu0 %1504
    %v1509 = vunpack.c.l.s4 1983009808
    %v1510 = vunpack.c.0.s8 %v1509
    %v1511 = vlaneseq
    %v1512 = vshrl.u32 %v1511, 7
    %v1513 = vsub.s32 %v1510, %v1512
    %v1514 = vrot.slane %v1501, %v1513
    %1515 = vrot.lane.b32.xlu0 %v1514, 96
    %v1516 = vpop.permute.xlu0 %1515
    %v1518 = vmul.f32 %v1505, %v1516
    %v1519 = vsub.f32 1.0, %v394
    %1521 = vset.pattern.permute.xlu0 0
    %1522 = vperm.xlu0 %1521, %v1519
    %v1523 = vpop.permute.xlu0 %1522
    %v1525 = vmul.f32 %v1523, %v1384
    %v1526 = vadd.f32 %v1518, %v1525
    %v1527 = vmul.f32 %v1505, %v1526
    %v1528 = vld [vmem:[%s9] sm:$0xff]
    %v1529 = vld [vmem:[%s9 + $0x8] sm:$0xff]
    %v1530 = vld [vmem:[%s9 + $0x10] sm:$0xff]
    %v1531 = vld [vmem:[%s9 + $0x18] sm:$0xff]
    %v1532 = vld [vmem:[#allocation10] sm:$0x1]
    %v1534 = vlaneseq
    %v1535 = vshrl.u32 %v1534, 7
    %v1536 = vsub.s32 0, %v1535
    %v1537 = vrot.slane %v1532, %v1536
    %v1540 = vsel %vm401, %v1526, 0
    %1542 = vmatprep.subr.mxu0 0.0
    %1543 = vmatpush1.msra.mxu0 0.0
    %1544 = vmatprep.subr.mxu0 0.0
    %1545 = vmatpush1.msra.mxu0 0.0
    %1546 = vmatprep.subr.mxu0 0.0
    %1547 = vmatpush1.msra.mxu0 0.0
    %1548 = vmatprep.subr.mxu0 0.0
    %1549 = vmatpush1.msra.mxu0 0.0
    %1550 = vmatprep.subr.mxu0 0.0
    %1551 = vmatpush1.msra.mxu0 0.0
    %1552 = vmatprep.subr.mxu0 0.0
    %1553 = vmatpush1.msra.mxu0 0.0
    %1554 = vmatprep.subr.mxu0 0.0
    %1555 = vmatpush1.msra.mxu0 0.0
    %1556 = vmatprep.subr.mxu0 0.0
    %1557 = vmatpush1.msra.mxu0 0.0
    %1558 = vmatprep.subr.mxu0 0.0
    %1559 = vmatpush1.msra.mxu0 0.0
    %1560 = vmatprep.subr.mxu0 0.0
    %1561 = vmatpush1.msra.mxu0 0.0
    %1562 = vmatprep.subr.mxu0 0.0
    %1563 = vmatpush1.msra.mxu0 0.0
    %1564 = vmatprep.subr.mxu0 0.0
    %1565 = vmatpush1.msra.mxu0 0.0
    %1566 = vmatprep.subr.mxu0 0.0
    %1567 = vmatpush1.msra.mxu0 %v1531
    %1568 = vmatprep.subr.mxu0 0.0
    %1569 = vmatpush1.msra.mxu0 %v1530
    %1570 = vmatprep.subr.mxu0 0.0
    %1571 = vmatpush1.msra.mxu0 %v1529
    %1572 = vmatprep.subr.mxu0 0.0
    %1573 = vmatpush1.msra.mxu0 %v1528
    %1574 = vmatprep.subr.mxu0 0.0
    %1575 = vmatpush2.msra.mxu0 0.0
    %1576 = vmatprep.subr.mxu0 0.0
    %1577 = vmatpush2.msra.mxu0 0.0
    %1578 = vmatprep.subr.mxu0 0.0
    %1579 = vmatpush2.msra.mxu0 0.0
    %1580 = vmatprep.subr.mxu0 0.0
    %1581 = vmatpush2.msra.mxu0 0.0
    %1582 = vmatprep.subr.mxu0 0.0
    %1583 = vmatpush2.msra.mxu0 0.0
    %1584 = vmatprep.subr.mxu0 0.0
    %1585 = vmatpush2.msra.mxu0 0.0
    %1586 = vmatprep.subr.mxu0 0.0
    %1587 = vmatpush2.msra.mxu0 0.0
    %1588 = vmatprep.subr.mxu0 0.0
    %1589 = vmatpush2.msra.mxu0 0.0
    %1590 = vmatprep.subr.mxu0 0.0
    %1591 = vmatpush2.msra.mxu0 0.0
    %1592 = vmatprep.subr.mxu0 0.0
    %1593 = vmatpush2.msra.mxu0 0.0
    %1594 = vmatprep.subr.mxu0 0.0
    %1595 = vmatpush2.msra.mxu0 0.0
    %1596 = vmatprep.subr.mxu0 0.0
    %1597 = vmatpush2.msra.mxu0 0.0
    %1598 = vmatprep.subr.mxu0 0.0
    %1599 = vmatpush2.msra.mxu0 0.0
    %1600 = vmatprep.subr.mxu0 0.0
    %1601 = vmatpush2.msra.mxu0 0.0
    %1602 = vmatprep.subr.mxu0 0.0
    %1603 = vmatpush2.msra.mxu0 0.0
    %1604 = vmatprep.subr.mxu0 0.0
    %1605 = vmatpush2.msra.mxu0 0.0
    %1606 = vmatprep.mubr.f32.mxu0 0.0
    %1607 = vmatmul.mubr.f32.gmra.mxu0 %v1540
    %v1608 = vpop.f32.mrf.mxu0
    %v1609 = vadd.f32 %v1537, %v1608
    %v1610 = vpop.f32.mrf.mxu0
    %1611 = vdwg.mxu0
    %v1612 = vtanh.pop %v1609
    %v1613 = vld [vmem:[%s13] sm:$0xff]
    %v1614 = vld [vmem:[%s13 + $0x8] sm:$0xff]
    %v1615 = vld [vmem:[%s13 + $0x10] sm:$0xff]
    %v1616 = vld [vmem:[%s13 + $0x18] sm:$0xff]
    %v1617 = vld [vmem:[#allocation13] sm:$0x1]
    %v1619 = vlaneseq
    %v1620 = vshrl.u32 %v1619, 7
    %v1621 = vsub.s32 0, %v1620
    %v1622 = vrot.slane %v1617, %v1621
    %v1632 = vcombine.low %v533, %v675
    %v1633 = vcombine.low %v817, %v959
    %v1635 = vunpack.c.l.s4 1983009808
    %v1636 = vunpack.c.0.s8 %v1635
    %v1637 = vlaneseq
    %v1638 = vshrl.u32 %v1637, 7
    %v1639 = vsub.s32 %v1636, %v1638
    %v1640 = vrot.slane %v1632, %v1639
    %v1642 = vunpack.c.l.s4 1983009808
    %v1643 = vunpack.c.0.s8 %v1642
    %v1644 = vlaneseq
    %v1645 = vshrl.u32 %v1644, 7
    %v1646 = vsub.s32 %v1643, %v1645
    %v1647 = vrot.slane %v1633, %v1646
    %v1648 = vcombine.low %v1640, %v1647
    %v1649 = vcombine.low %v1101, %v1243
    %v1650 = vcombine.low %v1385, %v1527
    %v1652 = vunpack.c.l.s4 1983009808
    %v1653 = vunpack.c.0.s8 %v1652
    %v1654 = vlaneseq
    %v1655 = vshrl.u32 %v1654, 7
    %v1656 = vsub.s32 %v1653, %v1655
    %v1657 = vrot.slane %v1649, %v1656
    %v1659 = vunpack.c.l.s4 1983009808
    %v1660 = vunpack.c.0.s8 %v1659
    %v1661 = vlaneseq
    %v1662 = vshrl.u32 %v1661, 7
    %v1663 = vsub.s32 %v1660, %v1662
    %v1664 = vrot.slane %v1650, %v1663
    %v1665 = vcombine.low %v1657, %v1664
    %v1666 = vsel %vm401, %v1648, 0
    %v1668 = vsel %vm401, %v1665, 0
    %1670 = vmatprep.subr.mxu0 0.0
    %1671 = vmatpush1.msra.mxu0 0.0
    %1672 = vmatprep.subr.mxu0 0.0
    %1673 = vmatpush1.msra.mxu0 0.0
    %1674 = vmatprep.subr.mxu0 0.0
    %1675 = vmatpush1.msra.mxu0 0.0
    %1676 = vmatprep.subr.mxu0 0.0
    %1677 = vmatpush1.msra.mxu0 0.0
    %1678 = vmatprep.subr.mxu0 0.0
    %1679 = vmatpush1.msra.mxu0 0.0
    %1680 = vmatprep.subr.mxu0 0.0
    %1681 = vmatpush1.msra.mxu0 0.0
    %1682 = vmatprep.subr.mxu0 0.0
    %1683 = vmatpush1.msra.mxu0 0.0
    %1684 = vmatprep.subr.mxu0 0.0
    %1685 = vmatpush1.msra.mxu0 0.0
    %1686 = vmatprep.subr.mxu0 0.0
    %1687 = vmatpush1.msra.mxu0 0.0
    %1688 = vmatprep.subr.mxu0 0.0
    %1689 = vmatpush1.msra.mxu0 0.0
    %1690 = vmatprep.subr.mxu0 0.0
    %1691 = vmatpush1.msra.mxu0 0.0
    %1692 = vmatprep.subr.mxu0 0.0
    %1693 = vmatpush1.msra.mxu0 0.0
    %1694 = vmatprep.subr.mxu0 0.0
    %1695 = vmatpush1.msra.mxu0 %v1616
    %1696 = vmatprep.subr.mxu0 0.0
    %1697 = vmatpush1.msra.mxu0 %v1615
    %1698 = vmatprep.subr.mxu0 0.0
    %1699 = vmatpush1.msra.mxu0 %v1614
    %1700 = vmatprep.subr.mxu0 0.0
    %1701 = vmatpush1.msra.mxu0 %v1613
    %1702 = vmatprep.subr.mxu0 0.0
    %1703 = vmatpush2.msra.mxu0 0.0
    %1704 = vmatprep.subr.mxu0 0.0
    %1705 = vmatpush2.msra.mxu0 0.0
    %1706 = vmatprep.subr.mxu0 0.0
    %1707 = vmatpush2.msra.mxu0 0.0
    %1708 = vmatprep.subr.mxu0 0.0
    %1709 = vmatpush2.msra.mxu0 0.0
    %1710 = vmatprep.subr.mxu0 0.0
    %1711 = vmatpush2.msra.mxu0 0.0
    %1712 = vmatprep.subr.mxu0 0.0
    %1713 = vmatpush2.msra.mxu0 0.0
    %1714 = vmatprep.subr.mxu0 0.0
    %1715 = vmatpush2.msra.mxu0 0.0
    %1716 = vmatprep.subr.mxu0 0.0
    %1717 = vmatpush2.msra.mxu0 0.0
    %1718 = vmatprep.subr.mxu0 0.0
    %1719 = vmatpush2.msra.mxu0 0.0
    %1720 = vmatprep.subr.mxu0 0.0
    %1721 = vmatpush2.msra.mxu0 0.0
    %1722 = vmatprep.subr.mxu0 0.0
    %1723 = vmatpush2.msra.mxu0 0.0
    %1724 = vmatprep.subr.mxu0 0.0
    %1725 = vmatpush2.msra.mxu0 0.0
    %1726 = vmatprep.subr.mxu0 0.0
    %1727 = vmatpush2.msra.mxu0 0.0
    %1728 = vmatprep.subr.mxu0 0.0
    %1729 = vmatpush2.msra.mxu0 0.0
    %1730 = vmatprep.subr.mxu0 0.0
    %1731 = vmatpush2.msra.mxu0 0.0
    %1732 = vmatprep.subr.mxu0 0.0
    %1733 = vmatpush2.msra.mxu0 0.0
    %1734 = vmatprep.mubr.f32.mxu0 0.0
    %1735 = vmatmul.mubr.f32.gmra.mxu0 %v1666
    %v1736 = vpop.f32.mrf.mxu0
    %v1737 = vadd.f32 %v1622, %v1736
    %v1738 = vpop.f32.mrf.mxu0
    %1739 = vmatprep.mubr.f32.mxu0 0.0
    %1740 = vmatmul.mubr.f32.gmra.mxu0 %v1668
    %v1741 = vpop.f32.mrf.mxu0
    %v1742 = vadd.f32 %v1622, %v1741
    %v1743 = vpop.f32.mrf.mxu0
    %1744 = vdwg.mxu0
    %v1747 = vcombine.high %v1737, %v1737
    %v1749 = vunpack.c.l.s4 1983009808
    %v1750 = vunpack.c.0.s8 %v1749
    %v1751 = vlaneseq
    %v1752 = vshrl.u32 %v1751, 7
    %v1753 = vsub.s32 %v1750, %v1752
    %v1754 = vrot.slane %v1737, %v1753
    %v1756 = vunpack.c.l.s4 1983009808
    %v1757 = vunpack.c.0.s8 %v1756
    %v1758 = vlaneseq
    %v1759 = vshrl.u32 %v1758, 7
    %v1760 = vsub.s32 %v1757, %v1759
    %v1761 = vrot.slane %v1747, %v1760
    %v1762 = vcombine.high %v1754, %v1754
    %v1763 = vcombine.high %v1761, %v1761
    %v1764 = vcombine.high %v1742, %v1742
    %v1766 = vunpack.c.l.s4 1983009808
    %v1767 = vunpack.c.0.s8 %v1766
    %v1768 = vlaneseq
    %v1769 = vshrl.u32 %v1768, 7
    %v1770 = vsub.s32 %v1767, %v1769
    %v1771 = vrot.slane %v1742, %v1770
    %v1773 = vunpack.c.l.s4 1983009808
    %v1774 = vunpack.c.0.s8 %v1773
    %v1775 = vlaneseq
    %v1776 = vshrl.u32 %v1775, 7
    %v1777 = vsub.s32 %v1774, %v1776
    %v1778 = vrot.slane %v1764, %v1777
    %v1779 = vcombine.high %v1771, %v1771
    %v1780 = vcombine.high %v1778, %v1778
    %v1789 = vld [vmem:[%s2] sm:$0xff]
    %v1790 = vld [vmem:[%s3] sm:$0x3]
    %v1791 = vld [vmem:[%s3 + $0x2] sm:$0x3]
    %v1792 = vld [vmem:[%s3 + $0x4] sm:$0x3]
    %v1793 = vld [vmem:[%s3 + $0x6] sm:$0x3]
    %v1794 = vld [vmem:[%s3 + $0x8] sm:$0x3]
    %v1795 = vld [vmem:[%s4 + $0x2] sm:$0x3]
    %v1796 = vld [vmem:[%s4 + $0x4] sm:$0x3]
    %v1797 = vld [vmem:[%s4 + $0x6] sm:$0x3]
    %v1798 = vld [vmem:[%s4 + $0x8] sm:$0x3]
    %v1799 = vld [vmem:[#allocation11] sm:$0xff]
    %v1800 = vld [vmem:[#allocation11 + $0x8] sm:$0xf]
    %v1801 = vld [vmem:[#allocation14] sm:$0x1]
    %v1802 = vlaneseq
    %v1803 = vand.u32 %v1802, 127
    %v1804 = vcvt.s32.f32 %v1803
    %1805 = vset.pattern.permute.xlu0 0
    %1806 = vperm.xlu0 %1805, %v1790
    %v1807 = vpop.permute.xlu0 %1806
    %vm1808 = vcmp.eq.s32.totalorder %v1803, %v1807
    %v1809 = vsel %vm1808, 1, 0
    %v1810 = vcvt.s32.f32 %v1809
    %vm1811 = vcmask 97280
    %v1813 = vsel %vm1811, %v1810, 0
    %vm1815 = vcmask 1043456
    %v1817 = vsel %vm1815, %v1800, 0
    %1819 = vmatprep.subr.mxu0 0.0
    %1820 = vmatpush1.msra.mxu0 0.0
    %1821 = vmatprep.subr.mxu0 0.0
    %1822 = vmatpush1.msra.mxu0 0.0
    %1823 = vmatprep.subr.mxu0 0.0
    %1824 = vmatpush1.msra.mxu0 0.0
    %1825 = vmatprep.subr.mxu0 0.0
    %1826 = vmatpush1.msra.mxu0 0.0
    %1827 = vmatprep.subr.mxu0 0.0
    %1828 = vmatpush1.msra.mxu0 0.0
    %1829 = vmatprep.subr.mxu0 0.0
    %1830 = vmatpush1.msra.mxu0 0.0
    %1831 = vmatprep.subr.mxu0 0.0
    %1832 = vmatpush1.msra.mxu0 0.0
    %1833 = vmatprep.subr.mxu0 0.0
    %1834 = vmatpush1.msra.mxu0 0.0
    %1835 = vmatprep.subr.mxu0 0.0
    %1836 = vmatpush1.msra.mxu0 0.0
    %1837 = vmatprep.subr.mxu0 0.0
    %1838 = vmatpush1.msra.mxu0 0.0
    %1839 = vmatprep.subr.mxu0 0.0
    %1840 = vmatpush1.msra.mxu0 0.0
    %1841 = vmatprep.subr.mxu0 0.0
    %1842 = vmatpush1.msra.mxu0 0.0
    %1843 = vmatprep.subr.mxu0 0.0
    %1844 = vmatpush1.msra.mxu0 0.0
    %1845 = vmatprep.subr.mxu0 0.0
    %1846 = vmatpush1.msra.mxu0 0.0
    %1847 = vmatprep.subr.mxu0 0.0
    %1848 = vmatpush1.msra.mxu0 %v1817
    %1849 = vmatprep.subr.mxu0 0.0
    %1850 = vmatpush1.msra.mxu0 %v1799
    %1851 = vmatprep.subr.mxu0 0.0
    %1852 = vmatpush2.msra.mxu0 0.0
    %1853 = vmatprep.subr.mxu0 0.0
    %1854 = vmatpush2.msra.mxu0 0.0
    %1855 = vmatprep.subr.mxu0 0.0
    %1856 = vmatpush2.msra.mxu0 0.0
    %1857 = vmatprep.subr.mxu0 0.0
    %1858 = vmatpush2.msra.mxu0 0.0
    %1859 = vmatprep.subr.mxu0 0.0
    %1860 = vmatpush2.msra.mxu0 0.0
    %1861 = vmatprep.subr.mxu0 0.0
    %1862 = vmatpush2.msra.mxu0 0.0
    %1863 = vmatprep.subr.mxu0 0.0
    %1864 = vmatpush2.msra.mxu0 0.0
    %1865 = vmatprep.subr.mxu0 0.0
    %1866 = vmatpush2.msra.mxu0 0.0
    %1867 = vmatprep.subr.mxu0 0.0
    %1868 = vmatpush2.msra.mxu0 0.0
    %1869 = vmatprep.subr.mxu0 0.0
    %1870 = vmatpush2.msra.mxu0 0.0
    %1871 = vmatprep.subr.mxu0 0.0
    %1872 = vmatpush2.msra.mxu0 0.0
    %1873 = vmatprep.subr.mxu0 0.0
    %1874 = vmatpush2.msra.mxu0 0.0
    %1875 = vmatprep.subr.mxu0 0.0
    %1876 = vmatpush2.msra.mxu0 0.0
    %1877 = vmatprep.subr.mxu0 0.0
    %1878 = vmatpush2.msra.mxu0 0.0
    %1879 = vmatprep.subr.mxu0 0.0
    %1880 = vmatpush2.msra.mxu0 0.0
    %1881 = vmatprep.subr.mxu0 0.0
    %1882 = vmatpush2.msra.mxu0 0.0
    %1883 = vmatprep.mubr.f32.mxu0 0.0
    %1884 = vmatmul.mubr.f32.gmra.mxu0 %v1813
    %v1885 = vpop.f32.mrf.mxu0
    %v1886 = vadd.f32 0.0, %v1885
    %v1887 = vpop.f32.mrf.mxu0
    %1888 = vdwg.mxu0
    %v1889 = vld [vmem:[%s12] sm:$0xff]
    %v1890 = vld [vmem:[%s12 + $0x8] sm:$0xff]
    %v1891 = vld [vmem:[%s12 + $0x10] sm:$0xff]
    %v1892 = vld [vmem:[%s12 + $0x18] sm:$0xff]
    %v1894 = vsel %vm401, %v1612, 0
    %1896 = vmatprep.subr.mxu0 0.0
    %1897 = vmatpush1.msra.mxu0 0.0
    %1898 = vmatprep.subr.mxu0 0.0
    %1899 = vmatpush1.msra.mxu0 0.0
    %1900 = vmatprep.subr.mxu0 0.0
    %1901 = vmatpush1.msra.mxu0 0.0
    %1902 = vmatprep.subr.mxu0 0.0
    %1903 = vmatpush1.msra.mxu0 0.0
    %1904 = vmatprep.subr.mxu0 0.0
    %1905 = vmatpush1.msra.mxu0 0.0
    %1906 = vmatprep.subr.mxu0 0.0
    %1907 = vmatpush1.msra.mxu0 0.0
    %1908 = vmatprep.subr.mxu0 0.0
    %1909 = vmatpush1.msra.mxu0 0.0
    %1910 = vmatprep.subr.mxu0 0.0
    %1911 = vmatpush1.msra.mxu0 0.0
    %1912 = vmatprep.subr.mxu0 0.0
    %1913 = vmatpush1.msra.mxu0 0.0
    %1914 = vmatprep.subr.mxu0 0.0
    %1915 = vmatpush1.msra.mxu0 0.0
    %1916 = vmatprep.subr.mxu0 0.0
    %1917 = vmatpush1.msra.mxu0 0.0
    %1918 = vmatprep.subr.mxu0 0.0
    %1919 = vmatpush1.msra.mxu0 0.0
    %1920 = vmatprep.subr.mxu0 0.0
    %1921 = vmatpush1.msra.mxu0 %v1892
    %1922 = vmatprep.subr.mxu0 0.0
    %1923 = vmatpush1.msra.mxu0 %v1891
    %1924 = vmatprep.subr.mxu0 0.0
    %1925 = vmatpush1.msra.mxu0 %v1890
    %1926 = vmatprep.subr.mxu0 0.0
    %1927 = vmatpush1.msra.mxu0 %v1889
    %1928 = vmatprep.subr.mxu0 0.0
    %1929 = vmatpush2.msra.mxu0 0.0
    %1930 = vmatprep.subr.mxu0 0.0
    %1931 = vmatpush2.msra.mxu0 0.0
    %1932 = vmatprep.subr.mxu0 0.0
    %1933 = vmatpush2.msra.mxu0 0.0
    %1934 = vmatprep.subr.mxu0 0.0
    %1935 = vmatpush2.msra.mxu0 0.0
    %1936 = vmatprep.subr.mxu0 0.0
    %1937 = vmatpush2.msra.mxu0 0.0
    %1938 = vmatprep.subr.mxu0 0.0
    %1939 = vmatpush2.msra.mxu0 0.0
    %1940 = vmatprep.subr.mxu0 0.0
    %1941 = vmatpush2.msra.mxu0 0.0
    %1942 = vmatprep.subr.mxu0 0.0
    %1943 = vmatpush2.msra.mxu0 0.0
    %1944 = vmatprep.subr.mxu0 0.0
    %1945 = vmatpush2.msra.mxu0 0.0
    %1946 = vmatprep.subr.mxu0 0.0
    %1947 = vmatpush2.msra.mxu0 0.0
    %1948 = vmatprep.subr.mxu0 0.0
    %1949 = vmatpush2.msra.mxu0 0.0
    %1950 = vmatprep.subr.mxu0 0.0
    %1951 = vmatpush2.msra.mxu0 0.0
    %1952 = vmatprep.subr.mxu0 0.0
    %1953 = vmatpush2.msra.mxu0 0.0
    %1954 = vmatprep.subr.mxu0 0.0
    %1955 = vmatpush2.msra.mxu0 0.0
    %1956 = vmatprep.subr.mxu0 0.0
    %1957 = vmatpush2.msra.mxu0 0.0
    %1958 = vmatprep.subr.mxu0 0.0
    %1959 = vmatpush2.msra.mxu0 0.0
    %1960 = vmatprep.mubr.f32.mxu0 0.0
    %1961 = vmatmul.mubr.f32.gmra.mxu0 %v1894
    %v1962 = vpop.f32.mrf.mxu0
    %v1963 = vadd.f32 0.0, %v1962
    %v1964 = vpop.f32.mrf.mxu0
    %1965 = vdwg.mxu0
    %v1966 = vadd.f32 %v1754, %v1963
    %v1967 = vadd.f32 %v1762, %v1963
    %v1968 = vadd.f32 %v1761, %v1963
    %v1969 = vadd.f32 %v1763, %v1963
    %v1970 = vadd.f32 %v1771, %v1963
    %v1971 = vadd.f32 %v1779, %v1963
    %v1972 = vadd.f32 %v1778, %v1963
    %v1973 = vadd.f32 %v1780, %v1963
    %v1974 = vtanh.pop %v1966
    %v1975 = vtanh.pop %v1967
    %v1976 = vtanh.pop %v1968
    %v1977 = vtanh.pop %v1969
    %v1978 = vtanh.pop %v1970
    %v1979 = vtanh.pop %v1971
    %v1980 = vtanh.pop %v1972
    %v1981 = vtanh.pop %v1973
    %v1983 = vlaneseq
    %v1984 = vshrl.u32 %v1983, 7
    %v1985 = vsub.s32 0, %v1984
    %v1986 = vrot.slane %v1801, %v1985
    %v1988 = vmul.f32 %v1974, %v1986
    %v1989 = vmul.f32 %v1975, %v1986
    %v1990 = vmul.f32 %v1976, %v1986
    %v1991 = vmul.f32 %v1977, %v1986
    %v1992 = vmul.f32 %v1978, %v1986
    %v1993 = vmul.f32 %v1979, %v1986
    %v1994 = vmul.f32 %v1980, %v1986
    %v1995 = vmul.f32 %v1981, %v1986
    %vm1996 = vcmask 254976
    %v1997 = vsel %vm1996, %v1988, 0.0
    %1998 = vadd.xlane.f32.xlu0 %v1997
    %v1999 = vpop.xlane.xlu0 %1998
    %v2000 = vsel %vm1996, %v1989, 0.0
    %2001 = vadd.xlane.f32.xlu0 %v2000
    %v2002 = vpop.xlane.xlu0 %2001
    %v2003 = vsel %vm1996, %v1990, 0.0
    %2004 = vadd.xlane.f32.xlu0 %v2003
    %v2005 = vpop.xlane.xlu0 %2004
    %v2006 = vsel %vm1996, %v1991, 0.0
    %2007 = vadd.xlane.f32.xlu0 %v2006
    %v2008 = vpop.xlane.xlu0 %2007
    %v2009 = vsel %vm1996, %v1992, 0.0
    %2010 = vadd.xlane.f32.xlu0 %v2009
    %v2011 = vpop.xlane.xlu0 %2010
    %v2012 = vsel %vm1996, %v1993, 0.0
    %2013 = vadd.xlane.f32.xlu0 %v2012
    %v2014 = vpop.xlane.xlu0 %2013
    %v2015 = vsel %vm1996, %v1994, 0.0
    %2016 = vadd.xlane.f32.xlu0 %v2015
    %v2017 = vpop.xlane.xlu0 %2016
    %v2018 = vsel %vm1996, %v1995, 0.0
    %2019 = vadd.xlane.f32.xlu0 %v2018
    %v2020 = vpop.xlane.xlu0 %2019
    %vm2021 = vcmp.gt.f32.partialorder %v1789, 0.0
    %v2030 = vlaneseq
    %v2031 = vshrl.u32 %v2030, 7
    %v2032 = vsub.s32 %v1803, %v2031
    %v2033 = vrot.slane %v1999, %v2032
    %v2034 = vlaneseq
    %v2035 = vshrl.u32 %v2034, 7
    %v2036 = vsub.s32 %v1803, %v2035
    %v2037 = vrot.slane %v2002, %v2036
    %v2038 = vlaneseq
    %v2039 = vshrl.u32 %v2038, 7
    %v2040 = vsub.s32 %v1803, %v2039
    %v2041 = vrot.slane %v2005, %v2040
    %v2042 = vlaneseq
    %v2043 = vshrl.u32 %v2042, 7
    %v2044 = vsub.s32 %v1803, %v2043
    %v2045 = vrot.slane %v2008, %v2044
    %v2046 = vlaneseq
    %v2047 = vshrl.u32 %v2046, 7
    %v2048 = vsub.s32 %v1803, %v2047
    %v2049 = vrot.slane %v2011, %v2048
    %v2050 = vlaneseq
    %v2051 = vshrl.u32 %v2050, 7
    %v2052 = vsub.s32 %v1803, %v2051
    %v2053 = vrot.slane %v2014, %v2052
    %v2054 = vlaneseq
    %v2055 = vshrl.u32 %v2054, 7
    %v2056 = vsub.s32 %v1803, %v2055
    %v2057 = vrot.slane %v2017, %v2056
    %v2058 = vlaneseq
    %v2059 = vshrl.u32 %v2058, 7
    %v2060 = vsub.s32 %v1803, %v2059
    %v2061 = vrot.slane %v2020, %v2060
    %vm2062 = vcmask 1041409
    %v2063 = vsel %vm2062, %v2037, %v2033
    %vm2064 = vcmask 1042434
    %v2065 = vsel %vm2064, %v2041, %v2063
    %vm2066 = vcmask 1043459
    %v2067 = vsel %vm2066, %v2045, %v2065
    %vm2068 = vcmask 1044484
    %v2069 = vsel %vm2068, %v2049, %v2067
    %vm2070 = vcmask 1045509
    %v2071 = vsel %vm2070, %v2053, %v2069
    %vm2072 = vcmask 1046534
    %v2073 = vsel %vm2072, %v2057, %v2071
    %vm2074 = vcmask 1047559
    %v2075 = vsel %vm2074, %v2061, %v2073
    %v2077 = vsel %vm2021, %v2075, -1e+10
    %vm2078 = vcmask 15360
    %v2079 = vsel %vm2078, %v2077, -inf
    %v2080 = vrot.slane %v2079, 4
    %v2081 = vmax.f32 %v2079, %v2080
    %v2082 = vrot.slane %v2081, 2
    %v2083 = vmax.f32 %v2081, %v2082
    %v2084 = vrot.slane %v2083, 1
    %v2085 = vmax.f32 %v2083, %v2084
    %v2086 = vsub.f32 %v2077, %v2085
    %v2087 = vmul.f32 %v2086, 1.442695
    %v2088 = vpow.pop %v2087
    %v2089 = vsel %vm2078, %v2088, 0.0
    %v2090 = vrot.slane %v2089, 4
    %v2091 = vadd.f32 %v2089, %v2090
    %v2092 = vrot.slane %v2091, 2
    %v2093 = vadd.f32 %v2091, %v2092
    %v2094 = vrot.slane %v2093, 1
    %v2095 = vadd.f32 %v2093, %v2094
    %v2096 = vrcp.pop %v2095
    %v2097 = vmul.f32 %v2088, %v2096
    %v2098 = vlaneseq
    %v2099 = vshrl.u32 %v2098, 7
    %v2100 = vsub.s32 0, %v2099
    %v2101 = vrot.slane %v2097, %v2100
    %2103 = vbcast.lane.b32.xlu0 %v2101, 256
    %v2104 = vpop.permute.xlu0 %2103
    %v2105 = vlaneseq
    %v2106 = vshrl.u32 %v2105, 7
    %v2107 = vsub.s32 1, %v2106
    %v2108 = vrot.slane %v2097, %v2107
    %2110 = vbcast.lane.b32.xlu0 %v2108, 256
    %v2111 = vpop.permute.xlu0 %2110
    %v2112 = vlaneseq
    %v2113 = vshrl.u32 %v2112, 7
    %v2114 = vsub.s32 2, %v2113
    %v2115 = vrot.slane %v2097, %v2114
    %2117 = vbcast.lane.b32.xlu0 %v2115, 256
    %v2118 = vpop.permute.xlu0 %2117
    %v2119 = vlaneseq
    %v2120 = vshrl.u32 %v2119, 7
    %v2121 = vsub.s32 3, %v2120
    %v2122 = vrot.slane %v2097, %v2121
    %2124 = vbcast.lane.b32.xlu0 %v2122, 256
    %v2125 = vpop.permute.xlu0 %2124
    %v2126 = vlaneseq
    %v2127 = vshrl.u32 %v2126, 7
    %v2128 = vsub.s32 4, %v2127
    %v2129 = vrot.slane %v2097, %v2128
    %2131 = vbcast.lane.b32.xlu0 %v2129, 256
    %v2132 = vpop.permute.xlu0 %2131
    %v2133 = vlaneseq
    %v2134 = vshrl.u32 %v2133, 7
    %v2135 = vsub.s32 5, %v2134
    %v2136 = vrot.slane %v2097, %v2135
    %2138 = vbcast.lane.b32.xlu0 %v2136, 256
    %v2139 = vpop.permute.xlu0 %2138
    %v2140 = vlaneseq
    %v2141 = vshrl.u32 %v2140, 7
    %v2142 = vsub.s32 6, %v2141
    %v2143 = vrot.slane %v2097, %v2142
    %2145 = vbcast.lane.b32.xlu0 %v2143, 256
    %v2146 = vpop.permute.xlu0 %2145
    %v2147 = vlaneseq
    %v2148 = vshrl.u32 %v2147, 7
    %v2149 = vsub.s32 7, %v2148
    %v2150 = vrot.slane %v2097, %v2149
    %2152 = vbcast.lane.b32.xlu0 %v2150, 256
    %v2153 = vpop.permute.xlu0 %2152
    %v2154 = vmul.f32 %v2104, %v533
    %v2155 = vmul.f32 %v2111, %v675
    %v2156 = vmul.f32 %v2118, %v817
    %v2157 = vmul.f32 %v2125, %v959
    %v2158 = vmul.f32 %v2132, %v1101
    %v2159 = vmul.f32 %v2139, %v1243
    %v2160 = vmul.f32 %v2146, %v1385
    %v2161 = vmul.f32 %v2153, %v1527
    %v2162 = vsel %vm1996, %v2154, 0.0
    %v2163 = vsel %vm1996, %v2155, 0.0
    %v2164 = vadd.f32 %v2162, %v2163
    %v2165 = vsel %vm1996, %v2156, 0.0
    %v2166 = vadd.f32 %v2164, %v2165
    %v2167 = vsel %vm1996, %v2157, 0.0
    %v2168 = vadd.f32 %v2166, %v2167
    %v2169 = vsel %vm1996, %v2158, 0.0
    %v2170 = vadd.f32 %v2168, %v2169
    %v2171 = vsel %vm1996, %v2159, 0.0
    %v2172 = vadd.f32 %v2170, %v2171
    %v2173 = vsel %vm1996, %v2160, 0.0
    %v2174 = vadd.f32 %v2172, %v2173
    %v2175 = vsel %vm1996, %v2161, 0.0
    %v2176 = vadd.f32 %v2174, %v2175
    %v2177 = vld [vmem:[#allocation16] sm:$0xff]
    %v2178 = vld [vmem:[#allocation16 + $0x8] sm:$0xff]
    %v2179 = vld [vmem:[%s17] sm:$0xff]
    %v2180 = vld [vmem:[%s17 + $0x8] sm:$0xff]
    %v2181 = vld [vmem:[%s17 + $0x10] sm:$0xff]
    %v2182 = vld [vmem:[%s17 + $0x18] sm:$0xff]
    %v2184 = vsel %vm401, %v2176, 0
    %2186 = vmatprep.subr.mxu0 0.0
    %2187 = vmatpush1.msra.mxu0 0.0
    %2188 = vmatprep.subr.mxu0 0.0
    %2189 = vmatpush1.msra.mxu0 0.0
    %2190 = vmatprep.subr.mxu0 0.0
    %2191 = vmatpush1.msra.mxu0 0.0
    %2192 = vmatprep.subr.mxu0 0.0
    %2193 = vmatpush1.msra.mxu0 0.0
    %2194 = vmatprep.subr.mxu0 0.0
    %2195 = vmatpush1.msra.mxu0 0.0
    %2196 = vmatprep.subr.mxu0 0.0
    %2197 = vmatpush1.msra.mxu0 0.0
    %2198 = vmatprep.subr.mxu0 0.0
    %2199 = vmatpush1.msra.mxu0 0.0
    %2200 = vmatprep.subr.mxu0 0.0
    %2201 = vmatpush1.msra.mxu0 0.0
    %2202 = vmatprep.subr.mxu0 0.0
    %2203 = vmatpush1.msra.mxu0 0.0
    %2204 = vmatprep.subr.mxu0 0.0
    %2205 = vmatpush1.msra.mxu0 0.0
    %2206 = vmatprep.subr.mxu0 0.0
    %2207 = vmatpush1.msra.mxu0 0.0
    %2208 = vmatprep.subr.mxu0 0.0
    %2209 = vmatpush1.msra.mxu0 0.0
    %2210 = vmatprep.subr.mxu0 0.0
    %2211 = vmatpush1.msra.mxu0 %v2182
    %2212 = vmatprep.subr.mxu0 0.0
    %2213 = vmatpush1.msra.mxu0 %v2181
    %2214 = vmatprep.subr.mxu0 0.0
    %2215 = vmatpush1.msra.mxu0 %v2180
    %2216 = vmatprep.subr.mxu0 0.0
    %2217 = vmatpush1.msra.mxu0 %v2179
    %2218 = vmatprep.subr.mxu0 0.0
    %2219 = vmatpush2.msra.mxu0 0.0
    %2220 = vmatprep.subr.mxu0 0.0
    %2221 = vmatpush2.msra.mxu0 0.0
    %2222 = vmatprep.subr.mxu0 0.0
    %2223 = vmatpush2.msra.mxu0 0.0
    %2224 = vmatprep.subr.mxu0 0.0
    %2225 = vmatpush2.msra.mxu0 0.0
    %2226 = vmatprep.subr.mxu0 0.0
    %2227 = vmatpush2.msra.mxu0 0.0
    %2228 = vmatprep.subr.mxu0 0.0
    %2229 = vmatpush2.msra.mxu0 0.0
    %2230 = vmatprep.subr.mxu0 0.0
    %2231 = vmatpush2.msra.mxu0 0.0
    %2232 = vmatprep.subr.mxu0 0.0
    %2233 = vmatpush2.msra.mxu0 0.0
    %2234 = vmatprep.subr.mxu0 0.0
    %2235 = vmatpush2.msra.mxu0 0.0
    %2236 = vmatprep.subr.mxu0 0.0
    %2237 = vmatpush2.msra.mxu0 0.0
    %2238 = vmatprep.subr.mxu0 0.0
    %2239 = vmatpush2.msra.mxu0 0.0
    %2240 = vmatprep.subr.mxu0 0.0
    %2241 = vmatpush2.msra.mxu0 0.0
    %2242 = vmatprep.subr.mxu0 0.0
    %2243 = vmatpush2.msra.mxu0 0.0
    %2244 = vmatprep.subr.mxu0 0.0
    %2245 = vmatpush2.msra.mxu0 0.0
    %2246 = vmatprep.subr.mxu0 0.0
    %2247 = vmatpush2.msra.mxu0 0.0
    %2248 = vmatprep.subr.mxu0 0.0
    %2249 = vmatpush2.msra.mxu0 0.0
    %2250 = vmatprep.mubr.f32.mxu0 0.0
    %2251 = vmatmul.mubr.f32.gmra.mxu0 %v2184
    %v2252 = vpop.f32.mrf.mxu0
    %v2253 = vadd.f32 0.0, %v2252
    %v2254 = vpop.f32.mrf.mxu0
    %2255 = vdwg.mxu0
    %v2257 = vsel %vm256, %v1886, 0
    %2259 = vmatprep.subr.mxu0 0.0
    %2260 = vmatpush1.msra.mxu0 0.0
    %2261 = vmatprep.subr.mxu0 0.0
    %2262 = vmatpush1.msra.mxu0 0.0
    %2263 = vmatprep.subr.mxu0 0.0
    %2264 = vmatpush1.msra.mxu0 0.0
    %2265 = vmatprep.subr.mxu0 0.0
    %2266 = vmatpush1.msra.mxu0 0.0
    %2267 = vmatprep.subr.mxu0 0.0
    %2268 = vmatpush1.msra.mxu0 0.0
    %2269 = vmatprep.subr.mxu0 0.0
    %2270 = vmatpush1.msra.mxu0 0.0
    %2271 = vmatprep.subr.mxu0 0.0
    %2272 = vmatpush1.msra.mxu0 0.0
    %2273 = vmatprep.subr.mxu0 0.0
    %2274 = vmatpush1.msra.mxu0 0.0
    %2275 = vmatprep.subr.mxu0 0.0
    %2276 = vmatpush1.msra.mxu0 0.0
    %2277 = vmatprep.subr.mxu0 0.0
    %2278 = vmatpush1.msra.mxu0 0.0
    %2279 = vmatprep.subr.mxu0 0.0
    %2280 = vmatpush1.msra.mxu0 0.0
    %2281 = vmatprep.subr.mxu0 0.0
    %2282 = vmatpush1.msra.mxu0 0.0
    %2283 = vmatprep.subr.mxu0 0.0
    %2284 = vmatpush1.msra.mxu0 0.0
    %2285 = vmatprep.subr.mxu0 0.0
    %2286 = vmatpush1.msra.mxu0 0.0
    %2287 = vmatprep.subr.mxu0 0.0
    %2288 = vmatpush1.msra.mxu0 %v2178
    %2289 = vmatprep.subr.mxu0 0.0
    %2290 = vmatpush1.msra.mxu0 %v2177
    %2291 = vmatprep.subr.mxu0 0.0
    %2292 = vmatpush2.msra.mxu0 0.0
    %2293 = vmatprep.subr.mxu0 0.0
    %2294 = vmatpush2.msra.mxu0 0.0
    %2295 = vmatprep.subr.mxu0 0.0
    %2296 = vmatpush2.msra.mxu0 0.0
    %2297 = vmatprep.subr.mxu0 0.0
    %2298 = vmatpush2.msra.mxu0 0.0
    %2299 = vmatprep.subr.mxu0 0.0
    %2300 = vmatpush2.msra.mxu0 0.0
    %2301 = vmatprep.subr.mxu0 0.0
    %2302 = vmatpush2.msra.mxu0 0.0
    %2303 = vmatprep.subr.mxu0 0.0
    %2304 = vmatpush2.msra.mxu0 0.0
    %2305 = vmatprep.subr.mxu0 0.0
    %2306 = vmatpush2.msra.mxu0 0.0
    %2307 = vmatprep.subr.mxu0 0.0
    %2308 = vmatpush2.msra.mxu0 0.0
    %2309 = vmatprep.subr.mxu0 0.0
    %2310 = vmatpush2.msra.mxu0 0.0
    %2311 = vmatprep.subr.mxu0 0.0
    %2312 = vmatpush2.msra.mxu0 0.0
    %2313 = vmatprep.subr.mxu0 0.0
    %2314 = vmatpush2.msra.mxu0 0.0
    %2315 = vmatprep.subr.mxu0 0.0
    %2316 = vmatpush2.msra.mxu0 0.0
    %2317 = vmatprep.subr.mxu0 0.0
    %2318 = vmatpush2.msra.mxu0 0.0
    %2319 = vmatprep.subr.mxu0 0.0
    %2320 = vmatpush2.msra.mxu0 0.0
    %2321 = vmatprep.subr.mxu0 0.0
    %2322 = vmatpush2.msra.mxu0 0.0
    %2323 = vmatprep.mubr.f32.mxu0 0.0
    %2324 = vmatmul.mubr.f32.gmra.mxu0 %v2257
    %v2325 = vpop.f32.mrf.mxu0
    %v2326 = vadd.f32 %v2253, %v2325
    %v2327 = vpop.f32.mrf.mxu0
    %2328 = vdwg.mxu0
    %v2329 = vld [vmem:[#allocation19] sm:$0x1]
    %v2331 = vlaneseq
    %v2332 = vshrl.u32 %v2331, 7
    %v2333 = vsub.s32 0, %v2332
    %v2334 = vrot.slane %v2329, %v2333
    %v2336 = vadd.f32 %v2326, %v2334
    %v2337 = vld [vmem:[#allocation17] sm:$0xff]
    %v2338 = vld [vmem:[#allocation17 + $0x8] sm:$0xff]
    %v2339 = vld [vmem:[#allocation17 + $0x10] sm:$0xff]
    %v2340 = vld [vmem:[#allocation17 + $0x18] sm:$0xff]
    %v2341 = vld [vmem:[#allocation20] sm:$0x1]
    %v2343 = vlaneseq
    %v2344 = vshrl.u32 %v2343, 7
    %v2345 = vsub.s32 0, %v2344
    %v2346 = vrot.slane %v2341, %v2345
    %2348 = vmatprep.subr.mxu0 0.0
    %2349 = vmatpush1.msra.mxu0 0.0
    %2350 = vmatprep.subr.mxu0 0.0
    %2351 = vmatpush1.msra.mxu0 0.0
    %2352 = vmatprep.subr.mxu0 0.0
    %2353 = vmatpush1.msra.mxu0 0.0
    %2354 = vmatprep.subr.mxu0 0.0
    %2355 = vmatpush1.msra.mxu0 0.0
    %2356 = vmatprep.subr.mxu0 0.0
    %2357 = vmatpush1.msra.mxu0 0.0
    %2358 = vmatprep.subr.mxu0 0.0
    %2359 = vmatpush1.msra.mxu0 0.0
    %2360 = vmatprep.subr.mxu0 0.0
    %2361 = vmatpush1.msra.mxu0 0.0
    %2362 = vmatprep.subr.mxu0 0.0
    %2363 = vmatpush1.msra.mxu0 0.0
    %2364 = vmatprep.subr.mxu0 0.0
    %2365 = vmatpush1.msra.mxu0 0.0
    %2366 = vmatprep.subr.mxu0 0.0
    %2367 = vmatpush1.msra.mxu0 0.0
    %2368 = vmatprep.subr.mxu0 0.0
    %2369 = vmatpush1.msra.mxu0 0.0
    %2370 = vmatprep.subr.mxu0 0.0
    %2371 = vmatpush1.msra.mxu0 0.0
    %2372 = vmatprep.subr.mxu0 0.0
    %2373 = vmatpush1.msra.mxu0 %v2340
    %2374 = vmatprep.subr.mxu0 0.0
    %2375 = vmatpush1.msra.mxu0 %v2339
    %2376 = vmatprep.subr.mxu0 0.0
    %2377 = vmatpush1.msra.mxu0 %v2338
    %2378 = vmatprep.subr.mxu0 0.0
    %2379 = vmatpush1.msra.mxu0 %v2337
    %2380 = vmatprep.subr.mxu0 0.0
    %2381 = vmatpush2.msra.mxu0 0.0
    %2382 = vmatprep.subr.mxu0 0.0
    %2383 = vmatpush2.msra.mxu0 0.0
    %2384 = vmatprep.subr.mxu0 0.0
    %2385 = vmatpush2.msra.mxu0 0.0
    %2386 = vmatprep.subr.mxu0 0.0
    %2387 = vmatpush2.msra.mxu0 0.0
    %2388 = vmatprep.subr.mxu0 0.0
    %2389 = vmatpush2.msra.mxu0 0.0
    %2390 = vmatprep.subr.mxu0 0.0
    %2391 = vmatpush2.msra.mxu0 0.0
    %2392 = vmatprep.subr.mxu0 0.0
    %2393 = vmatpush2.msra.mxu0 0.0
    %2394 = vmatprep.subr.mxu0 0.0
    %2395 = vmatpush2.msra.mxu0 0.0
    %2396 = vmatprep.subr.mxu0 0.0
    %2397 = vmatpush2.msra.mxu0 0.0
    %2398 = vmatprep.subr.mxu0 0.0
    %2399 = vmatpush2.msra.mxu0 0.0
    %2400 = vmatprep.subr.mxu0 0.0
    %2401 = vmatpush2.msra.mxu0 0.0
    %2402 = vmatprep.subr.mxu0 0.0
    %2403 = vmatpush2.msra.mxu0 0.0
    %2404 = vmatprep.subr.mxu0 0.0
    %2405 = vmatpush2.msra.mxu0 0.0
    %2406 = vmatprep.subr.mxu0 0.0
    %2407 = vmatpush2.msra.mxu0 0.0
    %2408 = vmatprep.subr.mxu0 0.0
    %2409 = vmatpush2.msra.mxu0 0.0
    %2410 = vmatprep.subr.mxu0 0.0
    %2411 = vmatpush2.msra.mxu0 0.0
    %2412 = vmatprep.mubr.f32.mxu0 0.0
    %2413 = vmatmul.mubr.f32.gmra.mxu0 %v1894
    %v2414 = vpop.f32.mrf.mxu0
    %v2415 = vadd.f32 %v2346, %v2414
    %v2416 = vpop.f32.mrf.mxu0
    %2417 = vdwg.mxu0
    %v2418 = vadd.f32 %v2336, %v2415
    %v2419 = vxor.u32 %v2418, 2147483648
    %v2420 = vmul.f32 %v2419, 1.442695
    %v2421 = vpow.pop %v2420
    %v2422 = vadd.f32 %v2421, 1.0
    %v2423 = vrcp.pop %v2422
    %v2424 = vmul.f32 1.0, %v2423
    %2426 = vrot.lane.b32.xlu0 %v2415, 64
    %v2427 = vpop.permute.xlu0 %2426
    %v2429 = vmul.f32 %v2424, %v2427
    %2431 = vrot.lane.b32.xlu0 %v2429, 64
    %v2432 = vpop.permute.xlu0 %2431
    %v2434 = vadd.f32 %v2336, %v2432
    %v2435 = vtanh.pop %v2434
    %v2436 = vsub.f32 1.0, %v2424
    %2438 = vrot.lane.b32.xlu0 %v2435, 96
    %v2439 = vpop.permute.xlu0 %2438
    %v2441 = vmul.f32 %v2436, %v2439
    %2442 = vrot.lane.b32.xlu0 %v1612, 32
    %v2443 = vpop.permute.xlu0 %2442
    %v2445 = vmul.f32 %v2424, %v2443
    %v2446 = vadd.f32 %v2441, %v2445
    %v2447 = vld [vmem:[%s21] sm:$0xff]
    %v2448 = vld [vmem:[%s21 + $0x8] sm:$0xff]
    %v2449 = vld [vmem:[%s21 + $0x10] sm:$0xff]
    %v2450 = vld [vmem:[%s21 + $0x18] sm:$0xff]
    %v2451 = vld [vmem:[%s22] sm:$0xff]
    %v2452 = vld [vmem:[%s22 + $0x8] sm:$0xff]
    %v2453 = vld [vmem:[%s22 + $0x10] sm:$0xff]
    %v2454 = vld [vmem:[%s22 + $0x18] sm:$0xff]
    %2455 = vmatprep.subr.mxu0 0.0
    %2456 = vmatpush1.msra.mxu0 0.0
    %2457 = vmatprep.subr.mxu0 0.0
    %2458 = vmatpush1.msra.mxu0 0.0
    %2459 = vmatprep.subr.mxu0 0.0
    %2460 = vmatpush1.msra.mxu0 0.0
    %2461 = vmatprep.subr.mxu0 0.0
    %2462 = vmatpush1.msra.mxu0 0.0
    %2463 = vmatprep.subr.mxu0 0.0
    %2464 = vmatpush1.msra.mxu0 0.0
    %2465 = vmatprep.subr.mxu0 0.0
    %2466 = vmatpush1.msra.mxu0 0.0
    %2467 = vmatprep.subr.mxu0 0.0
    %2468 = vmatpush1.msra.mxu0 0.0
    %2469 = vmatprep.subr.mxu0 0.0
    %2470 = vmatpush1.msra.mxu0 0.0
    %2471 = vmatprep.subr.mxu0 0.0
    %2472 = vmatpush1.msra.mxu0 0.0
    %2473 = vmatprep.subr.mxu0 0.0
    %2474 = vmatpush1.msra.mxu0 0.0
    %2475 = vmatprep.subr.mxu0 0.0
    %2476 = vmatpush1.msra.mxu0 0.0
    %2477 = vmatprep.subr.mxu0 0.0
    %2478 = vmatpush1.msra.mxu0 0.0
    %2479 = vmatprep.subr.mxu0 0.0
    %2480 = vmatpush1.msra.mxu0 %v2454
    %2481 = vmatprep.subr.mxu0 0.0
    %2482 = vmatpush1.msra.mxu0 %v2453
    %2483 = vmatprep.subr.mxu0 0.0
    %2484 = vmatpush1.msra.mxu0 %v2452
    %2485 = vmatprep.subr.mxu0 0.0
    %2486 = vmatpush1.msra.mxu0 %v2451
    %2487 = vmatprep.subr.mxu0 0.0
    %2488 = vmatpush2.msra.mxu0 0.0
    %2489 = vmatprep.subr.mxu0 0.0
    %2490 = vmatpush2.msra.mxu0 0.0
    %2491 = vmatprep.subr.mxu0 0.0
    %2492 = vmatpush2.msra.mxu0 0.0
    %2493 = vmatprep.subr.mxu0 0.0
    %2494 = vmatpush2.msra.mxu0 0.0
    %2495 = vmatprep.subr.mxu0 0.0
    %2496 = vmatpush2.msra.mxu0 0.0
    %2497 = vmatprep.subr.mxu0 0.0
    %2498 = vmatpush2.msra.mxu0 0.0
    %2499 = vmatprep.subr.mxu0 0.0
    %2500 = vmatpush2.msra.mxu0 0.0
    %2501 = vmatprep.subr.mxu0 0.0
    %2502 = vmatpush2.msra.mxu0 0.0
    %2503 = vmatprep.subr.mxu0 0.0
    %2504 = vmatpush2.msra.mxu0 0.0
    %2505 = vmatprep.subr.mxu0 0.0
    %2506 = vmatpush2.msra.mxu0 0.0
    %2507 = vmatprep.subr.mxu0 0.0
    %2508 = vmatpush2.msra.mxu0 0.0
    %2509 = vmatprep.subr.mxu0 0.0
    %2510 = vmatpush2.msra.mxu0 0.0
    %2511 = vmatprep.subr.mxu0 0.0
    %2512 = vmatpush2.msra.mxu0 0.0
    %2513 = vmatprep.subr.mxu0 0.0
    %2514 = vmatpush2.msra.mxu0 0.0
    %2515 = vmatprep.subr.mxu0 0.0
    %2516 = vmatpush2.msra.mxu0 0.0
    %2517 = vmatprep.subr.mxu0 0.0
    %2518 = vmatpush2.msra.mxu0 0.0
    %2519 = vmatprep.mubr.f32.mxu0 0.0
    %2520 = vmatmul.mubr.f32.gmra.mxu0 %v2184
    %v2521 = vpop.f32.mrf.mxu0
    %v2522 = vadd.f32 0.0, %v2521
    %v2523 = vpop.f32.mrf.mxu0
    %2524 = vdwg.mxu0
    %2526 = vrot.lane.b32.xlu0 %v2446, 96
    %v2527 = vpop.permute.xlu0 %2526
    %v2528 = vsel %vm401, %v2527, 0
    %2530 = vmatprep.subr.mxu0 0.0
    %2531 = vmatpush1.msra.mxu0 0.0
    %2532 = vmatprep.subr.mxu0 0.0
    %2533 = vmatpush1.msra.mxu0 0.0
    %2534 = vmatprep.subr.mxu0 0.0
    %2535 = vmatpush1.msra.mxu0 0.0
    %2536 = vmatprep.subr.mxu0 0.0
    %2537 = vmatpush1.msra.mxu0 0.0
    %2538 = vmatprep.subr.mxu0 0.0
    %2539 = vmatpush1.msra.mxu0 0.0
    %2540 = vmatprep.subr.mxu0 0.0
    %2541 = vmatpush1.msra.mxu0 0.0
    %2542 = vmatprep.subr.mxu0 0.0
    %2543 = vmatpush1.msra.mxu0 0.0
    %2544 = vmatprep.subr.mxu0 0.0
    %2545 = vmatpush1.msra.mxu0 0.0
    %2546 = vmatprep.subr.mxu0 0.0
    %2547 = vmatpush1.msra.mxu0 0.0
    %2548 = vmatprep.subr.mxu0 0.0
    %2549 = vmatpush1.msra.mxu0 0.0
    %2550 = vmatprep.subr.mxu0 0.0
    %2551 = vmatpush1.msra.mxu0 0.0
    %2552 = vmatprep.subr.mxu0 0.0
    %2553 = vmatpush1.msra.mxu0 0.0
    %2554 = vmatprep.subr.mxu0 0.0
    %2555 = vmatpush1.msra.mxu0 %v2450
    %2556 = vmatprep.subr.mxu0 0.0
    %2557 = vmatpush1.msra.mxu0 %v2449
    %2558 = vmatprep.subr.mxu0 0.0
    %2559 = vmatpush1.msra.mxu0 %v2448
    %2560 = vmatprep.subr.mxu0 0.0
    %2561 = vmatpush1.msra.mxu0 %v2447
    %2562 = vmatprep.subr.mxu0 0.0
    %2563 = vmatpush2.msra.mxu0 0.0
    %2564 = vmatprep.subr.mxu0 0.0
    %2565 = vmatpush2.msra.mxu0 0.0
    %2566 = vmatprep.subr.mxu0 0.0
    %2567 = vmatpush2.msra.mxu0 0.0
    %2568 = vmatprep.subr.mxu0 0.0
    %2569 = vmatpush2.msra.mxu0 0.0
    %2570 = vmatprep.subr.mxu0 0.0
    %2571 = vmatpush2.msra.mxu0 0.0
    %2572 = vmatprep.subr.mxu0 0.0
    %2573 = vmatpush2.msra.mxu0 0.0
    %2574 = vmatprep.subr.mxu0 0.0
    %2575 = vmatpush2.msra.mxu0 0.0
    %2576 = vmatprep.subr.mxu0 0.0
    %2577 = vmatpush2.msra.mxu0 0.0
    %2578 = vmatprep.subr.mxu0 0.0
    %2579 = vmatpush2.msra.mxu0 0.0
    %2580 = vmatprep.subr.mxu0 0.0
    %2581 = vmatpush2.msra.mxu0 0.0
    %2582 = vmatprep.subr.mxu0 0.0
    %2583 = vmatpush2.msra.mxu0 0.0
    %2584 = vmatprep.subr.mxu0 0.0
    %2585 = vmatpush2.msra.mxu0 0.0
    %2586 = vmatprep.subr.mxu0 0.0
    %2587 = vmatpush2.msra.mxu0 0.0
    %2588 = vmatprep.subr.mxu0 0.0
    %2589 = vmatpush2.msra.mxu0 0.0
    %2590 = vmatprep.subr.mxu0 0.0
    %2591 = vmatpush2.msra.mxu0 0.0
    %2592 = vmatprep.subr.mxu0 0.0
    %2593 = vmatpush2.msra.mxu0 0.0
    %2594 = vmatprep.mubr.f32.mxu0 0.0
    %2595 = vmatmul.mubr.f32.gmra.mxu0 %v2528
    %v2596 = vpop.f32.mrf.mxu0
    %v2597 = vadd.f32 %v2522, %v2596
    %v2598 = vpop.f32.mrf.mxu0
    %2599 = vdwg.mxu0
    %v2600 = vld [vmem:[#allocation22] sm:$0xff]
    %v2601 = vld [vmem:[#allocation22 + $0x8] sm:$0xff]
    %2602 = vmatprep.subr.mxu0 0.0
    %2603 = vmatpush1.msra.mxu0 0.0
    %2604 = vmatprep.subr.mxu0 0.0
    %2605 = vmatpush1.msra.mxu0 0.0
    %2606 = vmatprep.subr.mxu0 0.0
    %2607 = vmatpush1.msra.mxu0 0.0
    %2608 = vmatprep.subr.mxu0 0.0
    %2609 = vmatpush1.msra.mxu0 0.0
    %2610 = vmatprep.subr.mxu0 0.0
    %2611 = vmatpush1.msra.mxu0 0.0
    %2612 = vmatprep.subr.mxu0 0.0
    %2613 = vmatpush1.msra.mxu0 0.0
    %2614 = vmatprep.subr.mxu0 0.0
    %2615 = vmatpush1.msra.mxu0 0.0
    %2616 = vmatprep.subr.mxu0 0.0
    %2617 = vmatpush1.msra.mxu0 0.0
    %2618 = vmatprep.subr.mxu0 0.0
    %2619 = vmatpush1.msra.mxu0 0.0
    %2620 = vmatprep.subr.mxu0 0.0
    %2621 = vmatpush1.msra.mxu0 0.0
    %2622 = vmatprep.subr.mxu0 0.0
    %2623 = vmatpush1.msra.mxu0 0.0
    %2624 = vmatprep.subr.mxu0 0.0
    %2625 = vmatpush1.msra.mxu0 0.0
    %2626 = vmatprep.subr.mxu0 0.0
    %2627 = vmatpush1.msra.mxu0 0.0
    %2628 = vmatprep.subr.mxu0 0.0
    %2629 = vmatpush1.msra.mxu0 0.0
    %2630 = vmatprep.subr.mxu0 0.0
    %2631 = vmatpush1.msra.mxu0 %v2601
    %2632 = vmatprep.subr.mxu0 0.0
    %2633 = vmatpush1.msra.mxu0 %v2600
    %2634 = vmatprep.subr.mxu0 0.0
    %2635 = vmatpush2.msra.mxu0 0.0
    %2636 = vmatprep.subr.mxu0 0.0
    %2637 = vmatpush2.msra.mxu0 0.0
    %2638 = vmatprep.subr.mxu0 0.0
    %2639 = vmatpush2.msra.mxu0 0.0
    %2640 = vmatprep.subr.mxu0 0.0
    %2641 = vmatpush2.msra.mxu0 0.0
    %2642 = vmatprep.subr.mxu0 0.0
    %2643 = vmatpush2.msra.mxu0 0.0
    %2644 = vmatprep.subr.mxu0 0.0
    %2645 = vmatpush2.msra.mxu0 0.0
    %2646 = vmatprep.subr.mxu0 0.0
    %2647 = vmatpush2.msra.mxu0 0.0
    %2648 = vmatprep.subr.mxu0 0.0
    %2649 = vmatpush2.msra.mxu0 0.0
    %2650 = vmatprep.subr.mxu0 0.0
    %2651 = vmatpush2.msra.mxu0 0.0
    %2652 = vmatprep.subr.mxu0 0.0
    %2653 = vmatpush2.msra.mxu0 0.0
    %2654 = vmatprep.subr.mxu0 0.0
    %2655 = vmatpush2.msra.mxu0 0.0
    %2656 = vmatprep.subr.mxu0 0.0
    %2657 = vmatpush2.msra.mxu0 0.0
    %2658 = vmatprep.subr.mxu0 0.0
    %2659 = vmatpush2.msra.mxu0 0.0
    %2660 = vmatprep.subr.mxu0 0.0
    %2661 = vmatpush2.msra.mxu0 0.0
    %2662 = vmatprep.subr.mxu0 0.0
    %2663 = vmatpush2.msra.mxu0 0.0
    %2664 = vmatprep.subr.mxu0 0.0
    %2665 = vmatpush2.msra.mxu0 0.0
    %2666 = vmatprep.mubr.f32.mxu0 0.0
    %2667 = vmatmul.mubr.f32.gmra.mxu0 %v2257
    %v2668 = vpop.f32.mrf.mxu0
    %v2669 = vadd.f32 0.0, %v2668
    %v2670 = vpop.f32.mrf.mxu0
    %2671 = vdwg.mxu0
    %v2672 = vadd.f32 %v2597, %v2669
    %v2673 = vld [vmem:[%s24] sm:$0x1]
    %v2675 = vlaneseq
    %v2676 = vshrl.u32 %v2675, 7
    %v2677 = vsub.s32 0, %v2676
    %v2678 = vrot.slane %v2673, %v2677
    %v2680 = vadd.f32 %v2672, %v2678
    %vm2681 = vcmask 91136
    %v2682 = vsel %vm2681, %v2680, -inf
    %2683 = vmax.xlane.f32.xlu0 %v2682
    %v2684 = vpop.xlane.xlu0 %2683
    %vm2685 = vcmp.eq.f32.partialorder %v2680, %v2684
    %v2686 = vsel %vm2685, %v1804, 12.0
    %v2687 = vsel %vm2681, %v2686, inf
    %2688 = vmin.xlane.f32.xlu0 %v2687
    %v2689 = vpop.xlane.xlu0 %2688
    %v2690 = vcvt.f32.s32.to.zero.pseudo %v2689
    %vm2691 = vcmp.gt.f32.partialorder %v1795, 0.5
    %v2692 = vsel %vm2691, %v1791, %v2690
    %2693 = vset.pattern.permute.xlu0 0
    %2694 = vperm.xlu0 %2693, %v2692
    %v2695 = vpop.permute.xlu0 %2694
    %vm2696 = vcmp.eq.s32.totalorder %v1803, %v2695
    %v2697 = vsel %vm2696, 1, 0
    %v2698 = vcvt.s32.f32 %v2697
    %v2700 = vsel %vm1811, %v2698, 0
    %2702 = vmatprep.subr.mxu0 0.0
    %2703 = vmatpush1.msra.mxu0 0.0
    %2704 = vmatprep.subr.mxu0 0.0
    %2705 = vmatpush1.msra.mxu0 0.0
    %2706 = vmatprep.subr.mxu0 0.0
    %2707 = vmatpush1.msra.mxu0 0.0
    %2708 = vmatprep.subr.mxu0 0.0
    %2709 = vmatpush1.msra.mxu0 0.0
    %2710 = vmatprep.subr.mxu0 0.0
    %2711 = vmatpush1.msra.mxu0 0.0
    %2712 = vmatprep.subr.mxu0 0.0
    %2713 = vmatpush1.msra.mxu0 0.0
    %2714 = vmatprep.subr.mxu0 0.0
    %2715 = vmatpush1.msra.mxu0 0.0
    %2716 = vmatprep.subr.mxu0 0.0
    %2717 = vmatpush1.msra.mxu0 0.0
    %2718 = vmatprep.subr.mxu0 0.0
    %2719 = vmatpush1.msra.mxu0 0.0
    %2720 = vmatprep.subr.mxu0 0.0
    %2721 = vmatpush1.msra.mxu0 0.0
    %2722 = vmatprep.subr.mxu0 0.0
    %2723 = vmatpush1.msra.mxu0 0.0
    %2724 = vmatprep.subr.mxu0 0.0
    %2725 = vmatpush1.msra.mxu0 0.0
    %2726 = vmatprep.subr.mxu0 0.0
    %2727 = vmatpush1.msra.mxu0 0.0
    %2728 = vmatprep.subr.mxu0 0.0
    %2729 = vmatpush1.msra.mxu0 0.0
    %2730 = vmatprep.subr.mxu0 0.0
    %2731 = vmatpush1.msra.mxu0 %v1817
    %2732 = vmatprep.subr.mxu0 0.0
    %2733 = vmatpush1.msra.mxu0 %v1799
    %2734 = vmatprep.subr.mxu0 0.0
    %2735 = vmatpush2.msra.mxu0 0.0
    %2736 = vmatprep.subr.mxu0 0.0
    %2737 = vmatpush2.msra.mxu0 0.0
    %2738 = vmatprep.subr.mxu0 0.0
    %2739 = vmatpush2.msra.mxu0 0.0
    %2740 = vmatprep.subr.mxu0 0.0
    %2741 = vmatpush2.msra.mxu0 0.0
    %2742 = vmatprep.subr.mxu0 0.0
    %2743 = vmatpush2.msra.mxu0 0.0
    %2744 = vmatprep.subr.mxu0 0.0
    %2745 = vmatpush2.msra.mxu0 0.0
    %2746 = vmatprep.subr.mxu0 0.0
    %2747 = vmatpush2.msra.mxu0 0.0
    %2748 = vmatprep.subr.mxu0 0.0
    %2749 = vmatpush2.msra.mxu0 0.0
    %2750 = vmatprep.subr.mxu0 0.0
    %2751 = vmatpush2.msra.mxu0 0.0
    %2752 = vmatprep.subr.mxu0 0.0
    %2753 = vmatpush2.msra.mxu0 0.0
    %2754 = vmatprep.subr.mxu0 0.0
    %2755 = vmatpush2.msra.mxu0 0.0
    %2756 = vmatprep.subr.mxu0 0.0
    %2757 = vmatpush2.msra.mxu0 0.0
    %2758 = vmatprep.subr.mxu0 0.0
    %2759 = vmatpush2.msra.mxu0 0.0
    %2760 = vmatprep.subr.mxu0 0.0
    %2761 = vmatpush2.msra.mxu0 0.0
    %2762 = vmatprep.subr.mxu0 0.0
    %2763 = vmatpush2.msra.mxu0 0.0
    %2764 = vmatprep.subr.mxu0 0.0
    %2765 = vmatpush2.msra.mxu0 0.0
    %2766 = vmatprep.mubr.f32.mxu0 0.0
    %2767 = vmatmul.mubr.f32.gmra.mxu0 %v2700
    %v2768 = vpop.f32.mrf.mxu0
    %v2769 = vadd.f32 0.0, %v2768
    %v2770 = vpop.f32.mrf.mxu0
    %2771 = vdwg.mxu0
    %2772 = vmatprep.subr.mxu0 0.0
    %2773 = vmatpush1.msra.mxu0 0.0
    %2774 = vmatprep.subr.mxu0 0.0
    %2775 = vmatpush1.msra.mxu0 0.0
    %2776 = vmatprep.subr.mxu0 0.0
    %2777 = vmatpush1.msra.mxu0 0.0
    %2778 = vmatprep.subr.mxu0 0.0
    %2779 = vmatpush1.msra.mxu0 0.0
    %2780 = vmatprep.subr.mxu0 0.0
    %2781 = vmatpush1.msra.mxu0 0.0
    %2782 = vmatprep.subr.mxu0 0.0
    %2783 = vmatpush1.msra.mxu0 0.0
    %2784 = vmatprep.subr.mxu0 0.0
    %2785 = vmatpush1.msra.mxu0 0.0
    %2786 = vmatprep.subr.mxu0 0.0
    %2787 = vmatpush1.msra.mxu0 0.0
    %2788 = vmatprep.subr.mxu0 0.0
    %2789 = vmatpush1.msra.mxu0 0.0
    %2790 = vmatprep.subr.mxu0 0.0
    %2791 = vmatpush1.msra.mxu0 0.0
    %2792 = vmatprep.subr.mxu0 0.0
    %2793 = vmatpush1.msra.mxu0 0.0
    %2794 = vmatprep.subr.mxu0 0.0
    %2795 = vmatpush1.msra.mxu0 0.0
    %2796 = vmatprep.subr.mxu0 0.0
    %2797 = vmatpush1.msra.mxu0 %v1892
    %2798 = vmatprep.subr.mxu0 0.0
    %2799 = vmatpush1.msra.mxu0 %v1891
    %2800 = vmatprep.subr.mxu0 0.0
    %2801 = vmatpush1.msra.mxu0 %v1890
    %2802 = vmatprep.subr.mxu0 0.0
    %2803 = vmatpush1.msra.mxu0 %v1889
    %2804 = vmatprep.subr.mxu0 0.0
    %2805 = vmatpush2.msra.mxu0 0.0
    %2806 = vmatprep.subr.mxu0 0.0
    %2807 = vmatpush2.msra.mxu0 0.0
    %2808 = vmatprep.subr.mxu0 0.0
    %2809 = vmatpush2.msra.mxu0 0.0
    %2810 = vmatprep.subr.mxu0 0.0
    %2811 = vmatpush2.msra.mxu0 0.0
    %2812 = vmatprep.subr.mxu0 0.0
    %2813 = vmatpush2.msra.mxu0 0.0
    %2814 = vmatprep.subr.mxu0 0.0
    %2815 = vmatpush2.msra.mxu0 0.0
    %2816 = vmatprep.subr.mxu0 0.0
    %2817 = vmatpush2.msra.mxu0 0.0
    %2818 = vmatprep.subr.mxu0 0.0
    %2819 = vmatpush2.msra.mxu0 0.0
    %2820 = vmatprep.subr.mxu0 0.0
    %2821 = vmatpush2.msra.mxu0 0.0
    %2822 = vmatprep.subr.mxu0 0.0
    %2823 = vmatpush2.msra.mxu0 0.0
    %2824 = vmatprep.subr.mxu0 0.0
    %2825 = vmatpush2.msra.mxu0 0.0
    %2826 = vmatprep.subr.mxu0 0.0
    %2827 = vmatpush2.msra.mxu0 0.0
    %2828 = vmatprep.subr.mxu0 0.0
    %2829 = vmatpush2.msra.mxu0 0.0
    %2830 = vmatprep.subr.mxu0 0.0
    %2831 = vmatpush2.msra.mxu0 0.0
    %2832 = vmatprep.subr.mxu0 0.0
    %2833 = vmatpush2.msra.mxu0 0.0
    %2834 = vmatprep.subr.mxu0 0.0
    %2835 = vmatpush2.msra.mxu0 0.0
    %2836 = vmatprep.mubr.f32.mxu0 0.0
    %2837 = vmatmul.mubr.f32.gmra.mxu0 %v2528
    %v2838 = vpop.f32.mrf.mxu0
    %v2839 = vadd.f32 0.0, %v2838
    %v2840 = vpop.f32.mrf.mxu0
    %2841 = vdwg.mxu0
    %v2842 = vadd.f32 %v1754, %v2839
    %v2843 = vadd.f32 %v1762, %v2839
    %v2844 = vadd.f32 %v1761, %v2839
    %v2845 = vadd.f32 %v1763, %v2839
    %v2846 = vadd.f32 %v1771, %v2839
    %v2847 = vadd.f32 %v1779, %v2839
    %v2848 = vadd.f32 %v1778, %v2839
    %v2849 = vadd.f32 %v1780, %v2839
    %v2850 = vtanh.pop %v2842
    %v2851 = vtanh.pop %v2843
    %v2852 = vtanh.pop %v2844
    %v2853 = vtanh.pop %v2845
    %v2854 = vtanh.pop %v2846
    %v2855 = vtanh.pop %v2847
    %v2856 = vtanh.pop %v2848
    %v2857 = vtanh.pop %v2849
    %v2858 = vmul.f32 %v2850, %v1986
    %v2859 = vmul.f32 %v2851, %v1986
    %v2860 = vmul.f32 %v2852, %v1986
    %v2861 = vmul.f32 %v2853, %v1986
    %v2862 = vmul.f32 %v2854, %v1986
    %v2863 = vmul.f32 %v2855, %v1986
    %v2864 = vmul.f32 %v2856, %v1986
    %v2865 = vmul.f32 %v2857, %v1986
    %v2866 = vsel %vm1996, %v2858, 0.0
    %2867 = vadd.xlane.f32.xlu0 %v2866
    %v2868 = vpop.xlane.xlu0 %2867
    %v2869 = vsel %vm1996, %v2859, 0.0
    %2870 = vadd.xlane.f32.xlu0 %v2869
    %v2871 = vpop.xlane.xlu0 %2870
    %v2872 = vsel %vm1996, %v2860, 0.0
    %2873 = vadd.xlane.f32.xlu0 %v2872
    %v2874 = vpop.xlane.xlu0 %2873
    %v2875 = vsel %vm1996, %v2861, 0.0
    %2876 = vadd.xlane.f32.xlu0 %v2875
    %v2877 = vpop.xlane.xlu0 %2876
    %v2878 = vsel %vm1996, %v2862, 0.0
    %2879 = vadd.xlane.f32.xlu0 %v2878
    %v2880 = vpop.xlane.xlu0 %2879
    %v2881 = vsel %vm1996, %v2863, 0.0
    %2882 = vadd.xlane.f32.xlu0 %v2881
    %v2883 = vpop.xlane.xlu0 %2882
    %v2884 = vsel %vm1996, %v2864, 0.0
    %2885 = vadd.xlane.f32.xlu0 %v2884
    %v2886 = vpop.xlane.xlu0 %2885
    %v2887 = vsel %vm1996, %v2865, 0.0
    %2888 = vadd.xlane.f32.xlu0 %v2887
    %v2889 = vpop.xlane.xlu0 %2888
    %v2898 = vlaneseq
    %v2899 = vshrl.u32 %v2898, 7
    %v2900 = vsub.s32 %v1803, %v2899
    %v2901 = vrot.slane %v2868, %v2900
    %v2902 = vlaneseq
    %v2903 = vshrl.u32 %v2902, 7
    %v2904 = vsub.s32 %v1803, %v2903
    %v2905 = vrot.slane %v2871, %v2904
    %v2906 = vlaneseq
    %v2907 = vshrl.u32 %v2906, 7
    %v2908 = vsub.s32 %v1803, %v2907
    %v2909 = vrot.slane %v2874, %v2908
    %v2910 = vlaneseq
    %v2911 = vshrl.u32 %v2910, 7
    %v2912 = vsub.s32 %v1803, %v2911
    %v2913 = vrot.slane %v2877, %v2912
    %v2914 = vlaneseq
    %v2915 = vshrl.u32 %v2914, 7
    %v2916 = vsub.s32 %v1803, %v2915
    %v2917 = vrot.slane %v2880, %v2916
    %v2918 = vlaneseq
    %v2919 = vshrl.u32 %v2918, 7
    %v2920 = vsub.s32 %v1803, %v2919
    %v2921 = vrot.slane %v2883, %v2920
    %v2922 = vlaneseq
    %v2923 = vshrl.u32 %v2922, 7
    %v2924 = vsub.s32 %v1803, %v2923
    %v2925 = vrot.slane %v2886, %v2924
    %v2926 = vlaneseq
    %v2927 = vshrl.u32 %v2926, 7
    %v2928 = vsub.s32 %v1803, %v2927
    %v2929 = vrot.slane %v2889, %v2928
    %v2930 = vsel %vm2062, %v2905, %v2901
    %v2931 = vsel %vm2064, %v2909, %v2930
    %v2932 = vsel %vm2066, %v2913, %v2931
    %v2933 = vsel %vm2068, %v2917, %v2932
    %v2934 = vsel %vm2070, %v2921, %v2933
    %v2935 = vsel %vm2072, %v2925, %v2934
    %v2936 = vsel %vm2074, %v2929, %v2935
    %v2938 = vsel %vm2021, %v2936, -1e+10
    %v2939 = vsel %vm2078, %v2938, -inf
    %v2940 = vrot.slane %v2939, 4
    %v2941 = vmax.f32 %v2939, %v2940
    %v2942 = vrot.slane %v2941, 2
    %v2943 = vmax.f32 %v2941, %v2942
    %v2944 = vrot.slane %v2943, 1
    %v2945 = vmax.f32 %v2943, %v2944
    %v2946 = vsub.f32 %v2938, %v2945
    %v2947 = vmul.f32 %v2946, 1.442695
    %v2948 = vpow.pop %v2947
    %v2949 = vsel %vm2078, %v2948, 0.0
    %v2950 = vrot.slane %v2949, 4
    %v2951 = vadd.f32 %v2949, %v2950
    %v2952 = vrot.slane %v2951, 2
    %v2953 = vadd.f32 %v2951, %v2952
    %v2954 = vrot.slane %v2953, 1
    %v2955 = vadd.f32 %v2953, %v2954
    %v2956 = vrcp.pop %v2955
    %v2957 = vmul.f32 %v2948, %v2956
    %v2958 = vlaneseq
    %v2959 = vshrl.u32 %v2958, 7
    %v2960 = vsub.s32 0, %v2959
    %v2961 = vrot.slane %v2957, %v2960
    %2963 = vbcast.lane.b32.xlu0 %v2961, 256
    %v2964 = vpop.permute.xlu0 %2963
    %v2965 = vlaneseq
    %v2966 = vshrl.u32 %v2965, 7
    %v2967 = vsub.s32 1, %v2966
    %v2968 = vrot.slane %v2957, %v2967
    %2970 = vbcast.lane.b32.xlu0 %v2968, 256
    %v2971 = vpop.permute.xlu0 %2970
    %v2972 = vlaneseq
    %v2973 = vshrl.u32 %v2972, 7
    %v2974 = vsub.s32 2, %v2973
    %v2975 = vrot.slane %v2957, %v2974
    %2977 = vbcast.lane.b32.xlu0 %v2975, 256
    %v2978 = vpop.permute.xlu0 %2977
    %v2979 = vlaneseq
    %v2980 = vshrl.u32 %v2979, 7
    %v2981 = vsub.s32 3, %v2980
    %v2982 = vrot.slane %v2957, %v2981
    %2984 = vbcast.lane.b32.xlu0 %v2982, 256
    %v2985 = vpop.permute.xlu0 %2984
    %v2986 = vlaneseq
    %v2987 = vshrl.u32 %v2986, 7
    %v2988 = vsub.s32 4, %v2987
    %v2989 = vrot.slane %v2957, %v2988
    %2991 = vbcast.lane.b32.xlu0 %v2989, 256
    %v2992 = vpop.permute.xlu0 %2991
    %v2993 = vlaneseq
    %v2994 = vshrl.u32 %v2993, 7
    %v2995 = vsub.s32 5, %v2994
    %v2996 = vrot.slane %v2957, %v2995
    %2998 = vbcast.lane.b32.xlu0 %v2996, 256
    %v2999 = vpop.permute.xlu0 %2998
    %v3000 = vlaneseq
    %v3001 = vshrl.u32 %v3000, 7
    %v3002 = vsub.s32 6, %v3001
    %v3003 = vrot.slane %v2957, %v3002
    %3005 = vbcast.lane.b32.xlu0 %v3003, 256
    %v3006 = vpop.permute.xlu0 %3005
    %v3007 = vlaneseq
    %v3008 = vshrl.u32 %v3007, 7
    %v3009 = vsub.s32 7, %v3008
    %v3010 = vrot.slane %v2957, %v3009
    %3012 = vbcast.lane.b32.xlu0 %v3010, 256
    %v3013 = vpop.permute.xlu0 %3012
    %v3014 = vmul.f32 %v2964, %v533
    %v3015 = vmul.f32 %v2971, %v675
    %v3016 = vmul.f32 %v2978, %v817
    %v3017 = vmul.f32 %v2985, %v959
    %v3018 = vmul.f32 %v2992, %v1101
    %v3019 = vmul.f32 %v2999, %v1243
    %v3020 = vmul.f32 %v3006, %v1385
    %v3021 = vmul.f32 %v3013, %v1527
    %v3022 = vsel %vm1996, %v3014, 0.0
    %v3023 = vsel %vm1996, %v3015, 0.0
    %v3024 = vadd.f32 %v3022, %v3023
    %v3025 = vsel %vm1996, %v3016, 0.0
    %v3026 = vadd.f32 %v3024, %v3025
    %v3027 = vsel %vm1996, %v3017, 0.0
    %v3028 = vadd.f32 %v3026, %v3027
    %v3029 = vsel %vm1996, %v3018, 0.0
    %v3030 = vadd.f32 %v3028, %v3029
    %v3031 = vsel %vm1996, %v3019, 0.0
    %v3032 = vadd.f32 %v3030, %v3031
    %v3033 = vsel %vm1996, %v3020, 0.0
    %v3034 = vadd.f32 %v3032, %v3033
    %v3035 = vsel %vm1996, %v3021, 0.0
    %v3036 = vadd.f32 %v3034, %v3035
    %v3038 = vsel %vm401, %v3036, 0
    %3040 = vmatprep.subr.mxu0 0.0
    %3041 = vmatpush1.msra.mxu0 0.0
    %3042 = vmatprep.subr.mxu0 0.0
    %3043 = vmatpush1.msra.mxu0 0.0
    %3044 = vmatprep.subr.mxu0 0.0
    %3045 = vmatpush1.msra.mxu0 0.0
    %3046 = vmatprep.subr.mxu0 0.0
    %3047 = vmatpush1.msra.mxu0 0.0
    %3048 = vmatprep.subr.mxu0 0.0
    %3049 = vmatpush1.msra.mxu0 0.0
    %3050 = vmatprep.subr.mxu0 0.0
    %3051 = vmatpush1.msra.mxu0 0.0
    %3052 = vmatprep.subr.mxu0 0.0
    %3053 = vmatpush1.msra.mxu0 0.0
    %3054 = vmatprep.subr.mxu0 0.0
    %3055 = vmatpush1.msra.mxu0 0.0
    %3056 = vmatprep.subr.mxu0 0.0
    %3057 = vmatpush1.msra.mxu0 0.0
    %3058 = vmatprep.subr.mxu0 0.0
    %3059 = vmatpush1.msra.mxu0 0.0
    %3060 = vmatprep.subr.mxu0 0.0
    %3061 = vmatpush1.msra.mxu0 0.0
    %3062 = vmatprep.subr.mxu0 0.0
    %3063 = vmatpush1.msra.mxu0 0.0
    %3064 = vmatprep.subr.mxu0 0.0
    %3065 = vmatpush1.msra.mxu0 %v2182
    %3066 = vmatprep.subr.mxu0 0.0
    %3067 = vmatpush1.msra.mxu0 %v2181
    %3068 = vmatprep.subr.mxu0 0.0
    %3069 = vmatpush1.msra.mxu0 %v2180
    %3070 = vmatprep.subr.mxu0 0.0
    %3071 = vmatpush1.msra.mxu0 %v2179
    %3072 = vmatprep.subr.mxu0 0.0
    %3073 = vmatpush2.msra.mxu0 0.0
    %3074 = vmatprep.subr.mxu0 0.0
    %3075 = vmatpush2.msra.mxu0 0.0
    %3076 = vmatprep.subr.mxu0 0.0
    %3077 = vmatpush2.msra.mxu0 0.0
    %3078 = vmatprep.subr.mxu0 0.0
    %3079 = vmatpush2.msra.mxu0 0.0
    %3080 = vmatprep.subr.mxu0 0.0
    %3081 = vmatpush2.msra.mxu0 0.0
    %3082 = vmatprep.subr.mxu0 0.0
    %3083 = vmatpush2.msra.mxu0 0.0
    %3084 = vmatprep.subr.mxu0 0.0
    %3085 = vmatpush2.msra.mxu0 0.0
    %3086 = vmatprep.subr.mxu0 0.0
    %3087 = vmatpush2.msra.mxu0 0.0
    %3088 = vmatprep.subr.mxu0 0.0
    %3089 = vmatpush2.msra.mxu0 0.0
    %3090 = vmatprep.subr.mxu0 0.0
    %3091 = vmatpush2.msra.mxu0 0.0
    %3092 = vmatprep.subr.mxu0 0.0
    %3093 = vmatpush2.msra.mxu0 0.0
    %3094 = vmatprep.subr.mxu0 0.0
    %3095 = vmatpush2.msra.mxu0 0.0
    %3096 = vmatprep.subr.mxu0 0.0
    %3097 = vmatpush2.msra.mxu0 0.0
    %3098 = vmatprep.subr.mxu0 0.0
    %3099 = vmatpush2.msra.mxu0 0.0
    %3100 = vmatprep.subr.mxu0 0.0
    %3101 = vmatpush2.msra.mxu0 0.0
    %3102 = vmatprep.subr.mxu0 0.0
    %3103 = vmatpush2.msra.mxu0 0.0
    %3104 = vmatprep.mubr.f32.mxu0 0.0
    %3105 = vmatmul.mubr.f32.gmra.mxu0 %v3038
    %v3106 = vpop.f32.mrf.mxu0
    %v3107 = vadd.f32 0.0, %v3106
    %v3108 = vpop.f32.mrf.mxu0
    %3109 = vdwg.mxu0
    %v3111 = vsel %vm256, %v2769, 0
    %3113 = vmatprep.subr.mxu0 0.0
    %3114 = vmatpush1.msra.mxu0 0.0
    %3115 = vmatprep.subr.mxu0 0.0
    %3116 = vmatpush1.msra.mxu0 0.0
    %3117 = vmatprep.subr.mxu0 0.0
    %3118 = vmatpush1.msra.mxu0 0.0
    %3119 = vmatprep.subr.mxu0 0.0
    %3120 = vmatpush1.msra.mxu0 0.0
    %3121 = vmatprep.subr.mxu0 0.0
    %3122 = vmatpush1.msra.mxu0 0.0
    %3123 = vmatprep.subr.mxu0 0.0
    %3124 = vmatpush1.msra.mxu0 0.0
    %3125 = vmatprep.subr.mxu0 0.0
    %3126 = vmatpush1.msra.mxu0 0.0
    %3127 = vmatprep.subr.mxu0 0.0
    %3128 = vmatpush1.msra.mxu0 0.0
    %3129 = vmatprep.subr.mxu0 0.0
    %3130 = vmatpush1.msra.mxu0 0.0
    %3131 = vmatprep.subr.mxu0 0.0
    %3132 = vmatpush1.msra.mxu0 0.0
    %3133 = vmatprep.subr.mxu0 0.0
    %3134 = vmatpush1.msra.mxu0 0.0
    %3135 = vmatprep.subr.mxu0 0.0
    %3136 = vmatpush1.msra.mxu0 0.0
    %3137 = vmatprep.subr.mxu0 0.0
    %3138 = vmatpush1.msra.mxu0 0.0
    %3139 = vmatprep.subr.mxu0 0.0
    %3140 = vmatpush1.msra.mxu0 0.0
    %3141 = vmatprep.subr.mxu0 0.0
    %3142 = vmatpush1.msra.mxu0 %v2178
    %3143 = vmatprep.subr.mxu0 0.0
    %3144 = vmatpush1.msra.mxu0 %v2177
    %3145 = vmatprep.subr.mxu0 0.0
    %3146 = vmatpush2.msra.mxu0 0.0
    %3147 = vmatprep.subr.mxu0 0.0
    %3148 = vmatpush2.msra.mxu0 0.0
    %3149 = vmatprep.subr.mxu0 0.0
    %3150 = vmatpush2.msra.mxu0 0.0
    %3151 = vmatprep.subr.mxu0 0.0
    %3152 = vmatpush2.msra.mxu0 0.0
    %3153 = vmatprep.subr.mxu0 0.0
    %3154 = vmatpush2.msra.mxu0 0.0
    %3155 = vmatprep.subr.mxu0 0.0
    %3156 = vmatpush2.msra.mxu0 0.0
    %3157 = vmatprep.subr.mxu0 0.0
    %3158 = vmatpush2.msra.mxu0 0.0
    %3159 = vmatprep.subr.mxu0 0.0
    %3160 = vmatpush2.msra.mxu0 0.0
    %3161 = vmatprep.subr.mxu0 0.0
    %3162 = vmatpush2.msra.mxu0 0.0
    %3163 = vmatprep.subr.mxu0 0.0
    %3164 = vmatpush2.msra.mxu0 0.0
    %3165 = vmatprep.subr.mxu0 0.0
    %3166 = vmatpush2.msra.mxu0 0.0
    %3167 = vmatprep.subr.mxu0 0.0
    %3168 = vmatpush2.msra.mxu0 0.0
    %3169 = vmatprep.subr.mxu0 0.0
    %3170 = vmatpush2.msra.mxu0 0.0
    %3171 = vmatprep.subr.mxu0 0.0
    %3172 = vmatpush2.msra.mxu0 0.0
    %3173 = vmatprep.subr.mxu0 0.0
    %3174 = vmatpush2.msra.mxu0 0.0
    %3175 = vmatprep.subr.mxu0 0.0
    %3176 = vmatpush2.msra.mxu0 0.0
    %3177 = vmatprep.mubr.f32.mxu0 0.0
    %3178 = vmatmul.mubr.f32.gmra.mxu0 %v3111
    %v3179 = vpop.f32.mrf.mxu0
    %v3180 = vadd.f32 %v3107, %v3179
    %v3181 = vpop.f32.mrf.mxu0
    %3182 = vdwg.mxu0
    %v3183 = vadd.f32 %v3180, %v2334
    %3184 = vmatprep.subr.mxu0 0.0
    %3185 = vmatpush1.msra.mxu0 0.0
    %3186 = vmatprep.subr.mxu0 0.0
    %3187 = vmatpush1.msra.mxu0 0.0
    %3188 = vmatprep.subr.mxu0 0.0
    %3189 = vmatpush1.msra.mxu0 0.0
    %3190 = vmatprep.subr.mxu0 0.0
    %3191 = vmatpush1.msra.mxu0 0.0
    %3192 = vmatprep.subr.mxu0 0.0
    %3193 = vmatpush1.msra.mxu0 0.0
    %3194 = vmatprep.subr.mxu0 0.0
    %3195 = vmatpush1.msra.mxu0 0.0
    %3196 = vmatprep.subr.mxu0 0.0
    %3197 = vmatpush1.msra.mxu0 0.0
    %3198 = vmatprep.subr.mxu0 0.0
    %3199 = vmatpush1.msra.mxu0 0.0
    %3200 = vmatprep.subr.mxu0 0.0
    %3201 = vmatpush1.msra.mxu0 0.0
    %3202 = vmatprep.subr.mxu0 0.0
    %3203 = vmatpush1.msra.mxu0 0.0
    %3204 = vmatprep.subr.mxu0 0.0
    %3205 = vmatpush1.msra.mxu0 0.0
    %3206 = vmatprep.subr.mxu0 0.0
    %3207 = vmatpush1.msra.mxu0 0.0
    %3208 = vmatprep.subr.mxu0 0.0
    %3209 = vmatpush1.msra.mxu0 %v2340
    %3210 = vmatprep.subr.mxu0 0.0
    %3211 = vmatpush1.msra.mxu0 %v2339
    %3212 = vmatprep.subr.mxu0 0.0
    %3213 = vmatpush1.msra.mxu0 %v2338
    %3214 = vmatprep.subr.mxu0 0.0
    %3215 = vmatpush1.msra.mxu0 %v2337
    %3216 = vmatprep.subr.mxu0 0.0
    %3217 = vmatpush2.msra.mxu0 0.0
    %3218 = vmatprep.subr.mxu0 0.0
    %3219 = vmatpush2.msra.mxu0 0.0
    %3220 = vmatprep.subr.mxu0 0.0
    %3221 = vmatpush2.msra.mxu0 0.0
    %3222 = vmatprep.subr.mxu0 0.0
    %3223 = vmatpush2.msra.mxu0 0.0
    %3224 = vmatprep.subr.mxu0 0.0
    %3225 = vmatpush2.msra.mxu0 0.0
    %3226 = vmatprep.subr.mxu0 0.0
    %3227 = vmatpush2.msra.mxu0 0.0
    %3228 = vmatprep.subr.mxu0 0.0
    %3229 = vmatpush2.msra.mxu0 0.0
    %3230 = vmatprep.subr.mxu0 0.0
    %3231 = vmatpush2.msra.mxu0 0.0
    %3232 = vmatprep.subr.mxu0 0.0
    %3233 = vmatpush2.msra.mxu0 0.0
    %3234 = vmatprep.subr.mxu0 0.0
    %3235 = vmatpush2.msra.mxu0 0.0
    %3236 = vmatprep.subr.mxu0 0.0
    %3237 = vmatpush2.msra.mxu0 0.0
    %3238 = vmatprep.subr.mxu0 0.0
    %3239 = vmatpush2.msra.mxu0 0.0
    %3240 = vmatprep.subr.mxu0 0.0
    %3241 = vmatpush2.msra.mxu0 0.0
    %3242 = vmatprep.subr.mxu0 0.0
    %3243 = vmatpush2.msra.mxu0 0.0
    %3244 = vmatprep.subr.mxu0 0.0
    %3245 = vmatpush2.msra.mxu0 0.0
    %3246 = vmatprep.subr.mxu0 0.0
    %3247 = vmatpush2.msra.mxu0 0.0
    %3248 = vmatprep.mubr.f32.mxu0 0.0
    %3249 = vmatmul.mubr.f32.gmra.mxu0 %v2528
    %v3250 = vpop.f32.mrf.mxu0
    %v3251 = vadd.f32 %v2346, %v3250
    %v3252 = vpop.f32.mrf.mxu0
    %3253 = vdwg.mxu0
    %v3254 = vadd.f32 %v3183, %v3251
    %v3255 = vxor.u32 %v3254, 2147483648
    %v3256 = vmul.f32 %v3255, 1.442695
    %v3257 = vpow.pop %v3256
    %v3258 = vadd.f32 %v3257, 1.0
    %v3259 = vrcp.pop %v3258
    %v3260 = vmul.f32 1.0, %v3259
    %3262 = vrot.lane.b32.xlu0 %v3251, 64
    %v3263 = vpop.permute.xlu0 %3262
    %v3265 = vmul.f32 %v3260, %v3263
    %3267 = vrot.lane.b32.xlu0 %v3265, 64
    %v3268 = vpop.permute.xlu0 %3267
    %v3270 = vadd.f32 %v3183, %v3268
    %v3271 = vtanh.pop %v3270
    %v3272 = vsub.f32 1.0, %v3260
    %3274 = vrot.lane.b32.xlu0 %v3271, 96
    %v3275 = vpop.permute.xlu0 %3274
    %v3277 = vmul.f32 %v3272, %v3275
    %v3278 = vmul.f32 %v3260, %v2446
    %v3279 = vadd.f32 %v3277, %v3278
    %3280 = vmatprep.subr.mxu0 0.0
    %3281 = vmatpush1.msra.mxu0 0.0
    %3282 = vmatprep.subr.mxu0 0.0
    %3283 = vmatpush1.msra.mxu0 0.0
    %3284 = vmatprep.subr.mxu0 0.0
    %3285 = vmatpush1.msra.mxu0 0.0
    %3286 = vmatprep.subr.mxu0 0.0
    %3287 = vmatpush1.msra.mxu0 0.0
    %3288 = vmatprep.subr.mxu0 0.0
    %3289 = vmatpush1.msra.mxu0 0.0
    %3290 = vmatprep.subr.mxu0 0.0
    %3291 = vmatpush1.msra.mxu0 0.0
    %3292 = vmatprep.subr.mxu0 0.0
    %3293 = vmatpush1.msra.mxu0 0.0
    %3294 = vmatprep.subr.mxu0 0.0
    %3295 = vmatpush1.msra.mxu0 0.0
    %3296 = vmatprep.subr.mxu0 0.0
    %3297 = vmatpush1.msra.mxu0 0.0
    %3298 = vmatprep.subr.mxu0 0.0
    %3299 = vmatpush1.msra.mxu0 0.0
    %3300 = vmatprep.subr.mxu0 0.0
    %3301 = vmatpush1.msra.mxu0 0.0
    %3302 = vmatprep.subr.mxu0 0.0
    %3303 = vmatpush1.msra.mxu0 0.0
    %3304 = vmatprep.subr.mxu0 0.0
    %3305 = vmatpush1.msra.mxu0 %v2454
    %3306 = vmatprep.subr.mxu0 0.0
    %3307 = vmatpush1.msra.mxu0 %v2453
    %3308 = vmatprep.subr.mxu0 0.0
    %3309 = vmatpush1.msra.mxu0 %v2452
    %3310 = vmatprep.subr.mxu0 0.0
    %3311 = vmatpush1.msra.mxu0 %v2451
    %3312 = vmatprep.subr.mxu0 0.0
    %3313 = vmatpush2.msra.mxu0 0.0
    %3314 = vmatprep.subr.mxu0 0.0
    %3315 = vmatpush2.msra.mxu0 0.0
    %3316 = vmatprep.subr.mxu0 0.0
    %3317 = vmatpush2.msra.mxu0 0.0
    %3318 = vmatprep.subr.mxu0 0.0
    %3319 = vmatpush2.msra.mxu0 0.0
    %3320 = vmatprep.subr.mxu0 0.0
    %3321 = vmatpush2.msra.mxu0 0.0
    %3322 = vmatprep.subr.mxu0 0.0
    %3323 = vmatpush2.msra.mxu0 0.0
    %3324 = vmatprep.subr.mxu0 0.0
    %3325 = vmatpush2.msra.mxu0 0.0
    %3326 = vmatprep.subr.mxu0 0.0
    %3327 = vmatpush2.msra.mxu0 0.0
    %3328 = vmatprep.subr.mxu0 0.0
    %3329 = vmatpush2.msra.mxu0 0.0
    %3330 = vmatprep.subr.mxu0 0.0
    %3331 = vmatpush2.msra.mxu0 0.0
    %3332 = vmatprep.subr.mxu0 0.0
    %3333 = vmatpush2.msra.mxu0 0.0
    %3334 = vmatprep.subr.mxu0 0.0
    %3335 = vmatpush2.msra.mxu0 0.0
    %3336 = vmatprep.subr.mxu0 0.0
    %3337 = vmatpush2.msra.mxu0 0.0
    %3338 = vmatprep.subr.mxu0 0.0
    %3339 = vmatpush2.msra.mxu0 0.0
    %3340 = vmatprep.subr.mxu0 0.0
    %3341 = vmatpush2.msra.mxu0 0.0
    %3342 = vmatprep.subr.mxu0 0.0
    %3343 = vmatpush2.msra.mxu0 0.0
    %3344 = vmatprep.mubr.f32.mxu0 0.0
    %3345 = vmatmul.mubr.f32.gmra.mxu0 %v3038
    %v3346 = vpop.f32.mrf.mxu0
    %v3347 = vadd.f32 0.0, %v3346
    %v3348 = vpop.f32.mrf.mxu0
    %3349 = vdwg.mxu0
    %3351 = vrot.lane.b32.xlu0 %v3279, 96
    %v3352 = vpop.permute.xlu0 %3351
    %v3353 = vsel %vm401, %v3352, 0
    %3355 = vmatprep.subr.mxu0 0.0
    %3356 = vmatpush1.msra.mxu0 0.0
    %3357 = vmatprep.subr.mxu0 0.0
    %3358 = vmatpush1.msra.mxu0 0.0
    %3359 = vmatprep.subr.mxu0 0.0
    %3360 = vmatpush1.msra.mxu0 0.0
    %3361 = vmatprep.subr.mxu0 0.0
    %3362 = vmatpush1.msra.mxu0 0.0
    %3363 = vmatprep.subr.mxu0 0.0
    %3364 = vmatpush1.msra.mxu0 0.0
    %3365 = vmatprep.subr.mxu0 0.0
    %3366 = vmatpush1.msra.mxu0 0.0
    %3367 = vmatprep.subr.mxu0 0.0
    %3368 = vmatpush1.msra.mxu0 0.0
    %3369 = vmatprep.subr.mxu0 0.0
    %3370 = vmatpush1.msra.mxu0 0.0
    %3371 = vmatprep.subr.mxu0 0.0
    %3372 = vmatpush1.msra.mxu0 0.0
    %3373 = vmatprep.subr.mxu0 0.0
    %3374 = vmatpush1.msra.mxu0 0.0
    %3375 = vmatprep.subr.mxu0 0.0
    %3376 = vmatpush1.msra.mxu0 0.0
    %3377 = vmatprep.subr.mxu0 0.0
    %3378 = vmatpush1.msra.mxu0 0.0
    %3379 = vmatprep.subr.mxu0 0.0
    %3380 = vmatpush1.msra.mxu0 %v2450
    %3381 = vmatprep.subr.mxu0 0.0
    %3382 = vmatpush1.msra.mxu0 %v2449
    %3383 = vmatprep.subr.mxu0 0.0
    %3384 = vmatpush1.msra.mxu0 %v2448
    %3385 = vmatprep.subr.mxu0 0.0
    %3386 = vmatpush1.msra.mxu0 %v2447
    %3387 = vmatprep.subr.mxu0 0.0
    %3388 = vmatpush2.msra.mxu0 0.0
    %3389 = vmatprep.subr.mxu0 0.0
    %3390 = vmatpush2.msra.mxu0 0.0
    %3391 = vmatprep.subr.mxu0 0.0
    %3392 = vmatpush2.msra.mxu0 0.0
    %3393 = vmatprep.subr.mxu0 0.0
    %3394 = vmatpush2.msra.mxu0 0.0
    %3395 = vmatprep.subr.mxu0 0.0
    %3396 = vmatpush2.msra.mxu0 0.0
    %3397 = vmatprep.subr.mxu0 0.0
    %3398 = vmatpush2.msra.mxu0 0.0
    %3399 = vmatprep.subr.mxu0 0.0
    %3400 = vmatpush2.msra.mxu0 0.0
    %3401 = vmatprep.subr.mxu0 0.0
    %3402 = vmatpush2.msra.mxu0 0.0
    %3403 = vmatprep.subr.mxu0 0.0
    %3404 = vmatpush2.msra.mxu0 0.0
    %3405 = vmatprep.subr.mxu0 0.0
    %3406 = vmatpush2.msra.mxu0 0.0
    %3407 = vmatprep.subr.mxu0 0.0
    %3408 = vmatpush2.msra.mxu0 0.0
    %3409 = vmatprep.subr.mxu0 0.0
    %3410 = vmatpush2.msra.mxu0 0.0
    %3411 = vmatprep.subr.mxu0 0.0
    %3412 = vmatpush2.msra.mxu0 0.0
    %3413 = vmatprep.subr.mxu0 0.0
    %3414 = vmatpush2.msra.mxu0 0.0
    %3415 = vmatprep.subr.mxu0 0.0
    %3416 = vmatpush2.msra.mxu0 0.0
    %3417 = vmatprep.subr.mxu0 0.0
    %3418 = vmatpush2.msra.mxu0 0.0
    %3419 = vmatprep.mubr.f32.mxu0 0.0
    %3420 = vmatmul.mubr.f32.gmra.mxu0 %v3353
    %v3421 = vpop.f32.mrf.mxu0
    %v3422 = vadd.f32 %v3347, %v3421
    %v3423 = vpop.f32.mrf.mxu0
    %3424 = vdwg.mxu0
    %3425 = vmatprep.subr.mxu0 0.0
    %3426 = vmatpush1.msra.mxu0 0.0
    %3427 = vmatprep.subr.mxu0 0.0
    %3428 = vmatpush1.msra.mxu0 0.0
    %3429 = vmatprep.subr.mxu0 0.0
    %3430 = vmatpush1.msra.mxu0 0.0
    %3431 = vmatprep.subr.mxu0 0.0
    %3432 = vmatpush1.msra.mxu0 0.0
    %3433 = vmatprep.subr.mxu0 0.0
    %3434 = vmatpush1.msra.mxu0 0.0
    %3435 = vmatprep.subr.mxu0 0.0
    %3436 = vmatpush1.msra.mxu0 0.0
    %3437 = vmatprep.subr.mxu0 0.0
    %3438 = vmatpush1.msra.mxu0 0.0
    %3439 = vmatprep.subr.mxu0 0.0
    %3440 = vmatpush1.msra.mxu0 0.0
    %3441 = vmatprep.subr.mxu0 0.0
    %3442 = vmatpush1.msra.mxu0 0.0
    %3443 = vmatprep.subr.mxu0 0.0
    %3444 = vmatpush1.msra.mxu0 0.0
    %3445 = vmatprep.subr.mxu0 0.0
    %3446 = vmatpush1.msra.mxu0 0.0
    %3447 = vmatprep.subr.mxu0 0.0
    %3448 = vmatpush1.msra.mxu0 0.0
    %3449 = vmatprep.subr.mxu0 0.0
    %3450 = vmatpush1.msra.mxu0 0.0
    %3451 = vmatprep.subr.mxu0 0.0
    %3452 = vmatpush1.msra.mxu0 0.0
    %3453 = vmatprep.subr.mxu0 0.0
    %3454 = vmatpush1.msra.mxu0 %v2601
    %3455 = vmatprep.subr.mxu0 0.0
    %3456 = vmatpush1.msra.mxu0 %v2600
    %3457 = vmatprep.subr.mxu0 0.0
    %3458 = vmatpush2.msra.mxu0 0.0
    %3459 = vmatprep.subr.mxu0 0.0
    %3460 = vmatpush2.msra.mxu0 0.0
    %3461 = vmatprep.subr.mxu0 0.0
    %3462 = vmatpush2.msra.mxu0 0.0
    %3463 = vmatprep.subr.mxu0 0.0
    %3464 = vmatpush2.msra.mxu0 0.0
    %3465 = vmatprep.subr.mxu0 0.0
    %3466 = vmatpush2.msra.mxu0 0.0
    %3467 = vmatprep.subr.mxu0 0.0
    %3468 = vmatpush2.msra.mxu0 0.0
    %3469 = vmatprep.subr.mxu0 0.0
    %3470 = vmatpush2.msra.mxu0 0.0
    %3471 = vmatprep.subr.mxu0 0.0
    %3472 = vmatpush2.msra.mxu0 0.0
    %3473 = vmatprep.subr.mxu0 0.0
    %3474 = vmatpush2.msra.mxu0 0.0
    %3475 = vmatprep.subr.mxu0 0.0
    %3476 = vmatpush2.msra.mxu0 0.0
    %3477 = vmatprep.subr.mxu0 0.0
    %3478 = vmatpush2.msra.mxu0 0.0
    %3479 = vmatprep.subr.mxu0 0.0
    %3480 = vmatpush2.msra.mxu0 0.0
    %3481 = vmatprep.subr.mxu0 0.0
    %3482 = vmatpush2.msra.mxu0 0.0
    %3483 = vmatprep.subr.mxu0 0.0
    %3484 = vmatpush2.msra.mxu0 0.0
    %3485 = vmatprep.subr.mxu0 0.0
    %3486 = vmatpush2.msra.mxu0 0.0
    %3487 = vmatprep.subr.mxu0 0.0
    %3488 = vmatpush2.msra.mxu0 0.0
    %3489 = vmatprep.mubr.f32.mxu0 0.0
    %3490 = vmatmul.mubr.f32.gmra.mxu0 %v3111
    %v3491 = vpop.f32.mrf.mxu0
    %v3492 = vadd.f32 0.0, %v3491
    %v3493 = vpop.f32.mrf.mxu0
    %3494 = vdwg.mxu0
    %v3495 = vadd.f32 %v3422, %v3492
    %v3496 = vadd.f32 %v3495, %v2678
    %v3497 = vsel %vm2681, %v3496, -inf
    %3498 = vmax.xlane.f32.xlu0 %v3497
    %v3499 = vpop.xlane.xlu0 %3498
    %vm3500 = vcmp.eq.f32.partialorder %v3496, %v3499
    %v3501 = vsel %vm3500, %v1804, 12.0
    %v3502 = vsel %vm2681, %v3501, inf
    %3503 = vmin.xlane.f32.xlu0 %v3502
    %v3504 = vpop.xlane.xlu0 %3503
    %v3505 = vcvt.f32.s32.to.zero.pseudo %v3504
    %vm3506 = vcmp.gt.f32.partialorder %v1796, 0.5
    %v3507 = vsel %vm3506, %v1792, %v3505
    %3508 = vset.pattern.permute.xlu0 0
    %3509 = vperm.xlu0 %3508, %v3507
    %v3510 = vpop.permute.xlu0 %3509
    %vm3511 = vcmp.eq.s32.totalorder %v1803, %v3510
    %v3512 = vsel %vm3511, 1, 0
    %v3513 = vcvt.s32.f32 %v3512
    %v3515 = vsel %vm1811, %v3513, 0
    %3517 = vmatprep.subr.mxu0 0.0
    %3518 = vmatpush1.msra.mxu0 0.0
    %3519 = vmatprep.subr.mxu0 0.0
    %3520 = vmatpush1.msra.mxu0 0.0
    %3521 = vmatprep.subr.mxu0 0.0
    %3522 = vmatpush1.msra.mxu0 0.0
    %3523 = vmatprep.subr.mxu0 0.0
    %3524 = vmatpush1.msra.mxu0 0.0
    %3525 = vmatprep.subr.mxu0 0.0
    %3526 = vmatpush1.msra.mxu0 0.0
    %3527 = vmatprep.subr.mxu0 0.0
    %3528 = vmatpush1.msra.mxu0 0.0
    %3529 = vmatprep.subr.mxu0 0.0
    %3530 = vmatpush1.msra.mxu0 0.0
    %3531 = vmatprep.subr.mxu0 0.0
    %3532 = vmatpush1.msra.mxu0 0.0
    %3533 = vmatprep.subr.mxu0 0.0
    %3534 = vmatpush1.msra.mxu0 0.0
    %3535 = vmatprep.subr.mxu0 0.0
    %3536 = vmatpush1.msra.mxu0 0.0
    %3537 = vmatprep.subr.mxu0 0.0
    %3538 = vmatpush1.msra.mxu0 0.0
    %3539 = vmatprep.subr.mxu0 0.0
    %3540 = vmatpush1.msra.mxu0 0.0
    %3541 = vmatprep.subr.mxu0 0.0
    %3542 = vmatpush1.msra.mxu0 0.0
    %3543 = vmatprep.subr.mxu0 0.0
    %3544 = vmatpush1.msra.mxu0 0.0
    %3545 = vmatprep.subr.mxu0 0.0
    %3546 = vmatpush1.msra.mxu0 %v1817
    %3547 = vmatprep.subr.mxu0 0.0
    %3548 = vmatpush1.msra.mxu0 %v1799
    %3549 = vmatprep.subr.mxu0 0.0
    %3550 = vmatpush2.msra.mxu0 0.0
    %3551 = vmatprep.subr.mxu0 0.0
    %3552 = vmatpush2.msra.mxu0 0.0
    %3553 = vmatprep.subr.mxu0 0.0
    %3554 = vmatpush2.msra.mxu0 0.0
    %3555 = vmatprep.subr.mxu0 0.0
    %3556 = vmatpush2.msra.mxu0 0.0
    %3557 = vmatprep.subr.mxu0 0.0
    %3558 = vmatpush2.msra.mxu0 0.0
    %3559 = vmatprep.subr.mxu0 0.0
    %3560 = vmatpush2.msra.mxu0 0.0
    %3561 = vmatprep.subr.mxu0 0.0
    %3562 = vmatpush2.msra.mxu0 0.0
    %3563 = vmatprep.subr.mxu0 0.0
    %3564 = vmatpush2.msra.mxu0 0.0
    %3565 = vmatprep.subr.mxu0 0.0
    %3566 = vmatpush2.msra.mxu0 0.0
    %3567 = vmatprep.subr.mxu0 0.0
    %3568 = vmatpush2.msra.mxu0 0.0
    %3569 = vmatprep.subr.mxu0 0.0
    %3570 = vmatpush2.msra.mxu0 0.0
    %3571 = vmatprep.subr.mxu0 0.0
    %3572 = vmatpush2.msra.mxu0 0.0
    %3573 = vmatprep.subr.mxu0 0.0
    %3574 = vmatpush2.msra.mxu0 0.0
    %3575 = vmatprep.subr.mxu0 0.0
    %3576 = vmatpush2.msra.mxu0 0.0
    %3577 = vmatprep.subr.mxu0 0.0
    %3578 = vmatpush2.msra.mxu0 0.0
    %3579 = vmatprep.subr.mxu0 0.0
    %3580 = vmatpush2.msra.mxu0 0.0
    %3581 = vmatprep.mubr.f32.mxu0 0.0
    %3582 = vmatmul.mubr.f32.gmra.mxu0 %v3515
    %v3583 = vpop.f32.mrf.mxu0
    %v3584 = vadd.f32 0.0, %v3583
    %v3585 = vpop.f32.mrf.mxu0
    %3586 = vdwg.mxu0
    %3587 = vmatprep.subr.mxu0 0.0
    %3588 = vmatpush1.msra.mxu0 0.0
    %3589 = vmatprep.subr.mxu0 0.0
    %3590 = vmatpush1.msra.mxu0 0.0
    %3591 = vmatprep.subr.mxu0 0.0
    %3592 = vmatpush1.msra.mxu0 0.0
    %3593 = vmatprep.subr.mxu0 0.0
    %3594 = vmatpush1.msra.mxu0 0.0
    %3595 = vmatprep.subr.mxu0 0.0
    %3596 = vmatpush1.msra.mxu0 0.0
    %3597 = vmatprep.subr.mxu0 0.0
    %3598 = vmatpush1.msra.mxu0 0.0
    %3599 = vmatprep.subr.mxu0 0.0
    %3600 = vmatpush1.msra.mxu0 0.0
    %3601 = vmatprep.subr.mxu0 0.0
    %3602 = vmatpush1.msra.mxu0 0.0
    %3603 = vmatprep.subr.mxu0 0.0
    %3604 = vmatpush1.msra.mxu0 0.0
    %3605 = vmatprep.subr.mxu0 0.0
    %3606 = vmatpush1.msra.mxu0 0.0
    %3607 = vmatprep.subr.mxu0 0.0
    %3608 = vmatpush1.msra.mxu0 0.0
    %3609 = vmatprep.subr.mxu0 0.0
    %3610 = vmatpush1.msra.mxu0 0.0
    %3611 = vmatprep.subr.mxu0 0.0
    %3612 = vmatpush1.msra.mxu0 %v1892
    %3613 = vmatprep.subr.mxu0 0.0
    %3614 = vmatpush1.msra.mxu0 %v1891
    %3615 = vmatprep.subr.mxu0 0.0
    %3616 = vmatpush1.msra.mxu0 %v1890
    %3617 = vmatprep.subr.mxu0 0.0
    %3618 = vmatpush1.msra.mxu0 %v1889
    %3619 = vmatprep.subr.mxu0 0.0
    %3620 = vmatpush2.msra.mxu0 0.0
    %3621 = vmatprep.subr.mxu0 0.0
    %3622 = vmatpush2.msra.mxu0 0.0
    %3623 = vmatprep.subr.mxu0 0.0
    %3624 = vmatpush2.msra.mxu0 0.0
    %3625 = vmatprep.subr.mxu0 0.0
    %3626 = vmatpush2.msra.mxu0 0.0
    %3627 = vmatprep.subr.mxu0 0.0
    %3628 = vmatpush2.msra.mxu0 0.0
    %3629 = vmatprep.subr.mxu0 0.0
    %3630 = vmatpush2.msra.mxu0 0.0
    %3631 = vmatprep.subr.mxu0 0.0
    %3632 = vmatpush2.msra.mxu0 0.0
    %3633 = vmatprep.subr.mxu0 0.0
    %3634 = vmatpush2.msra.mxu0 0.0
    %3635 = vmatprep.subr.mxu0 0.0
    %3636 = vmatpush2.msra.mxu0 0.0
    %3637 = vmatprep.subr.mxu0 0.0
    %3638 = vmatpush2.msra.mxu0 0.0
    %3639 = vmatprep.subr.mxu0 0.0
    %3640 = vmatpush2.msra.mxu0 0.0
    %3641 = vmatprep.subr.mxu0 0.0
    %3642 = vmatpush2.msra.mxu0 0.0
    %3643 = vmatprep.subr.mxu0 0.0
    %3644 = vmatpush2.msra.mxu0 0.0
    %3645 = vmatprep.subr.mxu0 0.0
    %3646 = vmatpush2.msra.mxu0 0.0
    %3647 = vmatprep.subr.mxu0 0.0
    %3648 = vmatpush2.msra.mxu0 0.0
    %3649 = vmatprep.subr.mxu0 0.0
    %3650 = vmatpush2.msra.mxu0 0.0
    %3651 = vmatprep.mubr.f32.mxu0 0.0
    %3652 = vmatmul.mubr.f32.gmra.mxu0 %v3353
    %v3653 = vpop.f32.mrf.mxu0
    %v3654 = vadd.f32 0.0, %v3653
    %v3655 = vpop.f32.mrf.mxu0
    %3656 = vdwg.mxu0
    %v3657 = vadd.f32 %v1754, %v3654
    %v3658 = vadd.f32 %v1762, %v3654
    %v3659 = vadd.f32 %v1761, %v3654
    %v3660 = vadd.f32 %v1763, %v3654
    %v3661 = vadd.f32 %v1771, %v3654
    %v3662 = vadd.f32 %v1779, %v3654
    %v3663 = vadd.f32 %v1778, %v3654
    %v3664 = vadd.f32 %v1780, %v3654
    %v3665 = vtanh.pop %v3657
    %v3666 = vtanh.pop %v3658
    %v3667 = vtanh.pop %v3659
    %v3668 = vtanh.pop %v3660
    %v3669 = vtanh.pop %v3661
    %v3670 = vtanh.pop %v3662
    %v3671 = vtanh.pop %v3663
    %v3672 = vtanh.pop %v3664
    %v3673 = vmul.f32 %v3665, %v1986
    %v3674 = vmul.f32 %v3666, %v1986
    %v3675 = vmul.f32 %v3667, %v1986
    %v3676 = vmul.f32 %v3668, %v1986
    %v3677 = vmul.f32 %v3669, %v1986
    %v3678 = vmul.f32 %v3670, %v1986
    %v3679 = vmul.f32 %v3671, %v1986
    %v3680 = vmul.f32 %v3672, %v1986
    %v3681 = vsel %vm1996, %v3673, 0.0
    %3682 = vadd.xlane.f32.xlu0 %v3681
    %v3683 = vpop.xlane.xlu0 %3682
    %v3684 = vsel %vm1996, %v3674, 0.0
    %3685 = vadd.xlane.f32.xlu0 %v3684
    %v3686 = vpop.xlane.xlu0 %3685
    %v3687 = vsel %vm1996, %v3675, 0.0
    %3688 = vadd.xlane.f32.xlu0 %v3687
    %v3689 = vpop.xlane.xlu0 %3688
    %v3690 = vsel %vm1996, %v3676, 0.0
    %3691 = vadd.xlane.f32.xlu0 %v3690
    %v3692 = vpop.xlane.xlu0 %3691
    %v3693 = vsel %vm1996, %v3677, 0.0
    %3694 = vadd.xlane.f32.xlu0 %v3693
    %v3695 = vpop.xlane.xlu0 %3694
    %v3696 = vsel %vm1996, %v3678, 0.0
    %3697 = vadd.xlane.f32.xlu0 %v3696
    %v3698 = vpop.xlane.xlu0 %3697
    %v3699 = vsel %vm1996, %v3679, 0.0
    %3700 = vadd.xlane.f32.xlu0 %v3699
    %v3701 = vpop.xlane.xlu0 %3700
    %v3702 = vsel %vm1996, %v3680, 0.0
    %3703 = vadd.xlane.f32.xlu0 %v3702
    %v3704 = vpop.xlane.xlu0 %3703
    %v3713 = vlaneseq
    %v3714 = vshrl.u32 %v3713, 7
    %v3715 = vsub.s32 %v1803, %v3714
    %v3716 = vrot.slane %v3683, %v3715
    %v3717 = vlaneseq
    %v3718 = vshrl.u32 %v3717, 7
    %v3719 = vsub.s32 %v1803, %v3718
    %v3720 = vrot.slane %v3686, %v3719
    %v3721 = vlaneseq
    %v3722 = vshrl.u32 %v3721, 7
    %v3723 = vsub.s32 %v1803, %v3722
    %v3724 = vrot.slane %v3689, %v3723
    %v3725 = vlaneseq
    %v3726 = vshrl.u32 %v3725, 7
    %v3727 = vsub.s32 %v1803, %v3726
    %v3728 = vrot.slane %v3692, %v3727
    %v3729 = vlaneseq
    %v3730 = vshrl.u32 %v3729, 7
    %v3731 = vsub.s32 %v1803, %v3730
    %v3732 = vrot.slane %v3695, %v3731
    %v3733 = vlaneseq
    %v3734 = vshrl.u32 %v3733, 7
    %v3735 = vsub.s32 %v1803, %v3734
    %v3736 = vrot.slane %v3698, %v3735
    %v3737 = vlaneseq
    %v3738 = vshrl.u32 %v3737, 7
    %v3739 = vsub.s32 %v1803, %v3738
    %v3740 = vrot.slane %v3701, %v3739
    %v3741 = vlaneseq
    %v3742 = vshrl.u32 %v3741, 7
    %v3743 = vsub.s32 %v1803, %v3742
    %v3744 = vrot.slane %v3704, %v3743
    %v3745 = vsel %vm2062, %v3720, %v3716
    %v3746 = vsel %vm2064, %v3724, %v3745
    %v3747 = vsel %vm2066, %v3728, %v3746
    %v3748 = vsel %vm2068, %v3732, %v3747
    %v3749 = vsel %vm2070, %v3736, %v3748
    %v3750 = vsel %vm2072, %v3740, %v3749
    %v3751 = vsel %vm2074, %v3744, %v3750
    %v3753 = vsel %vm2021, %v3751, -1e+10
    %v3754 = vsel %vm2078, %v3753, -inf
    %v3755 = vrot.slane %v3754, 4
    %v3756 = vmax.f32 %v3754, %v3755
    %v3757 = vrot.slane %v3756, 2
    %v3758 = vmax.f32 %v3756, %v3757
    %v3759 = vrot.slane %v3758, 1
    %v3760 = vmax.f32 %v3758, %v3759
    %v3761 = vsub.f32 %v3753, %v3760
    %v3762 = vmul.f32 %v3761, 1.442695
    %v3763 = vpow.pop %v3762
    %v3764 = vsel %vm2078, %v3763, 0.0
    %v3765 = vrot.slane %v3764, 4
    %v3766 = vadd.f32 %v3764, %v3765
    %v3767 = vrot.slane %v3766, 2
    %v3768 = vadd.f32 %v3766, %v3767
    %v3769 = vrot.slane %v3768, 1
    %v3770 = vadd.f32 %v3768, %v3769
    %v3771 = vrcp.pop %v3770
    %v3772 = vmul.f32 %v3763, %v3771
    %v3773 = vlaneseq
    %v3774 = vshrl.u32 %v3773, 7
    %v3775 = vsub.s32 0, %v3774
    %v3776 = vrot.slane %v3772, %v3775
    %3778 = vbcast.lane.b32.xlu0 %v3776, 256
    %v3779 = vpop.permute.xlu0 %3778
    %v3780 = vlaneseq
    %v3781 = vshrl.u32 %v3780, 7
    %v3782 = vsub.s32 1, %v3781
    %v3783 = vrot.slane %v3772, %v3782
    %3785 = vbcast.lane.b32.xlu0 %v3783, 256
    %v3786 = vpop.permute.xlu0 %3785
    %v3787 = vlaneseq
    %v3788 = vshrl.u32 %v3787, 7
    %v3789 = vsub.s32 2, %v3788
    %v3790 = vrot.slane %v3772, %v3789
    %3792 = vbcast.lane.b32.xlu0 %v3790, 256
    %v3793 = vpop.permute.xlu0 %3792
    %v3794 = vlaneseq
    %v3795 = vshrl.u32 %v3794, 7
    %v3796 = vsub.s32 3, %v3795
    %v3797 = vrot.slane %v3772, %v3796
    %3799 = vbcast.lane.b32.xlu0 %v3797, 256
    %v3800 = vpop.permute.xlu0 %3799
    %v3801 = vlaneseq
    %v3802 = vshrl.u32 %v3801, 7
    %v3803 = vsub.s32 4, %v3802
    %v3804 = vrot.slane %v3772, %v3803
    %3806 = vbcast.lane.b32.xlu0 %v3804, 256
    %v3807 = vpop.permute.xlu0 %3806
    %v3808 = vlaneseq
    %v3809 = vshrl.u32 %v3808, 7
    %v3810 = vsub.s32 5, %v3809
    %v3811 = vrot.slane %v3772, %v3810
    %3813 = vbcast.lane.b32.xlu0 %v3811, 256
    %v3814 = vpop.permute.xlu0 %3813
    %v3815 = vlaneseq
    %v3816 = vshrl.u32 %v3815, 7
    %v3817 = vsub.s32 6, %v3816
    %v3818 = vrot.slane %v3772, %v3817
    %3820 = vbcast.lane.b32.xlu0 %v3818, 256
    %v3821 = vpop.permute.xlu0 %3820
    %v3822 = vlaneseq
    %v3823 = vshrl.u32 %v3822, 7
    %v3824 = vsub.s32 7, %v3823
    %v3825 = vrot.slane %v3772, %v3824
    %3827 = vbcast.lane.b32.xlu0 %v3825, 256
    %v3828 = vpop.permute.xlu0 %3827
    %v3829 = vmul.f32 %v3779, %v533
    %v3830 = vmul.f32 %v3786, %v675
    %v3831 = vmul.f32 %v3793, %v817
    %v3832 = vmul.f32 %v3800, %v959
    %v3833 = vmul.f32 %v3807, %v1101
    %v3834 = vmul.f32 %v3814, %v1243
    %v3835 = vmul.f32 %v3821, %v1385
    %v3836 = vmul.f32 %v3828, %v1527
    %v3837 = vsel %vm1996, %v3829, 0.0
    %v3838 = vsel %vm1996, %v3830, 0.0
    %v3839 = vadd.f32 %v3837, %v3838
    %v3840 = vsel %vm1996, %v3831, 0.0
    %v3841 = vadd.f32 %v3839, %v3840
    %v3842 = vsel %vm1996, %v3832, 0.0
    %v3843 = vadd.f32 %v3841, %v3842
    %v3844 = vsel %vm1996, %v3833, 0.0
    %v3845 = vadd.f32 %v3843, %v3844
    %v3846 = vsel %vm1996, %v3834, 0.0
    %v3847 = vadd.f32 %v3845, %v3846
    %v3848 = vsel %vm1996, %v3835, 0.0
    %v3849 = vadd.f32 %v3847, %v3848
    %v3850 = vsel %vm1996, %v3836, 0.0
    %v3851 = vadd.f32 %v3849, %v3850
    %v3853 = vsel %vm401, %v3851, 0
    %3855 = vmatprep.subr.mxu0 0.0
    %3856 = vmatpush1.msra.mxu0 0.0
    %3857 = vmatprep.subr.mxu0 0.0
    %3858 = vmatpush1.msra.mxu0 0.0
    %3859 = vmatprep.subr.mxu0 0.0
    %3860 = vmatpush1.msra.mxu0 0.0
    %3861 = vmatprep.subr.mxu0 0.0
    %3862 = vmatpush1.msra.mxu0 0.0
    %3863 = vmatprep.subr.mxu0 0.0
    %3864 = vmatpush1.msra.mxu0 0.0
    %3865 = vmatprep.subr.mxu0 0.0
    %3866 = vmatpush1.msra.mxu0 0.0
    %3867 = vmatprep.subr.mxu0 0.0
    %3868 = vmatpush1.msra.mxu0 0.0
    %3869 = vmatprep.subr.mxu0 0.0
    %3870 = vmatpush1.msra.mxu0 0.0
    %3871 = vmatprep.subr.mxu0 0.0
    %3872 = vmatpush1.msra.mxu0 0.0
    %3873 = vmatprep.subr.mxu0 0.0
    %3874 = vmatpush1.msra.mxu0 0.0
    %3875 = vmatprep.subr.mxu0 0.0
    %3876 = vmatpush1.msra.mxu0 0.0
    %3877 = vmatprep.subr.mxu0 0.0
    %3878 = vmatpush1.msra.mxu0 0.0
    %3879 = vmatprep.subr.mxu0 0.0
    %3880 = vmatpush1.msra.mxu0 %v2182
    %3881 = vmatprep.subr.mxu0 0.0
    %3882 = vmatpush1.msra.mxu0 %v2181
    %3883 = vmatprep.subr.mxu0 0.0
    %3884 = vmatpush1.msra.mxu0 %v2180
    %3885 = vmatprep.subr.mxu0 0.0
    %3886 = vmatpush1.msra.mxu0 %v2179
    %3887 = vmatprep.subr.mxu0 0.0
    %3888 = vmatpush2.msra.mxu0 0.0
    %3889 = vmatprep.subr.mxu0 0.0
    %3890 = vmatpush2.msra.mxu0 0.0
    %3891 = vmatprep.subr.mxu0 0.0
    %3892 = vmatpush2.msra.mxu0 0.0
    %3893 = vmatprep.subr.mxu0 0.0
    %3894 = vmatpush2.msra.mxu0 0.0
    %3895 = vmatprep.subr.mxu0 0.0
    %3896 = vmatpush2.msra.mxu0 0.0
    %3897 = vmatprep.subr.mxu0 0.0
    %3898 = vmatpush2.msra.mxu0 0.0
    %3899 = vmatprep.subr.mxu0 0.0
    %3900 = vmatpush2.msra.mxu0 0.0
    %3901 = vmatprep.subr.mxu0 0.0
    %3902 = vmatpush2.msra.mxu0 0.0
    %3903 = vmatprep.subr.mxu0 0.0
    %3904 = vmatpush2.msra.mxu0 0.0
    %3905 = vmatprep.subr.mxu0 0.0
    %3906 = vmatpush2.msra.mxu0 0.0
    %3907 = vmatprep.subr.mxu0 0.0
    %3908 = vmatpush2.msra.mxu0 0.0
    %3909 = vmatprep.subr.mxu0 0.0
    %3910 = vmatpush2.msra.mxu0 0.0
    %3911 = vmatprep.subr.mxu0 0.0
    %3912 = vmatpush2.msra.mxu0 0.0
    %3913 = vmatprep.subr.mxu0 0.0
    %3914 = vmatpush2.msra.mxu0 0.0
    %3915 = vmatprep.subr.mxu0 0.0
    %3916 = vmatpush2.msra.mxu0 0.0
    %3917 = vmatprep.subr.mxu0 0.0
    %3918 = vmatpush2.msra.mxu0 0.0
    %3919 = vmatprep.mubr.f32.mxu0 0.0
    %3920 = vmatmul.mubr.f32.gmra.mxu0 %v3853
    %v3921 = vpop.f32.mrf.mxu0
    %v3922 = vadd.f32 0.0, %v3921
    %v3923 = vpop.f32.mrf.mxu0
    %3924 = vdwg.mxu0
    %v3926 = vsel %vm256, %v3584, 0
    %3928 = vmatprep.subr.mxu0 0.0
    %3929 = vmatpush1.msra.mxu0 0.0
    %3930 = vmatprep.subr.mxu0 0.0
    %3931 = vmatpush1.msra.mxu0 0.0
    %3932 = vmatprep.subr.mxu0 0.0
    %3933 = vmatpush1.msra.mxu0 0.0
    %3934 = vmatprep.subr.mxu0 0.0
    %3935 = vmatpush1.msra.mxu0 0.0
    %3936 = vmatprep.subr.mxu0 0.0
    %3937 = vmatpush1.msra.mxu0 0.0
    %3938 = vmatprep.subr.mxu0 0.0
    %3939 = vmatpush1.msra.mxu0 0.0
    %3940 = vmatprep.subr.mxu0 0.0
    %3941 = vmatpush1.msra.mxu0 0.0
    %3942 = vmatprep.subr.mxu0 0.0
    %3943 = vmatpush1.msra.mxu0 0.0
    %3944 = vmatprep.subr.mxu0 0.0
    %3945 = vmatpush1.msra.mxu0 0.0
    %3946 = vmatprep.subr.mxu0 0.0
    %3947 = vmatpush1.msra.mxu0 0.0
    %3948 = vmatprep.subr.mxu0 0.0
    %3949 = vmatpush1.msra.mxu0 0.0
    %3950 = vmatprep.subr.mxu0 0.0
    %3951 = vmatpush1.msra.mxu0 0.0
    %3952 = vmatprep.subr.mxu0 0.0
    %3953 = vmatpush1.msra.mxu0 0.0
    %3954 = vmatprep.subr.mxu0 0.0
    %3955 = vmatpush1.msra.mxu0 0.0
    %3956 = vmatprep.subr.mxu0 0.0
    %3957 = vmatpush1.msra.mxu0 %v2178
    %3958 = vmatprep.subr.mxu0 0.0
    %3959 = vmatpush1.msra.mxu0 %v2177
    %3960 = vmatprep.subr.mxu0 0.0
    %3961 = vmatpush2.msra.mxu0 0.0
    %3962 = vmatprep.subr.mxu0 0.0
    %3963 = vmatpush2.msra.mxu0 0.0
    %3964 = vmatprep.subr.mxu0 0.0
    %3965 = vmatpush2.msra.mxu0 0.0
    %3966 = vmatprep.subr.mxu0 0.0
    %3967 = vmatpush2.msra.mxu0 0.0
    %3968 = vmatprep.subr.mxu0 0.0
    %3969 = vmatpush2.msra.mxu0 0.0
    %3970 = vmatprep.subr.mxu0 0.0
    %3971 = vmatpush2.msra.mxu0 0.0
    %3972 = vmatprep.subr.mxu0 0.0
    %3973 = vmatpush2.msra.mxu0 0.0
    %3974 = vmatprep.subr.mxu0 0.0
    %3975 = vmatpush2.msra.mxu0 0.0
    %3976 = vmatprep.subr.mxu0 0.0
    %3977 = vmatpush2.msra.mxu0 0.0
    %3978 = vmatprep.subr.mxu0 0.0
    %3979 = vmatpush2.msra.mxu0 0.0
    %3980 = vmatprep.subr.mxu0 0.0
    %3981 = vmatpush2.msra.mxu0 0.0
    %3982 = vmatprep.subr.mxu0 0.0
    %3983 = vmatpush2.msra.mxu0 0.0
    %3984 = vmatprep.subr.mxu0 0.0
    %3985 = vmatpush2.msra.mxu0 0.0
    %3986 = vmatprep.subr.mxu0 0.0
    %3987 = vmatpush2.msra.mxu0 0.0
    %3988 = vmatprep.subr.mxu0 0.0
    %3989 = vmatpush2.msra.mxu0 0.0
    %3990 = vmatprep.subr.mxu0 0.0
    %3991 = vmatpush2.msra.mxu0 0.0
    %3992 = vmatprep.mubr.f32.mxu0 0.0
    %3993 = vmatmul.mubr.f32.gmra.mxu0 %v3926
    %v3994 = vpop.f32.mrf.mxu0
    %v3995 = vadd.f32 %v3922, %v3994
    %v3996 = vpop.f32.mrf.mxu0
    %3997 = vdwg.mxu0
    %v3998 = vadd.f32 %v3995, %v2334
    %3999 = vmatprep.subr.mxu0 0.0
    %4000 = vmatpush1.msra.mxu0 0.0
    %4001 = vmatprep.subr.mxu0 0.0
    %4002 = vmatpush1.msra.mxu0 0.0
    %4003 = vmatprep.subr.mxu0 0.0
    %4004 = vmatpush1.msra.mxu0 0.0
    %4005 = vmatprep.subr.mxu0 0.0
    %4006 = vmatpush1.msra.mxu0 0.0
    %4007 = vmatprep.subr.mxu0 0.0
    %4008 = vmatpush1.msra.mxu0 0.0
    %4009 = vmatprep.subr.mxu0 0.0
    %4010 = vmatpush1.msra.mxu0 0.0
    %4011 = vmatprep.subr.mxu0 0.0
    %4012 = vmatpush1.msra.mxu0 0.0
    %4013 = vmatprep.subr.mxu0 0.0
    %4014 = vmatpush1.msra.mxu0 0.0
    %4015 = vmatprep.subr.mxu0 0.0
    %4016 = vmatpush1.msra.mxu0 0.0
    %4017 = vmatprep.subr.mxu0 0.0
    %4018 = vmatpush1.msra.mxu0 0.0
    %4019 = vmatprep.subr.mxu0 0.0
    %4020 = vmatpush1.msra.mxu0 0.0
    %4021 = vmatprep.subr.mxu0 0.0
    %4022 = vmatpush1.msra.mxu0 0.0
    %4023 = vmatprep.subr.mxu0 0.0
    %4024 = vmatpush1.msra.mxu0 %v2340
    %4025 = vmatprep.subr.mxu0 0.0
    %4026 = vmatpush1.msra.mxu0 %v2339
    %4027 = vmatprep.subr.mxu0 0.0
    %4028 = vmatpush1.msra.mxu0 %v2338
    %4029 = vmatprep.subr.mxu0 0.0
    %4030 = vmatpush1.msra.mxu0 %v2337
    %4031 = vmatprep.subr.mxu0 0.0
    %4032 = vmatpush2.msra.mxu0 0.0
    %4033 = vmatprep.subr.mxu0 0.0
    %4034 = vmatpush2.msra.mxu0 0.0
    %4035 = vmatprep.subr.mxu0 0.0
    %4036 = vmatpush2.msra.mxu0 0.0
    %4037 = vmatprep.subr.mxu0 0.0
    %4038 = vmatpush2.msra.mxu0 0.0
    %4039 = vmatprep.subr.mxu0 0.0
    %4040 = vmatpush2.msra.mxu0 0.0
    %4041 = vmatprep.subr.mxu0 0.0
    %4042 = vmatpush2.msra.mxu0 0.0
    %4043 = vmatprep.subr.mxu0 0.0
    %4044 = vmatpush2.msra.mxu0 0.0
    %4045 = vmatprep.subr.mxu0 0.0
    %4046 = vmatpush2.msra.mxu0 0.0
    %4047 = vmatprep.subr.mxu0 0.0
    %4048 = vmatpush2.msra.mxu0 0.0
    %4049 = vmatprep.subr.mxu0 0.0
    %4050 = vmatpush2.msra.mxu0 0.0
    %4051 = vmatprep.subr.mxu0 0.0
    %4052 = vmatpush2.msra.mxu0 0.0
    %4053 = vmatprep.subr.mxu0 0.0
    %4054 = vmatpush2.msra.mxu0 0.0
    %4055 = vmatprep.subr.mxu0 0.0
    %4056 = vmatpush2.msra.mxu0 0.0
    %4057 = vmatprep.subr.mxu0 0.0
    %4058 = vmatpush2.msra.mxu0 0.0
    %4059 = vmatprep.subr.mxu0 0.0
    %4060 = vmatpush2.msra.mxu0 0.0
    %4061 = vmatprep.subr.mxu0 0.0
    %4062 = vmatpush2.msra.mxu0 0.0
    %4063 = vmatprep.mubr.f32.mxu0 0.0
    %4064 = vmatmul.mubr.f32.gmra.mxu0 %v3353
    %v4065 = vpop.f32.mrf.mxu0
    %v4066 = vadd.f32 %v2346, %v4065
    %v4067 = vpop.f32.mrf.mxu0
    %4068 = vdwg.mxu0
    %v4069 = vadd.f32 %v3998, %v4066
    %v4070 = vxor.u32 %v4069, 2147483648
    %v4071 = vmul.f32 %v4070, 1.442695
    %v4072 = vpow.pop %v4071
    %v4073 = vadd.f32 %v4072, 1.0
    %v4074 = vrcp.pop %v4073
    %v4075 = vmul.f32 1.0, %v4074
    %4077 = vrot.lane.b32.xlu0 %v4066, 64
    %v4078 = vpop.permute.xlu0 %4077
    %v4080 = vmul.f32 %v4075, %v4078
    %4082 = vrot.lane.b32.xlu0 %v4080, 64
    %v4083 = vpop.permute.xlu0 %4082
    %v4085 = vadd.f32 %v3998, %v4083
    %v4086 = vtanh.pop %v4085
    %v4087 = vsub.f32 1.0, %v4075
    %4089 = vrot.lane.b32.xlu0 %v4086, 96
    %v4090 = vpop.permute.xlu0 %4089
    %v4092 = vmul.f32 %v4087, %v4090
    %v4093 = vmul.f32 %v4075, %v3279
    %v4094 = vadd.f32 %v4092, %v4093
    %4095 = vmatprep.subr.mxu0 0.0
    %4096 = vmatpush1.msra.mxu0 0.0
    %4097 = vmatprep.subr.mxu0 0.0
    %4098 = vmatpush1.msra.mxu0 0.0
    %4099 = vmatprep.subr.mxu0 0.0
    %4100 = vmatpush1.msra.mxu0 0.0
    %4101 = vmatprep.subr.mxu0 0.0
    %4102 = vmatpush1.msra.mxu0 0.0
    %4103 = vmatprep.subr.mxu0 0.0
    %4104 = vmatpush1.msra.mxu0 0.0
    %4105 = vmatprep.subr.mxu0 0.0
    %4106 = vmatpush1.msra.mxu0 0.0
    %4107 = vmatprep.subr.mxu0 0.0
    %4108 = vmatpush1.msra.mxu0 0.0
    %4109 = vmatprep.subr.mxu0 0.0
    %4110 = vmatpush1.msra.mxu0 0.0
    %4111 = vmatprep.subr.mxu0 0.0
    %4112 = vmatpush1.msra.mxu0 0.0
    %4113 = vmatprep.subr.mxu0 0.0
    %4114 = vmatpush1.msra.mxu0 0.0
    %4115 = vmatprep.subr.mxu0 0.0
    %4116 = vmatpush1.msra.mxu0 0.0
    %4117 = vmatprep.subr.mxu0 0.0
    %4118 = vmatpush1.msra.mxu0 0.0
    %4119 = vmatprep.subr.mxu0 0.0
    %4120 = vmatpush1.msra.mxu0 %v2454
    %4121 = vmatprep.subr.mxu0 0.0
    %4122 = vmatpush1.msra.mxu0 %v2453
    %4123 = vmatprep.subr.mxu0 0.0
    %4124 = vmatpush1.msra.mxu0 %v2452
    %4125 = vmatprep.subr.mxu0 0.0
    %4126 = vmatpush1.msra.mxu0 %v2451
    %4127 = vmatprep.subr.mxu0 0.0
    %4128 = vmatpush2.msra.mxu0 0.0
    %4129 = vmatprep.subr.mxu0 0.0
    %4130 = vmatpush2.msra.mxu0 0.0
    %4131 = vmatprep.subr.mxu0 0.0
    %4132 = vmatpush2.msra.mxu0 0.0
    %4133 = vmatprep.subr.mxu0 0.0
    %4134 = vmatpush2.msra.mxu0 0.0
    %4135 = vmatprep.subr.mxu0 0.0
    %4136 = vmatpush2.msra.mxu0 0.0
    %4137 = vmatprep.subr.mxu0 0.0
    %4138 = vmatpush2.msra.mxu0 0.0
    %4139 = vmatprep.subr.mxu0 0.0
    %4140 = vmatpush2.msra.mxu0 0.0
    %4141 = vmatprep.subr.mxu0 0.0
    %4142 = vmatpush2.msra.mxu0 0.0
    %4143 = vmatprep.subr.mxu0 0.0
    %4144 = vmatpush2.msra.mxu0 0.0
    %4145 = vmatprep.subr.mxu0 0.0
    %4146 = vmatpush2.msra.mxu0 0.0
    %4147 = vmatprep.subr.mxu0 0.0
    %4148 = vmatpush2.msra.mxu0 0.0
    %4149 = vmatprep.subr.mxu0 0.0
    %4150 = vmatpush2.msra.mxu0 0.0
    %4151 = vmatprep.subr.mxu0 0.0
    %4152 = vmatpush2.msra.mxu0 0.0
    %4153 = vmatprep.subr.mxu0 0.0
    %4154 = vmatpush2.msra.mxu0 0.0
    %4155 = vmatprep.subr.mxu0 0.0
    %4156 = vmatpush2.msra.mxu0 0.0
    %4157 = vmatprep.subr.mxu0 0.0
    %4158 = vmatpush2.msra.mxu0 0.0
    %4159 = vmatprep.mubr.f32.mxu0 0.0
    %4160 = vmatmul.mubr.f32.gmra.mxu0 %v3853
    %v4161 = vpop.f32.mrf.mxu0
    %v4162 = vadd.f32 0.0, %v4161
    %v4163 = vpop.f32.mrf.mxu0
    %4164 = vdwg.mxu0
    %4166 = vrot.lane.b32.xlu0 %v4094, 96
    %v4167 = vpop.permute.xlu0 %4166
    %v4168 = vsel %vm401, %v4167, 0
    %4170 = vmatprep.subr.mxu0 0.0
    %4171 = vmatpush1.msra.mxu0 0.0
    %4172 = vmatprep.subr.mxu0 0.0
    %4173 = vmatpush1.msra.mxu0 0.0
    %4174 = vmatprep.subr.mxu0 0.0
    %4175 = vmatpush1.msra.mxu0 0.0
    %4176 = vmatprep.subr.mxu0 0.0
    %4177 = vmatpush1.msra.mxu0 0.0
    %4178 = vmatprep.subr.mxu0 0.0
    %4179 = vmatpush1.msra.mxu0 0.0
    %4180 = vmatprep.subr.mxu0 0.0
    %4181 = vmatpush1.msra.mxu0 0.0
    %4182 = vmatprep.subr.mxu0 0.0
    %4183 = vmatpush1.msra.mxu0 0.0
    %4184 = vmatprep.subr.mxu0 0.0
    %4185 = vmatpush1.msra.mxu0 0.0
    %4186 = vmatprep.subr.mxu0 0.0
    %4187 = vmatpush1.msra.mxu0 0.0
    %4188 = vmatprep.subr.mxu0 0.0
    %4189 = vmatpush1.msra.mxu0 0.0
    %4190 = vmatprep.subr.mxu0 0.0
    %4191 = vmatpush1.msra.mxu0 0.0
    %4192 = vmatprep.subr.mxu0 0.0
    %4193 = vmatpush1.msra.mxu0 0.0
    %4194 = vmatprep.subr.mxu0 0.0
    %4195 = vmatpush1.msra.mxu0 %v2450
    %4196 = vmatprep.subr.mxu0 0.0
    %4197 = vmatpush1.msra.mxu0 %v2449
    %4198 = vmatprep.subr.mxu0 0.0
    %4199 = vmatpush1.msra.mxu0 %v2448
    %4200 = vmatprep.subr.mxu0 0.0
    %4201 = vmatpush1.msra.mxu0 %v2447
    %4202 = vmatprep.subr.mxu0 0.0
    %4203 = vmatpush2.msra.mxu0 0.0
    %4204 = vmatprep.subr.mxu0 0.0
    %4205 = vmatpush2.msra.mxu0 0.0
    %4206 = vmatprep.subr.mxu0 0.0
    %4207 = vmatpush2.msra.mxu0 0.0
    %4208 = vmatprep.subr.mxu0 0.0
    %4209 = vmatpush2.msra.mxu0 0.0
    %4210 = vmatprep.subr.mxu0 0.0
    %4211 = vmatpush2.msra.mxu0 0.0
    %4212 = vmatprep.subr.mxu0 0.0
    %4213 = vmatpush2.msra.mxu0 0.0
    %4214 = vmatprep.subr.mxu0 0.0
    %4215 = vmatpush2.msra.mxu0 0.0
    %4216 = vmatprep.subr.mxu0 0.0
    %4217 = vmatpush2.msra.mxu0 0.0
    %4218 = vmatprep.subr.mxu0 0.0
    %4219 = vmatpush2.msra.mxu0 0.0
    %4220 = vmatprep.subr.mxu0 0.0
    %4221 = vmatpush2.msra.mxu0 0.0
    %4222 = vmatprep.subr.mxu0 0.0
    %4223 = vmatpush2.msra.mxu0 0.0
    %4224 = vmatprep.subr.mxu0 0.0
    %4225 = vmatpush2.msra.mxu0 0.0
    %4226 = vmatprep.subr.mxu0 0.0
    %4227 = vmatpush2.msra.mxu0 0.0
    %4228 = vmatprep.subr.mxu0 0.0
    %4229 = vmatpush2.msra.mxu0 0.0
    %4230 = vmatprep.subr.mxu0 0.0
    %4231 = vmatpush2.msra.mxu0 0.0
    %4232 = vmatprep.subr.mxu0 0.0
    %4233 = vmatpush2.msra.mxu0 0.0
    %4234 = vmatprep.mubr.f32.mxu0 0.0
    %4235 = vmatmul.mubr.f32.gmra.mxu0 %v4168
    %v4236 = vpop.f32.mrf.mxu0
    %v4237 = vadd.f32 %v4162, %v4236
    %v4238 = vpop.f32.mrf.mxu0
    %4239 = vdwg.mxu0
    %4240 = vmatprep.subr.mxu0 0.0
    %4241 = vmatpush1.msra.mxu0 0.0
    %4242 = vmatprep.subr.mxu0 0.0
    %4243 = vmatpush1.msra.mxu0 0.0
    %4244 = vmatprep.subr.mxu0 0.0
    %4245 = vmatpush1.msra.mxu0 0.0
    %4246 = vmatprep.subr.mxu0 0.0
    %4247 = vmatpush1.msra.mxu0 0.0
    %4248 = vmatprep.subr.mxu0 0.0
    %4249 = vmatpush1.msra.mxu0 0.0
    %4250 = vmatprep.subr.mxu0 0.0
    %4251 = vmatpush1.msra.mxu0 0.0
    %4252 = vmatprep.subr.mxu0 0.0
    %4253 = vmatpush1.msra.mxu0 0.0
    %4254 = vmatprep.subr.mxu0 0.0
    %4255 = vmatpush1.msra.mxu0 0.0
    %4256 = vmatprep.subr.mxu0 0.0
    %4257 = vmatpush1.msra.mxu0 0.0
    %4258 = vmatprep.subr.mxu0 0.0
    %4259 = vmatpush1.msra.mxu0 0.0
    %4260 = vmatprep.subr.mxu0 0.0
    %4261 = vmatpush1.msra.mxu0 0.0
    %4262 = vmatprep.subr.mxu0 0.0
    %4263 = vmatpush1.msra.mxu0 0.0
    %4264 = vmatprep.subr.mxu0 0.0
    %4265 = vmatpush1.msra.mxu0 0.0
    %4266 = vmatprep.subr.mxu0 0.0
    %4267 = vmatpush1.msra.mxu0 0.0
    %4268 = vmatprep.subr.mxu0 0.0
    %4269 = vmatpush1.msra.mxu0 %v2601
    %4270 = vmatprep.subr.mxu0 0.0
    %4271 = vmatpush1.msra.mxu0 %v2600
    %4272 = vmatprep.subr.mxu0 0.0
    %4273 = vmatpush2.msra.mxu0 0.0
    %4274 = vmatprep.subr.mxu0 0.0
    %4275 = vmatpush2.msra.mxu0 0.0
    %4276 = vmatprep.subr.mxu0 0.0
    %4277 = vmatpush2.msra.mxu0 0.0
    %4278 = vmatprep.subr.mxu0 0.0
    %4279 = vmatpush2.msra.mxu0 0.0
    %4280 = vmatprep.subr.mxu0 0.0
    %4281 = vmatpush2.msra.mxu0 0.0
    %4282 = vmatprep.subr.mxu0 0.0
    %4283 = vmatpush2.msra.mxu0 0.0
    %4284 = vmatprep.subr.mxu0 0.0
    %4285 = vmatpush2.msra.mxu0 0.0
    %4286 = vmatprep.subr.mxu0 0.0
    %4287 = vmatpush2.msra.mxu0 0.0
    %4288 = vmatprep.subr.mxu0 0.0
    %4289 = vmatpush2.msra.mxu0 0.0
    %4290 = vmatprep.subr.mxu0 0.0
    %4291 = vmatpush2.msra.mxu0 0.0
    %4292 = vmatprep.subr.mxu0 0.0
    %4293 = vmatpush2.msra.mxu0 0.0
    %4294 = vmatprep.subr.mxu0 0.0
    %4295 = vmatpush2.msra.mxu0 0.0
    %4296 = vmatprep.subr.mxu0 0.0
    %4297 = vmatpush2.msra.mxu0 0.0
    %4298 = vmatprep.subr.mxu0 0.0
    %4299 = vmatpush2.msra.mxu0 0.0
    %4300 = vmatprep.subr.mxu0 0.0
    %4301 = vmatpush2.msra.mxu0 0.0
    %4302 = vmatprep.subr.mxu0 0.0
    %4303 = vmatpush2.msra.mxu0 0.0
    %4304 = vmatprep.mubr.f32.mxu0 0.0
    %4305 = vmatmul.mubr.f32.gmra.mxu0 %v3926
    %v4306 = vpop.f32.mrf.mxu0
    %v4307 = vadd.f32 0.0, %v4306
    %v4308 = vpop.f32.mrf.mxu0
    %4309 = vdwg.mxu0
    %v4310 = vadd.f32 %v4237, %v4307
    %v4311 = vadd.f32 %v4310, %v2678
    %v4312 = vsel %vm2681, %v4311, -inf
    %4313 = vmax.xlane.f32.xlu0 %v4312
    %v4314 = vpop.xlane.xlu0 %4313
    %vm4315 = vcmp.eq.f32.partialorder %v4311, %v4314
    %v4316 = vsel %vm4315, %v1804, 12.0
    %v4317 = vsel %vm2681, %v4316, inf
    %4318 = vmin.xlane.f32.xlu0 %v4317
    %v4319 = vpop.xlane.xlu0 %4318
    %v4320 = vcvt.f32.s32.to.zero.pseudo %v4319
    %vm4321 = vcmp.gt.f32.partialorder %v1797, 0.5
    %v4322 = vsel %vm4321, %v1793, %v4320
    %4323 = vset.pattern.permute.xlu0 0
    %4324 = vperm.xlu0 %4323, %v4322
    %v4325 = vpop.permute.xlu0 %4324
    %vm4326 = vcmp.eq.s32.totalorder %v1803, %v4325
    %v4327 = vsel %vm4326, 1, 0
    %v4328 = vcvt.s32.f32 %v4327
    %v4330 = vsel %vm1811, %v4328, 0
    %4332 = vmatprep.subr.mxu0 0.0
    %4333 = vmatpush1.msra.mxu0 0.0
    %4334 = vmatprep.subr.mxu0 0.0
    %4335 = vmatpush1.msra.mxu0 0.0
    %4336 = vmatprep.subr.mxu0 0.0
    %4337 = vmatpush1.msra.mxu0 0.0
    %4338 = vmatprep.subr.mxu0 0.0
    %4339 = vmatpush1.msra.mxu0 0.0
    %4340 = vmatprep.subr.mxu0 0.0
    %4341 = vmatpush1.msra.mxu0 0.0
    %4342 = vmatprep.subr.mxu0 0.0
    %4343 = vmatpush1.msra.mxu0 0.0
    %4344 = vmatprep.subr.mxu0 0.0
    %4345 = vmatpush1.msra.mxu0 0.0
    %4346 = vmatprep.subr.mxu0 0.0
    %4347 = vmatpush1.msra.mxu0 0.0
    %4348 = vmatprep.subr.mxu0 0.0
    %4349 = vmatpush1.msra.mxu0 0.0
    %4350 = vmatprep.subr.mxu0 0.0
    %4351 = vmatpush1.msra.mxu0 0.0
    %4352 = vmatprep.subr.mxu0 0.0
    %4353 = vmatpush1.msra.mxu0 0.0
    %4354 = vmatprep.subr.mxu0 0.0
    %4355 = vmatpush1.msra.mxu0 0.0
    %4356 = vmatprep.subr.mxu0 0.0
    %4357 = vmatpush1.msra.mxu0 0.0
    %4358 = vmatprep.subr.mxu0 0.0
    %4359 = vmatpush1.msra.mxu0 0.0
    %4360 = vmatprep.subr.mxu0 0.0
    %4361 = vmatpush1.msra.mxu0 %v1817
    %4362 = vmatprep.subr.mxu0 0.0
    %4363 = vmatpush1.msra.mxu0 %v1799
    %4364 = vmatprep.subr.mxu0 0.0
    %4365 = vmatpush2.msra.mxu0 0.0
    %4366 = vmatprep.subr.mxu0 0.0
    %4367 = vmatpush2.msra.mxu0 0.0
    %4368 = vmatprep.subr.mxu0 0.0
    %4369 = vmatpush2.msra.mxu0 0.0
    %4370 = vmatprep.subr.mxu0 0.0
    %4371 = vmatpush2.msra.mxu0 0.0
    %4372 = vmatprep.subr.mxu0 0.0
    %4373 = vmatpush2.msra.mxu0 0.0
    %4374 = vmatprep.subr.mxu0 0.0
    %4375 = vmatpush2.msra.mxu0 0.0
    %4376 = vmatprep.subr.mxu0 0.0
    %4377 = vmatpush2.msra.mxu0 0.0
    %4378 = vmatprep.subr.mxu0 0.0
    %4379 = vmatpush2.msra.mxu0 0.0
    %4380 = vmatprep.subr.mxu0 0.0
    %4381 = vmatpush2.msra.mxu0 0.0
    %4382 = vmatprep.subr.mxu0 0.0
    %4383 = vmatpush2.msra.mxu0 0.0
    %4384 = vmatprep.subr.mxu0 0.0
    %4385 = vmatpush2.msra.mxu0 0.0
    %4386 = vmatprep.subr.mxu0 0.0
    %4387 = vmatpush2.msra.mxu0 0.0
    %4388 = vmatprep.subr.mxu0 0.0
    %4389 = vmatpush2.msra.mxu0 0.0
    %4390 = vmatprep.subr.mxu0 0.0
    %4391 = vmatpush2.msra.mxu0 0.0
    %4392 = vmatprep.subr.mxu0 0.0
    %4393 = vmatpush2.msra.mxu0 0.0
    %4394 = vmatprep.subr.mxu0 0.0
    %4395 = vmatpush2.msra.mxu0 0.0
    %4396 = vmatprep.mubr.f32.mxu0 0.0
    %4397 = vmatmul.mubr.f32.gmra.mxu0 %v4330
    %v4398 = vpop.f32.mrf.mxu0
    %v4399 = vadd.f32 0.0, %v4398
    %v4400 = vpop.f32.mrf.mxu0
    %4401 = vdwg.mxu0
    %4402 = vmatprep.subr.mxu0 0.0
    %4403 = vmatpush1.msra.mxu0 0.0
    %4404 = vmatprep.subr.mxu0 0.0
    %4405 = vmatpush1.msra.mxu0 0.0
    %4406 = vmatprep.subr.mxu0 0.0
    %4407 = vmatpush1.msra.mxu0 0.0
    %4408 = vmatprep.subr.mxu0 0.0
    %4409 = vmatpush1.msra.mxu0 0.0
    %4410 = vmatprep.subr.mxu0 0.0
    %4411 = vmatpush1.msra.mxu0 0.0
    %4412 = vmatprep.subr.mxu0 0.0
    %4413 = vmatpush1.msra.mxu0 0.0
    %4414 = vmatprep.subr.mxu0 0.0
    %4415 = vmatpush1.msra.mxu0 0.0
    %4416 = vmatprep.subr.mxu0 0.0
    %4417 = vmatpush1.msra.mxu0 0.0
    %4418 = vmatprep.subr.mxu0 0.0
    %4419 = vmatpush1.msra.mxu0 0.0
    %4420 = vmatprep.subr.mxu0 0.0
    %4421 = vmatpush1.msra.mxu0 0.0
    %4422 = vmatprep.subr.mxu0 0.0
    %4423 = vmatpush1.msra.mxu0 0.0
    %4424 = vmatprep.subr.mxu0 0.0
    %4425 = vmatpush1.msra.mxu0 0.0
    %4426 = vmatprep.subr.mxu0 0.0
    %4427 = vmatpush1.msra.mxu0 %v1892
    %4428 = vmatprep.subr.mxu0 0.0
    %4429 = vmatpush1.msra.mxu0 %v1891
    %4430 = vmatprep.subr.mxu0 0.0
    %4431 = vmatpush1.msra.mxu0 %v1890
    %4432 = vmatprep.subr.mxu0 0.0
    %4433 = vmatpush1.msra.mxu0 %v1889
    %4434 = vmatprep.subr.mxu0 0.0
    %4435 = vmatpush2.msra.mxu0 0.0
    %4436 = vmatprep.subr.mxu0 0.0
    %4437 = vmatpush2.msra.mxu0 0.0
    %4438 = vmatprep.subr.mxu0 0.0
    %4439 = vmatpush2.msra.mxu0 0.0
    %4440 = vmatprep.subr.mxu0 0.0
    %4441 = vmatpush2.msra.mxu0 0.0
    %4442 = vmatprep.subr.mxu0 0.0
    %4443 = vmatpush2.msra.mxu0 0.0
    %4444 = vmatprep.subr.mxu0 0.0
    %4445 = vmatpush2.msra.mxu0 0.0
    %4446 = vmatprep.subr.mxu0 0.0
    %4447 = vmatpush2.msra.mxu0 0.0
    %4448 = vmatprep.subr.mxu0 0.0
    %4449 = vmatpush2.msra.mxu0 0.0
    %4450 = vmatprep.subr.mxu0 0.0
    %4451 = vmatpush2.msra.mxu0 0.0
    %4452 = vmatprep.subr.mxu0 0.0
    %4453 = vmatpush2.msra.mxu0 0.0
    %4454 = vmatprep.subr.mxu0 0.0
    %4455 = vmatpush2.msra.mxu0 0.0
    %4456 = vmatprep.subr.mxu0 0.0
    %4457 = vmatpush2.msra.mxu0 0.0
    %4458 = vmatprep.subr.mxu0 0.0
    %4459 = vmatpush2.msra.mxu0 0.0
    %4460 = vmatprep.subr.mxu0 0.0
    %4461 = vmatpush2.msra.mxu0 0.0
    %4462 = vmatprep.subr.mxu0 0.0
    %4463 = vmatpush2.msra.mxu0 0.0
    %4464 = vmatprep.subr.mxu0 0.0
    %4465 = vmatpush2.msra.mxu0 0.0
    %4466 = vmatprep.mubr.f32.mxu0 0.0
    %4467 = vmatmul.mubr.f32.gmra.mxu0 %v4168
    %v4468 = vpop.f32.mrf.mxu0
    %v4469 = vadd.f32 0.0, %v4468
    %v4470 = vpop.f32.mrf.mxu0
    %4471 = vdwg.mxu0
    %v4472 = vadd.f32 %v1754, %v4469
    %v4473 = vadd.f32 %v1762, %v4469
    %v4474 = vadd.f32 %v1761, %v4469
    %v4475 = vadd.f32 %v1763, %v4469
    %v4476 = vadd.f32 %v1771, %v4469
    %v4477 = vadd.f32 %v1779, %v4469
    %v4478 = vadd.f32 %v1778, %v4469
    %v4479 = vadd.f32 %v1780, %v4469
    %v4480 = vtanh.pop %v4472
    %v4481 = vtanh.pop %v4473
    %v4482 = vtanh.pop %v4474
    %v4483 = vtanh.pop %v4475
    %v4484 = vtanh.pop %v4476
    %v4485 = vtanh.pop %v4477
    %v4486 = vtanh.pop %v4478
    %v4487 = vtanh.pop %v4479
    %v4488 = vmul.f32 %v4480, %v1986
    %v4489 = vmul.f32 %v4481, %v1986
    %v4490 = vmul.f32 %v4482, %v1986
    %v4491 = vmul.f32 %v4483, %v1986
    %v4492 = vmul.f32 %v4484, %v1986
    %v4493 = vmul.f32 %v4485, %v1986
    %v4494 = vmul.f32 %v4486, %v1986
    %v4495 = vmul.f32 %v4487, %v1986
    %v4496 = vsel %vm1996, %v4488, 0.0
    %4497 = vadd.xlane.f32.xlu0 %v4496
    %v4498 = vpop.xlane.xlu0 %4497
    %v4499 = vsel %vm1996, %v4489, 0.0
    %4500 = vadd.xlane.f32.xlu0 %v4499
    %v4501 = vpop.xlane.xlu0 %4500
    %v4502 = vsel %vm1996, %v4490, 0.0
    %4503 = vadd.xlane.f32.xlu0 %v4502
    %v4504 = vpop.xlane.xlu0 %4503
    %v4505 = vsel %vm1996, %v4491, 0.0
    %4506 = vadd.xlane.f32.xlu0 %v4505
    %v4507 = vpop.xlane.xlu0 %4506
    %v4508 = vsel %vm1996, %v4492, 0.0
    %4509 = vadd.xlane.f32.xlu0 %v4508
    %v4510 = vpop.xlane.xlu0 %4509
    %v4511 = vsel %vm1996, %v4493, 0.0
    %4512 = vadd.xlane.f32.xlu0 %v4511
    %v4513 = vpop.xlane.xlu0 %4512
    %v4514 = vsel %vm1996, %v4494, 0.0
    %4515 = vadd.xlane.f32.xlu0 %v4514
    %v4516 = vpop.xlane.xlu0 %4515
    %v4517 = vsel %vm1996, %v4495, 0.0
    %4518 = vadd.xlane.f32.xlu0 %v4517
    %v4519 = vpop.xlane.xlu0 %4518
    %v4528 = vlaneseq
    %v4529 = vshrl.u32 %v4528, 7
    %v4530 = vsub.s32 %v1803, %v4529
    %v4531 = vrot.slane %v4498, %v4530
    %v4532 = vlaneseq
    %v4533 = vshrl.u32 %v4532, 7
    %v4534 = vsub.s32 %v1803, %v4533
    %v4535 = vrot.slane %v4501, %v4534
    %v4536 = vlaneseq
    %v4537 = vshrl.u32 %v4536, 7
    %v4538 = vsub.s32 %v1803, %v4537
    %v4539 = vrot.slane %v4504, %v4538
    %v4540 = vlaneseq
    %v4541 = vshrl.u32 %v4540, 7
    %v4542 = vsub.s32 %v1803, %v4541
    %v4543 = vrot.slane %v4507, %v4542
    %v4544 = vlaneseq
    %v4545 = vshrl.u32 %v4544, 7
    %v4546 = vsub.s32 %v1803, %v4545
    %v4547 = vrot.slane %v4510, %v4546
    %v4548 = vlaneseq
    %v4549 = vshrl.u32 %v4548, 7
    %v4550 = vsub.s32 %v1803, %v4549
    %v4551 = vrot.slane %v4513, %v4550
    %v4552 = vlaneseq
    %v4553 = vshrl.u32 %v4552, 7
    %v4554 = vsub.s32 %v1803, %v4553
    %v4555 = vrot.slane %v4516, %v4554
    %v4556 = vlaneseq
    %v4557 = vshrl.u32 %v4556, 7
    %v4558 = vsub.s32 %v1803, %v4557
    %v4559 = vrot.slane %v4519, %v4558
    %v4560 = vsel %vm2062, %v4535, %v4531
    %v4561 = vsel %vm2064, %v4539, %v4560
    %v4562 = vsel %vm2066, %v4543, %v4561
    %v4563 = vsel %vm2068, %v4547, %v4562
    %v4564 = vsel %vm2070, %v4551, %v4563
    %v4565 = vsel %vm2072, %v4555, %v4564
    %v4566 = vsel %vm2074, %v4559, %v4565
    %v4568 = vsel %vm2021, %v4566, -1e+10
    %v4569 = vsel %vm2078, %v4568, -inf
    %v4570 = vrot.slane %v4569, 4
    %v4571 = vmax.f32 %v4569, %v4570
    %v4572 = vrot.slane %v4571, 2
    %v4573 = vmax.f32 %v4571, %v4572
    %v4574 = vrot.slane %v4573, 1
    %v4575 = vmax.f32 %v4573, %v4574
    %v4576 = vsub.f32 %v4568, %v4575
    %v4577 = vmul.f32 %v4576, 1.442695
    %v4578 = vpow.pop %v4577
    %v4579 = vsel %vm2078, %v4578, 0.0
    %v4580 = vrot.slane %v4579, 4
    %v4581 = vadd.f32 %v4579, %v4580
    %v4582 = vrot.slane %v4581, 2
    %v4583 = vadd.f32 %v4581, %v4582
    %v4584 = vrot.slane %v4583, 1
    %v4585 = vadd.f32 %v4583, %v4584
    %v4586 = vrcp.pop %v4585
    %v4587 = vmul.f32 %v4578, %v4586
    %v4588 = vlaneseq
    %v4589 = vshrl.u32 %v4588, 7
    %v4590 = vsub.s32 0, %v4589
    %v4591 = vrot.slane %v4587, %v4590
    %4593 = vbcast.lane.b32.xlu0 %v4591, 256
    %v4594 = vpop.permute.xlu0 %4593
    %v4595 = vlaneseq
    %v4596 = vshrl.u32 %v4595, 7
    %v4597 = vsub.s32 1, %v4596
    %v4598 = vrot.slane %v4587, %v4597
    %4600 = vbcast.lane.b32.xlu0 %v4598, 256
    %v4601 = vpop.permute.xlu0 %4600
    %v4602 = vlaneseq
    %v4603 = vshrl.u32 %v4602, 7
    %v4604 = vsub.s32 2, %v4603
    %v4605 = vrot.slane %v4587, %v4604
    %4607 = vbcast.lane.b32.xlu0 %v4605, 256
    %v4608 = vpop.permute.xlu0 %4607
    %v4609 = vlaneseq
    %v4610 = vshrl.u32 %v4609, 7
    %v4611 = vsub.s32 3, %v4610
    %v4612 = vrot.slane %v4587, %v4611
    %4614 = vbcast.lane.b32.xlu0 %v4612, 256
    %v4615 = vpop.permute.xlu0 %4614
    %v4616 = vlaneseq
    %v4617 = vshrl.u32 %v4616, 7
    %v4618 = vsub.s32 4, %v4617
    %v4619 = vrot.slane %v4587, %v4618
    %4621 = vbcast.lane.b32.xlu0 %v4619, 256
    %v4622 = vpop.permute.xlu0 %4621
    %v4623 = vlaneseq
    %v4624 = vshrl.u32 %v4623, 7
    %v4625 = vsub.s32 5, %v4624
    %v4626 = vrot.slane %v4587, %v4625
    %4628 = vbcast.lane.b32.xlu0 %v4626, 256
    %v4629 = vpop.permute.xlu0 %4628
    %v4630 = vlaneseq
    %v4631 = vshrl.u32 %v4630, 7
    %v4632 = vsub.s32 6, %v4631
    %v4633 = vrot.slane %v4587, %v4632
    %4635 = vbcast.lane.b32.xlu0 %v4633, 256
    %v4636 = vpop.permute.xlu0 %4635
    %v4637 = vlaneseq
    %v4638 = vshrl.u32 %v4637, 7
    %v4639 = vsub.s32 7, %v4638
    %v4640 = vrot.slane %v4587, %v4639
    %4642 = vbcast.lane.b32.xlu0 %v4640, 256
    %v4643 = vpop.permute.xlu0 %4642
    %v4644 = vmul.f32 %v4594, %v533
    %v4645 = vmul.f32 %v4601, %v675
    %v4646 = vmul.f32 %v4608, %v817
    %v4647 = vmul.f32 %v4615, %v959
    %v4648 = vmul.f32 %v4622, %v1101
    %v4649 = vmul.f32 %v4629, %v1243
    %v4650 = vmul.f32 %v4636, %v1385
    %v4651 = vmul.f32 %v4643, %v1527
    %v4652 = vsel %vm1996, %v4644, 0.0
    %v4653 = vsel %vm1996, %v4645, 0.0
    %v4654 = vadd.f32 %v4652, %v4653
    %v4655 = vsel %vm1996, %v4646, 0.0
    %v4656 = vadd.f32 %v4654, %v4655
    %v4657 = vsel %vm1996, %v4647, 0.0
    %v4658 = vadd.f32 %v4656, %v4657
    %v4659 = vsel %vm1996, %v4648, 0.0
    %v4660 = vadd.f32 %v4658, %v4659
    %v4661 = vsel %vm1996, %v4649, 0.0
    %v4662 = vadd.f32 %v4660, %v4661
    %v4663 = vsel %vm1996, %v4650, 0.0
    %v4664 = vadd.f32 %v4662, %v4663
    %v4665 = vsel %vm1996, %v4651, 0.0
    %v4666 = vadd.f32 %v4664, %v4665
    %v4668 = vsel %vm401, %v4666, 0
    %4670 = vmatprep.subr.mxu0 0.0
    %4671 = vmatpush1.msra.mxu0 0.0
    %4672 = vmatprep.subr.mxu0 0.0
    %4673 = vmatpush1.msra.mxu0 0.0
    %4674 = vmatprep.subr.mxu0 0.0
    %4675 = vmatpush1.msra.mxu0 0.0
    %4676 = vmatprep.subr.mxu0 0.0
    %4677 = vmatpush1.msra.mxu0 0.0
    %4678 = vmatprep.subr.mxu0 0.0
    %4679 = vmatpush1.msra.mxu0 0.0
    %4680 = vmatprep.subr.mxu0 0.0
    %4681 = vmatpush1.msra.mxu0 0.0
    %4682 = vmatprep.subr.mxu0 0.0
    %4683 = vmatpush1.msra.mxu0 0.0
    %4684 = vmatprep.subr.mxu0 0.0
    %4685 = vmatpush1.msra.mxu0 0.0
    %4686 = vmatprep.subr.mxu0 0.0
    %4687 = vmatpush1.msra.mxu0 0.0
    %4688 = vmatprep.subr.mxu0 0.0
    %4689 = vmatpush1.msra.mxu0 0.0
    %4690 = vmatprep.subr.mxu0 0.0
    %4691 = vmatpush1.msra.mxu0 0.0
    %4692 = vmatprep.subr.mxu0 0.0
    %4693 = vmatpush1.msra.mxu0 0.0
    %4694 = vmatprep.subr.mxu0 0.0
    %4695 = vmatpush1.msra.mxu0 %v2182
    %4696 = vmatprep.subr.mxu0 0.0
    %4697 = vmatpush1.msra.mxu0 %v2181
    %4698 = vmatprep.subr.mxu0 0.0
    %4699 = vmatpush1.msra.mxu0 %v2180
    %4700 = vmatprep.subr.mxu0 0.0
    %4701 = vmatpush1.msra.mxu0 %v2179
    %4702 = vmatprep.subr.mxu0 0.0
    %4703 = vmatpush2.msra.mxu0 0.0
    %4704 = vmatprep.subr.mxu0 0.0
    %4705 = vmatpush2.msra.mxu0 0.0
    %4706 = vmatprep.subr.mxu0 0.0
    %4707 = vmatpush2.msra.mxu0 0.0
    %4708 = vmatprep.subr.mxu0 0.0
    %4709 = vmatpush2.msra.mxu0 0.0
    %4710 = vmatprep.subr.mxu0 0.0
    %4711 = vmatpush2.msra.mxu0 0.0
    %4712 = vmatprep.subr.mxu0 0.0
    %4713 = vmatpush2.msra.mxu0 0.0
    %4714 = vmatprep.subr.mxu0 0.0
    %4715 = vmatpush2.msra.mxu0 0.0
    %4716 = vmatprep.subr.mxu0 0.0
    %4717 = vmatpush2.msra.mxu0 0.0
    %4718 = vmatprep.subr.mxu0 0.0
    %4719 = vmatpush2.msra.mxu0 0.0
    %4720 = vmatprep.subr.mxu0 0.0
    %4721 = vmatpush2.msra.mxu0 0.0
    %4722 = vmatprep.subr.mxu0 0.0
    %4723 = vmatpush2.msra.mxu0 0.0
    %4724 = vmatprep.subr.mxu0 0.0
    %4725 = vmatpush2.msra.mxu0 0.0
    %4726 = vmatprep.subr.mxu0 0.0
    %4727 = vmatpush2.msra.mxu0 0.0
    %4728 = vmatprep.subr.mxu0 0.0
    %4729 = vmatpush2.msra.mxu0 0.0
    %4730 = vmatprep.subr.mxu0 0.0
    %4731 = vmatpush2.msra.mxu0 0.0
    %4732 = vmatprep.subr.mxu0 0.0
    %4733 = vmatpush2.msra.mxu0 0.0
    %4734 = vmatprep.mubr.f32.mxu0 0.0
    %4735 = vmatmul.mubr.f32.gmra.mxu0 %v4668
    %v4736 = vpop.f32.mrf.mxu0
    %v4737 = vadd.f32 0.0, %v4736
    %v4738 = vpop.f32.mrf.mxu0
    %4739 = vdwg.mxu0
    %v4741 = vsel %vm256, %v4399, 0
    %4743 = vmatprep.subr.mxu0 0.0
    %4744 = vmatpush1.msra.mxu0 0.0
    %4745 = vmatprep.subr.mxu0 0.0
    %4746 = vmatpush1.msra.mxu0 0.0
    %4747 = vmatprep.subr.mxu0 0.0
    %4748 = vmatpush1.msra.mxu0 0.0
    %4749 = vmatprep.subr.mxu0 0.0
    %4750 = vmatpush1.msra.mxu0 0.0
    %4751 = vmatprep.subr.mxu0 0.0
    %4752 = vmatpush1.msra.mxu0 0.0
    %4753 = vmatprep.subr.mxu0 0.0
    %4754 = vmatpush1.msra.mxu0 0.0
    %4755 = vmatprep.subr.mxu0 0.0
    %4756 = vmatpush1.msra.mxu0 0.0
    %4757 = vmatprep.subr.mxu0 0.0
    %4758 = vmatpush1.msra.mxu0 0.0
    %4759 = vmatprep.subr.mxu0 0.0
    %4760 = vmatpush1.msra.mxu0 0.0
    %4761 = vmatprep.subr.mxu0 0.0
    %4762 = vmatpush1.msra.mxu0 0.0
    %4763 = vmatprep.subr.mxu0 0.0
    %4764 = vmatpush1.msra.mxu0 0.0
    %4765 = vmatprep.subr.mxu0 0.0
    %4766 = vmatpush1.msra.mxu0 0.0
    %4767 = vmatprep.subr.mxu0 0.0
    %4768 = vmatpush1.msra.mxu0 0.0
    %4769 = vmatprep.subr.mxu0 0.0
    %4770 = vmatpush1.msra.mxu0 0.0
    %4771 = vmatprep.subr.mxu0 0.0
    %4772 = vmatpush1.msra.mxu0 %v2178
    %4773 = vmatprep.subr.mxu0 0.0
    %4774 = vmatpush1.msra.mxu0 %v2177
    %4775 = vmatprep.subr.mxu0 0.0
    %4776 = vmatpush2.msra.mxu0 0.0
    %4777 = vmatprep.subr.mxu0 0.0
    %4778 = vmatpush2.msra.mxu0 0.0
    %4779 = vmatprep.subr.mxu0 0.0
    %4780 = vmatpush2.msra.mxu0 0.0
    %4781 = vmatprep.subr.mxu0 0.0
    %4782 = vmatpush2.msra.mxu0 0.0
    %4783 = vmatprep.subr.mxu0 0.0
    %4784 = vmatpush2.msra.mxu0 0.0
    %4785 = vmatprep.subr.mxu0 0.0
    %4786 = vmatpush2.msra.mxu0 0.0
    %4787 = vmatprep.subr.mxu0 0.0
    %4788 = vmatpush2.msra.mxu0 0.0
    %4789 = vmatprep.subr.mxu0 0.0
    %4790 = vmatpush2.msra.mxu0 0.0
    %4791 = vmatprep.subr.mxu0 0.0
    %4792 = vmatpush2.msra.mxu0 0.0
    %4793 = vmatprep.subr.mxu0 0.0
    %4794 = vmatpush2.msra.mxu0 0.0
    %4795 = vmatprep.subr.mxu0 0.0
    %4796 = vmatpush2.msra.mxu0 0.0
    %4797 = vmatprep.subr.mxu0 0.0
    %4798 = vmatpush2.msra.mxu0 0.0
    %4799 = vmatprep.subr.mxu0 0.0
    %4800 = vmatpush2.msra.mxu0 0.0
    %4801 = vmatprep.subr.mxu0 0.0
    %4802 = vmatpush2.msra.mxu0 0.0
    %4803 = vmatprep.subr.mxu0 0.0
    %4804 = vmatpush2.msra.mxu0 0.0
    %4805 = vmatprep.subr.mxu0 0.0
    %4806 = vmatpush2.msra.mxu0 0.0
    %4807 = vmatprep.mubr.f32.mxu0 0.0
    %4808 = vmatmul.mubr.f32.gmra.mxu0 %v4741
    %v4809 = vpop.f32.mrf.mxu0
    %v4810 = vadd.f32 %v4737, %v4809
    %v4811 = vpop.f32.mrf.mxu0
    %4812 = vdwg.mxu0
    %v4813 = vadd.f32 %v4810, %v2334
    %4814 = vmatprep.subr.mxu0 0.0
    %4815 = vmatpush1.msra.mxu0 0.0
    %4816 = vmatprep.subr.mxu0 0.0
    %4817 = vmatpush1.msra.mxu0 0.0
    %4818 = vmatprep.subr.mxu0 0.0
    %4819 = vmatpush1.msra.mxu0 0.0
    %4820 = vmatprep.subr.mxu0 0.0
    %4821 = vmatpush1.msra.mxu0 0.0
    %4822 = vmatprep.subr.mxu0 0.0
    %4823 = vmatpush1.msra.mxu0 0.0
    %4824 = vmatprep.subr.mxu0 0.0
    %4825 = vmatpush1.msra.mxu0 0.0
    %4826 = vmatprep.subr.mxu0 0.0
    %4827 = vmatpush1.msra.mxu0 0.0
    %4828 = vmatprep.subr.mxu0 0.0
    %4829 = vmatpush1.msra.mxu0 0.0
    %4830 = vmatprep.subr.mxu0 0.0
    %4831 = vmatpush1.msra.mxu0 0.0
    %4832 = vmatprep.subr.mxu0 0.0
    %4833 = vmatpush1.msra.mxu0 0.0
    %4834 = vmatprep.subr.mxu0 0.0
    %4835 = vmatpush1.msra.mxu0 0.0
    %4836 = vmatprep.subr.mxu0 0.0
    %4837 = vmatpush1.msra.mxu0 0.0
    %4838 = vmatprep.subr.mxu0 0.0
    %4839 = vmatpush1.msra.mxu0 %v2340
    %4840 = vmatprep.subr.mxu0 0.0
    %4841 = vmatpush1.msra.mxu0 %v2339
    %4842 = vmatprep.subr.mxu0 0.0
    %4843 = vmatpush1.msra.mxu0 %v2338
    %4844 = vmatprep.subr.mxu0 0.0
    %4845 = vmatpush1.msra.mxu0 %v2337
    %4846 = vmatprep.subr.mxu0 0.0
    %4847 = vmatpush2.msra.mxu0 0.0
    %4848 = vmatprep.subr.mxu0 0.0
    %4849 = vmatpush2.msra.mxu0 0.0
    %4850 = vmatprep.subr.mxu0 0.0
    %4851 = vmatpush2.msra.mxu0 0.0
    %4852 = vmatprep.subr.mxu0 0.0
    %4853 = vmatpush2.msra.mxu0 0.0
    %4854 = vmatprep.subr.mxu0 0.0
    %4855 = vmatpush2.msra.mxu0 0.0
    %4856 = vmatprep.subr.mxu0 0.0
    %4857 = vmatpush2.msra.mxu0 0.0
    %4858 = vmatprep.subr.mxu0 0.0
    %4859 = vmatpush2.msra.mxu0 0.0
    %4860 = vmatprep.subr.mxu0 0.0
    %4861 = vmatpush2.msra.mxu0 0.0
    %4862 = vmatprep.subr.mxu0 0.0
    %4863 = vmatpush2.msra.mxu0 0.0
    %4864 = vmatprep.subr.mxu0 0.0
    %4865 = vmatpush2.msra.mxu0 0.0
    %4866 = vmatprep.subr.mxu0 0.0
    %4867 = vmatpush2.msra.mxu0 0.0
    %4868 = vmatprep.subr.mxu0 0.0
    %4869 = vmatpush2.msra.mxu0 0.0
    %4870 = vmatprep.subr.mxu0 0.0
    %4871 = vmatpush2.msra.mxu0 0.0
    %4872 = vmatprep.subr.mxu0 0.0
    %4873 = vmatpush2.msra.mxu0 0.0
    %4874 = vmatprep.subr.mxu0 0.0
    %4875 = vmatpush2.msra.mxu0 0.0
    %4876 = vmatprep.subr.mxu0 0.0
    %4877 = vmatpush2.msra.mxu0 0.0
    %4878 = vmatprep.mubr.f32.mxu0 0.0
    %4879 = vmatmul.mubr.f32.gmra.mxu0 %v4168
    %v4880 = vpop.f32.mrf.mxu0
    %v4881 = vadd.f32 %v2346, %v4880
    %v4882 = vpop.f32.mrf.mxu0
    %4883 = vdwg.mxu0
    %v4884 = vadd.f32 %v4813, %v4881
    %v4885 = vxor.u32 %v4884, 2147483648
    %v4886 = vmul.f32 %v4885, 1.442695
    %v4887 = vpow.pop %v4886
    %v4888 = vadd.f32 %v4887, 1.0
    %v4889 = vrcp.pop %v4888
    %v4890 = vmul.f32 1.0, %v4889
    %4892 = vrot.lane.b32.xlu0 %v4881, 64
    %v4893 = vpop.permute.xlu0 %4892
    %v4895 = vmul.f32 %v4890, %v4893
    %4897 = vrot.lane.b32.xlu0 %v4895, 64
    %v4898 = vpop.permute.xlu0 %4897
    %v4900 = vadd.f32 %v4813, %v4898
    %v4901 = vtanh.pop %v4900
    %v4902 = vsub.f32 1.0, %v4890
    %4904 = vrot.lane.b32.xlu0 %v4901, 96
    %v4905 = vpop.permute.xlu0 %4904
    %v4907 = vmul.f32 %v4902, %v4905
    %v4908 = vmul.f32 %v4890, %v4094
    %v4909 = vadd.f32 %v4907, %v4908
    %4910 = vmatprep.subr.mxu0 0.0
    %4911 = vmatpush1.msra.mxu0 0.0
    %4912 = vmatprep.subr.mxu0 0.0
    %4913 = vmatpush1.msra.mxu0 0.0
    %4914 = vmatprep.subr.mxu0 0.0
    %4915 = vmatpush1.msra.mxu0 0.0
    %4916 = vmatprep.subr.mxu0 0.0
    %4917 = vmatpush1.msra.mxu0 0.0
    %4918 = vmatprep.subr.mxu0 0.0
    %4919 = vmatpush1.msra.mxu0 0.0
    %4920 = vmatprep.subr.mxu0 0.0
    %4921 = vmatpush1.msra.mxu0 0.0
    %4922 = vmatprep.subr.mxu0 0.0
    %4923 = vmatpush1.msra.mxu0 0.0
    %4924 = vmatprep.subr.mxu0 0.0
    %4925 = vmatpush1.msra.mxu0 0.0
    %4926 = vmatprep.subr.mxu0 0.0
    %4927 = vmatpush1.msra.mxu0 0.0
    %4928 = vmatprep.subr.mxu0 0.0
    %4929 = vmatpush1.msra.mxu0 0.0
    %4930 = vmatprep.subr.mxu0 0.0
    %4931 = vmatpush1.msra.mxu0 0.0
    %4932 = vmatprep.subr.mxu0 0.0
    %4933 = vmatpush1.msra.mxu0 0.0
    %4934 = vmatprep.subr.mxu0 0.0
    %4935 = vmatpush1.msra.mxu0 %v2454
    %4936 = vmatprep.subr.mxu0 0.0
    %4937 = vmatpush1.msra.mxu0 %v2453
    %4938 = vmatprep.subr.mxu0 0.0
    %4939 = vmatpush1.msra.mxu0 %v2452
    %4940 = vmatprep.subr.mxu0 0.0
    %4941 = vmatpush1.msra.mxu0 %v2451
    %4942 = vmatprep.subr.mxu0 0.0
    %4943 = vmatpush2.msra.mxu0 0.0
    %4944 = vmatprep.subr.mxu0 0.0
    %4945 = vmatpush2.msra.mxu0 0.0
    %4946 = vmatprep.subr.mxu0 0.0
    %4947 = vmatpush2.msra.mxu0 0.0
    %4948 = vmatprep.subr.mxu0 0.0
    %4949 = vmatpush2.msra.mxu0 0.0
    %4950 = vmatprep.subr.mxu0 0.0
    %4951 = vmatpush2.msra.mxu0 0.0
    %4952 = vmatprep.subr.mxu0 0.0
    %4953 = vmatpush2.msra.mxu0 0.0
    %4954 = vmatprep.subr.mxu0 0.0
    %4955 = vmatpush2.msra.mxu0 0.0
    %4956 = vmatprep.subr.mxu0 0.0
    %4957 = vmatpush2.msra.mxu0 0.0
    %4958 = vmatprep.subr.mxu0 0.0
    %4959 = vmatpush2.msra.mxu0 0.0
    %4960 = vmatprep.subr.mxu0 0.0
    %4961 = vmatpush2.msra.mxu0 0.0
    %4962 = vmatprep.subr.mxu0 0.0
    %4963 = vmatpush2.msra.mxu0 0.0
    %4964 = vmatprep.subr.mxu0 0.0
    %4965 = vmatpush2.msra.mxu0 0.0
    %4966 = vmatprep.subr.mxu0 0.0
    %4967 = vmatpush2.msra.mxu0 0.0
    %4968 = vmatprep.subr.mxu0 0.0
    %4969 = vmatpush2.msra.mxu0 0.0
    %4970 = vmatprep.subr.mxu0 0.0
    %4971 = vmatpush2.msra.mxu0 0.0
    %4972 = vmatprep.subr.mxu0 0.0
    %4973 = vmatpush2.msra.mxu0 0.0
    %4974 = vmatprep.mubr.f32.mxu0 0.0
    %4975 = vmatmul.mubr.f32.gmra.mxu0 %v4668
    %v4976 = vpop.f32.mrf.mxu0
    %v4977 = vadd.f32 0.0, %v4976
    %v4978 = vpop.f32.mrf.mxu0
    %4979 = vdwg.mxu0
    %4981 = vrot.lane.b32.xlu0 %v4909, 96
    %v4982 = vpop.permute.xlu0 %4981
    %v4983 = vsel %vm401, %v4982, 0
    %4985 = vmatprep.subr.mxu0 0.0
    %4986 = vmatpush1.msra.mxu0 0.0
    %4987 = vmatprep.subr.mxu0 0.0
    %4988 = vmatpush1.msra.mxu0 0.0
    %4989 = vmatprep.subr.mxu0 0.0
    %4990 = vmatpush1.msra.mxu0 0.0
    %4991 = vmatprep.subr.mxu0 0.0
    %4992 = vmatpush1.msra.mxu0 0.0
    %4993 = vmatprep.subr.mxu0 0.0
    %4994 = vmatpush1.msra.mxu0 0.0
    %4995 = vmatprep.subr.mxu0 0.0
    %4996 = vmatpush1.msra.mxu0 0.0
    %4997 = vmatprep.subr.mxu0 0.0
    %4998 = vmatpush1.msra.mxu0 0.0
    %4999 = vmatprep.subr.mxu0 0.0
    %5000 = vmatpush1.msra.mxu0 0.0
    %5001 = vmatprep.subr.mxu0 0.0
    %5002 = vmatpush1.msra.mxu0 0.0
    %5003 = vmatprep.subr.mxu0 0.0
    %5004 = vmatpush1.msra.mxu0 0.0
    %5005 = vmatprep.subr.mxu0 0.0
    %5006 = vmatpush1.msra.mxu0 0.0
    %5007 = vmatprep.subr.mxu0 0.0
    %5008 = vmatpush1.msra.mxu0 0.0
    %5009 = vmatprep.subr.mxu0 0.0
    %5010 = vmatpush1.msra.mxu0 %v2450
    %5011 = vmatprep.subr.mxu0 0.0
    %5012 = vmatpush1.msra.mxu0 %v2449
    %5013 = vmatprep.subr.mxu0 0.0
    %5014 = vmatpush1.msra.mxu0 %v2448
    %5015 = vmatprep.subr.mxu0 0.0
    %5016 = vmatpush1.msra.mxu0 %v2447
    %5017 = vmatprep.subr.mxu0 0.0
    %5018 = vmatpush2.msra.mxu0 0.0
    %5019 = vmatprep.subr.mxu0 0.0
    %5020 = vmatpush2.msra.mxu0 0.0
    %5021 = vmatprep.subr.mxu0 0.0
    %5022 = vmatpush2.msra.mxu0 0.0
    %5023 = vmatprep.subr.mxu0 0.0
    %5024 = vmatpush2.msra.mxu0 0.0
    %5025 = vmatprep.subr.mxu0 0.0
    %5026 = vmatpush2.msra.mxu0 0.0
    %5027 = vmatprep.subr.mxu0 0.0
    %5028 = vmatpush2.msra.mxu0 0.0
    %5029 = vmatprep.subr.mxu0 0.0
    %5030 = vmatpush2.msra.mxu0 0.0
    %5031 = vmatprep.subr.mxu0 0.0
    %5032 = vmatpush2.msra.mxu0 0.0
    %5033 = vmatprep.subr.mxu0 0.0
    %5034 = vmatpush2.msra.mxu0 0.0
    %5035 = vmatprep.subr.mxu0 0.0
    %5036 = vmatpush2.msra.mxu0 0.0
    %5037 = vmatprep.subr.mxu0 0.0
    %5038 = vmatpush2.msra.mxu0 0.0
    %5039 = vmatprep.subr.mxu0 0.0
    %5040 = vmatpush2.msra.mxu0 0.0
    %5041 = vmatprep.subr.mxu0 0.0
    %5042 = vmatpush2.msra.mxu0 0.0
    %5043 = vmatprep.subr.mxu0 0.0
    %5044 = vmatpush2.msra.mxu0 0.0
    %5045 = vmatprep.subr.mxu0 0.0
    %5046 = vmatpush2.msra.mxu0 0.0
    %5047 = vmatprep.subr.mxu0 0.0
    %5048 = vmatpush2.msra.mxu0 0.0
    %5049 = vmatprep.mubr.f32.mxu0 0.0
    %5050 = vmatmul.mubr.f32.gmra.mxu0 %v4983
    %v5051 = vpop.f32.mrf.mxu0
    %v5052 = vadd.f32 %v4977, %v5051
    %v5053 = vpop.f32.mrf.mxu0
    %5054 = vdwg.mxu0
    %5055 = vmatprep.subr.mxu0 0.0
    %5056 = vmatpush1.msra.mxu0 0.0
    %5057 = vmatprep.subr.mxu0 0.0
    %5058 = vmatpush1.msra.mxu0 0.0
    %5059 = vmatprep.subr.mxu0 0.0
    %5060 = vmatpush1.msra.mxu0 0.0
    %5061 = vmatprep.subr.mxu0 0.0
    %5062 = vmatpush1.msra.mxu0 0.0
    %5063 = vmatprep.subr.mxu0 0.0
    %5064 = vmatpush1.msra.mxu0 0.0
    %5065 = vmatprep.subr.mxu0 0.0
    %5066 = vmatpush1.msra.mxu0 0.0
    %5067 = vmatprep.subr.mxu0 0.0
    %5068 = vmatpush1.msra.mxu0 0.0
    %5069 = vmatprep.subr.mxu0 0.0
    %5070 = vmatpush1.msra.mxu0 0.0
    %5071 = vmatprep.subr.mxu0 0.0
    %5072 = vmatpush1.msra.mxu0 0.0
    %5073 = vmatprep.subr.mxu0 0.0
    %5074 = vmatpush1.msra.mxu0 0.0
    %5075 = vmatprep.subr.mxu0 0.0
    %5076 = vmatpush1.msra.mxu0 0.0
    %5077 = vmatprep.subr.mxu0 0.0
    %5078 = vmatpush1.msra.mxu0 0.0
    %5079 = vmatprep.subr.mxu0 0.0
    %5080 = vmatpush1.msra.mxu0 0.0
    %5081 = vmatprep.subr.mxu0 0.0
    %5082 = vmatpush1.msra.mxu0 0.0
    %5083 = vmatprep.subr.mxu0 0.0
    %5084 = vmatpush1.msra.mxu0 %v2601
    %5085 = vmatprep.subr.mxu0 0.0
    %5086 = vmatpush1.msra.mxu0 %v2600
    %5087 = vmatprep.subr.mxu0 0.0
    %5088 = vmatpush2.msra.mxu0 0.0
    %5089 = vmatprep.subr.mxu0 0.0
    %5090 = vmatpush2.msra.mxu0 0.0
    %5091 = vmatprep.subr.mxu0 0.0
    %5092 = vmatpush2.msra.mxu0 0.0
    %5093 = vmatprep.subr.mxu0 0.0
    %5094 = vmatpush2.msra.mxu0 0.0
    %5095 = vmatprep.subr.mxu0 0.0
    %5096 = vmatpush2.msra.mxu0 0.0
    %5097 = vmatprep.subr.mxu0 0.0
    %5098 = vmatpush2.msra.mxu0 0.0
    %5099 = vmatprep.subr.mxu0 0.0
    %5100 = vmatpush2.msra.mxu0 0.0
    %5101 = vmatprep.subr.mxu0 0.0
    %5102 = vmatpush2.msra.mxu0 0.0
    %5103 = vmatprep.subr.mxu0 0.0
    %5104 = vmatpush2.msra.mxu0 0.0
    %5105 = vmatprep.subr.mxu0 0.0
    %5106 = vmatpush2.msra.mxu0 0.0
    %5107 = vmatprep.subr.mxu0 0.0
    %5108 = vmatpush2.msra.mxu0 0.0
    %5109 = vmatprep.subr.mxu0 0.0
    %5110 = vmatpush2.msra.mxu0 0.0
    %5111 = vmatprep.subr.mxu0 0.0
    %5112 = vmatpush2.msra.mxu0 0.0
    %5113 = vmatprep.subr.mxu0 0.0
    %5114 = vmatpush2.msra.mxu0 0.0
    %5115 = vmatprep.subr.mxu0 0.0
    %5116 = vmatpush2.msra.mxu0 0.0
    %5117 = vmatprep.subr.mxu0 0.0
    %5118 = vmatpush2.msra.mxu0 0.0
    %5119 = vmatprep.mubr.f32.mxu0 0.0
    %5120 = vmatmul.mubr.f32.gmra.mxu0 %v4741
    %v5121 = vpop.f32.mrf.mxu0
    %v5122 = vadd.f32 0.0, %v5121
    %v5123 = vpop.f32.mrf.mxu0
    %5124 = vdwg.mxu0
    %v5125 = vadd.f32 %v5052, %v5122
    %v5126 = vadd.f32 %v5125, %v2678
    %v5127 = vsel %vm2681, %v5126, -inf
    %5128 = vmax.xlane.f32.xlu0 %v5127
    %v5129 = vpop.xlane.xlu0 %5128
    %vm5130 = vcmp.eq.f32.partialorder %v5126, %v5129
    %v5131 = vsel %vm5130, %v1804, 12.0
    %v5132 = vsel %vm2681, %v5131, inf
    %5133 = vmin.xlane.f32.xlu0 %v5132
    %v5134 = vpop.xlane.xlu0 %5133
    %v5135 = vcvt.f32.s32.to.zero.pseudo %v5134
    %vm5136 = vcmp.gt.f32.partialorder %v1798, 0.5
    %v5137 = vsel %vm5136, %v1794, %v5135
    %5138 = vset.pattern.permute.xlu0 0
    %5139 = vperm.xlu0 %5138, %v5137
    %v5140 = vpop.permute.xlu0 %5139
    %vm5141 = vcmp.eq.s32.totalorder %v1803, %v5140
    %v5142 = vsel %vm5141, 1, 0
    %v5143 = vcvt.s32.f32 %v5142
    %v5145 = vsel %vm1811, %v5143, 0
    %5147 = vmatprep.subr.mxu0 0.0
    %5148 = vmatpush1.msra.mxu0 0.0
    %5149 = vmatprep.subr.mxu0 0.0
    %5150 = vmatpush1.msra.mxu0 0.0
    %5151 = vmatprep.subr.mxu0 0.0
    %5152 = vmatpush1.msra.mxu0 0.0
    %5153 = vmatprep.subr.mxu0 0.0
    %5154 = vmatpush1.msra.mxu0 0.0
    %5155 = vmatprep.subr.mxu0 0.0
    %5156 = vmatpush1.msra.mxu0 0.0
    %5157 = vmatprep.subr.mxu0 0.0
    %5158 = vmatpush1.msra.mxu0 0.0
    %5159 = vmatprep.subr.mxu0 0.0
    %5160 = vmatpush1.msra.mxu0 0.0
    %5161 = vmatprep.subr.mxu0 0.0
    %5162 = vmatpush1.msra.mxu0 0.0
    %5163 = vmatprep.subr.mxu0 0.0
    %5164 = vmatpush1.msra.mxu0 0.0
    %5165 = vmatprep.subr.mxu0 0.0
    %5166 = vmatpush1.msra.mxu0 0.0
    %5167 = vmatprep.subr.mxu0 0.0
    %5168 = vmatpush1.msra.mxu0 0.0
    %5169 = vmatprep.subr.mxu0 0.0
    %5170 = vmatpush1.msra.mxu0 0.0
    %5171 = vmatprep.subr.mxu0 0.0
    %5172 = vmatpush1.msra.mxu0 0.0
    %5173 = vmatprep.subr.mxu0 0.0
    %5174 = vmatpush1.msra.mxu0 0.0
    %5175 = vmatprep.subr.mxu0 0.0
    %5176 = vmatpush1.msra.mxu0 %v1817
    %5177 = vmatprep.subr.mxu0 0.0
    %5178 = vmatpush1.msra.mxu0 %v1799
    %5179 = vmatprep.subr.mxu0 0.0
    %5180 = vmatpush2.msra.mxu0 0.0
    %5181 = vmatprep.subr.mxu0 0.0
    %5182 = vmatpush2.msra.mxu0 0.0
    %5183 = vmatprep.subr.mxu0 0.0
    %5184 = vmatpush2.msra.mxu0 0.0
    %5185 = vmatprep.subr.mxu0 0.0
    %5186 = vmatpush2.msra.mxu0 0.0
    %5187 = vmatprep.subr.mxu0 0.0
    %5188 = vmatpush2.msra.mxu0 0.0
    %5189 = vmatprep.subr.mxu0 0.0
    %5190 = vmatpush2.msra.mxu0 0.0
    %5191 = vmatprep.subr.mxu0 0.0
    %5192 = vmatpush2.msra.mxu0 0.0
    %5193 = vmatprep.subr.mxu0 0.0
    %5194 = vmatpush2.msra.mxu0 0.0
    %5195 = vmatprep.subr.mxu0 0.0
    %5196 = vmatpush2.msra.mxu0 0.0
    %5197 = vmatprep.subr.mxu0 0.0
    %5198 = vmatpush2.msra.mxu0 0.0
    %5199 = vmatprep.subr.mxu0 0.0
    %5200 = vmatpush2.msra.mxu0 0.0
    %5201 = vmatprep.subr.mxu0 0.0
    %5202 = vmatpush2.msra.mxu0 0.0
    %5203 = vmatprep.subr.mxu0 0.0
    %5204 = vmatpush2.msra.mxu0 0.0
    %5205 = vmatprep.subr.mxu0 0.0
    %5206 = vmatpush2.msra.mxu0 0.0
    %5207 = vmatprep.subr.mxu0 0.0
    %5208 = vmatpush2.msra.mxu0 0.0
    %5209 = vmatprep.subr.mxu0 0.0
    %5210 = vmatpush2.msra.mxu0 0.0
    %5211 = vmatprep.mubr.f32.mxu0 0.0
    %5212 = vmatmul.mubr.f32.gmra.mxu0 %v5145
    %v5213 = vpop.f32.mrf.mxu0
    %v5214 = vadd.f32 0.0, %v5213
    %v5215 = vpop.f32.mrf.mxu0
    %5216 = vdwg.mxu0
    %5217 = vmatprep.subr.mxu0 0.0
    %5218 = vmatpush1.msra.mxu0 0.0
    %5219 = vmatprep.subr.mxu0 0.0
    %5220 = vmatpush1.msra.mxu0 0.0
    %5221 = vmatprep.subr.mxu0 0.0
    %5222 = vmatpush1.msra.mxu0 0.0
    %5223 = vmatprep.subr.mxu0 0.0
    %5224 = vmatpush1.msra.mxu0 0.0
    %5225 = vmatprep.subr.mxu0 0.0
    %5226 = vmatpush1.msra.mxu0 0.0
    %5227 = vmatprep.subr.mxu0 0.0
    %5228 = vmatpush1.msra.mxu0 0.0
    %5229 = vmatprep.subr.mxu0 0.0
    %5230 = vmatpush1.msra.mxu0 0.0
    %5231 = vmatprep.subr.mxu0 0.0
    %5232 = vmatpush1.msra.mxu0 0.0
    %5233 = vmatprep.subr.mxu0 0.0
    %5234 = vmatpush1.msra.mxu0 0.0
    %5235 = vmatprep.subr.mxu0 0.0
    %5236 = vmatpush1.msra.mxu0 0.0
    %5237 = vmatprep.subr.mxu0 0.0
    %5238 = vmatpush1.msra.mxu0 0.0
    %5239 = vmatprep.subr.mxu0 0.0
    %5240 = vmatpush1.msra.mxu0 0.0
    %5241 = vmatprep.subr.mxu0 0.0
    %5242 = vmatpush1.msra.mxu0 %v1892
    %5243 = vmatprep.subr.mxu0 0.0
    %5244 = vmatpush1.msra.mxu0 %v1891
    %5245 = vmatprep.subr.mxu0 0.0
    %5246 = vmatpush1.msra.mxu0 %v1890
    %5247 = vmatprep.subr.mxu0 0.0
    %5248 = vmatpush1.msra.mxu0 %v1889
    %5249 = vmatprep.subr.mxu0 0.0
    %5250 = vmatpush2.msra.mxu0 0.0
    %5251 = vmatprep.subr.mxu0 0.0
    %5252 = vmatpush2.msra.mxu0 0.0
    %5253 = vmatprep.subr.mxu0 0.0
    %5254 = vmatpush2.msra.mxu0 0.0
    %5255 = vmatprep.subr.mxu0 0.0
    %5256 = vmatpush2.msra.mxu0 0.0
    %5257 = vmatprep.subr.mxu0 0.0
    %5258 = vmatpush2.msra.mxu0 0.0
    %5259 = vmatprep.subr.mxu0 0.0
    %5260 = vmatpush2.msra.mxu0 0.0
    %5261 = vmatprep.subr.mxu0 0.0
    %5262 = vmatpush2.msra.mxu0 0.0
    %5263 = vmatprep.subr.mxu0 0.0
    %5264 = vmatpush2.msra.mxu0 0.0
    %5265 = vmatprep.subr.mxu0 0.0
    %5266 = vmatpush2.msra.mxu0 0.0
    %5267 = vmatprep.subr.mxu0 0.0
    %5268 = vmatpush2.msra.mxu0 0.0
    %5269 = vmatprep.subr.mxu0 0.0
    %5270 = vmatpush2.msra.mxu0 0.0
    %5271 = vmatprep.subr.mxu0 0.0
    %5272 = vmatpush2.msra.mxu0 0.0
    %5273 = vmatprep.subr.mxu0 0.0
    %5274 = vmatpush2.msra.mxu0 0.0
    %5275 = vmatprep.subr.mxu0 0.0
    %5276 = vmatpush2.msra.mxu0 0.0
    %5277 = vmatprep.subr.mxu0 0.0
    %5278 = vmatpush2.msra.mxu0 0.0
    %5279 = vmatprep.subr.mxu0 0.0
    %5280 = vmatpush2.msra.mxu0 0.0
    %5281 = vmatprep.mubr.f32.mxu0 0.0
    %5282 = vmatmul.mubr.f32.gmra.mxu0 %v4983
    %v5283 = vpop.f32.mrf.mxu0
    %v5284 = vadd.f32 0.0, %v5283
    %v5285 = vpop.f32.mrf.mxu0
    %5286 = vdwg.mxu0
    %v5287 = vadd.f32 %v1754, %v5284
    %v5288 = vadd.f32 %v1762, %v5284
    %v5289 = vadd.f32 %v1761, %v5284
    %v5290 = vadd.f32 %v1763, %v5284
    %v5291 = vadd.f32 %v1771, %v5284
    %v5292 = vadd.f32 %v1779, %v5284
    %v5293 = vadd.f32 %v1778, %v5284
    %v5294 = vadd.f32 %v1780, %v5284
    %v5295 = vtanh.pop %v5287
    %v5296 = vtanh.pop %v5288
    %v5297 = vtanh.pop %v5289
    %v5298 = vtanh.pop %v5290
    %v5299 = vtanh.pop %v5291
    %v5300 = vtanh.pop %v5292
    %v5301 = vtanh.pop %v5293
    %v5302 = vtanh.pop %v5294
    %v5303 = vmul.f32 %v5295, %v1986
    %v5304 = vmul.f32 %v5296, %v1986
    %v5305 = vmul.f32 %v5297, %v1986
    %v5306 = vmul.f32 %v5298, %v1986
    %v5307 = vmul.f32 %v5299, %v1986
    %v5308 = vmul.f32 %v5300, %v1986
    %v5309 = vmul.f32 %v5301, %v1986
    %v5310 = vmul.f32 %v5302, %v1986
    %v5311 = vsel %vm1996, %v5303, 0.0
    %5312 = vadd.xlane.f32.xlu0 %v5311
    %v5313 = vpop.xlane.xlu0 %5312
    %v5314 = vsel %vm1996, %v5304, 0.0
    %5315 = vadd.xlane.f32.xlu0 %v5314
    %v5316 = vpop.xlane.xlu0 %5315
    %v5317 = vsel %vm1996, %v5305, 0.0
    %5318 = vadd.xlane.f32.xlu0 %v5317
    %v5319 = vpop.xlane.xlu0 %5318
    %v5320 = vsel %vm1996, %v5306, 0.0
    %5321 = vadd.xlane.f32.xlu0 %v5320
    %v5322 = vpop.xlane.xlu0 %5321
    %v5323 = vsel %vm1996, %v5307, 0.0
    %5324 = vadd.xlane.f32.xlu0 %v5323
    %v5325 = vpop.xlane.xlu0 %5324
    %v5326 = vsel %vm1996, %v5308, 0.0
    %5327 = vadd.xlane.f32.xlu0 %v5326
    %v5328 = vpop.xlane.xlu0 %5327
    %v5329 = vsel %vm1996, %v5309, 0.0
    %5330 = vadd.xlane.f32.xlu0 %v5329
    %v5331 = vpop.xlane.xlu0 %5330
    %v5332 = vsel %vm1996, %v5310, 0.0
    %5333 = vadd.xlane.f32.xlu0 %v5332
    %v5334 = vpop.xlane.xlu0 %5333
    %v5343 = vlaneseq
    %v5344 = vshrl.u32 %v5343, 7
    %v5345 = vsub.s32 %v1803, %v5344
    %v5346 = vrot.slane %v5313, %v5345
    %v5347 = vlaneseq
    %v5348 = vshrl.u32 %v5347, 7
    %v5349 = vsub.s32 %v1803, %v5348
    %v5350 = vrot.slane %v5316, %v5349
    %v5351 = vlaneseq
    %v5352 = vshrl.u32 %v5351, 7
    %v5353 = vsub.s32 %v1803, %v5352
    %v5354 = vrot.slane %v5319, %v5353
    %v5355 = vlaneseq
    %v5356 = vshrl.u32 %v5355, 7
    %v5357 = vsub.s32 %v1803, %v5356
    %v5358 = vrot.slane %v5322, %v5357
    %v5359 = vlaneseq
    %v5360 = vshrl.u32 %v5359, 7
    %v5361 = vsub.s32 %v1803, %v5360
    %v5362 = vrot.slane %v5325, %v5361
    %v5363 = vlaneseq
    %v5364 = vshrl.u32 %v5363, 7
    %v5365 = vsub.s32 %v1803, %v5364
    %v5366 = vrot.slane %v5328, %v5365
    %v5367 = vlaneseq
    %v5368 = vshrl.u32 %v5367, 7
    %v5369 = vsub.s32 %v1803, %v5368
    %v5370 = vrot.slane %v5331, %v5369
    %v5371 = vlaneseq
    %v5372 = vshrl.u32 %v5371, 7
    %v5373 = vsub.s32 %v1803, %v5372
    %v5374 = vrot.slane %v5334, %v5373
    %v5375 = vsel %vm2062, %v5350, %v5346
    %v5376 = vsel %vm2064, %v5354, %v5375
    %v5377 = vsel %vm2066, %v5358, %v5376
    %v5378 = vsel %vm2068, %v5362, %v5377
    %v5379 = vsel %vm2070, %v5366, %v5378
    %v5380 = vsel %vm2072, %v5370, %v5379
    %v5381 = vsel %vm2074, %v5374, %v5380
    %v5383 = vsel %vm2021, %v5381, -1e+10
    %v5384 = vsel %vm2078, %v5383, -inf
    %v5385 = vrot.slane %v5384, 4
    %v5386 = vmax.f32 %v5384, %v5385
    %v5387 = vrot.slane %v5386, 2
    %v5388 = vmax.f32 %v5386, %v5387
    %v5389 = vrot.slane %v5388, 1
    %v5390 = vmax.f32 %v5388, %v5389
    %v5391 = vsub.f32 %v5383, %v5390
    %v5392 = vmul.f32 %v5391, 1.442695
    %v5393 = vpow.pop %v5392
    %v5394 = vsel %vm2078, %v5393, 0.0
    %v5395 = vrot.slane %v5394, 4
    %v5396 = vadd.f32 %v5394, %v5395
    %v5397 = vrot.slane %v5396, 2
    %v5398 = vadd.f32 %v5396, %v5397
    %v5399 = vrot.slane %v5398, 1
    %v5400 = vadd.f32 %v5398, %v5399
    %v5401 = vrcp.pop %v5400
    %v5402 = vmul.f32 %v5393, %v5401
    %v5403 = vlaneseq
    %v5404 = vshrl.u32 %v5403, 7
    %v5405 = vsub.s32 0, %v5404
    %v5406 = vrot.slane %v5402, %v5405
    %5408 = vbcast.lane.b32.xlu0 %v5406, 256
    %v5409 = vpop.permute.xlu0 %5408
    %v5410 = vlaneseq
    %v5411 = vshrl.u32 %v5410, 7
    %v5412 = vsub.s32 1, %v5411
    %v5413 = vrot.slane %v5402, %v5412
    %5415 = vbcast.lane.b32.xlu0 %v5413, 256
    %v5416 = vpop.permute.xlu0 %5415
    %v5417 = vlaneseq
    %v5418 = vshrl.u32 %v5417, 7
    %v5419 = vsub.s32 2, %v5418
    %v5420 = vrot.slane %v5402, %v5419
    %5422 = vbcast.lane.b32.xlu0 %v5420, 256
    %v5423 = vpop.permute.xlu0 %5422
    %v5424 = vlaneseq
    %v5425 = vshrl.u32 %v5424, 7
    %v5426 = vsub.s32 3, %v5425
    %v5427 = vrot.slane %v5402, %v5426
    %5429 = vbcast.lane.b32.xlu0 %v5427, 256
    %v5430 = vpop.permute.xlu0 %5429
    %v5431 = vlaneseq
    %v5432 = vshrl.u32 %v5431, 7
    %v5433 = vsub.s32 4, %v5432
    %v5434 = vrot.slane %v5402, %v5433
    %5436 = vbcast.lane.b32.xlu0 %v5434, 256
    %v5437 = vpop.permute.xlu0 %5436
    %v5438 = vlaneseq
    %v5439 = vshrl.u32 %v5438, 7
    %v5440 = vsub.s32 5, %v5439
    %v5441 = vrot.slane %v5402, %v5440
    %5443 = vbcast.lane.b32.xlu0 %v5441, 256
    %v5444 = vpop.permute.xlu0 %5443
    %v5445 = vlaneseq
    %v5446 = vshrl.u32 %v5445, 7
    %v5447 = vsub.s32 6, %v5446
    %v5448 = vrot.slane %v5402, %v5447
    %5450 = vbcast.lane.b32.xlu0 %v5448, 256
    %v5451 = vpop.permute.xlu0 %5450
    %v5452 = vlaneseq
    %v5453 = vshrl.u32 %v5452, 7
    %v5454 = vsub.s32 7, %v5453
    %v5455 = vrot.slane %v5402, %v5454
    %5457 = vbcast.lane.b32.xlu0 %v5455, 256
    %v5458 = vpop.permute.xlu0 %5457
    %v5459 = vmul.f32 %v5409, %v533
    %v5460 = vmul.f32 %v5416, %v675
    %v5461 = vmul.f32 %v5423, %v817
    %v5462 = vmul.f32 %v5430, %v959
    %v5463 = vmul.f32 %v5437, %v1101
    %v5464 = vmul.f32 %v5444, %v1243
    %v5465 = vmul.f32 %v5451, %v1385
    %v5466 = vmul.f32 %v5458, %v1527
    %v5467 = vsel %vm1996, %v5459, 0.0
    %v5468 = vsel %vm1996, %v5460, 0.0
    %v5469 = vadd.f32 %v5467, %v5468
    %v5470 = vsel %vm1996, %v5461, 0.0
    %v5471 = vadd.f32 %v5469, %v5470
    %v5472 = vsel %vm1996, %v5462, 0.0
    %v5473 = vadd.f32 %v5471, %v5472
    %v5474 = vsel %vm1996, %v5463, 0.0
    %v5475 = vadd.f32 %v5473, %v5474
    %v5476 = vsel %vm1996, %v5464, 0.0
    %v5477 = vadd.f32 %v5475, %v5476
    %v5478 = vsel %vm1996, %v5465, 0.0
    %v5479 = vadd.f32 %v5477, %v5478
    %v5480 = vsel %vm1996, %v5466, 0.0
    %v5481 = vadd.f32 %v5479, %v5480
    %v5483 = vsel %vm401, %v5481, 0
    %5485 = vmatprep.subr.mxu0 0.0
    %5486 = vmatpush1.msra.mxu0 0.0
    %5487 = vmatprep.subr.mxu0 0.0
    %5488 = vmatpush1.msra.mxu0 0.0
    %5489 = vmatprep.subr.mxu0 0.0
    %5490 = vmatpush1.msra.mxu0 0.0
    %5491 = vmatprep.subr.mxu0 0.0
    %5492 = vmatpush1.msra.mxu0 0.0
    %5493 = vmatprep.subr.mxu0 0.0
    %5494 = vmatpush1.msra.mxu0 0.0
    %5495 = vmatprep.subr.mxu0 0.0
    %5496 = vmatpush1.msra.mxu0 0.0
    %5497 = vmatprep.subr.mxu0 0.0
    %5498 = vmatpush1.msra.mxu0 0.0
    %5499 = vmatprep.subr.mxu0 0.0
    %5500 = vmatpush1.msra.mxu0 0.0
    %5501 = vmatprep.subr.mxu0 0.0
    %5502 = vmatpush1.msra.mxu0 0.0
    %5503 = vmatprep.subr.mxu0 0.0
    %5504 = vmatpush1.msra.mxu0 0.0
    %5505 = vmatprep.subr.mxu0 0.0
    %5506 = vmatpush1.msra.mxu0 0.0
    %5507 = vmatprep.subr.mxu0 0.0
    %5508 = vmatpush1.msra.mxu0 0.0
    %5509 = vmatprep.subr.mxu0 0.0
    %5510 = vmatpush1.msra.mxu0 %v2182
    %5511 = vmatprep.subr.mxu0 0.0
    %5512 = vmatpush1.msra.mxu0 %v2181
    %5513 = vmatprep.subr.mxu0 0.0
    %5514 = vmatpush1.msra.mxu0 %v2180
    %5515 = vmatprep.subr.mxu0 0.0
    %5516 = vmatpush1.msra.mxu0 %v2179
    %5517 = vmatprep.subr.mxu0 0.0
    %5518 = vmatpush2.msra.mxu0 0.0
    %5519 = vmatprep.subr.mxu0 0.0
    %5520 = vmatpush2.msra.mxu0 0.0
    %5521 = vmatprep.subr.mxu0 0.0
    %5522 = vmatpush2.msra.mxu0 0.0
    %5523 = vmatprep.subr.mxu0 0.0
    %5524 = vmatpush2.msra.mxu0 0.0
    %5525 = vmatprep.subr.mxu0 0.0
    %5526 = vmatpush2.msra.mxu0 0.0
    %5527 = vmatprep.subr.mxu0 0.0
    %5528 = vmatpush2.msra.mxu0 0.0
    %5529 = vmatprep.subr.mxu0 0.0
    %5530 = vmatpush2.msra.mxu0 0.0
    %5531 = vmatprep.subr.mxu0 0.0
    %5532 = vmatpush2.msra.mxu0 0.0
    %5533 = vmatprep.subr.mxu0 0.0
    %5534 = vmatpush2.msra.mxu0 0.0
    %5535 = vmatprep.subr.mxu0 0.0
    %5536 = vmatpush2.msra.mxu0 0.0
    %5537 = vmatprep.subr.mxu0 0.0
    %5538 = vmatpush2.msra.mxu0 0.0
    %5539 = vmatprep.subr.mxu0 0.0
    %5540 = vmatpush2.msra.mxu0 0.0
    %5541 = vmatprep.subr.mxu0 0.0
    %5542 = vmatpush2.msra.mxu0 0.0
    %5543 = vmatprep.subr.mxu0 0.0
    %5544 = vmatpush2.msra.mxu0 0.0
    %5545 = vmatprep.subr.mxu0 0.0
    %5546 = vmatpush2.msra.mxu0 0.0
    %5547 = vmatprep.subr.mxu0 0.0
    %5548 = vmatpush2.msra.mxu0 0.0
    %5549 = vmatprep.mubr.f32.mxu0 0.0
    %5550 = vmatmul.mubr.f32.gmra.mxu0 %v5483
    %v5551 = vpop.f32.mrf.mxu0
    %v5552 = vadd.f32 0.0, %v5551
    %v5553 = vpop.f32.mrf.mxu0
    %5554 = vdwg.mxu0
    %v5556 = vsel %vm256, %v5214, 0
    %5558 = vmatprep.subr.mxu0 0.0
    %5559 = vmatpush1.msra.mxu0 0.0
    %5560 = vmatprep.subr.mxu0 0.0
    %5561 = vmatpush1.msra.mxu0 0.0
    %5562 = vmatprep.subr.mxu0 0.0
    %5563 = vmatpush1.msra.mxu0 0.0
    %5564 = vmatprep.subr.mxu0 0.0
    %5565 = vmatpush1.msra.mxu0 0.0
    %5566 = vmatprep.subr.mxu0 0.0
    %5567 = vmatpush1.msra.mxu0 0.0
    %5568 = vmatprep.subr.mxu0 0.0
    %5569 = vmatpush1.msra.mxu0 0.0
    %5570 = vmatprep.subr.mxu0 0.0
    %5571 = vmatpush1.msra.mxu0 0.0
    %5572 = vmatprep.subr.mxu0 0.0
    %5573 = vmatpush1.msra.mxu0 0.0
    %5574 = vmatprep.subr.mxu0 0.0
    %5575 = vmatpush1.msra.mxu0 0.0
    %5576 = vmatprep.subr.mxu0 0.0
    %5577 = vmatpush1.msra.mxu0 0.0
    %5578 = vmatprep.subr.mxu0 0.0
    %5579 = vmatpush1.msra.mxu0 0.0
    %5580 = vmatprep.subr.mxu0 0.0
    %5581 = vmatpush1.msra.mxu0 0.0
    %5582 = vmatprep.subr.mxu0 0.0
    %5583 = vmatpush1.msra.mxu0 0.0
    %5584 = vmatprep.subr.mxu0 0.0
    %5585 = vmatpush1.msra.mxu0 0.0
    %5586 = vmatprep.subr.mxu0 0.0
    %5587 = vmatpush1.msra.mxu0 %v2178
    %5588 = vmatprep.subr.mxu0 0.0
    %5589 = vmatpush1.msra.mxu0 %v2177
    %5590 = vmatprep.subr.mxu0 0.0
    %5591 = vmatpush2.msra.mxu0 0.0
    %5592 = vmatprep.subr.mxu0 0.0
    %5593 = vmatpush2.msra.mxu0 0.0
    %5594 = vmatprep.subr.mxu0 0.0
    %5595 = vmatpush2.msra.mxu0 0.0
    %5596 = vmatprep.subr.mxu0 0.0
    %5597 = vmatpush2.msra.mxu0 0.0
    %5598 = vmatprep.subr.mxu0 0.0
    %5599 = vmatpush2.msra.mxu0 0.0
    %5600 = vmatprep.subr.mxu0 0.0
    %5601 = vmatpush2.msra.mxu0 0.0
    %5602 = vmatprep.subr.mxu0 0.0
    %5603 = vmatpush2.msra.mxu0 0.0
    %5604 = vmatprep.subr.mxu0 0.0
    %5605 = vmatpush2.msra.mxu0 0.0
    %5606 = vmatprep.subr.mxu0 0.0
    %5607 = vmatpush2.msra.mxu0 0.0
    %5608 = vmatprep.subr.mxu0 0.0
    %5609 = vmatpush2.msra.mxu0 0.0
    %5610 = vmatprep.subr.mxu0 0.0
    %5611 = vmatpush2.msra.mxu0 0.0
    %5612 = vmatprep.subr.mxu0 0.0
    %5613 = vmatpush2.msra.mxu0 0.0
    %5614 = vmatprep.subr.mxu0 0.0
    %5615 = vmatpush2.msra.mxu0 0.0
    %5616 = vmatprep.subr.mxu0 0.0
    %5617 = vmatpush2.msra.mxu0 0.0
    %5618 = vmatprep.subr.mxu0 0.0
    %5619 = vmatpush2.msra.mxu0 0.0
    %5620 = vmatprep.subr.mxu0 0.0
    %5621 = vmatpush2.msra.mxu0 0.0
    %5622 = vmatprep.mubr.f32.mxu0 0.0
    %5623 = vmatmul.mubr.f32.gmra.mxu0 %v5556
    %v5624 = vpop.f32.mrf.mxu0
    %v5625 = vadd.f32 %v5552, %v5624
    %v5626 = vpop.f32.mrf.mxu0
    %5627 = vdwg.mxu0
    %v5628 = vadd.f32 %v5625, %v2334
    %5629 = vmatprep.subr.mxu0 0.0
    %5630 = vmatpush1.msra.mxu0 0.0
    %5631 = vmatprep.subr.mxu0 0.0
    %5632 = vmatpush1.msra.mxu0 0.0
    %5633 = vmatprep.subr.mxu0 0.0
    %5634 = vmatpush1.msra.mxu0 0.0
    %5635 = vmatprep.subr.mxu0 0.0
    %5636 = vmatpush1.msra.mxu0 0.0
    %5637 = vmatprep.subr.mxu0 0.0
    %5638 = vmatpush1.msra.mxu0 0.0
    %5639 = vmatprep.subr.mxu0 0.0
    %5640 = vmatpush1.msra.mxu0 0.0
    %5641 = vmatprep.subr.mxu0 0.0
    %5642 = vmatpush1.msra.mxu0 0.0
    %5643 = vmatprep.subr.mxu0 0.0
    %5644 = vmatpush1.msra.mxu0 0.0
    %5645 = vmatprep.subr.mxu0 0.0
    %5646 = vmatpush1.msra.mxu0 0.0
    %5647 = vmatprep.subr.mxu0 0.0
    %5648 = vmatpush1.msra.mxu0 0.0
    %5649 = vmatprep.subr.mxu0 0.0
    %5650 = vmatpush1.msra.mxu0 0.0
    %5651 = vmatprep.subr.mxu0 0.0
    %5652 = vmatpush1.msra.mxu0 0.0
    %5653 = vmatprep.subr.mxu0 0.0
    %5654 = vmatpush1.msra.mxu0 %v2340
    %5655 = vmatprep.subr.mxu0 0.0
    %5656 = vmatpush1.msra.mxu0 %v2339
    %5657 = vmatprep.subr.mxu0 0.0
    %5658 = vmatpush1.msra.mxu0 %v2338
    %5659 = vmatprep.subr.mxu0 0.0
    %5660 = vmatpush1.msra.mxu0 %v2337
    %5661 = vmatprep.subr.mxu0 0.0
    %5662 = vmatpush2.msra.mxu0 0.0
    %5663 = vmatprep.subr.mxu0 0.0
    %5664 = vmatpush2.msra.mxu0 0.0
    %5665 = vmatprep.subr.mxu0 0.0
    %5666 = vmatpush2.msra.mxu0 0.0
    %5667 = vmatprep.subr.mxu0 0.0
    %5668 = vmatpush2.msra.mxu0 0.0
    %5669 = vmatprep.subr.mxu0 0.0
    %5670 = vmatpush2.msra.mxu0 0.0
    %5671 = vmatprep.subr.mxu0 0.0
    %5672 = vmatpush2.msra.mxu0 0.0
    %5673 = vmatprep.subr.mxu0 0.0
    %5674 = vmatpush2.msra.mxu0 0.0
    %5675 = vmatprep.subr.mxu0 0.0
    %5676 = vmatpush2.msra.mxu0 0.0
    %5677 = vmatprep.subr.mxu0 0.0
    %5678 = vmatpush2.msra.mxu0 0.0
    %5679 = vmatprep.subr.mxu0 0.0
    %5680 = vmatpush2.msra.mxu0 0.0
    %5681 = vmatprep.subr.mxu0 0.0
    %5682 = vmatpush2.msra.mxu0 0.0
    %5683 = vmatprep.subr.mxu0 0.0
    %5684 = vmatpush2.msra.mxu0 0.0
    %5685 = vmatprep.subr.mxu0 0.0
    %5686 = vmatpush2.msra.mxu0 0.0
    %5687 = vmatprep.subr.mxu0 0.0
    %5688 = vmatpush2.msra.mxu0 0.0
    %5689 = vmatprep.subr.mxu0 0.0
    %5690 = vmatpush2.msra.mxu0 0.0
    %5691 = vmatprep.subr.mxu0 0.0
    %5692 = vmatpush2.msra.mxu0 0.0
    %5693 = vmatprep.mubr.f32.mxu0 0.0
    %5694 = vmatmul.mubr.f32.gmra.mxu0 %v4983
    %v5695 = vpop.f32.mrf.mxu0
    %v5696 = vadd.f32 %v2346, %v5695
    %v5697 = vpop.f32.mrf.mxu0
    %5698 = vdwg.mxu0
    %v5699 = vadd.f32 %v5628, %v5696
    %v5700 = vxor.u32 %v5699, 2147483648
    %v5701 = vmul.f32 %v5700, 1.442695
    %v5702 = vpow.pop %v5701
    %v5703 = vadd.f32 %v5702, 1.0
    %v5704 = vrcp.pop %v5703
    %v5705 = vmul.f32 1.0, %v5704
    %5707 = vrot.lane.b32.xlu0 %v5696, 64
    %v5708 = vpop.permute.xlu0 %5707
    %v5710 = vmul.f32 %v5705, %v5708
    %5712 = vrot.lane.b32.xlu0 %v5710, 64
    %v5713 = vpop.permute.xlu0 %5712
    %v5715 = vadd.f32 %v5628, %v5713
    %v5716 = vtanh.pop %v5715
    %v5717 = vsub.f32 1.0, %v5705
    %5719 = vrot.lane.b32.xlu0 %v5716, 96
    %v5720 = vpop.permute.xlu0 %5719
    %v5722 = vmul.f32 %v5717, %v5720
    %v5723 = vmul.f32 %v5705, %v4909
    %v5724 = vadd.f32 %v5722, %v5723
    %5725 = vmatprep.subr.mxu0 0.0
    %5726 = vmatpush1.msra.mxu0 0.0
    %5727 = vmatprep.subr.mxu0 0.0
    %5728 = vmatpush1.msra.mxu0 0.0
    %5729 = vmatprep.subr.mxu0 0.0
    %5730 = vmatpush1.msra.mxu0 0.0
    %5731 = vmatprep.subr.mxu0 0.0
    %5732 = vmatpush1.msra.mxu0 0.0
    %5733 = vmatprep.subr.mxu0 0.0
    %5734 = vmatpush1.msra.mxu0 0.0
    %5735 = vmatprep.subr.mxu0 0.0
    %5736 = vmatpush1.msra.mxu0 0.0
    %5737 = vmatprep.subr.mxu0 0.0
    %5738 = vmatpush1.msra.mxu0 0.0
    %5739 = vmatprep.subr.mxu0 0.0
    %5740 = vmatpush1.msra.mxu0 0.0
    %5741 = vmatprep.subr.mxu0 0.0
    %5742 = vmatpush1.msra.mxu0 0.0
    %5743 = vmatprep.subr.mxu0 0.0
    %5744 = vmatpush1.msra.mxu0 0.0
    %5745 = vmatprep.subr.mxu0 0.0
    %5746 = vmatpush1.msra.mxu0 0.0
    %5747 = vmatprep.subr.mxu0 0.0
    %5748 = vmatpush1.msra.mxu0 0.0
    %5749 = vmatprep.subr.mxu0 0.0
    %5750 = vmatpush1.msra.mxu0 %v2454
    %5751 = vmatprep.subr.mxu0 0.0
    %5752 = vmatpush1.msra.mxu0 %v2453
    %5753 = vmatprep.subr.mxu0 0.0
    %5754 = vmatpush1.msra.mxu0 %v2452
    %5755 = vmatprep.subr.mxu0 0.0
    %5756 = vmatpush1.msra.mxu0 %v2451
    %5757 = vmatprep.subr.mxu0 0.0
    %5758 = vmatpush2.msra.mxu0 0.0
    %5759 = vmatprep.subr.mxu0 0.0
    %5760 = vmatpush2.msra.mxu0 0.0
    %5761 = vmatprep.subr.mxu0 0.0
    %5762 = vmatpush2.msra.mxu0 0.0
    %5763 = vmatprep.subr.mxu0 0.0
    %5764 = vmatpush2.msra.mxu0 0.0
    %5765 = vmatprep.subr.mxu0 0.0
    %5766 = vmatpush2.msra.mxu0 0.0
    %5767 = vmatprep.subr.mxu0 0.0
    %5768 = vmatpush2.msra.mxu0 0.0
    %5769 = vmatprep.subr.mxu0 0.0
    %5770 = vmatpush2.msra.mxu0 0.0
    %5771 = vmatprep.subr.mxu0 0.0
    %5772 = vmatpush2.msra.mxu0 0.0
    %5773 = vmatprep.subr.mxu0 0.0
    %5774 = vmatpush2.msra.mxu0 0.0
    %5775 = vmatprep.subr.mxu0 0.0
    %5776 = vmatpush2.msra.mxu0 0.0
    %5777 = vmatprep.subr.mxu0 0.0
    %5778 = vmatpush2.msra.mxu0 0.0
    %5779 = vmatprep.subr.mxu0 0.0
    %5780 = vmatpush2.msra.mxu0 0.0
    %5781 = vmatprep.subr.mxu0 0.0
    %5782 = vmatpush2.msra.mxu0 0.0
    %5783 = vmatprep.subr.mxu0 0.0
    %5784 = vmatpush2.msra.mxu0 0.0
    %5785 = vmatprep.subr.mxu0 0.0
    %5786 = vmatpush2.msra.mxu0 0.0
    %5787 = vmatprep.subr.mxu0 0.0
    %5788 = vmatpush2.msra.mxu0 0.0
    %5789 = vmatprep.mubr.f32.mxu0 0.0
    %5790 = vmatmul.mubr.f32.gmra.mxu0 %v5483
    %v5791 = vpop.f32.mrf.mxu0
    %v5792 = vadd.f32 0.0, %v5791
    %v5793 = vpop.f32.mrf.mxu0
    %5794 = vdwg.mxu0
    %5796 = vrot.lane.b32.xlu0 %v5724, 96
    %v5797 = vpop.permute.xlu0 %5796
    %v5798 = vsel %vm401, %v5797, 0
    %5800 = vmatprep.subr.mxu0 0.0
    %5801 = vmatpush1.msra.mxu0 0.0
    %5802 = vmatprep.subr.mxu0 0.0
    %5803 = vmatpush1.msra.mxu0 0.0
    %5804 = vmatprep.subr.mxu0 0.0
    %5805 = vmatpush1.msra.mxu0 0.0
    %5806 = vmatprep.subr.mxu0 0.0
    %5807 = vmatpush1.msra.mxu0 0.0
    %5808 = vmatprep.subr.mxu0 0.0
    %5809 = vmatpush1.msra.mxu0 0.0
    %5810 = vmatprep.subr.mxu0 0.0
    %5811 = vmatpush1.msra.mxu0 0.0
    %5812 = vmatprep.subr.mxu0 0.0
    %5813 = vmatpush1.msra.mxu0 0.0
    %5814 = vmatprep.subr.mxu0 0.0
    %5815 = vmatpush1.msra.mxu0 0.0
    %5816 = vmatprep.subr.mxu0 0.0
    %5817 = vmatpush1.msra.mxu0 0.0
    %5818 = vmatprep.subr.mxu0 0.0
    %5819 = vmatpush1.msra.mxu0 0.0
    %5820 = vmatprep.subr.mxu0 0.0
    %5821 = vmatpush1.msra.mxu0 0.0
    %5822 = vmatprep.subr.mxu0 0.0
    %5823 = vmatpush1.msra.mxu0 0.0
    %5824 = vmatprep.subr.mxu0 0.0
    %5825 = vmatpush1.msra.mxu0 %v2450
    %5826 = vmatprep.subr.mxu0 0.0
    %5827 = vmatpush1.msra.mxu0 %v2449
    %5828 = vmatprep.subr.mxu0 0.0
    %5829 = vmatpush1.msra.mxu0 %v2448
    %5830 = vmatprep.subr.mxu0 0.0
    %5831 = vmatpush1.msra.mxu0 %v2447
    %5832 = vmatprep.subr.mxu0 0.0
    %5833 = vmatpush2.msra.mxu0 0.0
    %5834 = vmatprep.subr.mxu0 0.0
    %5835 = vmatpush2.msra.mxu0 0.0
    %5836 = vmatprep.subr.mxu0 0.0
    %5837 = vmatpush2.msra.mxu0 0.0
    %5838 = vmatprep.subr.mxu0 0.0
    %5839 = vmatpush2.msra.mxu0 0.0
    %5840 = vmatprep.subr.mxu0 0.0
    %5841 = vmatpush2.msra.mxu0 0.0
    %5842 = vmatprep.subr.mxu0 0.0
    %5843 = vmatpush2.msra.mxu0 0.0
    %5844 = vmatprep.subr.mxu0 0.0
    %5845 = vmatpush2.msra.mxu0 0.0
    %5846 = vmatprep.subr.mxu0 0.0
    %5847 = vmatpush2.msra.mxu0 0.0
    %5848 = vmatprep.subr.mxu0 0.0
    %5849 = vmatpush2.msra.mxu0 0.0
    %5850 = vmatprep.subr.mxu0 0.0
    %5851 = vmatpush2.msra.mxu0 0.0
    %5852 = vmatprep.subr.mxu0 0.0
    %5853 = vmatpush2.msra.mxu0 0.0
    %5854 = vmatprep.subr.mxu0 0.0
    %5855 = vmatpush2.msra.mxu0 0.0
    %5856 = vmatprep.subr.mxu0 0.0
    %5857 = vmatpush2.msra.mxu0 0.0
    %5858 = vmatprep.subr.mxu0 0.0
    %5859 = vmatpush2.msra.mxu0 0.0
    %5860 = vmatprep.subr.mxu0 0.0
    %5861 = vmatpush2.msra.mxu0 0.0
    %5862 = vmatprep.subr.mxu0 0.0
    %5863 = vmatpush2.msra.mxu0 0.0
    %5864 = vmatprep.mubr.f32.mxu0 0.0
    %5865 = vmatmul.mubr.f32.gmra.mxu0 %v5798
    %v5866 = vpop.f32.mrf.mxu0
    %v5867 = vadd.f32 %v5792, %v5866
    %v5868 = vpop.f32.mrf.mxu0
    %5869 = vdwg.mxu0
    %5870 = vmatprep.subr.mxu0 0.0
    %5871 = vmatpush1.msra.mxu0 0.0
    %5872 = vmatprep.subr.mxu0 0.0
    %5873 = vmatpush1.msra.mxu0 0.0
    %5874 = vmatprep.subr.mxu0 0.0
    %5875 = vmatpush1.msra.mxu0 0.0
    %5876 = vmatprep.subr.mxu0 0.0
    %5877 = vmatpush1.msra.mxu0 0.0
    %5878 = vmatprep.subr.mxu0 0.0
    %5879 = vmatpush1.msra.mxu0 0.0
    %5880 = vmatprep.subr.mxu0 0.0
    %5881 = vmatpush1.msra.mxu0 0.0
    %5882 = vmatprep.subr.mxu0 0.0
    %5883 = vmatpush1.msra.mxu0 0.0
    %5884 = vmatprep.subr.mxu0 0.0
    %5885 = vmatpush1.msra.mxu0 0.0
    %5886 = vmatprep.subr.mxu0 0.0
    %5887 = vmatpush1.msra.mxu0 0.0
    %5888 = vmatprep.subr.mxu0 0.0
    %5889 = vmatpush1.msra.mxu0 0.0
    %5890 = vmatprep.subr.mxu0 0.0
    %5891 = vmatpush1.msra.mxu0 0.0
    %5892 = vmatprep.subr.mxu0 0.0
    %5893 = vmatpush1.msra.mxu0 0.0
    %5894 = vmatprep.subr.mxu0 0.0
    %5895 = vmatpush1.msra.mxu0 0.0
    %5896 = vmatprep.subr.mxu0 0.0
    %5897 = vmatpush1.msra.mxu0 0.0
    %5898 = vmatprep.subr.mxu0 0.0
    %5899 = vmatpush1.msra.mxu0 %v2601
    %5900 = vmatprep.subr.mxu0 0.0
    %5901 = vmatpush1.msra.mxu0 %v2600
    %5902 = vmatprep.subr.mxu0 0.0
    %5903 = vmatpush2.msra.mxu0 0.0
    %5904 = vmatprep.subr.mxu0 0.0
    %5905 = vmatpush2.msra.mxu0 0.0
    %5906 = vmatprep.subr.mxu0 0.0
    %5907 = vmatpush2.msra.mxu0 0.0
    %5908 = vmatprep.subr.mxu0 0.0
    %5909 = vmatpush2.msra.mxu0 0.0
    %5910 = vmatprep.subr.mxu0 0.0
    %5911 = vmatpush2.msra.mxu0 0.0
    %5912 = vmatprep.subr.mxu0 0.0
    %5913 = vmatpush2.msra.mxu0 0.0
    %5914 = vmatprep.subr.mxu0 0.0
    %5915 = vmatpush2.msra.mxu0 0.0
    %5916 = vmatprep.subr.mxu0 0.0
    %5917 = vmatpush2.msra.mxu0 0.0
    %5918 = vmatprep.subr.mxu0 0.0
    %5919 = vmatpush2.msra.mxu0 0.0
    %5920 = vmatprep.subr.mxu0 0.0
    %5921 = vmatpush2.msra.mxu0 0.0
    %5922 = vmatprep.subr.mxu0 0.0
    %5923 = vmatpush2.msra.mxu0 0.0
    %5924 = vmatprep.subr.mxu0 0.0
    %5925 = vmatpush2.msra.mxu0 0.0
    %5926 = vmatprep.subr.mxu0 0.0
    %5927 = vmatpush2.msra.mxu0 0.0
    %5928 = vmatprep.subr.mxu0 0.0
    %5929 = vmatpush2.msra.mxu0 0.0
    %5930 = vmatprep.subr.mxu0 0.0
    %5931 = vmatpush2.msra.mxu0 0.0
    %5932 = vmatprep.subr.mxu0 0.0
    %5933 = vmatpush2.msra.mxu0 0.0
    %5934 = vmatprep.mubr.f32.mxu0 0.0
    %5935 = vmatmul.mubr.f32.gmra.mxu0 %v5556
    %v5936 = vpop.f32.mrf.mxu0
    %v5937 = vadd.f32 0.0, %v5936
    %v5938 = vpop.f32.mrf.mxu0
    %5939 = vdwg.mxu0
    %v5940 = vadd.f32 %v5867, %v5937
    %v5941 = vadd.f32 %v5940, %v2678
    %5942 = vst.msk [vmem:[#allocation23] sm:$0x3] %vm2681, 0.0
    %5943 = vst.msk [vmem:[#allocation23 + $0x2] sm:$0x3] %vm2681, %v2680
    %5944 = vst.msk [vmem:[#allocation23 + $0x4] sm:$0x3] %vm2681, %v3496
    %5945 = vst.msk [vmem:[#allocation23 + $0x6] sm:$0x3] %vm2681, %v4311
    %5946 = vst.msk [vmem:[#allocation23 + $0x8] sm:$0x3] %vm2681, %v5126
    %5947 = vst.msk [vmem:[#allocation23 + $0xa] sm:$0x3] %vm2681, %v5941
    %5948 = vst.msk [vmem:[%s26] sm:$0xff] %vm2078, 0.0
    %5949 = vst.msk [vmem:[%s26 + $0x8] sm:$0xff] %vm2078, %v2097
    %5950 = vst.msk [vmem:[%s26 + $0x10] sm:$0xff] %vm2078, %v2957
    %5951 = vst.msk [vmem:[%s26 + $0x18] sm:$0xff] %vm2078, %v3772
    %5952 = vst.msk [vmem:[%s26 + $0x20] sm:$0xff] %vm2078, %v4587
    %5953 = vst.msk [vmem:[%s26 + $0x28] sm:$0xff] %vm2078, %v5402
    // Predicated region
    $region154: #{tpu_custom_call.1} parent=1 // pred_check
      _
    $region155: #{tpu_custom_call.1} parent=1 // pred_check_branch
      %5955 = sbr.rel (0) target = $region157
    $region156: #{tpu_custom_call.1} parent=1 // pred_region
      %s5957 = ssub.s32 192, 192
      %5958 = vsyncadd [#allocation4], %s5957
      %s5959 = sshll.u32 [#allocation23], 4
      %s5960 = int_to_ptr.vmem [resolvable:$true] %s5959
      %5965 = dma.vmem_to_hbm [thread:$0]  %s5960, 192, %s25, [#allocation4], 32, 32, 2
    $region157: #{tpu_custom_call.1} parent=1 // pred_fallthru
      _
    // Predicated region
    $region158: #{tpu_custom_call.1} parent=1 // pred_check
      _
    $region159: #{tpu_custom_call.1} parent=1 // pred_check_branch
      %5967 = sbr.rel (0) target = $region161
    $region160: #{tpu_custom_call.1} parent=1 // pred_region
      _
    $region161: #{tpu_custom_call.1} parent=1 // pred_fallthru
      _
    // Predicated region
    $region162: #{tpu_custom_call.1} parent=1 // pred_check
      _
    $region163: #{tpu_custom_call.1} parent=1 // pred_check_branch
      %5969 = sbr.rel (0) target = $region165
    $region164: #{tpu_custom_call.1} parent=1 // pred_region
      %5970 = dma.done [#allocation4], 192
    $region165: #{tpu_custom_call.1} parent=1 // pred_fallthru
      _
    // Predicated region
    $region166: #{tpu_custom_call.1} parent=1 // pred_check
      _
    $region167: #{tpu_custom_call.1} parent=1 // pred_check_branch
      %5972 = sbr.rel (0) target = $region169
    $region168: #{tpu_custom_call.1} parent=1 // pred_region
      _
    $region169: #{tpu_custom_call.1} parent=1 // pred_fallthru
      _
    %5973 = vsyncpa [#allocation3], 1
    %5974 = vsyncpa [#allocation6], 1
    %5975 = vsyncpa [#allocation9], 1
    %5976 = vsyncpa [#allocation12], 1
    %5977 = vsyncpa [#allocation15], 1
    %5978 = vsyncpa [#allocation18], 1
    %5979 = vsyncpa [#allocation21], 1
    %5980 = vsyncpa [#allocation4], 1

</llo_original>
